<compile_context>
chip_gen: v7x
topology: tpu7x:2x2x1
jax: 0.10.0
libtpu: 0.0.40
codegen_flags: <defaults>
</compile_context>

<pallas_src>
import functools

import jax
import jax.numpy as jnp
import numpy as np
from jax.experimental import pallas as pl
from jax.experimental.pallas import tpu as pltpu


# ----------------------------------------------------------------------------
# Fused ConvBlock kernel
# ----------------------------------------------------------------------------
def _conv_block_kernel(x_ref, masks_ref,
                       s1_ref, b1_ref, w1_ref,
                       s2_ref, b2_ref, w2_ref,
                       s3_ref, b3_ref, w3_ref,
                       *rest, H, W, nb, has_downsample):
    """Fused ConvBlock forward for `nb` images.

    x_ref     : (nb, H*W, Cin)  f32   NHWC flattened to (pixels, channels)
    masks_ref : (9, H*W, 1)     f32   per-tap validity mask (conv zero padding)
    s*/b*     : (1, C)          f32   folded BN scale/bias (eval mode)
    w1/w2/w3  : (9*Cin_s, Cout_s) bf16  3x3 taps flattened tap-major (im2col)
    [sd,bd,wd]: downsample BN + (Cin, Cout) bf16 1x1 conv   (optional)
    o_ref     : (nb, H*W, Cout) f32
    """
    if has_downsample:
        sd_ref, bd_ref, wd_ref, o_ref = rest
    else:
        (o_ref,) = rest

    HW = H * W

    # Per-tap (roll shift, border mask), hoisted once per grid step and reused
    # by all three conv stages and all images of the batch block.
    # piece[p] = a[p + sy*W + sx] (via cyclic roll), zeroed where the 3x3 tap
    # falls outside the image -> exactly Conv2d(padding=1) on relu(bn(x)).
    taps = []
    for dy in range(3):
        for dx in range(3):
            shift = (-((dy - 1) * W + (dx - 1))) % HW
            taps.append((shift, masks_ref[dy * 3 + dx]))      # mask: (HW, 1)

    def bn_relu(v, s_ref, b_ref):
        # Elementwise math in f32 (v5e VPU has no bf16); (1, C) broadcasts.
        return jnp.maximum(v * s_ref[...] + b_ref[...], 0.0)

    def conv3x3(a, w_ref):
        # a: (HW, Ci) f32 activation; w_ref: (9*Ci, Co) bf16.
        pieces = []
        for shift, mask in taps:
            piece = pltpu.roll(a, shift, axis=0) if shift else a
            pieces.append(piece * mask)
        patches = jnp.concatenate(pieces, axis=-1)            # (HW, 9*Ci)
        return jnp.dot(patches.astype(jnp.bfloat16), w_ref[...],
                       preferred_element_type=jnp.float32)    # (HW, Co) f32

    for b in range(nb):
        x = x_ref[b]                                          # (HW, Cin) f32
        out1 = conv3x3(bn_relu(x, s1_ref, b1_ref), w1_ref)    # (HW, C1)
        out2 = conv3x3(bn_relu(out1, s2_ref, b2_ref), w2_ref)  # (HW, C2)
        out3 = conv3x3(bn_relu(out2, s3_ref, b3_ref), w3_ref)  # (HW, C2)

        if has_downsample:
            a_d = bn_relu(x, sd_ref, bd_ref)
            res = jnp.dot(a_d.astype(jnp.bfloat16), wd_ref[...],
                          preferred_element_type=jnp.float32)  # (HW, Cout)
        else:
            res = x                                           # Cin == Cout

        cat = jnp.concatenate([out1, out2, out3], axis=-1)    # (HW, Cout)
        o_ref[b] = (cat + res).astype(o_ref.dtype)            # single store


# ----------------------------------------------------------------------------
# Wrapper
# ----------------------------------------------------------------------------
def _tap_masks(H, W):
    """(9, H*W, 1) f32 validity masks for the 9 conv taps (zero padding)."""
    r = np.arange(H * W) // W
    c = np.arange(H * W) % W
    m = []
    for dy in (-1, 0, 1):
        for dx in (-1, 0, 1):
            valid = (r + dy >= 0) & (r + dy < H) & (c + dx >= 0) & (c + dx < W)
            m.append(valid.astype(np.float32))
    return jnp.asarray(np.stack(m)[:, :, None])


def _pick_batch_block(n):
    # Amortize per-grid-step overhead for larger batches while keeping >= 2
    # grid steps so dimension_semantics=("parallel",) can shard across v7x's
    # two TensorCores.
    for nb in (8, 4, 2):
        if n % nb == 0 and n // nb >= 2:
            return nb
    return 1


def conv_block_forward(x_nchw, params):
    """ConvBlock forward.  x_nchw: (N, Cin, H, W) like PyTorch."""
    N, Cin, H, W = x_nchw.shape
    x = jnp.transpose(x_nchw, (0, 2, 3, 1)).astype(jnp.float32)   # NHWC
    xf = x.reshape(N, H * W, Cin)                                 # free reshape

    (s1, b1), (s2, b2), (s3, b3) = params["bn1"], params["bn2"], params["bn3"]
    w1, w2, w3 = params["w1"], params["w2"], params["w3"]
    C1, C2, C3 = w1.shape[-1], w2.shape[-1], w3.shape[-1]
    Cout = C1 + C2 + C3
    has_ds = "w_d" in params
    HW = H * W

    def im2col_w(w):   # (3,3,Ci,Co) -> (9*Ci, Co), tap-major rows, bf16 (MXU)
        kh, kw, ci, co = w.shape
        return w.reshape(kh * kw * ci, co).astype(jnp.bfloat16)

    nb = _pick_batch_block(N)
    grid = (N // nb,)

    args = [xf, _tap_masks(H, W),
            s1.reshape(1, Cin), b1.reshape(1, Cin), im2col_w(w1),
            s2.reshape(1, C1), b2.reshape(1, C1), im2col_w(w2),
            s3.reshape(1, C2), b3.reshape(1, C2), im2col_w(w3)]
    in_specs = [
        pl.BlockSpec((nb, HW, Cin), lambda n: (n, 0, 0)),
        pl.BlockSpec((9, HW, 1), lambda n: (0, 0, 0)),
        pl.BlockSpec((1, Cin), lambda n: (0, 0)),
        pl.BlockSpec((1, Cin), lambda n: (0, 0)),
        pl.BlockSpec((9 * Cin, C1), lambda n: (0, 0)),
        pl.BlockSpec((1, C1), lambda n: (0, 0)),
        pl.BlockSpec((1, C1), lambda n: (0, 0)),
        pl.BlockSpec((9 * C1, C2), lambda n: (0, 0)),
        pl.BlockSpec((1, C2), lambda n: (0, 0)),
        pl.BlockSpec((1, C2), lambda n: (0, 0)),
        pl.BlockSpec((9 * C2, C3), lambda n: (0, 0)),
    ]
    if has_ds:
        sd, bd = params["bn_d"]
        wd = params["w_d"].reshape(Cin, Cout).astype(jnp.bfloat16)
        args += [sd.reshape(1, Cin), bd.reshape(1, Cin), wd]
        in_specs += [pl.BlockSpec((1, Cin), lambda n: (0, 0)),
                     pl.BlockSpec((1, Cin), lambda n: (0, 0)),
                     pl.BlockSpec((Cin, Cout), lambda n: (0, 0))]

    kernel = functools.partial(_conv_block_kernel, H=H, W=W, nb=nb,
                               has_downsample=has_ds)
    out_flat = pl.pallas_call(
        kernel,
        out_shape=jax.ShapeDtypeStruct((N, HW, Cout), jnp.float32),
        grid=grid,
        in_specs=in_specs,
        out_specs=pl.BlockSpec((nb, HW, Cout), lambda n: (n, 0, 0)),
        compiler_params=pltpu.CompilerParams(
            dimension_semantics=("parallel",)),
    )(*args)

    out = out_flat.reshape(N, H, W, Cout)
    return jnp.transpose(out, (0, 3, 1, 2))                       # back to NCHW


# ----------------------------------------------------------------------------
# Deterministic parameter init (BN folded to scale/bias, eval mode)
# ----------------------------------------------------------------------------
def init_params(key, in_planes, out_planes):
    mid = out_planes // 2
    qtr = out_planes // 4
    eps = 1e-5
    ks = jax.random.split(key, 8)

    def bn(k, c):
        k1, k2, k3, k4 = jax.random.split(k, 4)
        gamma = jax.random.uniform(k1, (c,), jnp.float32, 0.5, 1.5)
        beta = jax.random.uniform(k2, (c,), jnp.float32, -0.5, 0.5)
        mean = jax.random.uniform(k3, (c,), jnp.float32, -0.5, 0.5)
        var = jax.random.uniform(k4, (c,), jnp.float32, 0.5, 1.5)
        scale = gamma * jax.lax.rsqrt(var + eps)
        bias = beta - mean * scale
        return scale, bias

    def conv_w(k, kh, kw, ci, co):
        return jax.random.normal(k, (kh, kw, ci, co), jnp.float32) * 0.1

    params = {
        "bn1": bn(ks[0], in_planes),
        "w1": conv_w(ks[1], 3, 3, in_planes, mid),
        "bn2": bn(ks[2], mid),
        "w2": conv_w(ks[3], 3, 3, mid, qtr),
        "bn3": bn(ks[4], qtr),
        "w3": conv_w(ks[5], 3, 3, qtr, qtr),
    }
    if in_planes != out_planes:
        params["bn_d"] = bn(ks[6], in_planes)
        params["w_d"] = conv_w(ks[7], 1, 1, in_planes, out_planes)
    return params


# ----------------------------------------------------------------------------
# Pure-JAX reference (f32, for correctness check)
# ----------------------------------------------------------------------------
def ref_forward(x_nchw, params):
    x = jnp.transpose(x_nchw, (0, 2, 3, 1)).astype(jnp.float32)

    def bnrelu(v, sb):
        s, b = sb
        return jnp.maximum(v * s + b, 0.0)

    def conv(v, w, pad):
        return jax.lax.conv_general_dilated(
            v, w, (1, 1), pad, dimension_numbers=("NHWC", "HWIO", "NHWC"))

    out1 = conv(bnrelu(x, params["bn1"]), params["w1"], "SAME")
    out2 = conv(bnrelu(out1, params["bn2"]), params["w2"], "SAME")
    out3 = conv(bnrelu(out2, params["bn3"]), params["w3"], "SAME")
    cat = jnp.concatenate([out1, out2, out3], axis=-1)
    if "w_d" in params:
        res = conv(bnrelu(x, params["bn_d"]), params["w_d"], "VALID")
    else:
        res = x
    return jnp.transpose(cat + res, (0, 3, 1, 2))


if __name__ == "__main__":
    N, in_planes, H, W = 2, 4, 16, 16
    out_planes = 8

    key = jax.random.PRNGKey(0)
    kx, kp = jax.random.split(key)
    x = jax.random.normal(kx, (N, in_planes, H, W), jnp.float32)   # NCHW
    params = init_params(kp, in_planes, out_planes)

    fwd = jax.jit(conv_block_forward)
    out = jax.block_until_ready(fwd(x, params))
    assert out.shape == (N, out_planes, H, W), out.shape

    ref = jax.block_until_ready(ref_forward(x, params))
    # bf16 MXU operands (f32 accumulation) through a 3-deep conv chain vs the
    # pure-f32 reference -> loosened tolerance.
    np.testing.assert_allclose(np.asarray(out), np.asarray(ref),
                               rtol=5e-2, atol=5e-2)

    print("KERNEL_OK")
</pallas_src>

<mosaic_0001>
module attributes {stable_mosaic.version = 11 : i64} {
  func.func @_conv_block_kernel(%arg0: i32, %arg1: memref<1x256x4xf32, #tpu.memory_space<vmem>>, %arg2: memref<9x256x1xf32, #tpu.memory_space<vmem>>, %arg3: memref<1x4xf32, #tpu.memory_space<vmem>>, %arg4: memref<1x4xf32, #tpu.memory_space<vmem>>, %arg5: memref<36x4xbf16, #tpu.memory_space<vmem>>, %arg6: memref<1x4xf32, #tpu.memory_space<vmem>>, %arg7: memref<1x4xf32, #tpu.memory_space<vmem>>, %arg8: memref<36x2xbf16, #tpu.memory_space<vmem>>, %arg9: memref<1x2xf32, #tpu.memory_space<vmem>>, %arg10: memref<1x2xf32, #tpu.memory_space<vmem>>, %arg11: memref<18x2xbf16, #tpu.memory_space<vmem>>, %arg12: memref<1x4xf32, #tpu.memory_space<vmem>>, %arg13: memref<1x4xf32, #tpu.memory_space<vmem>>, %arg14: memref<4x8xbf16, #tpu.memory_space<vmem>>, %arg15: memref<1x256x8xf32, #tpu.memory_space<vmem>>) attributes {dimension_semantics = [#tpu.dimension_semantics<parallel>], iteration_bounds = array<i64: 2>, scalar_prefetch = 0 : i64, scratch_operands = 0 : i64, tpu.core_type = #tpu.core_type<tc>, window_params = [{transform_indices = @transform_0, window_bounds = array<i64: 1, 256, 4>}, {pipeline_mode = #tpu.pipeline_mode<synchronous>, transform_indices = @transform_1, window_bounds = array<i64: 9, 256, 1>}, {pipeline_mode = #tpu.pipeline_mode<synchronous>, transform_indices = @transform_2, window_bounds = array<i64: 1, 4>}, {pipeline_mode = #tpu.pipeline_mode<synchronous>, transform_indices = @transform_3, window_bounds = array<i64: 1, 4>}, {pipeline_mode = #tpu.pipeline_mode<synchronous>, transform_indices = @transform_4, window_bounds = array<i64: 36, 4>}, {pipeline_mode = #tpu.pipeline_mode<synchronous>, transform_indices = @transform_5, window_bounds = array<i64: 1, 4>}, {pipeline_mode = #tpu.pipeline_mode<synchronous>, transform_indices = @transform_6, window_bounds = array<i64: 1, 4>}, {pipeline_mode = #tpu.pipeline_mode<synchronous>, transform_indices = @transform_7, window_bounds = array<i64: 36, 2>}, {pipeline_mode = #tpu.pipeline_mode<synchronous>, transform_indices = @transform_8, window_bounds = array<i64: 1, 2>}, {pipeline_mode = #tpu.pipeline_mode<synchronous>, transform_indices = @transform_9, window_bounds = array<i64: 1, 2>}, {pipeline_mode = #tpu.pipeline_mode<synchronous>, transform_indices = @transform_10, window_bounds = array<i64: 18, 2>}, {pipeline_mode = #tpu.pipeline_mode<synchronous>, transform_indices = @transform_11, window_bounds = array<i64: 1, 4>}, {pipeline_mode = #tpu.pipeline_mode<synchronous>, transform_indices = @transform_12, window_bounds = array<i64: 1, 4>}, {pipeline_mode = #tpu.pipeline_mode<synchronous>, transform_indices = @transform_13, window_bounds = array<i64: 4, 8>}, {transform_indices = @transform_14, window_bounds = array<i64: 1, 256, 8>}]} {
    %c0 = arith.constant 0 : index
    %c0_0 = arith.constant 0 : index
    %c0_1 = arith.constant 0 : index
    %0 = vector.load %arg2[%c0, %c0_0, %c0_1] : memref<9x256x1xf32, #tpu.memory_space<vmem>>, vector<1x256x1xf32>
    %1 = vector.shape_cast %0 : vector<1x256x1xf32> to vector<256x1xf32>
    %c1 = arith.constant 1 : index
    %c0_2 = arith.constant 0 : index
    %c0_3 = arith.constant 0 : index
    %2 = vector.load %arg2[%c1, %c0_2, %c0_3] : memref<9x256x1xf32, #tpu.memory_space<vmem>>, vector<1x256x1xf32>
    %3 = vector.shape_cast %2 : vector<1x256x1xf32> to vector<256x1xf32>
    %c2 = arith.constant 2 : index
    %c0_4 = arith.constant 0 : index
    %c0_5 = arith.constant 0 : index
    %4 = vector.load %arg2[%c2, %c0_4, %c0_5] : memref<9x256x1xf32, #tpu.memory_space<vmem>>, vector<1x256x1xf32>
    %5 = vector.shape_cast %4 : vector<1x256x1xf32> to vector<256x1xf32>
    %c3 = arith.constant 3 : index
    %c0_6 = arith.constant 0 : index
    %c0_7 = arith.constant 0 : index
    %6 = vector.load %arg2[%c3, %c0_6, %c0_7] : memref<9x256x1xf32, #tpu.memory_space<vmem>>, vector<1x256x1xf32>
    %7 = vector.shape_cast %6 : vector<1x256x1xf32> to vector<256x1xf32>
    %c4 = arith.constant 4 : index
    %c0_8 = arith.constant 0 : index
    %c0_9 = arith.constant 0 : index
    %8 = vector.load %arg2[%c4, %c0_8, %c0_9] : memref<9x256x1xf32, #tpu.memory_space<vmem>>, vector<1x256x1xf32>
    %9 = vector.shape_cast %8 : vector<1x256x1xf32> to vector<256x1xf32>
    %c5 = arith.constant 5 : index
    %c0_10 = arith.constant 0 : index
    %c0_11 = arith.constant 0 : index
    %10 = vector.load %arg2[%c5, %c0_10, %c0_11] : memref<9x256x1xf32, #tpu.memory_space<vmem>>, vector<1x256x1xf32>
    %11 = vector.shape_cast %10 : vector<1x256x1xf32> to vector<256x1xf32>
    %c6 = arith.constant 6 : index
    %c0_12 = arith.constant 0 : index
    %c0_13 = arith.constant 0 : index
    %12 = vector.load %arg2[%c6, %c0_12, %c0_13] : memref<9x256x1xf32, #tpu.memory_space<vmem>>, vector<1x256x1xf32>
    %13 = vector.shape_cast %12 : vector<1x256x1xf32> to vector<256x1xf32>
    %c7 = arith.constant 7 : index
    %c0_14 = arith.constant 0 : index
    %c0_15 = arith.constant 0 : index
    %14 = vector.load %arg2[%c7, %c0_14, %c0_15] : memref<9x256x1xf32, #tpu.memory_space<vmem>>, vector<1x256x1xf32>
    %15 = vector.shape_cast %14 : vector<1x256x1xf32> to vector<256x1xf32>
    %c8 = arith.constant 8 : index
    %c0_16 = arith.constant 0 : index
    %c0_17 = arith.constant 0 : index
    %16 = vector.load %arg2[%c8, %c0_16, %c0_17] : memref<9x256x1xf32, #tpu.memory_space<vmem>>, vector<1x256x1xf32>
    %17 = vector.shape_cast %16 : vector<1x256x1xf32> to vector<256x1xf32>
    %c0_18 = arith.constant 0 : index
    %c0_19 = arith.constant 0 : index
    %c0_20 = arith.constant 0 : index
    %18 = vector.load %arg1[%c0_18, %c0_19, %c0_20] : memref<1x256x4xf32, #tpu.memory_space<vmem>>, vector<1x256x4xf32>
    %19 = vector.shape_cast %18 : vector<1x256x4xf32> to vector<256x4xf32>
    %c0_21 = arith.constant 0 : index
    %c0_22 = arith.constant 0 : index
    %20 = vector.load %arg3[%c0_21, %c0_22] : memref<1x4xf32, #tpu.memory_space<vmem>>, vector<1x4xf32>
    %21 = vector.broadcast %20 : vector<1x4xf32> to vector<256x4xf32>
    %22 = arith.mulf %19, %21 : vector<256x4xf32>
    %c0_23 = arith.constant 0 : index
    %c0_24 = arith.constant 0 : index
    %23 = vector.load %arg4[%c0_23, %c0_24] : memref<1x4xf32, #tpu.memory_space<vmem>>, vector<1x4xf32>
    %24 = vector.broadcast %23 : vector<1x4xf32> to vector<256x4xf32>
    %25 = arith.addf %22, %24 : vector<256x4xf32>
    %cst = arith.constant 0.000000e+00 : f32
    %26 = vector.broadcast %cst : f32 to vector<256x4xf32>
    %27 = arith.maximumf %25, %26 : vector<256x4xf32>
    %c17_i32 = arith.constant 17 : i32
    %28 = tpu.dynamic_rotate %27 by %c17_i32 dim 0 : vector<256x4xf32>, i32 -> vector<256x4xf32>
    %29 = vector.broadcast %1 : vector<256x1xf32> to vector<256x4xf32>
    %30 = arith.mulf %28, %29 : vector<256x4xf32>
    %c16_i32 = arith.constant 16 : i32
    %31 = tpu.dynamic_rotate %27 by %c16_i32 dim 0 : vector<256x4xf32>, i32 -> vector<256x4xf32>
    %32 = vector.broadcast %3 : vector<256x1xf32> to vector<256x4xf32>
    %33 = arith.mulf %31, %32 : vector<256x4xf32>
    %c15_i32 = arith.constant 15 : i32
    %34 = tpu.dynamic_rotate %27 by %c15_i32 dim 0 : vector<256x4xf32>, i32 -> vector<256x4xf32>
    %35 = vector.broadcast %5 : vector<256x1xf32> to vector<256x4xf32>
    %36 = arith.mulf %34, %35 : vector<256x4xf32>
    %c1_i32 = arith.constant 1 : i32
    %37 = tpu.dynamic_rotate %27 by %c1_i32 dim 0 : vector<256x4xf32>, i32 -> vector<256x4xf32>
    %38 = vector.broadcast %7 : vector<256x1xf32> to vector<256x4xf32>
    %39 = arith.mulf %37, %38 : vector<256x4xf32>
    %40 = vector.broadcast %9 : vector<256x1xf32> to vector<256x4xf32>
    %41 = arith.mulf %27, %40 : vector<256x4xf32>
    %c255_i32 = arith.constant 255 : i32
    %42 = tpu.dynamic_rotate %27 by %c255_i32 dim 0 : vector<256x4xf32>, i32 -> vector<256x4xf32>
    %43 = vector.broadcast %11 : vector<256x1xf32> to vector<256x4xf32>
    %44 = arith.mulf %42, %43 : vector<256x4xf32>
    %c241_i32 = arith.constant 241 : i32
    %45 = tpu.dynamic_rotate %27 by %c241_i32 dim 0 : vector<256x4xf32>, i32 -> vector<256x4xf32>
    %46 = vector.broadcast %13 : vector<256x1xf32> to vector<256x4xf32>
    %47 = arith.mulf %45, %46 : vector<256x4xf32>
    %c240_i32 = arith.constant 240 : i32
    %48 = tpu.dynamic_rotate %27 by %c240_i32 dim 0 : vector<256x4xf32>, i32 -> vector<256x4xf32>
    %49 = vector.broadcast %15 : vector<256x1xf32> to vector<256x4xf32>
    %50 = arith.mulf %48, %49 : vector<256x4xf32>
    %c239_i32 = arith.constant 239 : i32
    %51 = tpu.dynamic_rotate %27 by %c239_i32 dim 0 : vector<256x4xf32>, i32 -> vector<256x4xf32>
    %52 = vector.broadcast %17 : vector<256x1xf32> to vector<256x4xf32>
    %53 = arith.mulf %51, %52 : vector<256x4xf32>
    %54 = tpu.concatenate %30, %33, %36, %39, %41, %44, %47, %50, %53 in 1 : vector<256x4xf32>, vector<256x4xf32>, vector<256x4xf32>, vector<256x4xf32>, vector<256x4xf32>, vector<256x4xf32>, vector<256x4xf32>, vector<256x4xf32>, vector<256x4xf32> -> vector<256x36xf32>
    %55 = arith.truncf %54 : vector<256x36xf32> to vector<256x36xbf16>
    %c0_25 = arith.constant 0 : index
    %c0_26 = arith.constant 0 : index
    %56 = vector.load %arg5[%c0_25, %c0_26] : memref<36x4xbf16, #tpu.memory_space<vmem>>, vector<36x4xbf16>
    %cst_27 = arith.constant dense<0.000000e+00> : vector<256x4xf32>
    %57 = tpu.matmul %55, %56, %cst_27 {dimension_numbers = #tpu.dot_dimension_numbers<[1], [0], [0], [1], [0, 0, 1, 1], [], []>} : vector<256x36xbf16>, vector<36x4xbf16>, vector<256x4xf32> -> vector<256x4xf32>
    %c0_28 = arith.constant 0 : index
    %c0_29 = arith.constant 0 : index
    %58 = vector.load %arg6[%c0_28, %c0_29] : memref<1x4xf32, #tpu.memory_space<vmem>>, vector<1x4xf32>
    %59 = vector.broadcast %58 : vector<1x4xf32> to vector<256x4xf32>
    %60 = arith.mulf %57, %59 : vector<256x4xf32>
    %c0_30 = arith.constant 0 : index
    %c0_31 = arith.constant 0 : index
    %61 = vector.load %arg7[%c0_30, %c0_31] : memref<1x4xf32, #tpu.memory_space<vmem>>, vector<1x4xf32>
    %62 = vector.broadcast %61 : vector<1x4xf32> to vector<256x4xf32>
    %63 = arith.addf %60, %62 : vector<256x4xf32>
    %cst_32 = arith.constant 0.000000e+00 : f32
    %64 = vector.broadcast %cst_32 : f32 to vector<256x4xf32>
    %65 = arith.maximumf %63, %64 : vector<256x4xf32>
    %c17_i32_33 = arith.constant 17 : i32
    %66 = tpu.dynamic_rotate %65 by %c17_i32_33 dim 0 : vector<256x4xf32>, i32 -> vector<256x4xf32>
    %67 = vector.broadcast %1 : vector<256x1xf32> to vector<256x4xf32>
    %68 = arith.mulf %66, %67 : vector<256x4xf32>
    %c16_i32_34 = arith.constant 16 : i32
    %69 = tpu.dynamic_rotate %65 by %c16_i32_34 dim 0 : vector<256x4xf32>, i32 -> vector<256x4xf32>
    %70 = vector.broadcast %3 : vector<256x1xf32> to vector<256x4xf32>
    %71 = arith.mulf %69, %70 : vector<256x4xf32>
    %c15_i32_35 = arith.constant 15 : i32
    %72 = tpu.dynamic_rotate %65 by %c15_i32_35 dim 0 : vector<256x4xf32>, i32 -> vector<256x4xf32>
    %73 = vector.broadcast %5 : vector<256x1xf32> to vector<256x4xf32>
    %74 = arith.mulf %72, %73 : vector<256x4xf32>
    %c1_i32_36 = arith.constant 1 : i32
    %75 = tpu.dynamic_rotate %65 by %c1_i32_36 dim 0 : vector<256x4xf32>, i32 -> vector<256x4xf32>
    %76 = vector.broadcast %7 : vector<256x1xf32> to vector<256x4xf32>
    %77 = arith.mulf %75, %76 : vector<256x4xf32>
    %78 = vector.broadcast %9 : vector<256x1xf32> to vector<256x4xf32>
    %79 = arith.mulf %65, %78 : vector<256x4xf32>
    %c255_i32_37 = arith.constant 255 : i32
    %80 = tpu.dynamic_rotate %65 by %c255_i32_37 dim 0 : vector<256x4xf32>, i32 -> vector<256x4xf32>
    %81 = vector.broadcast %11 : vector<256x1xf32> to vector<256x4xf32>
    %82 = arith.mulf %80, %81 : vector<256x4xf32>
    %c241_i32_38 = arith.constant 241 : i32
    %83 = tpu.dynamic_rotate %65 by %c241_i32_38 dim 0 : vector<256x4xf32>, i32 -> vector<256x4xf32>
    %84 = vector.broadcast %13 : vector<256x1xf32> to vector<256x4xf32>
    %85 = arith.mulf %83, %84 : vector<256x4xf32>
    %c240_i32_39 = arith.constant 240 : i32
    %86 = tpu.dynamic_rotate %65 by %c240_i32_39 dim 0 : vector<256x4xf32>, i32 -> vector<256x4xf32>
    %87 = vector.broadcast %15 : vector<256x1xf32> to vector<256x4xf32>
    %88 = arith.mulf %86, %87 : vector<256x4xf32>
    %c239_i32_40 = arith.constant 239 : i32
    %89 = tpu.dynamic_rotate %65 by %c239_i32_40 dim 0 : vector<256x4xf32>, i32 -> vector<256x4xf32>
    %90 = vector.broadcast %17 : vector<256x1xf32> to vector<256x4xf32>
    %91 = arith.mulf %89, %90 : vector<256x4xf32>
    %92 = tpu.concatenate %68, %71, %74, %77, %79, %82, %85, %88, %91 in 1 : vector<256x4xf32>, vector<256x4xf32>, vector<256x4xf32>, vector<256x4xf32>, vector<256x4xf32>, vector<256x4xf32>, vector<256x4xf32>, vector<256x4xf32>, vector<256x4xf32> -> vector<256x36xf32>
    %93 = arith.truncf %92 : vector<256x36xf32> to vector<256x36xbf16>
    %c0_41 = arith.constant 0 : index
    %c0_42 = arith.constant 0 : index
    %94 = vector.load %arg8[%c0_41, %c0_42] : memref<36x2xbf16, #tpu.memory_space<vmem>>, vector<36x2xbf16>
    %cst_43 = arith.constant dense<0.000000e+00> : vector<256x2xf32>
    %95 = tpu.matmul %93, %94, %cst_43 {dimension_numbers = #tpu.dot_dimension_numbers<[1], [0], [0], [1], [0, 0, 1, 1], [], []>} : vector<256x36xbf16>, vector<36x2xbf16>, vector<256x2xf32> -> vector<256x2xf32>
    %c0_44 = arith.constant 0 : index
    %c0_45 = arith.constant 0 : index
    %96 = vector.load %arg9[%c0_44, %c0_45] : memref<1x2xf32, #tpu.memory_space<vmem>>, vector<1x2xf32>
    %97 = vector.broadcast %96 : vector<1x2xf32> to vector<256x2xf32>
    %98 = arith.mulf %95, %97 : vector<256x2xf32>
    %c0_46 = arith.constant 0 : index
    %c0_47 = arith.constant 0 : index
    %99 = vector.load %arg10[%c0_46, %c0_47] : memref<1x2xf32, #tpu.memory_space<vmem>>, vector<1x2xf32>
    %100 = vector.broadcast %99 : vector<1x2xf32> to vector<256x2xf32>
    %101 = arith.addf %98, %100 : vector<256x2xf32>
    %cst_48 = arith.constant 0.000000e+00 : f32
    %102 = vector.broadcast %cst_48 : f32 to vector<256x2xf32>
    %103 = arith.maximumf %101, %102 : vector<256x2xf32>
    %c17_i32_49 = arith.constant 17 : i32
    %104 = tpu.dynamic_rotate %103 by %c17_i32_49 dim 0 : vector<256x2xf32>, i32 -> vector<256x2xf32>
    %105 = vector.broadcast %1 : vector<256x1xf32> to vector<256x2xf32>
    %106 = arith.mulf %104, %105 : vector<256x2xf32>
    %c16_i32_50 = arith.constant 16 : i32
    %107 = tpu.dynamic_rotate %103 by %c16_i32_50 dim 0 : vector<256x2xf32>, i32 -> vector<256x2xf32>
    %108 = vector.broadcast %3 : vector<256x1xf32> to vector<256x2xf32>
    %109 = arith.mulf %107, %108 : vector<256x2xf32>
    %c15_i32_51 = arith.constant 15 : i32
    %110 = tpu.dynamic_rotate %103 by %c15_i32_51 dim 0 : vector<256x2xf32>, i32 -> vector<256x2xf32>
    %111 = vector.broadcast %5 : vector<256x1xf32> to vector<256x2xf32>
    %112 = arith.mulf %110, %111 : vector<256x2xf32>
    %c1_i32_52 = arith.constant 1 : i32
    %113 = tpu.dynamic_rotate %103 by %c1_i32_52 dim 0 : vector<256x2xf32>, i32 -> vector<256x2xf32>
    %114 = vector.broadcast %7 : vector<256x1xf32> to vector<256x2xf32>
    %115 = arith.mulf %113, %114 : vector<256x2xf32>
    %116 = vector.broadcast %9 : vector<256x1xf32> to vector<256x2xf32>
    %117 = arith.mulf %103, %116 : vector<256x2xf32>
    %c255_i32_53 = arith.constant 255 : i32
    %118 = tpu.dynamic_rotate %103 by %c255_i32_53 dim 0 : vector<256x2xf32>, i32 -> vector<256x2xf32>
    %119 = vector.broadcast %11 : vector<256x1xf32> to vector<256x2xf32>
    %120 = arith.mulf %118, %119 : vector<256x2xf32>
    %c241_i32_54 = arith.constant 241 : i32
    %121 = tpu.dynamic_rotate %103 by %c241_i32_54 dim 0 : vector<256x2xf32>, i32 -> vector<256x2xf32>
    %122 = vector.broadcast %13 : vector<256x1xf32> to vector<256x2xf32>
    %123 = arith.mulf %121, %122 : vector<256x2xf32>
    %c240_i32_55 = arith.constant 240 : i32
    %124 = tpu.dynamic_rotate %103 by %c240_i32_55 dim 0 : vector<256x2xf32>, i32 -> vector<256x2xf32>
    %125 = vector.broadcast %15 : vector<256x1xf32> to vector<256x2xf32>
    %126 = arith.mulf %124, %125 : vector<256x2xf32>
    %c239_i32_56 = arith.constant 239 : i32
    %127 = tpu.dynamic_rotate %103 by %c239_i32_56 dim 0 : vector<256x2xf32>, i32 -> vector<256x2xf32>
    %128 = vector.broadcast %17 : vector<256x1xf32> to vector<256x2xf32>
    %129 = arith.mulf %127, %128 : vector<256x2xf32>
    %130 = tpu.concatenate %106, %109, %112, %115, %117, %120, %123, %126, %129 in 1 : vector<256x2xf32>, vector<256x2xf32>, vector<256x2xf32>, vector<256x2xf32>, vector<256x2xf32>, vector<256x2xf32>, vector<256x2xf32>, vector<256x2xf32>, vector<256x2xf32> -> vector<256x18xf32>
    %131 = arith.truncf %130 : vector<256x18xf32> to vector<256x18xbf16>
    %c0_57 = arith.constant 0 : index
    %c0_58 = arith.constant 0 : index
    %132 = vector.load %arg11[%c0_57, %c0_58] : memref<18x2xbf16, #tpu.memory_space<vmem>>, vector<18x2xbf16>
    %cst_59 = arith.constant dense<0.000000e+00> : vector<256x2xf32>
    %133 = tpu.matmul %131, %132, %cst_59 {dimension_numbers = #tpu.dot_dimension_numbers<[1], [0], [0], [1], [0, 0, 1, 1], [], []>} : vector<256x18xbf16>, vector<18x2xbf16>, vector<256x2xf32> -> vector<256x2xf32>
    %c0_60 = arith.constant 0 : index
    %c0_61 = arith.constant 0 : index
    %134 = vector.load %arg12[%c0_60, %c0_61] : memref<1x4xf32, #tpu.memory_space<vmem>>, vector<1x4xf32>
    %135 = vector.broadcast %134 : vector<1x4xf32> to vector<256x4xf32>
    %136 = arith.mulf %19, %135 : vector<256x4xf32>
    %c0_62 = arith.constant 0 : index
    %c0_63 = arith.constant 0 : index
    %137 = vector.load %arg13[%c0_62, %c0_63] : memref<1x4xf32, #tpu.memory_space<vmem>>, vector<1x4xf32>
    %138 = vector.broadcast %137 : vector<1x4xf32> to vector<256x4xf32>
    %139 = arith.addf %136, %138 : vector<256x4xf32>
    %cst_64 = arith.constant 0.000000e+00 : f32
    %140 = vector.broadcast %cst_64 : f32 to vector<256x4xf32>
    %141 = arith.maximumf %139, %140 : vector<256x4xf32>
    %142 = arith.truncf %141 : vector<256x4xf32> to vector<256x4xbf16>
    %c0_65 = arith.constant 0 : index
    %c0_66 = arith.constant 0 : index
    %143 = vector.load %arg14[%c0_65, %c0_66] : memref<4x8xbf16, #tpu.memory_space<vmem>>, vector<4x8xbf16>
    %cst_67 = arith.constant dense<0.000000e+00> : vector<256x8xf32>
    %144 = tpu.matmul %142, %143, %cst_67 {dimension_numbers = #tpu.dot_dimension_numbers<[1], [0], [0], [1], [0, 0, 1, 1], [], []>} : vector<256x4xbf16>, vector<4x8xbf16>, vector<256x8xf32> -> vector<256x8xf32>
    %145 = tpu.concatenate %57, %95, %133 in 1 : vector<256x4xf32>, vector<256x2xf32>, vector<256x2xf32> -> vector<256x8xf32>
    %146 = arith.addf %145, %144 : vector<256x8xf32>
    %c0_68 = arith.constant 0 : index
    %c0_69 = arith.constant 0 : index
    %c0_70 = arith.constant 0 : index
    %147 = vector.load %arg15[%c0_68, %c0_69, %c0_70] : memref<1x256x8xf32, #tpu.memory_space<vmem>>, vector<1x256x8xf32>
    %148 = vector.shape_cast %147 : vector<1x256x8xf32> to vector<256x8xf32>
    %149 = vector.shape_cast %146 : vector<256x8xf32> to vector<1x256x8xf32>
    tpu.vector_store %arg15[%c0_68, %c0_69, %c0_70], %149 {strides = array<i32>} : memref<1x256x8xf32, #tpu.memory_space<vmem>>, vector<1x256x8xf32>,
    return
  }
  func.func @transform_0(%arg0: i32) -> (i32, i32, i32) {
    %c0_i32 = arith.constant 0 : i32
    %c0_i32_0 = arith.constant 0 : i32
    %c0_i32_1 = arith.constant 0 : i32
    return %arg0, %c0_i32, %c0_i32_0 : i32, i32, i32
  }
  func.func @transform_1(%arg0: i32) -> (i32, i32, i32) {
    %c0_i32 = arith.constant 0 : i32
    %c0_i32_0 = arith.constant 0 : i32
    %c0_i32_1 = arith.constant 0 : i32
    %c0_i32_2 = arith.constant 0 : i32
    return %c0_i32, %c0_i32_0, %c0_i32_1 : i32, i32, i32
  }
  func.func @transform_2(%arg0: i32) -> (i32, i32) {
    %c0_i32 = arith.constant 0 : i32
    %c0_i32_0 = arith.constant 0 : i32
    %c0_i32_1 = arith.constant 0 : i32
    return %c0_i32, %c0_i32_0 : i32, i32
  }
  func.func @transform_3(%arg0: i32) -> (i32, i32) {
    %c0_i32 = arith.constant 0 : i32
    %c0_i32_0 = arith.constant 0 : i32
    %c0_i32_1 = arith.constant 0 : i32
    return %c0_i32, %c0_i32_0 : i32, i32
  }
  func.func @transform_4(%arg0: i32) -> (i32, i32) {
    %c0_i32 = arith.constant 0 : i32
    %c0_i32_0 = arith.constant 0 : i32
    %c0_i32_1 = arith.constant 0 : i32
    return %c0_i32, %c0_i32_0 : i32, i32
  }
  func.func @transform_5(%arg0: i32) -> (i32, i32) {
    %c0_i32 = arith.constant 0 : i32
    %c0_i32_0 = arith.constant 0 : i32
    %c0_i32_1 = arith.constant 0 : i32
    return %c0_i32, %c0_i32_0 : i32, i32
  }
  func.func @transform_6(%arg0: i32) -> (i32, i32) {
    %c0_i32 = arith.constant 0 : i32
    %c0_i32_0 = arith.constant 0 : i32
    %c0_i32_1 = arith.constant 0 : i32
    return %c0_i32, %c0_i32_0 : i32, i32
  }
  func.func @transform_7(%arg0: i32) -> (i32, i32) {
    %c0_i32 = arith.constant 0 : i32
    %c0_i32_0 = arith.constant 0 : i32
    %c0_i32_1 = arith.constant 0 : i32
    return %c0_i32, %c0_i32_0 : i32, i32
  }
  func.func @transform_8(%arg0: i32) -> (i32, i32) {
    %c0_i32 = arith.constant 0 : i32
    %c0_i32_0 = arith.constant 0 : i32
    %c0_i32_1 = arith.constant 0 : i32
    return %c0_i32, %c0_i32_0 : i32, i32
  }
  func.func @transform_9(%arg0: i32) -> (i32, i32) {
    %c0_i32 = arith.constant 0 : i32
    %c0_i32_0 = arith.constant 0 : i32
    %c0_i32_1 = arith.constant 0 : i32
    return %c0_i32, %c0_i32_0 : i32, i32
  }
  func.func @transform_10(%arg0: i32) -> (i32, i32) {
    %c0_i32 = arith.constant 0 : i32
    %c0_i32_0 = arith.constant 0 : i32
    %c0_i32_1 = arith.constant 0 : i32
    return %c0_i32, %c0_i32_0 : i32, i32
  }
  func.func @transform_11(%arg0: i32) -> (i32, i32) {
    %c0_i32 = arith.constant 0 : i32
    %c0_i32_0 = arith.constant 0 : i32
    %c0_i32_1 = arith.constant 0 : i32
    return %c0_i32, %c0_i32_0 : i32, i32
  }
  func.func @transform_12(%arg0: i32) -> (i32, i32) {
    %c0_i32 = arith.constant 0 : i32
    %c0_i32_0 = arith.constant 0 : i32
    %c0_i32_1 = arith.constant 0 : i32
    return %c0_i32, %c0_i32_0 : i32, i32
  }
  func.func @transform_13(%arg0: i32) -> (i32, i32) {
    %c0_i32 = arith.constant 0 : i32
    %c0_i32_0 = arith.constant 0 : i32
    %c0_i32_1 = arith.constant 0 : i32
    return %c0_i32, %c0_i32_0 : i32, i32
  }
  func.func @transform_14(%arg0: i32) -> (i32, i32, i32) {
    %c0_i32 = arith.constant 0 : i32
    %c0_i32_0 = arith.constant 0 : i32
    %c0_i32_1 = arith.constant 0 : i32
    return %arg0, %c0_i32, %c0_i32_0 : i32, i32, i32
  }
}

</mosaic_0001>

<llo_original>
// kernel: conv_block_forward.1
$region0: #{conv_block_forward.1}
  #allocation0 [shape = 'u32[]', space=smem, size = 0x4, offset = 0x4, fixed_abs, tag = 'smem constant byte address 0x4 - core index']
  #allocation1 [shape = 'u32[144,128]{1,0:T(1,128)}', space=vmem, size = 0x12000, scoped, tag = 'internal scratch']
  %s0 = inlined_call_operand.vmem [shape: f32[2,256,4], index: 0, kind: input, shape index: {}]
  %s1 = inlined_call_operand.hbm [shape: f32[9,256,1], index: 1, kind: input, shape index: {}]
  %s2 = inlined_call_operand.hbm [shape: f32[1,4], index: 2, kind: input, shape index: {}]
  %s3 = inlined_call_operand.hbm [shape: f32[1,4], index: 3, kind: input, shape index: {}]
  %s4 = inlined_call_operand.vmem [shape: bf16[36,4], index: 4, kind: input, shape index: {}]
  %s5 = inlined_call_operand.hbm [shape: f32[1,4], index: 5, kind: input, shape index: {}]
  %s6 = inlined_call_operand.hbm [shape: f32[1,4], index: 6, kind: input, shape index: {}]
  %s7 = inlined_call_operand.vmem [shape: bf16[36,2], index: 7, kind: input, shape index: {}]
  %s8 = inlined_call_operand.hbm [shape: f32[1,2], index: 8, kind: input, shape index: {}]
  %s9 = inlined_call_operand.hbm [shape: f32[1,2], index: 9, kind: input, shape index: {}]
  %s10 = inlined_call_operand.vmem [shape: bf16[18,2], index: 10, kind: input, shape index: {}]
  %s11 = inlined_call_operand.hbm [shape: f32[1,4], index: 11, kind: input, shape index: {}]
  %s12 = inlined_call_operand.hbm [shape: f32[1,4], index: 12, kind: input, shape index: {}]
  %s13 = inlined_call_operand.vmem [shape: bf16[4,8], index: 13, kind: input, shape index: {}]
  %s14 = inlined_call_operand.vmem [shape: f32[2,256,8], index: 14, kind: output, shape index: {}]
  %s15 = sld [smem:[#allocation0]]
  $region125: #{conv_block_forward.1} parent=0
    _
  %s17 = ssub.s32 1, %s15
  %s18 = scalar_select 0, %s17, %s15
  $region1: #{conv_block_forward.1} parent=0
    #allocation2 [shape = 'u8[1179648]{0}', space=vmem, size = 0x120000, scoped, tag = 'input window, operand 1, single buffered']
    #allocation3 [shape = 's32[2]{0}', space=sflag, size = 0x8, scoped, tag = 'scoped memory for conv_block_forward.1']
    #allocation4 [shape = 'u8[512]{0}', space=vmem, size = 0x400, scoped, tag = 'input window, operand 2, single buffered']
    #allocation5 [shape = 's32[1]{0}', space=sflag, size = 0x4, scoped, tag = 'scoped memory for conv_block_forward.1']
    #allocation6 [shape = 'u8[512]{0}', space=vmem, size = 0x400, scoped, tag = 'input window, operand 3, single buffered']
    #allocation7 [shape = 'u8[512]{0}', space=vmem, size = 0x400, scoped, tag = 'input window, operand 5, single buffered']
    #allocation8 [shape = 's32[1]{0}', space=sflag, size = 0x4, scoped, tag = 'scoped memory for conv_block_forward.1']
    #allocation9 [shape = 'u8[512]{0}', space=vmem, size = 0x400, scoped, tag = 'input window, operand 6, single buffered']
    #allocation10 [shape = 'u8[512]{0}', space=vmem, size = 0x400, scoped, tag = 'input window, operand 8, single buffered']
    #allocation11 [shape = 's32[1]{0}', space=sflag, size = 0x4, scoped, tag = 'scoped memory for conv_block_forward.1']
    #allocation12 [shape = 'u8[512]{0}', space=vmem, size = 0x400, scoped, tag = 'input window, operand 9, single buffered']
    #allocation13 [shape = 'u8[512]{0}', space=vmem, size = 0x400, scoped, tag = 'input window, operand 11, single buffered']
    #allocation14 [shape = 's32[1]{0}', space=sflag, size = 0x4, scoped, tag = 'scoped memory for conv_block_forward.1']
    #allocation15 [shape = 'u8[512]{0}', space=vmem, size = 0x400, scoped, tag = 'input window, operand 12, single buffered']
    %19 = vsyncpa [#allocation3], 0
    %20 = vsyncpa [#allocation5], 0
    %21 = vsyncpa [#allocation8], 0
    %22 = vsyncpa [#allocation11], 0
    %23 = vsyncpa [#allocation14], 0
    loop: start=0, step=1, limit=4
    $region2: #{conv_block_forward.1} parent=1 // loop_pre_header
      _
    $region3: #{conv_block_forward.1} parent=1 // loop_header
      %s25 = sphi 0, %s29
      %p26 = scmp.ge.s32.totalorder %s25, 4
      %s35 = sphi 0, %s37
      %s38 = sphi 0, %s35
      %s39 = sphi 0, %s38
      %s55 = sphi 0, %s39
      %s59 = sphi 0, %s59
      %s61 = sphi 0, %s59
      %s62 = sphi 0, %s61
      %s76 = sphi 0, %s62
      %s80 = sphi 0, %s80
      %s82 = sphi 0, %s80
      %s83 = sphi 0, %s82
      %s97 = sphi 0, %s83
      %s101 = sphi 0, %s101
      %s103 = sphi 0, %s101
      %s104 = sphi 0, %s103
      %s118 = sphi 0, %s104
      %s122 = sphi 0, %s122
      %s124 = sphi 0, %s122
      %s125 = sphi 0, %s124
      %s139 = sphi 0, %s125
      %s143 = sphi 0, %s143
      %s145 = sphi 0, %s143
      %s146 = sphi 0, %s145
      %s160 = sphi 0, %s146
      %s164 = sphi 0, %s164
      %s166 = sphi 0, %s164
      %s167 = sphi 0, %s166
      %s181 = sphi 0, %s167
      %s185 = sphi 0, %s185
      %s187 = sphi 0, %s185
      %s188 = sphi 0, %s187
      %s202 = sphi 0, %s188
      %s206 = sphi 0, %s206
      %s208 = sphi 0, %s206
      %s209 = sphi 0, %s208
      %s223 = sphi 0, %s209
      %s227 = sphi 0, %s227
      %s229 = sphi 0, %s227
      %s230 = sphi 0, %s229
      %s244 = sphi 0, %s230
      %s248 = sphi 0, %s248
      %s250 = sphi 0, %s248
      %s251 = sphi 0, %s250
      %s265 = sphi 0, %s251
      %s269 = sphi 0, %s269
      %s271 = sphi 0, %s269
      %s272 = sphi 0, %s271
      %s286 = sphi 0, %s272
      %s290 = sphi 0, %s290
      %s292 = sphi 0, %s290
      %s293 = sphi 0, %s292
      %s307 = sphi 0, %s293
      %s311 = sphi 0, %s311
      %s313 = sphi 0, %s311
      %s314 = sphi 0, %s313
      %s328 = sphi 0, %s314
      %s334 = sphi 0, %s336
      %s337 = sphi 0, %s334
      %s338 = sphi 0, %s337
      %s354 = sphi 0, %s338
    $region4: #{conv_block_forward.1} parent=1 // loop_header_branch
      %28 = sbr.rel (%p26) target = $region8
    $region5: #{conv_block_forward.1} parent=1 // loop_body
      %s30 = ssub.s32 %s25, 1
      %s31 = ssub.s32 %s25, 2
      %s32 = sadd.s32 %s25, 1
      %s33 = ssub.s32 %s25, %s32
      %p34 = scmp.eq.s32.totalorder %s33, 0
      %s36 = sadd.s32 %s35, 1
      %s37 = scalar_select %p34, %s35, %s36
      %p40 = pneg %p34
      %p41 = scmp.eq.s32.totalorder %s25, 1
      %p42 = por %p40, %p41
      %p43 = scmp.ne.s32.totalorder %s35, %s38
      %p44 = scmp.eq.s32.totalorder %s25, 0
      %p45 = por %p43, %p44
      %p46 = scmp.ne.s32.totalorder %s35, %s38
      %p47 = scmp.eq.s32.totalorder %s30, 1
      %p48 = por %p46, %p47
      %p49 = scmp.ne.s32.totalorder %s38, %s39
      %p50 = scmp.eq.s32.totalorder %s30, 0
      %p51 = por %p49, %p50
      %p52 = scmp.ne.s32.totalorder %s38, %s39
      %p53 = scmp.eq.s32.totalorder %s31, 1
      %p54 = por %p52, %p53
      %p56 = scmp.ne.s32.totalorder %s39, %s55
      %p57 = scmp.eq.s32.totalorder %s31, 0
      %p58 = por %p56, %p57
      %s60 = sadd.s32 %s59, 1
      %p63 = scmp.eq.s32.totalorder %s25, 1
      %p64 = scmp.ne.s32.totalorder %s59, %s61
      %p65 = scmp.eq.s32.totalorder %s25, 0
      %p66 = por %p64, %p65
      %p67 = scmp.ne.s32.totalorder %s59, %s61
      %p68 = scmp.eq.s32.totalorder %s30, 1
      %p69 = por %p67, %p68
      %p70 = scmp.ne.s32.totalorder %s61, %s62
      %p71 = scmp.eq.s32.totalorder %s30, 0
      %p72 = por %p70, %p71
      %p73 = scmp.ne.s32.totalorder %s61, %s62
      %p74 = scmp.eq.s32.totalorder %s31, 1
      %p75 = por %p73, %p74
      %p77 = scmp.ne.s32.totalorder %s62, %s76
      %p78 = scmp.eq.s32.totalorder %s31, 0
      %p79 = por %p77, %p78
      %s81 = sadd.s32 %s80, 1
      %p84 = scmp.eq.s32.totalorder %s25, 1
      %p85 = scmp.ne.s32.totalorder %s80, %s82
      %p86 = scmp.eq.s32.totalorder %s25, 0
      %p87 = por %p85, %p86
      %p88 = scmp.ne.s32.totalorder %s80, %s82
      %p89 = scmp.eq.s32.totalorder %s30, 1
      %p90 = por %p88, %p89
      %p91 = scmp.ne.s32.totalorder %s82, %s83
      %p92 = scmp.eq.s32.totalorder %s30, 0
      %p93 = por %p91, %p92
      %p94 = scmp.ne.s32.totalorder %s82, %s83
      %p95 = scmp.eq.s32.totalorder %s31, 1
      %p96 = por %p94, %p95
      %p98 = scmp.ne.s32.totalorder %s83, %s97
      %p99 = scmp.eq.s32.totalorder %s31, 0
      %p100 = por %p98, %p99
      %s102 = sadd.s32 %s101, 1
      %p105 = scmp.eq.s32.totalorder %s25, 1
      %p106 = scmp.ne.s32.totalorder %s101, %s103
      %p107 = scmp.eq.s32.totalorder %s25, 0
      %p108 = por %p106, %p107
      %p109 = scmp.ne.s32.totalorder %s101, %s103
      %p110 = scmp.eq.s32.totalorder %s30, 1
      %p111 = por %p109, %p110
      %p112 = scmp.ne.s32.totalorder %s103, %s104
      %p113 = scmp.eq.s32.totalorder %s30, 0
      %p114 = por %p112, %p113
      %p115 = scmp.ne.s32.totalorder %s103, %s104
      %p116 = scmp.eq.s32.totalorder %s31, 1
      %p117 = por %p115, %p116
      %p119 = scmp.ne.s32.totalorder %s104, %s118
      %p120 = scmp.eq.s32.totalorder %s31, 0
      %p121 = por %p119, %p120
      %s123 = sadd.s32 %s122, 1
      %p126 = scmp.eq.s32.totalorder %s25, 1
      %p127 = scmp.ne.s32.totalorder %s122, %s124
      %p128 = scmp.eq.s32.totalorder %s25, 0
      %p129 = por %p127, %p128
      %p130 = scmp.ne.s32.totalorder %s122, %s124
      %p131 = scmp.eq.s32.totalorder %s30, 1
      %p132 = por %p130, %p131
      %p133 = scmp.ne.s32.totalorder %s124, %s125
      %p134 = scmp.eq.s32.totalorder %s30, 0
      %p135 = por %p133, %p134
      %p136 = scmp.ne.s32.totalorder %s124, %s125
      %p137 = scmp.eq.s32.totalorder %s31, 1
      %p138 = por %p136, %p137
      %p140 = scmp.ne.s32.totalorder %s125, %s139
      %p141 = scmp.eq.s32.totalorder %s31, 0
      %p142 = por %p140, %p141
      %s144 = sadd.s32 %s143, 1
      %p147 = scmp.eq.s32.totalorder %s25, 1
      %p148 = scmp.ne.s32.totalorder %s143, %s145
      %p149 = scmp.eq.s32.totalorder %s25, 0
      %p150 = por %p148, %p149
      %p151 = scmp.ne.s32.totalorder %s143, %s145
      %p152 = scmp.eq.s32.totalorder %s30, 1
      %p153 = por %p151, %p152
      %p154 = scmp.ne.s32.totalorder %s145, %s146
      %p155 = scmp.eq.s32.totalorder %s30, 0
      %p156 = por %p154, %p155
      %p157 = scmp.ne.s32.totalorder %s145, %s146
      %p158 = scmp.eq.s32.totalorder %s31, 1
      %p159 = por %p157, %p158
      %p161 = scmp.ne.s32.totalorder %s146, %s160
      %p162 = scmp.eq.s32.totalorder %s31, 0
      %p163 = por %p161, %p162
      %s165 = sadd.s32 %s164, 1
      %p168 = scmp.eq.s32.totalorder %s25, 1
      %p169 = scmp.ne.s32.totalorder %s164, %s166
      %p170 = scmp.eq.s32.totalorder %s25, 0
      %p171 = por %p169, %p170
      %p172 = scmp.ne.s32.totalorder %s164, %s166
      %p173 = scmp.eq.s32.totalorder %s30, 1
      %p174 = por %p172, %p173
      %p175 = scmp.ne.s32.totalorder %s166, %s167
      %p176 = scmp.eq.s32.totalorder %s30, 0
      %p177 = por %p175, %p176
      %p178 = scmp.ne.s32.totalorder %s166, %s167
      %p179 = scmp.eq.s32.totalorder %s31, 1
      %p180 = por %p178, %p179
      %p182 = scmp.ne.s32.totalorder %s167, %s181
      %p183 = scmp.eq.s32.totalorder %s31, 0
      %p184 = por %p182, %p183
      %s186 = sadd.s32 %s185, 1
      %p189 = scmp.eq.s32.totalorder %s25, 1
      %p190 = scmp.ne.s32.totalorder %s185, %s187
      %p191 = scmp.eq.s32.totalorder %s25, 0
      %p192 = por %p190, %p191
      %p193 = scmp.ne.s32.totalorder %s185, %s187
      %p194 = scmp.eq.s32.totalorder %s30, 1
      %p195 = por %p193, %p194
      %p196 = scmp.ne.s32.totalorder %s187, %s188
      %p197 = scmp.eq.s32.totalorder %s30, 0
      %p198 = por %p196, %p197
      %p199 = scmp.ne.s32.totalorder %s187, %s188
      %p200 = scmp.eq.s32.totalorder %s31, 1
      %p201 = por %p199, %p200
      %p203 = scmp.ne.s32.totalorder %s188, %s202
      %p204 = scmp.eq.s32.totalorder %s31, 0
      %p205 = por %p203, %p204
      %s207 = sadd.s32 %s206, 1
      %p210 = scmp.eq.s32.totalorder %s25, 1
      %p211 = scmp.ne.s32.totalorder %s206, %s208
      %p212 = scmp.eq.s32.totalorder %s25, 0
      %p213 = por %p211, %p212
      %p214 = scmp.ne.s32.totalorder %s206, %s208
      %p215 = scmp.eq.s32.totalorder %s30, 1
      %p216 = por %p214, %p215
      %p217 = scmp.ne.s32.totalorder %s208, %s209
      %p218 = scmp.eq.s32.totalorder %s30, 0
      %p219 = por %p217, %p218
      %p220 = scmp.ne.s32.totalorder %s208, %s209
      %p221 = scmp.eq.s32.totalorder %s31, 1
      %p222 = por %p220, %p221
      %p224 = scmp.ne.s32.totalorder %s209, %s223
      %p225 = scmp.eq.s32.totalorder %s31, 0
      %p226 = por %p224, %p225
      %s228 = sadd.s32 %s227, 1
      %p231 = scmp.eq.s32.totalorder %s25, 1
      %p232 = scmp.ne.s32.totalorder %s227, %s229
      %p233 = scmp.eq.s32.totalorder %s25, 0
      %p234 = por %p232, %p233
      %p235 = scmp.ne.s32.totalorder %s227, %s229
      %p236 = scmp.eq.s32.totalorder %s30, 1
      %p237 = por %p235, %p236
      %p238 = scmp.ne.s32.totalorder %s229, %s230
      %p239 = scmp.eq.s32.totalorder %s30, 0
      %p240 = por %p238, %p239
      %p241 = scmp.ne.s32.totalorder %s229, %s230
      %p242 = scmp.eq.s32.totalorder %s31, 1
      %p243 = por %p241, %p242
      %p245 = scmp.ne.s32.totalorder %s230, %s244
      %p246 = scmp.eq.s32.totalorder %s31, 0
      %p247 = por %p245, %p246
      %s249 = sadd.s32 %s248, 1
      %p252 = scmp.eq.s32.totalorder %s25, 1
      %p253 = scmp.ne.s32.totalorder %s248, %s250
      %p254 = scmp.eq.s32.totalorder %s25, 0
      %p255 = por %p253, %p254
      %p256 = scmp.ne.s32.totalorder %s248, %s250
      %p257 = scmp.eq.s32.totalorder %s30, 1
      %p258 = por %p256, %p257
      %p259 = scmp.ne.s32.totalorder %s250, %s251
      %p260 = scmp.eq.s32.totalorder %s30, 0
      %p261 = por %p259, %p260
      %p262 = scmp.ne.s32.totalorder %s250, %s251
      %p263 = scmp.eq.s32.totalorder %s31, 1
      %p264 = por %p262, %p263
      %p266 = scmp.ne.s32.totalorder %s251, %s265
      %p267 = scmp.eq.s32.totalorder %s31, 0
      %p268 = por %p266, %p267
      %s270 = sadd.s32 %s269, 1
      %p273 = scmp.eq.s32.totalorder %s25, 1
      %p274 = scmp.ne.s32.totalorder %s269, %s271
      %p275 = scmp.eq.s32.totalorder %s25, 0
      %p276 = por %p274, %p275
      %p277 = scmp.ne.s32.totalorder %s269, %s271
      %p278 = scmp.eq.s32.totalorder %s30, 1
      %p279 = por %p277, %p278
      %p280 = scmp.ne.s32.totalorder %s271, %s272
      %p281 = scmp.eq.s32.totalorder %s30, 0
      %p282 = por %p280, %p281
      %p283 = scmp.ne.s32.totalorder %s271, %s272
      %p284 = scmp.eq.s32.totalorder %s31, 1
      %p285 = por %p283, %p284
      %p287 = scmp.ne.s32.totalorder %s272, %s286
      %p288 = scmp.eq.s32.totalorder %s31, 0
      %p289 = por %p287, %p288
      %s291 = sadd.s32 %s290, 1
      %p294 = scmp.eq.s32.totalorder %s25, 1
      %p295 = scmp.ne.s32.totalorder %s290, %s292
      %p296 = scmp.eq.s32.totalorder %s25, 0
      %p297 = por %p295, %p296
      %p298 = scmp.ne.s32.totalorder %s290, %s292
      %p299 = scmp.eq.s32.totalorder %s30, 1
      %p300 = por %p298, %p299
      %p301 = scmp.ne.s32.totalorder %s292, %s293
      %p302 = scmp.eq.s32.totalorder %s30, 0
      %p303 = por %p301, %p302
      %p304 = scmp.ne.s32.totalorder %s292, %s293
      %p305 = scmp.eq.s32.totalorder %s31, 1
      %p306 = por %p304, %p305
      %p308 = scmp.ne.s32.totalorder %s293, %s307
      %p309 = scmp.eq.s32.totalorder %s31, 0
      %p310 = por %p308, %p309
      %s312 = sadd.s32 %s311, 1
      %p315 = scmp.eq.s32.totalorder %s25, 1
      %p316 = scmp.ne.s32.totalorder %s311, %s313
      %p317 = scmp.eq.s32.totalorder %s25, 0
      %p318 = por %p316, %p317
      %p319 = scmp.ne.s32.totalorder %s311, %s313
      %p320 = scmp.eq.s32.totalorder %s30, 1
      %p321 = por %p319, %p320
      %p322 = scmp.ne.s32.totalorder %s313, %s314
      %p323 = scmp.eq.s32.totalorder %s30, 0
      %p324 = por %p322, %p323
      %p325 = scmp.ne.s32.totalorder %s313, %s314
      %p326 = scmp.eq.s32.totalorder %s31, 1
      %p327 = por %p325, %p326
      %p329 = scmp.ne.s32.totalorder %s314, %s328
      %p330 = scmp.eq.s32.totalorder %s31, 0
      %p331 = por %p329, %p330
      %s332 = ssub.s32 %s25, %s32
      %p333 = scmp.eq.s32.totalorder %s332, 0
      %s335 = sadd.s32 %s334, 1
      %s336 = scalar_select %p333, %s334, %s335
      %p339 = pneg %p333
      %p340 = scmp.eq.s32.totalorder %s25, 1
      %p341 = por %p339, %p340
      %p342 = scmp.ne.s32.totalorder %s334, %s337
      %p343 = scmp.eq.s32.totalorder %s25, 0
      %p344 = por %p342, %p343
      %p345 = scmp.ne.s32.totalorder %s334, %s337
      %p346 = scmp.eq.s32.totalorder %s30, 1
      %p347 = por %p345, %p346
      %p348 = scmp.ne.s32.totalorder %s337, %s338
      %p349 = scmp.eq.s32.totalorder %s30, 0
      %p350 = por %p348, %p349
      %p351 = scmp.ne.s32.totalorder %s337, %s338
      %p352 = scmp.eq.s32.totalorder %s31, 1
      %p353 = por %p351, %p352
      %p355 = scmp.ne.s32.totalorder %s338, %s354
      %p356 = scmp.eq.s32.totalorder %s31, 0
      %p357 = por %p355, %p356
      %p358 = scmp.le.s32.totalorder 1, %s25
      %p359 = scmp.lt.s32.totalorder %s25, 3
      %p360 = pnand %p358, %p359
      %p361 = pneg %p360
      // Predicated region
      $region9: #{conv_block_forward.1} parent=5 // pred_check
        _
      $region10: #{conv_block_forward.1} parent=5 // pred_check_branch
        %363 = sbr.rel (%p360) target = $region12
      $region11: #{conv_block_forward.1} parent=5 // pred_region
        %s364 = ssub.s32 %s25, 1
        // Predicated region
        $region13: #{conv_block_forward.1} parent=11 // pred_check
          %p365 = pneg %p72
        $region14: #{conv_block_forward.1} parent=11 // pred_check_branch
          %367 = sbr.rel (%p365) target = $region16
        $region15: #{conv_block_forward.1} parent=11 // pred_region
          %s369 = ssub.s32 36864, 36864
          %370 = vsyncadd [#allocation3], %s369
          %s371 = sshll.u32 [#allocation2], 4
          %s372 = int_to_ptr.vmem [resolvable:$true] %s371
          %377 = dma.hbm_to_vmem [thread:$0]  %s1, 36864, %s372, [#allocation3], 128, 128, 8
        $region16: #{conv_block_forward.1} parent=11 // pred_fallthru
          _
        // Predicated region
        $region17: #{conv_block_forward.1} parent=11 // pred_check
          %p378 = pneg %p93
        $region18: #{conv_block_forward.1} parent=11 // pred_check_branch
          %380 = sbr.rel (%p378) target = $region20
        $region19: #{conv_block_forward.1} parent=11 // pred_region
          %s382 = ssub.s32 16, 16
          %383 = vsyncadd [#allocation5], %s382
          %s385 = sshll.u32 [#allocation4], 4
          %s386 = int_to_ptr.vmem [resolvable:$true] %s385
          %388 = dma.hbm_to_vmem [thread:$0]  %s2, 16, %s386, [#allocation5]
        $region20: #{conv_block_forward.1} parent=11 // pred_fallthru
          _
        // Predicated region
        $region21: #{conv_block_forward.1} parent=11 // pred_check
          %p389 = pneg %p114
        $region22: #{conv_block_forward.1} parent=11 // pred_check_branch
          %391 = sbr.rel (%p389) target = $region24
        $region23: #{conv_block_forward.1} parent=11 // pred_region
          %s393 = ssub.s32 16, 16
          %394 = vsyncadd [#allocation5], %s393
          %s396 = sshll.u32 [#allocation6], 4
          %s397 = int_to_ptr.vmem [resolvable:$true] %s396
          %399 = dma.hbm_to_vmem [thread:$0]  %s3, 16, %s397, [#allocation5]
        $region24: #{conv_block_forward.1} parent=11 // pred_fallthru
          _
        // Predicated region
        $region25: #{conv_block_forward.1} parent=11 // pred_check
          %p400 = pneg %p135
        $region26: #{conv_block_forward.1} parent=11 // pred_check_branch
          %402 = sbr.rel (%p400) target = $region28
        $region27: #{conv_block_forward.1} parent=11 // pred_region
          _
        $region28: #{conv_block_forward.1} parent=11 // pred_fallthru
          _
        // Predicated region
        $region29: #{conv_block_forward.1} parent=11 // pred_check
          %p403 = pneg %p156
        $region30: #{conv_block_forward.1} parent=11 // pred_check_branch
          %405 = sbr.rel (%p403) target = $region32
        $region31: #{conv_block_forward.1} parent=11 // pred_region
          %s407 = ssub.s32 16, 16
          %408 = vsyncadd [#allocation8], %s407
          %s410 = sshll.u32 [#allocation7], 4
          %s411 = int_to_ptr.vmem [resolvable:$true] %s410
          %413 = dma.hbm_to_vmem [thread:$0]  %s5, 16, %s411, [#allocation8]
        $region32: #{conv_block_forward.1} parent=11 // pred_fallthru
          _
        // Predicated region
        $region33: #{conv_block_forward.1} parent=11 // pred_check
          %p414 = pneg %p177
        $region34: #{conv_block_forward.1} parent=11 // pred_check_branch
          %416 = sbr.rel (%p414) target = $region36
        $region35: #{conv_block_forward.1} parent=11 // pred_region
          %s418 = ssub.s32 16, 16
          %419 = vsyncadd [#allocation8], %s418
          %s421 = sshll.u32 [#allocation9], 4
          %s422 = int_to_ptr.vmem [resolvable:$true] %s421
          %424 = dma.hbm_to_vmem [thread:$0]  %s6, 16, %s422, [#allocation8]
        $region36: #{conv_block_forward.1} parent=11 // pred_fallthru
          _
        // Predicated region
        $region37: #{conv_block_forward.1} parent=11 // pred_check
          %p425 = pneg %p198
        $region38: #{conv_block_forward.1} parent=11 // pred_check_branch
          %427 = sbr.rel (%p425) target = $region40
        $region39: #{conv_block_forward.1} parent=11 // pred_region
          _
        $region40: #{conv_block_forward.1} parent=11 // pred_fallthru
          _
        // Predicated region
        $region41: #{conv_block_forward.1} parent=11 // pred_check
          %p428 = pneg %p219
        $region42: #{conv_block_forward.1} parent=11 // pred_check_branch
          %430 = sbr.rel (%p428) target = $region44
        $region43: #{conv_block_forward.1} parent=11 // pred_region
          %s432 = ssub.s32 16, 16
          %433 = vsyncadd [#allocation11], %s432
          %s435 = sshll.u32 [#allocation10], 4
          %s436 = int_to_ptr.vmem [resolvable:$true] %s435
          %438 = dma.hbm_to_vmem [thread:$0]  %s8, 16, %s436, [#allocation11]
        $region44: #{conv_block_forward.1} parent=11 // pred_fallthru
          _
        // Predicated region
        $region45: #{conv_block_forward.1} parent=11 // pred_check
          %p439 = pneg %p240
        $region46: #{conv_block_forward.1} parent=11 // pred_check_branch
          %441 = sbr.rel (%p439) target = $region48
        $region47: #{conv_block_forward.1} parent=11 // pred_region
          %s443 = ssub.s32 16, 16
          %444 = vsyncadd [#allocation11], %s443
          %s446 = sshll.u32 [#allocation12], 4
          %s447 = int_to_ptr.vmem [resolvable:$true] %s446
          %449 = dma.hbm_to_vmem [thread:$0]  %s9, 16, %s447, [#allocation11]
        $region48: #{conv_block_forward.1} parent=11 // pred_fallthru
          _
        // Predicated region
        $region49: #{conv_block_forward.1} parent=11 // pred_check
          %p450 = pneg %p261
        $region50: #{conv_block_forward.1} parent=11 // pred_check_branch
          %452 = sbr.rel (%p450) target = $region52
        $region51: #{conv_block_forward.1} parent=11 // pred_region
          _
        $region52: #{conv_block_forward.1} parent=11 // pred_fallthru
          _
        // Predicated region
        $region53: #{conv_block_forward.1} parent=11 // pred_check
          %p453 = pneg %p282
        $region54: #{conv_block_forward.1} parent=11 // pred_check_branch
          %455 = sbr.rel (%p453) target = $region56
        $region55: #{conv_block_forward.1} parent=11 // pred_region
          %s457 = ssub.s32 16, 16
          %458 = vsyncadd [#allocation14], %s457
          %s460 = sshll.u32 [#allocation13], 4
          %s461 = int_to_ptr.vmem [resolvable:$true] %s460
          %463 = dma.hbm_to_vmem [thread:$0]  %s11, 16, %s461, [#allocation14]
        $region56: #{conv_block_forward.1} parent=11 // pred_fallthru
          _
        // Predicated region
        $region57: #{conv_block_forward.1} parent=11 // pred_check
          %p464 = pneg %p303
        $region58: #{conv_block_forward.1} parent=11 // pred_check_branch
          %466 = sbr.rel (%p464) target = $region60
        $region59: #{conv_block_forward.1} parent=11 // pred_region
          %s468 = ssub.s32 16, 16
          %469 = vsyncadd [#allocation14], %s468
          %s471 = sshll.u32 [#allocation15], 4
          %s472 = int_to_ptr.vmem [resolvable:$true] %s471
          %474 = dma.hbm_to_vmem [thread:$0]  %s12, 16, %s472, [#allocation14]
        $region60: #{conv_block_forward.1} parent=11 // pred_fallthru
          _
        // Predicated region
        $region61: #{conv_block_forward.1} parent=11 // pred_check
          %p475 = pneg %p324
        $region62: #{conv_block_forward.1} parent=11 // pred_check_branch
          %477 = sbr.rel (%p475) target = $region64
        $region63: #{conv_block_forward.1} parent=11 // pred_region
          _
        $region64: #{conv_block_forward.1} parent=11 // pred_fallthru
          _
      $region12: #{conv_block_forward.1} parent=5 // pred_fallthru
        _
      %p478 = scmp.lt.s32.totalorder %s25, 2
      // Predicated region
      $region65: #{conv_block_forward.1} parent=5 // pred_check
        %p479 = pneg %p478
      $region66: #{conv_block_forward.1} parent=5 // pred_check_branch
        %481 = sbr.rel (%p479) target = $region68
      $region67: #{conv_block_forward.1} parent=5 // pred_region
        // Predicated region
        $region69: #{conv_block_forward.1} parent=67 // pred_check
          %p482 = pneg %p45
        $region70: #{conv_block_forward.1} parent=67 // pred_check_branch
          %484 = sbr.rel (%p482) target = $region72
        $region71: #{conv_block_forward.1} parent=67 // pred_region
          %p485 = scmp.lt.s32.totalorder %s25, 1
          %s486 = scalar_select %p485, %s25, 1
          %s487 = smul.addr %s486, 32
          %s488 = smul.addr %s487, 8
          %s489 = scalar_lea.vmem %s0, %s488
        $region72: #{conv_block_forward.1} parent=67 // pred_fallthru
          _
      $region68: #{conv_block_forward.1} parent=5 // pred_fallthru
        _
      %p490 = scmp.le.s32.totalorder 1, %s25
      %p491 = scmp.lt.s32.totalorder %s25, 3
      %p492 = pnand %p490, %p491
      %p493 = pneg %p492
      // Predicated region
      $region73: #{conv_block_forward.1} parent=5 // pred_check
        _
      $region74: #{conv_block_forward.1} parent=5 // pred_check_branch
        %495 = sbr.rel (%p492) target = $region76
      $region75: #{conv_block_forward.1} parent=5 // pred_region
        %s496 = ssub.s32 %s25, 1
        // Predicated region
        $region77: #{conv_block_forward.1} parent=75 // pred_check
          %p497 = pneg %p72
        $region78: #{conv_block_forward.1} parent=75 // pred_check_branch
          %499 = sbr.rel (%p497) target = $region80
        $region79: #{conv_block_forward.1} parent=75 // pred_region
          %500 = dma.done [#allocation3], 36864
        $region80: #{conv_block_forward.1} parent=75 // pred_fallthru
          _
        // Predicated region
        $region81: #{conv_block_forward.1} parent=75 // pred_check
          %p501 = pneg %p93
        $region82: #{conv_block_forward.1} parent=75 // pred_check_branch
          %503 = sbr.rel (%p501) target = $region84
        $region83: #{conv_block_forward.1} parent=75 // pred_region
          %504 = dma.done [#allocation5], 16
        $region84: #{conv_block_forward.1} parent=75 // pred_fallthru
          _
        // Predicated region
        $region85: #{conv_block_forward.1} parent=75 // pred_check
          %p505 = pneg %p114
        $region86: #{conv_block_forward.1} parent=75 // pred_check_branch
          %507 = sbr.rel (%p505) target = $region88
        $region87: #{conv_block_forward.1} parent=75 // pred_region
          %508 = dma.done [#allocation5], 16
        $region88: #{conv_block_forward.1} parent=75 // pred_fallthru
          _
        // Predicated region
        $region89: #{conv_block_forward.1} parent=75 // pred_check
          %p509 = pneg %p156
        $region90: #{conv_block_forward.1} parent=75 // pred_check_branch
          %511 = sbr.rel (%p509) target = $region92
        $region91: #{conv_block_forward.1} parent=75 // pred_region
          %512 = dma.done [#allocation8], 16
        $region92: #{conv_block_forward.1} parent=75 // pred_fallthru
          _
        // Predicated region
        $region93: #{conv_block_forward.1} parent=75 // pred_check
          %p513 = pneg %p177
        $region94: #{conv_block_forward.1} parent=75 // pred_check_branch
          %515 = sbr.rel (%p513) target = $region96
        $region95: #{conv_block_forward.1} parent=75 // pred_region
          %516 = dma.done [#allocation8], 16
        $region96: #{conv_block_forward.1} parent=75 // pred_fallthru
          _
        // Predicated region
        $region97: #{conv_block_forward.1} parent=75 // pred_check
          %p517 = pneg %p219
        $region98: #{conv_block_forward.1} parent=75 // pred_check_branch
          %519 = sbr.rel (%p517) target = $region100
        $region99: #{conv_block_forward.1} parent=75 // pred_region
          %520 = dma.done [#allocation11], 16
        $region100: #{conv_block_forward.1} parent=75 // pred_fallthru
          _
        // Predicated region
        $region101: #{conv_block_forward.1} parent=75 // pred_check
          %p521 = pneg %p240
        $region102: #{conv_block_forward.1} parent=75 // pred_check_branch
          %523 = sbr.rel (%p521) target = $region104
        $region103: #{conv_block_forward.1} parent=75 // pred_region
          %524 = dma.done [#allocation11], 16
        $region104: #{conv_block_forward.1} parent=75 // pred_fallthru
          _
        // Predicated region
        $region105: #{conv_block_forward.1} parent=75 // pred_check
          %p525 = pneg %p282
        $region106: #{conv_block_forward.1} parent=75 // pred_check_branch
          %527 = sbr.rel (%p525) target = $region108
        $region107: #{conv_block_forward.1} parent=75 // pred_region
          %528 = dma.done [#allocation14], 16
        $region108: #{conv_block_forward.1} parent=75 // pred_fallthru
          _
        // Predicated region
        $region109: #{conv_block_forward.1} parent=75 // pred_check
          %p529 = pneg %p303
        $region110: #{conv_block_forward.1} parent=75 // pred_check_branch
          %531 = sbr.rel (%p529) target = $region112
        $region111: #{conv_block_forward.1} parent=75 // pred_region
          %532 = dma.done [#allocation14], 16
        $region112: #{conv_block_forward.1} parent=75 // pred_fallthru
          _
        %p533 = scmp.lt.s32.totalorder %s30, 1
        %s534 = scalar_select %p533, %s30, 1
        %s535 = smul.addr %s534, 32
        %s536 = smul.addr %s535, 8
        %s537 = scalar_lea.vmem %s0, %s536
        %p538 = pneg %p51
        %p539 = pneg %p48
        %p540 = pneg %p72
        %p541 = pneg %p69
        %p542 = pneg %p93
        %p543 = pneg %p90
        %p544 = pneg %p114
        %p545 = pneg %p111
        %p546 = pneg %p135
        %p547 = pneg %p132
        %p548 = pneg %p156
        %p549 = pneg %p153
        %p550 = pneg %p177
        %p551 = pneg %p174
        %p552 = pneg %p198
        %p553 = pneg %p195
        %p554 = pneg %p219
        %p555 = pneg %p216
        %p556 = pneg %p240
        %p557 = pneg %p237
        %p558 = pneg %p261
        %p559 = pneg %p258
        %p560 = pneg %p282
        %p561 = pneg %p279
        %p562 = pneg %p303
        %p563 = pneg %p300
        %p564 = pneg %p324
        %p565 = pneg %p321
        %p566 = pneg %p350
        %p567 = pneg %p347
        %p568 = scmp.lt.s32.totalorder %s30, 1
        %s569 = scalar_select %p568, %s30, 1
        %s570 = smul.addr %s569, 32
        %s571 = smul.addr %s570, 8
        %s572 = scalar_lea.vmem %s14, %s571
        %p573 = scmp.lt.s32.totalorder %s30, 1
        %s574 = scalar_select %p573, %s30, 1
        %s575 = smul.addr %s574, 32
        %s576 = smul.addr %s575, 8
        %s577 = scalar_lea.vmem %s0, %s576
        %p578 = scmp.lt.s32.totalorder %s30, 1
        %s579 = scalar_select %p578, %s30, 1
        %s580 = smul.addr %s579, 32
        %s581 = smul.addr %s580, 8
        %s582 = scalar_lea.vmem %s14, %s581
        %v584 = vld [vmem:[#allocation2] sm:$0xff]
        %v585 = vld [vmem:[#allocation2 + $0x8] sm:$0xff]
        %v586 = vld [vmem:[#allocation2 + $0x10] sm:$0xff]
        %v587 = vld [vmem:[#allocation2 + $0x18] sm:$0xff]
        %v588 = vld [vmem:[#allocation2 + $0x20] sm:$0xff]
        %v589 = vld [vmem:[#allocation2 + $0x28] sm:$0xff]
        %v590 = vld [vmem:[#allocation2 + $0x30] sm:$0xff]
        %v591 = vld [vmem:[#allocation2 + $0x38] sm:$0xff]
        %v592 = vld [vmem:[#allocation2 + $0x40] sm:$0xff]
        %v593 = vld [vmem:[#allocation2 + $0x48] sm:$0xff]
        %v594 = vld [vmem:[#allocation2 + $0x50] sm:$0xff]
        %v595 = vld [vmem:[#allocation2 + $0x58] sm:$0xff]
        %v596 = vld [vmem:[#allocation2 + $0x60] sm:$0xff]
        %v597 = vld [vmem:[#allocation2 + $0x68] sm:$0xff]
        %v598 = vld [vmem:[#allocation2 + $0x70] sm:$0xff]
        %v599 = vld [vmem:[#allocation2 + $0x78] sm:$0xff]
        %v600 = vld [vmem:[#allocation2 + $0x80] sm:$0xff]
        %v601 = vld [vmem:[#allocation2 + $0x88] sm:$0xff]
        %v602 = vld [vmem:[#allocation2 + $0x90] sm:$0xff]
        %v603 = vld [vmem:[#allocation2 + $0x98] sm:$0xff]
        %v604 = vld [vmem:[#allocation2 + $0xa0] sm:$0xff]
        %v605 = vld [vmem:[#allocation2 + $0xa8] sm:$0xff]
        %v606 = vld [vmem:[#allocation2 + $0xb0] sm:$0xff]
        %v607 = vld [vmem:[#allocation2 + $0xb8] sm:$0xff]
        %v608 = vld [vmem:[#allocation2 + $0xc0] sm:$0xff]
        %v609 = vld [vmem:[#allocation2 + $0xc8] sm:$0xff]
        %v610 = vld [vmem:[#allocation2 + $0xd0] sm:$0xff]
        %v611 = vld [vmem:[#allocation2 + $0xd8] sm:$0xff]
        %v612 = vld [vmem:[#allocation2 + $0xe0] sm:$0xff]
        %v613 = vld [vmem:[#allocation2 + $0xe8] sm:$0xff]
        %v614 = vld [vmem:[#allocation2 + $0xf0] sm:$0xff]
        %v615 = vld [vmem:[#allocation2 + $0xf8] sm:$0xff]
        %s616 = scalar_lea.vmem [#allocation2], 256
        %v617 = vld [vmem:[%s616] sm:$0xff]
        %v618 = vld [vmem:[%s616 + $0x8] sm:$0xff]
        %v619 = vld [vmem:[%s616 + $0x10] sm:$0xff]
        %v620 = vld [vmem:[%s616 + $0x18] sm:$0xff]
        %v621 = vld [vmem:[%s616 + $0x20] sm:$0xff]
        %v622 = vld [vmem:[%s616 + $0x28] sm:$0xff]
        %v623 = vld [vmem:[%s616 + $0x30] sm:$0xff]
        %v624 = vld [vmem:[%s616 + $0x38] sm:$0xff]
        %v625 = vld [vmem:[%s616 + $0x40] sm:$0xff]
        %v626 = vld [vmem:[%s616 + $0x48] sm:$0xff]
        %v627 = vld [vmem:[%s616 + $0x50] sm:$0xff]
        %v628 = vld [vmem:[%s616 + $0x58] sm:$0xff]
        %v629 = vld [vmem:[%s616 + $0x60] sm:$0xff]
        %v630 = vld [vmem:[%s616 + $0x68] sm:$0xff]
        %v631 = vld [vmem:[%s616 + $0x70] sm:$0xff]
        %v632 = vld [vmem:[%s616 + $0x78] sm:$0xff]
        %v633 = vld [vmem:[%s616 + $0x80] sm:$0xff]
        %v634 = vld [vmem:[%s616 + $0x88] sm:$0xff]
        %v635 = vld [vmem:[%s616 + $0x90] sm:$0xff]
        %v636 = vld [vmem:[%s616 + $0x98] sm:$0xff]
        %v637 = vld [vmem:[%s616 + $0xa0] sm:$0xff]
        %v638 = vld [vmem:[%s616 + $0xa8] sm:$0xff]
        %v639 = vld [vmem:[%s616 + $0xb0] sm:$0xff]
        %v640 = vld [vmem:[%s616 + $0xb8] sm:$0xff]
        %v641 = vld [vmem:[%s616 + $0xc0] sm:$0xff]
        %v642 = vld [vmem:[%s616 + $0xc8] sm:$0xff]
        %v643 = vld [vmem:[%s616 + $0xd0] sm:$0xff]
        %v644 = vld [vmem:[%s616 + $0xd8] sm:$0xff]
        %v645 = vld [vmem:[%s616 + $0xe0] sm:$0xff]
        %v646 = vld [vmem:[%s616 + $0xe8] sm:$0xff]
        %v647 = vld [vmem:[%s616 + $0xf0] sm:$0xff]
        %v648 = vld [vmem:[%s616 + $0xf8] sm:$0xff]
        %s649 = scalar_lea.vmem [#allocation2], 512
        %v650 = vld [vmem:[%s649] sm:$0xff]
        %v651 = vld [vmem:[%s649 + $0x8] sm:$0xff]
        %v652 = vld [vmem:[%s649 + $0x10] sm:$0xff]
        %v653 = vld [vmem:[%s649 + $0x18] sm:$0xff]
        %v654 = vld [vmem:[%s649 + $0x20] sm:$0xff]
        %v655 = vld [vmem:[%s649 + $0x28] sm:$0xff]
        %v656 = vld [vmem:[%s649 + $0x30] sm:$0xff]
        %v657 = vld [vmem:[%s649 + $0x38] sm:$0xff]
        %v658 = vld [vmem:[%s649 + $0x40] sm:$0xff]
        %v659 = vld [vmem:[%s649 + $0x48] sm:$0xff]
        %v660 = vld [vmem:[%s649 + $0x50] sm:$0xff]
        %v661 = vld [vmem:[%s649 + $0x58] sm:$0xff]
        %v662 = vld [vmem:[%s649 + $0x60] sm:$0xff]
        %v663 = vld [vmem:[%s649 + $0x68] sm:$0xff]
        %v664 = vld [vmem:[%s649 + $0x70] sm:$0xff]
        %v665 = vld [vmem:[%s649 + $0x78] sm:$0xff]
        %v666 = vld [vmem:[%s649 + $0x80] sm:$0xff]
        %v667 = vld [vmem:[%s649 + $0x88] sm:$0xff]
        %v668 = vld [vmem:[%s649 + $0x90] sm:$0xff]
        %v669 = vld [vmem:[%s649 + $0x98] sm:$0xff]
        %v670 = vld [vmem:[%s649 + $0xa0] sm:$0xff]
        %v671 = vld [vmem:[%s649 + $0xa8] sm:$0xff]
        %v672 = vld [vmem:[%s649 + $0xb0] sm:$0xff]
        %v673 = vld [vmem:[%s649 + $0xb8] sm:$0xff]
        %v674 = vld [vmem:[%s649 + $0xc0] sm:$0xff]
        %v675 = vld [vmem:[%s649 + $0xc8] sm:$0xff]
        %v676 = vld [vmem:[%s649 + $0xd0] sm:$0xff]
        %v677 = vld [vmem:[%s649 + $0xd8] sm:$0xff]
        %v678 = vld [vmem:[%s649 + $0xe0] sm:$0xff]
        %v679 = vld [vmem:[%s649 + $0xe8] sm:$0xff]
        %v680 = vld [vmem:[%s649 + $0xf0] sm:$0xff]
        %v681 = vld [vmem:[%s649 + $0xf8] sm:$0xff]
        %s682 = scalar_lea.vmem [#allocation2], 768
        %v683 = vld [vmem:[%s682] sm:$0xff]
        %v684 = vld [vmem:[%s682 + $0x8] sm:$0xff]
        %v685 = vld [vmem:[%s682 + $0x10] sm:$0xff]
        %v686 = vld [vmem:[%s682 + $0x18] sm:$0xff]
        %v687 = vld [vmem:[%s682 + $0x20] sm:$0xff]
        %v688 = vld [vmem:[%s682 + $0x28] sm:$0xff]
        %v689 = vld [vmem:[%s682 + $0x30] sm:$0xff]
        %v690 = vld [vmem:[%s682 + $0x38] sm:$0xff]
        %v691 = vld [vmem:[%s682 + $0x40] sm:$0xff]
        %v692 = vld [vmem:[%s682 + $0x48] sm:$0xff]
        %v693 = vld [vmem:[%s682 + $0x50] sm:$0xff]
        %v694 = vld [vmem:[%s682 + $0x58] sm:$0xff]
        %v695 = vld [vmem:[%s682 + $0x60] sm:$0xff]
        %v696 = vld [vmem:[%s682 + $0x68] sm:$0xff]
        %v697 = vld [vmem:[%s682 + $0x70] sm:$0xff]
        %v698 = vld [vmem:[%s682 + $0x78] sm:$0xff]
        %v699 = vld [vmem:[%s682 + $0x80] sm:$0xff]
        %v700 = vld [vmem:[%s682 + $0x88] sm:$0xff]
        %v701 = vld [vmem:[%s682 + $0x90] sm:$0xff]
        %v702 = vld [vmem:[%s682 + $0x98] sm:$0xff]
        %v703 = vld [vmem:[%s682 + $0xa0] sm:$0xff]
        %v704 = vld [vmem:[%s682 + $0xa8] sm:$0xff]
        %v705 = vld [vmem:[%s682 + $0xb0] sm:$0xff]
        %v706 = vld [vmem:[%s682 + $0xb8] sm:$0xff]
        %v707 = vld [vmem:[%s682 + $0xc0] sm:$0xff]
        %v708 = vld [vmem:[%s682 + $0xc8] sm:$0xff]
        %v709 = vld [vmem:[%s682 + $0xd0] sm:$0xff]
        %v710 = vld [vmem:[%s682 + $0xd8] sm:$0xff]
        %v711 = vld [vmem:[%s682 + $0xe0] sm:$0xff]
        %v712 = vld [vmem:[%s682 + $0xe8] sm:$0xff]
        %v713 = vld [vmem:[%s682 + $0xf0] sm:$0xff]
        %v714 = vld [vmem:[%s682 + $0xf8] sm:$0xff]
        %s715 = scalar_lea.vmem [#allocation2], 1024
        %v716 = vld [vmem:[%s715] sm:$0xff]
        %v717 = vld [vmem:[%s715 + $0x8] sm:$0xff]
        %v718 = vld [vmem:[%s715 + $0x10] sm:$0xff]
        %v719 = vld [vmem:[%s715 + $0x18] sm:$0xff]
        %v720 = vld [vmem:[%s715 + $0x20] sm:$0xff]
        %v721 = vld [vmem:[%s715 + $0x28] sm:$0xff]
        %v722 = vld [vmem:[%s715 + $0x30] sm:$0xff]
        %v723 = vld [vmem:[%s715 + $0x38] sm:$0xff]
        %v724 = vld [vmem:[%s715 + $0x40] sm:$0xff]
        %v725 = vld [vmem:[%s715 + $0x48] sm:$0xff]
        %v726 = vld [vmem:[%s715 + $0x50] sm:$0xff]
        %v727 = vld [vmem:[%s715 + $0x58] sm:$0xff]
        %v728 = vld [vmem:[%s715 + $0x60] sm:$0xff]
        %v729 = vld [vmem:[%s715 + $0x68] sm:$0xff]
        %v730 = vld [vmem:[%s715 + $0x70] sm:$0xff]
        %v731 = vld [vmem:[%s715 + $0x78] sm:$0xff]
        %v732 = vld [vmem:[%s715 + $0x80] sm:$0xff]
        %v733 = vld [vmem:[%s715 + $0x88] sm:$0xff]
        %v734 = vld [vmem:[%s715 + $0x90] sm:$0xff]
        %v735 = vld [vmem:[%s715 + $0x98] sm:$0xff]
        %v736 = vld [vmem:[%s715 + $0xa0] sm:$0xff]
        %v737 = vld [vmem:[%s715 + $0xa8] sm:$0xff]
        %v738 = vld [vmem:[%s715 + $0xb0] sm:$0xff]
        %v739 = vld [vmem:[%s715 + $0xb8] sm:$0xff]
        %v740 = vld [vmem:[%s715 + $0xc0] sm:$0xff]
        %v741 = vld [vmem:[%s715 + $0xc8] sm:$0xff]
        %v742 = vld [vmem:[%s715 + $0xd0] sm:$0xff]
        %v743 = vld [vmem:[%s715 + $0xd8] sm:$0xff]
        %v744 = vld [vmem:[%s715 + $0xe0] sm:$0xff]
        %v745 = vld [vmem:[%s715 + $0xe8] sm:$0xff]
        %v746 = vld [vmem:[%s715 + $0xf0] sm:$0xff]
        %v747 = vld [vmem:[%s715 + $0xf8] sm:$0xff]
        %s748 = scalar_lea.vmem [#allocation2], 1280
        %v749 = vld [vmem:[%s748] sm:$0xff]
        %v750 = vld [vmem:[%s748 + $0x8] sm:$0xff]
        %v751 = vld [vmem:[%s748 + $0x10] sm:$0xff]
        %v752 = vld [vmem:[%s748 + $0x18] sm:$0xff]
        %v753 = vld [vmem:[%s748 + $0x20] sm:$0xff]
        %v754 = vld [vmem:[%s748 + $0x28] sm:$0xff]
        %v755 = vld [vmem:[%s748 + $0x30] sm:$0xff]
        %v756 = vld [vmem:[%s748 + $0x38] sm:$0xff]
        %v757 = vld [vmem:[%s748 + $0x40] sm:$0xff]
        %v758 = vld [vmem:[%s748 + $0x48] sm:$0xff]
        %v759 = vld [vmem:[%s748 + $0x50] sm:$0xff]
        %v760 = vld [vmem:[%s748 + $0x58] sm:$0xff]
        %v761 = vld [vmem:[%s748 + $0x60] sm:$0xff]
        %v762 = vld [vmem:[%s748 + $0x68] sm:$0xff]
        %v763 = vld [vmem:[%s748 + $0x70] sm:$0xff]
        %v764 = vld [vmem:[%s748 + $0x78] sm:$0xff]
        %v765 = vld [vmem:[%s748 + $0x80] sm:$0xff]
        %v766 = vld [vmem:[%s748 + $0x88] sm:$0xff]
        %v767 = vld [vmem:[%s748 + $0x90] sm:$0xff]
        %v768 = vld [vmem:[%s748 + $0x98] sm:$0xff]
        %v769 = vld [vmem:[%s748 + $0xa0] sm:$0xff]
        %v770 = vld [vmem:[%s748 + $0xa8] sm:$0xff]
        %v771 = vld [vmem:[%s748 + $0xb0] sm:$0xff]
        %v772 = vld [vmem:[%s748 + $0xb8] sm:$0xff]
        %v773 = vld [vmem:[%s748 + $0xc0] sm:$0xff]
        %v774 = vld [vmem:[%s748 + $0xc8] sm:$0xff]
        %v775 = vld [vmem:[%s748 + $0xd0] sm:$0xff]
        %v776 = vld [vmem:[%s748 + $0xd8] sm:$0xff]
        %v777 = vld [vmem:[%s748 + $0xe0] sm:$0xff]
        %v778 = vld [vmem:[%s748 + $0xe8] sm:$0xff]
        %v779 = vld [vmem:[%s748 + $0xf0] sm:$0xff]
        %v780 = vld [vmem:[%s748 + $0xf8] sm:$0xff]
        %s781 = scalar_lea.vmem [#allocation2], 1536
        %v782 = vld [vmem:[%s781] sm:$0xff]
        %v783 = vld [vmem:[%s781 + $0x8] sm:$0xff]
        %v784 = vld [vmem:[%s781 + $0x10] sm:$0xff]
        %v785 = vld [vmem:[%s781 + $0x18] sm:$0xff]
        %v786 = vld [vmem:[%s781 + $0x20] sm:$0xff]
        %v787 = vld [vmem:[%s781 + $0x28] sm:$0xff]
        %v788 = vld [vmem:[%s781 + $0x30] sm:$0xff]
        %v789 = vld [vmem:[%s781 + $0x38] sm:$0xff]
        %v790 = vld [vmem:[%s781 + $0x40] sm:$0xff]
        %v791 = vld [vmem:[%s781 + $0x48] sm:$0xff]
        %v792 = vld [vmem:[%s781 + $0x50] sm:$0xff]
        %v793 = vld [vmem:[%s781 + $0x58] sm:$0xff]
        %v794 = vld [vmem:[%s781 + $0x60] sm:$0xff]
        %v795 = vld [vmem:[%s781 + $0x68] sm:$0xff]
        %v796 = vld [vmem:[%s781 + $0x70] sm:$0xff]
        %v797 = vld [vmem:[%s781 + $0x78] sm:$0xff]
        %v798 = vld [vmem:[%s781 + $0x80] sm:$0xff]
        %v799 = vld [vmem:[%s781 + $0x88] sm:$0xff]
        %v800 = vld [vmem:[%s781 + $0x90] sm:$0xff]
        %v801 = vld [vmem:[%s781 + $0x98] sm:$0xff]
        %v802 = vld [vmem:[%s781 + $0xa0] sm:$0xff]
        %v803 = vld [vmem:[%s781 + $0xa8] sm:$0xff]
        %v804 = vld [vmem:[%s781 + $0xb0] sm:$0xff]
        %v805 = vld [vmem:[%s781 + $0xb8] sm:$0xff]
        %v806 = vld [vmem:[%s781 + $0xc0] sm:$0xff]
        %v807 = vld [vmem:[%s781 + $0xc8] sm:$0xff]
        %v808 = vld [vmem:[%s781 + $0xd0] sm:$0xff]
        %v809 = vld [vmem:[%s781 + $0xd8] sm:$0xff]
        %v810 = vld [vmem:[%s781 + $0xe0] sm:$0xff]
        %v811 = vld [vmem:[%s781 + $0xe8] sm:$0xff]
        %v812 = vld [vmem:[%s781 + $0xf0] sm:$0xff]
        %v813 = vld [vmem:[%s781 + $0xf8] sm:$0xff]
        %s814 = scalar_lea.vmem [#allocation2], 1792
        %v815 = vld [vmem:[%s814] sm:$0xff]
        %v816 = vld [vmem:[%s814 + $0x8] sm:$0xff]
        %v817 = vld [vmem:[%s814 + $0x10] sm:$0xff]
        %v818 = vld [vmem:[%s814 + $0x18] sm:$0xff]
        %v819 = vld [vmem:[%s814 + $0x20] sm:$0xff]
        %v820 = vld [vmem:[%s814 + $0x28] sm:$0xff]
        %v821 = vld [vmem:[%s814 + $0x30] sm:$0xff]
        %v822 = vld [vmem:[%s814 + $0x38] sm:$0xff]
        %v823 = vld [vmem:[%s814 + $0x40] sm:$0xff]
        %v824 = vld [vmem:[%s814 + $0x48] sm:$0xff]
        %v825 = vld [vmem:[%s814 + $0x50] sm:$0xff]
        %v826 = vld [vmem:[%s814 + $0x58] sm:$0xff]
        %v827 = vld [vmem:[%s814 + $0x60] sm:$0xff]
        %v828 = vld [vmem:[%s814 + $0x68] sm:$0xff]
        %v829 = vld [vmem:[%s814 + $0x70] sm:$0xff]
        %v830 = vld [vmem:[%s814 + $0x78] sm:$0xff]
        %v831 = vld [vmem:[%s814 + $0x80] sm:$0xff]
        %v832 = vld [vmem:[%s814 + $0x88] sm:$0xff]
        %v833 = vld [vmem:[%s814 + $0x90] sm:$0xff]
        %v834 = vld [vmem:[%s814 + $0x98] sm:$0xff]
        %v835 = vld [vmem:[%s814 + $0xa0] sm:$0xff]
        %v836 = vld [vmem:[%s814 + $0xa8] sm:$0xff]
        %v837 = vld [vmem:[%s814 + $0xb0] sm:$0xff]
        %v838 = vld [vmem:[%s814 + $0xb8] sm:$0xff]
        %v839 = vld [vmem:[%s814 + $0xc0] sm:$0xff]
        %v840 = vld [vmem:[%s814 + $0xc8] sm:$0xff]
        %v841 = vld [vmem:[%s814 + $0xd0] sm:$0xff]
        %v842 = vld [vmem:[%s814 + $0xd8] sm:$0xff]
        %v843 = vld [vmem:[%s814 + $0xe0] sm:$0xff]
        %v844 = vld [vmem:[%s814 + $0xe8] sm:$0xff]
        %v845 = vld [vmem:[%s814 + $0xf0] sm:$0xff]
        %v846 = vld [vmem:[%s814 + $0xf8] sm:$0xff]
        %s847 = scalar_lea.vmem [#allocation2], 2048
        %v848 = vld [vmem:[%s847] sm:$0xff]
        %v849 = vld [vmem:[%s847 + $0x8] sm:$0xff]
        %v850 = vld [vmem:[%s847 + $0x10] sm:$0xff]
        %v851 = vld [vmem:[%s847 + $0x18] sm:$0xff]
        %v852 = vld [vmem:[%s847 + $0x20] sm:$0xff]
        %v853 = vld [vmem:[%s847 + $0x28] sm:$0xff]
        %v854 = vld [vmem:[%s847 + $0x30] sm:$0xff]
        %v855 = vld [vmem:[%s847 + $0x38] sm:$0xff]
        %v856 = vld [vmem:[%s847 + $0x40] sm:$0xff]
        %v857 = vld [vmem:[%s847 + $0x48] sm:$0xff]
        %v858 = vld [vmem:[%s847 + $0x50] sm:$0xff]
        %v859 = vld [vmem:[%s847 + $0x58] sm:$0xff]
        %v860 = vld [vmem:[%s847 + $0x60] sm:$0xff]
        %v861 = vld [vmem:[%s847 + $0x68] sm:$0xff]
        %v862 = vld [vmem:[%s847 + $0x70] sm:$0xff]
        %v863 = vld [vmem:[%s847 + $0x78] sm:$0xff]
        %v864 = vld [vmem:[%s847 + $0x80] sm:$0xff]
        %v865 = vld [vmem:[%s847 + $0x88] sm:$0xff]
        %v866 = vld [vmem:[%s847 + $0x90] sm:$0xff]
        %v867 = vld [vmem:[%s847 + $0x98] sm:$0xff]
        %v868 = vld [vmem:[%s847 + $0xa0] sm:$0xff]
        %v869 = vld [vmem:[%s847 + $0xa8] sm:$0xff]
        %v870 = vld [vmem:[%s847 + $0xb0] sm:$0xff]
        %v871 = vld [vmem:[%s847 + $0xb8] sm:$0xff]
        %v872 = vld [vmem:[%s847 + $0xc0] sm:$0xff]
        %v873 = vld [vmem:[%s847 + $0xc8] sm:$0xff]
        %v874 = vld [vmem:[%s847 + $0xd0] sm:$0xff]
        %v875 = vld [vmem:[%s847 + $0xd8] sm:$0xff]
        %v876 = vld [vmem:[%s847 + $0xe0] sm:$0xff]
        %v877 = vld [vmem:[%s847 + $0xe8] sm:$0xff]
        %v878 = vld [vmem:[%s847 + $0xf0] sm:$0xff]
        %v879 = vld [vmem:[%s847 + $0xf8] sm:$0xff]
        %v880 = vld [vmem:[%s577] sm:$0xff]
        %v881 = vld [vmem:[%s577 + $0x8] sm:$0xff]
        %v882 = vld [vmem:[%s577 + $0x10] sm:$0xff]
        %v883 = vld [vmem:[%s577 + $0x18] sm:$0xff]
        %v884 = vld [vmem:[%s577 + $0x20] sm:$0xff]
        %v885 = vld [vmem:[%s577 + $0x28] sm:$0xff]
        %v886 = vld [vmem:[%s577 + $0x30] sm:$0xff]
        %v887 = vld [vmem:[%s577 + $0x38] sm:$0xff]
        %v888 = vld [vmem:[%s577 + $0x40] sm:$0xff]
        %v889 = vld [vmem:[%s577 + $0x48] sm:$0xff]
        %v890 = vld [vmem:[%s577 + $0x50] sm:$0xff]
        %v891 = vld [vmem:[%s577 + $0x58] sm:$0xff]
        %v892 = vld [vmem:[%s577 + $0x60] sm:$0xff]
        %v893 = vld [vmem:[%s577 + $0x68] sm:$0xff]
        %v894 = vld [vmem:[%s577 + $0x70] sm:$0xff]
        %v895 = vld [vmem:[%s577 + $0x78] sm:$0xff]
        %v896 = vld [vmem:[%s577 + $0x80] sm:$0xff]
        %v897 = vld [vmem:[%s577 + $0x88] sm:$0xff]
        %v898 = vld [vmem:[%s577 + $0x90] sm:$0xff]
        %v899 = vld [vmem:[%s577 + $0x98] sm:$0xff]
        %v900 = vld [vmem:[%s577 + $0xa0] sm:$0xff]
        %v901 = vld [vmem:[%s577 + $0xa8] sm:$0xff]
        %v902 = vld [vmem:[%s577 + $0xb0] sm:$0xff]
        %v903 = vld [vmem:[%s577 + $0xb8] sm:$0xff]
        %v904 = vld [vmem:[%s577 + $0xc0] sm:$0xff]
        %v905 = vld [vmem:[%s577 + $0xc8] sm:$0xff]
        %v906 = vld [vmem:[%s577 + $0xd0] sm:$0xff]
        %v907 = vld [vmem:[%s577 + $0xd8] sm:$0xff]
        %v908 = vld [vmem:[%s577 + $0xe0] sm:$0xff]
        %v909 = vld [vmem:[%s577 + $0xe8] sm:$0xff]
        %v910 = vld [vmem:[%s577 + $0xf0] sm:$0xff]
        %v911 = vld [vmem:[%s577 + $0xf8] sm:$0xff]
        %v912 = vld [vmem:[#allocation4] sm:$0x1]
        %v914 = vlaneseq
        %v915 = vshrl.u32 %v914, 7
        %v916 = vsub.s32 0, %v915
        %v917 = vrot.slane %v912, %v916
        %v919 = vmul.f32 %v880, %v917
        %v920 = vmul.f32 %v881, %v917
        %v921 = vmul.f32 %v882, %v917
        %v922 = vmul.f32 %v883, %v917
        %v923 = vmul.f32 %v884, %v917
        %v924 = vmul.f32 %v885, %v917
        %v925 = vmul.f32 %v886, %v917
        %v926 = vmul.f32 %v887, %v917
        %v927 = vmul.f32 %v888, %v917
        %v928 = vmul.f32 %v889, %v917
        %v929 = vmul.f32 %v890, %v917
        %v930 = vmul.f32 %v891, %v917
        %v931 = vmul.f32 %v892, %v917
        %v932 = vmul.f32 %v893, %v917
        %v933 = vmul.f32 %v894, %v917
        %v934 = vmul.f32 %v895, %v917
        %v935 = vmul.f32 %v896, %v917
        %v936 = vmul.f32 %v897, %v917
        %v937 = vmul.f32 %v898, %v917
        %v938 = vmul.f32 %v899, %v917
        %v939 = vmul.f32 %v900, %v917
        %v940 = vmul.f32 %v901, %v917
        %v941 = vmul.f32 %v902, %v917
        %v942 = vmul.f32 %v903, %v917
        %v943 = vmul.f32 %v904, %v917
        %v944 = vmul.f32 %v905, %v917
        %v945 = vmul.f32 %v906, %v917
        %v946 = vmul.f32 %v907, %v917
        %v947 = vmul.f32 %v908, %v917
        %v948 = vmul.f32 %v909, %v917
        %v949 = vmul.f32 %v910, %v917
        %v950 = vmul.f32 %v911, %v917
        %v951 = vld [vmem:[#allocation6] sm:$0x1]
        %v953 = vlaneseq
        %v954 = vshrl.u32 %v953, 7
        %v955 = vsub.s32 0, %v954
        %v956 = vrot.slane %v951, %v955
        %v958 = vadd.f32 %v919, %v956
        %v959 = vadd.f32 %v920, %v956
        %v960 = vadd.f32 %v921, %v956
        %v961 = vadd.f32 %v922, %v956
        %v962 = vadd.f32 %v923, %v956
        %v963 = vadd.f32 %v924, %v956
        %v964 = vadd.f32 %v925, %v956
        %v965 = vadd.f32 %v926, %v956
        %v966 = vadd.f32 %v927, %v956
        %v967 = vadd.f32 %v928, %v956
        %v968 = vadd.f32 %v929, %v956
        %v969 = vadd.f32 %v930, %v956
        %v970 = vadd.f32 %v931, %v956
        %v971 = vadd.f32 %v932, %v956
        %v972 = vadd.f32 %v933, %v956
        %v973 = vadd.f32 %v934, %v956
        %v974 = vadd.f32 %v935, %v956
        %v975 = vadd.f32 %v936, %v956
        %v976 = vadd.f32 %v937, %v956
        %v977 = vadd.f32 %v938, %v956
        %v978 = vadd.f32 %v939, %v956
        %v979 = vadd.f32 %v940, %v956
        %v980 = vadd.f32 %v941, %v956
        %v981 = vadd.f32 %v942, %v956
        %v982 = vadd.f32 %v943, %v956
        %v983 = vadd.f32 %v944, %v956
        %v984 = vadd.f32 %v945, %v956
        %v985 = vadd.f32 %v946, %v956
        %v986 = vadd.f32 %v947, %v956
        %v987 = vadd.f32 %v948, %v956
        %v988 = vadd.f32 %v949, %v956
        %v989 = vadd.f32 %v950, %v956
        %v990 = vmax.f32 %v958, 0.0
        %v991 = vmax.f32 %v959, 0.0
        %v992 = vmax.f32 %v960, 0.0
        %v993 = vmax.f32 %v961, 0.0
        %v994 = vmax.f32 %v962, 0.0
        %v995 = vmax.f32 %v963, 0.0
        %v996 = vmax.f32 %v964, 0.0
        %v997 = vmax.f32 %v965, 0.0
        %v998 = vmax.f32 %v966, 0.0
        %v999 = vmax.f32 %v967, 0.0
        %v1000 = vmax.f32 %v968, 0.0
        %v1001 = vmax.f32 %v969, 0.0
        %v1002 = vmax.f32 %v970, 0.0
        %v1003 = vmax.f32 %v971, 0.0
        %v1004 = vmax.f32 %v972, 0.0
        %v1005 = vmax.f32 %v973, 0.0
        %v1006 = vmax.f32 %v974, 0.0
        %v1007 = vmax.f32 %v975, 0.0
        %v1008 = vmax.f32 %v976, 0.0
        %v1009 = vmax.f32 %v977, 0.0
        %v1010 = vmax.f32 %v978, 0.0
        %v1011 = vmax.f32 %v979, 0.0
        %v1012 = vmax.f32 %v980, 0.0
        %v1013 = vmax.f32 %v981, 0.0
        %v1014 = vmax.f32 %v982, 0.0
        %v1015 = vmax.f32 %v983, 0.0
        %v1016 = vmax.f32 %v984, 0.0
        %v1017 = vmax.f32 %v985, 0.0
        %v1018 = vmax.f32 %v986, 0.0
        %v1019 = vmax.f32 %v987, 0.0
        %v1020 = vmax.f32 %v988, 0.0
        %v1021 = vmax.f32 %v989, 0.0
        %v1022 = vrot.slane %v990, 7
        %v1023 = vrot.slane %v991, 7
        %v1024 = vrot.slane %v992, 7
        %v1025 = vrot.slane %v993, 7
        %v1026 = vrot.slane %v994, 7
        %v1027 = vrot.slane %v995, 7
        %v1028 = vrot.slane %v996, 7
        %v1029 = vrot.slane %v997, 7
        %v1030 = vrot.slane %v998, 7
        %v1031 = vrot.slane %v999, 7
        %v1032 = vrot.slane %v1000, 7
        %v1033 = vrot.slane %v1001, 7
        %v1034 = vrot.slane %v1002, 7
        %v1035 = vrot.slane %v1003, 7
        %v1036 = vrot.slane %v1004, 7
        %v1037 = vrot.slane %v1005, 7
        %v1038 = vrot.slane %v1006, 7
        %v1039 = vrot.slane %v1007, 7
        %v1040 = vrot.slane %v1008, 7
        %v1041 = vrot.slane %v1009, 7
        %v1042 = vrot.slane %v1010, 7
        %v1043 = vrot.slane %v1011, 7
        %v1044 = vrot.slane %v1012, 7
        %v1045 = vrot.slane %v1013, 7
        %v1046 = vrot.slane %v1014, 7
        %v1047 = vrot.slane %v1015, 7
        %v1048 = vrot.slane %v1016, 7
        %v1049 = vrot.slane %v1017, 7
        %v1050 = vrot.slane %v1018, 7
        %v1051 = vrot.slane %v1019, 7
        %v1052 = vrot.slane %v1020, 7
        %v1053 = vrot.slane %v1021, 7
        %v1054 = vlaneseq
        %v1055 = vshrl.u32 %v1054, 7
        %vm1056 = vcmp.lt.s32.totalorder %v1055, 1
        %v1057 = vsel %vm1056, %v1052, %v1053
        %v1058 = vsel %vm1056, %v1051, %v1052
        %v1059 = vsel %vm1056, %v1050, %v1051
        %v1060 = vsel %vm1056, %v1049, %v1050
        %v1061 = vsel %vm1056, %v1048, %v1049
        %v1062 = vsel %vm1056, %v1047, %v1048
        %v1063 = vsel %vm1056, %v1046, %v1047
        %v1064 = vsel %vm1056, %v1045, %v1046
        %v1065 = vsel %vm1056, %v1044, %v1045
        %v1066 = vsel %vm1056, %v1043, %v1044
        %v1067 = vsel %vm1056, %v1042, %v1043
        %v1068 = vsel %vm1056, %v1041, %v1042
        %v1069 = vsel %vm1056, %v1040, %v1041
        %v1070 = vsel %vm1056, %v1039, %v1040
        %v1071 = vsel %vm1056, %v1038, %v1039
        %v1072 = vsel %vm1056, %v1037, %v1038
        %v1073 = vsel %vm1056, %v1036, %v1037
        %v1074 = vsel %vm1056, %v1035, %v1036
        %v1075 = vsel %vm1056, %v1034, %v1035
        %v1076 = vsel %vm1056, %v1033, %v1034
        %v1077 = vsel %vm1056, %v1032, %v1033
        %v1078 = vsel %vm1056, %v1031, %v1032
        %v1079 = vsel %vm1056, %v1030, %v1031
        %v1080 = vsel %vm1056, %v1029, %v1030
        %v1081 = vsel %vm1056, %v1028, %v1029
        %v1082 = vsel %vm1056, %v1027, %v1028
        %v1083 = vsel %vm1056, %v1026, %v1027
        %v1084 = vsel %vm1056, %v1025, %v1026
        %v1085 = vsel %vm1056, %v1024, %v1025
        %v1086 = vsel %vm1056, %v1023, %v1024
        %v1087 = vsel %vm1056, %v1022, %v1023
        %v1088 = vsel %vm1056, %v1053, %v1022
        %1090 = vset.pattern.permute.xlu0 0
        %1091 = vperm.xlu0 %1090, %v584
        %v1092 = vpop.permute.xlu0 %1091
        %1095 = vset.pattern.permute.xlu0 0
        %1096 = vperm.xlu0 %1095, %v585
        %v1097 = vpop.permute.xlu0 %1096
        %1100 = vset.pattern.permute.xlu0 0
        %1101 = vperm.xlu0 %1100, %v586
        %v1102 = vpop.permute.xlu0 %1101
        %1105 = vset.pattern.permute.xlu0 0
        %1106 = vperm.xlu0 %1105, %v587
        %v1107 = vpop.permute.xlu0 %1106
        %1110 = vset.pattern.permute.xlu0 0
        %1111 = vperm.xlu0 %1110, %v588
        %v1112 = vpop.permute.xlu0 %1111
        %1115 = vset.pattern.permute.xlu0 0
        %1116 = vperm.xlu0 %1115, %v589
        %v1117 = vpop.permute.xlu0 %1116
        %1120 = vset.pattern.permute.xlu0 0
        %1121 = vperm.xlu0 %1120, %v590
        %v1122 = vpop.permute.xlu0 %1121
        %1125 = vset.pattern.permute.xlu0 0
        %1126 = vperm.xlu0 %1125, %v591
        %v1127 = vpop.permute.xlu0 %1126
        %1130 = vset.pattern.permute.xlu0 0
        %1131 = vperm.xlu0 %1130, %v592
        %v1132 = vpop.permute.xlu0 %1131
        %1135 = vset.pattern.permute.xlu0 0
        %1136 = vperm.xlu0 %1135, %v593
        %v1137 = vpop.permute.xlu0 %1136
        %1140 = vset.pattern.permute.xlu0 0
        %1141 = vperm.xlu0 %1140, %v594
        %v1142 = vpop.permute.xlu0 %1141
        %1145 = vset.pattern.permute.xlu0 0
        %1146 = vperm.xlu0 %1145, %v595
        %v1147 = vpop.permute.xlu0 %1146
        %1150 = vset.pattern.permute.xlu0 0
        %1151 = vperm.xlu0 %1150, %v596
        %v1152 = vpop.permute.xlu0 %1151
        %1155 = vset.pattern.permute.xlu0 0
        %1156 = vperm.xlu0 %1155, %v597
        %v1157 = vpop.permute.xlu0 %1156
        %1160 = vset.pattern.permute.xlu0 0
        %1161 = vperm.xlu0 %1160, %v598
        %v1162 = vpop.permute.xlu0 %1161
        %1165 = vset.pattern.permute.xlu0 0
        %1166 = vperm.xlu0 %1165, %v599
        %v1167 = vpop.permute.xlu0 %1166
        %1170 = vset.pattern.permute.xlu0 0
        %1171 = vperm.xlu0 %1170, %v600
        %v1172 = vpop.permute.xlu0 %1171
        %1175 = vset.pattern.permute.xlu0 0
        %1176 = vperm.xlu0 %1175, %v601
        %v1177 = vpop.permute.xlu0 %1176
        %1180 = vset.pattern.permute.xlu0 0
        %1181 = vperm.xlu0 %1180, %v602
        %v1182 = vpop.permute.xlu0 %1181
        %1185 = vset.pattern.permute.xlu0 0
        %1186 = vperm.xlu0 %1185, %v603
        %v1187 = vpop.permute.xlu0 %1186
        %1190 = vset.pattern.permute.xlu0 0
        %1191 = vperm.xlu0 %1190, %v604
        %v1192 = vpop.permute.xlu0 %1191
        %1195 = vset.pattern.permute.xlu0 0
        %1196 = vperm.xlu0 %1195, %v605
        %v1197 = vpop.permute.xlu0 %1196
        %1200 = vset.pattern.permute.xlu0 0
        %1201 = vperm.xlu0 %1200, %v606
        %v1202 = vpop.permute.xlu0 %1201
        %1205 = vset.pattern.permute.xlu0 0
        %1206 = vperm.xlu0 %1205, %v607
        %v1207 = vpop.permute.xlu0 %1206
        %1210 = vset.pattern.permute.xlu0 0
        %1211 = vperm.xlu0 %1210, %v608
        %v1212 = vpop.permute.xlu0 %1211
        %1215 = vset.pattern.permute.xlu0 0
        %1216 = vperm.xlu0 %1215, %v609
        %v1217 = vpop.permute.xlu0 %1216
        %1220 = vset.pattern.permute.xlu0 0
        %1221 = vperm.xlu0 %1220, %v610
        %v1222 = vpop.permute.xlu0 %1221
        %1225 = vset.pattern.permute.xlu0 0
        %1226 = vperm.xlu0 %1225, %v611
        %v1227 = vpop.permute.xlu0 %1226
        %1230 = vset.pattern.permute.xlu0 0
        %1231 = vperm.xlu0 %1230, %v612
        %v1232 = vpop.permute.xlu0 %1231
        %1235 = vset.pattern.permute.xlu0 0
        %1236 = vperm.xlu0 %1235, %v613
        %v1237 = vpop.permute.xlu0 %1236
        %1240 = vset.pattern.permute.xlu0 0
        %1241 = vperm.xlu0 %1240, %v614
        %v1242 = vpop.permute.xlu0 %1241
        %1245 = vset.pattern.permute.xlu0 0
        %1246 = vperm.xlu0 %1245, %v615
        %v1247 = vpop.permute.xlu0 %1246
        %v1249 = vmul.f32 %v1058, %v1092
        %v1250 = vmul.f32 %v1057, %v1097
        %v1251 = vmul.f32 %v1088, %v1102
        %v1252 = vmul.f32 %v1087, %v1107
        %v1253 = vmul.f32 %v1086, %v1112
        %v1254 = vmul.f32 %v1085, %v1117
        %v1255 = vmul.f32 %v1084, %v1122
        %v1256 = vmul.f32 %v1083, %v1127
        %v1257 = vmul.f32 %v1082, %v1132
        %v1258 = vmul.f32 %v1081, %v1137
        %v1259 = vmul.f32 %v1080, %v1142
        %v1260 = vmul.f32 %v1079, %v1147
        %v1261 = vmul.f32 %v1078, %v1152
        %v1262 = vmul.f32 %v1077, %v1157
        %v1263 = vmul.f32 %v1076, %v1162
        %v1264 = vmul.f32 %v1075, %v1167
        %v1265 = vmul.f32 %v1074, %v1172
        %v1266 = vmul.f32 %v1073, %v1177
        %v1267 = vmul.f32 %v1072, %v1182
        %v1268 = vmul.f32 %v1071, %v1187
        %v1269 = vmul.f32 %v1070, %v1192
        %v1270 = vmul.f32 %v1069, %v1197
        %v1271 = vmul.f32 %v1068, %v1202
        %v1272 = vmul.f32 %v1067, %v1207
        %v1273 = vmul.f32 %v1066, %v1212
        %v1274 = vmul.f32 %v1065, %v1217
        %v1275 = vmul.f32 %v1064, %v1222
        %v1276 = vmul.f32 %v1063, %v1227
        %v1277 = vmul.f32 %v1062, %v1232
        %v1278 = vmul.f32 %v1061, %v1237
        %v1279 = vmul.f32 %v1060, %v1242
        %v1280 = vmul.f32 %v1059, %v1247
        %1282 = vset.pattern.permute.xlu0 0
        %1283 = vperm.xlu0 %1282, %v617
        %v1284 = vpop.permute.xlu0 %1283
        %1287 = vset.pattern.permute.xlu0 0
        %1288 = vperm.xlu0 %1287, %v618
        %v1289 = vpop.permute.xlu0 %1288
        %1292 = vset.pattern.permute.xlu0 0
        %1293 = vperm.xlu0 %1292, %v619
        %v1294 = vpop.permute.xlu0 %1293
        %1297 = vset.pattern.permute.xlu0 0
        %1298 = vperm.xlu0 %1297, %v620
        %v1299 = vpop.permute.xlu0 %1298
        %1302 = vset.pattern.permute.xlu0 0
        %1303 = vperm.xlu0 %1302, %v621
        %v1304 = vpop.permute.xlu0 %1303
        %1307 = vset.pattern.permute.xlu0 0
        %1308 = vperm.xlu0 %1307, %v622
        %v1309 = vpop.permute.xlu0 %1308
        %1312 = vset.pattern.permute.xlu0 0
        %1313 = vperm.xlu0 %1312, %v623
        %v1314 = vpop.permute.xlu0 %1313
        %1317 = vset.pattern.permute.xlu0 0
        %1318 = vperm.xlu0 %1317, %v624
        %v1319 = vpop.permute.xlu0 %1318
        %1322 = vset.pattern.permute.xlu0 0
        %1323 = vperm.xlu0 %1322, %v625
        %v1324 = vpop.permute.xlu0 %1323
        %1327 = vset.pattern.permute.xlu0 0
        %1328 = vperm.xlu0 %1327, %v626
        %v1329 = vpop.permute.xlu0 %1328
        %1332 = vset.pattern.permute.xlu0 0
        %1333 = vperm.xlu0 %1332, %v627
        %v1334 = vpop.permute.xlu0 %1333
        %1337 = vset.pattern.permute.xlu0 0
        %1338 = vperm.xlu0 %1337, %v628
        %v1339 = vpop.permute.xlu0 %1338
        %1342 = vset.pattern.permute.xlu0 0
        %1343 = vperm.xlu0 %1342, %v629
        %v1344 = vpop.permute.xlu0 %1343
        %1347 = vset.pattern.permute.xlu0 0
        %1348 = vperm.xlu0 %1347, %v630
        %v1349 = vpop.permute.xlu0 %1348
        %1352 = vset.pattern.permute.xlu0 0
        %1353 = vperm.xlu0 %1352, %v631
        %v1354 = vpop.permute.xlu0 %1353
        %1357 = vset.pattern.permute.xlu0 0
        %1358 = vperm.xlu0 %1357, %v632
        %v1359 = vpop.permute.xlu0 %1358
        %1362 = vset.pattern.permute.xlu0 0
        %1363 = vperm.xlu0 %1362, %v633
        %v1364 = vpop.permute.xlu0 %1363
        %1367 = vset.pattern.permute.xlu0 0
        %1368 = vperm.xlu0 %1367, %v634
        %v1369 = vpop.permute.xlu0 %1368
        %1372 = vset.pattern.permute.xlu0 0
        %1373 = vperm.xlu0 %1372, %v635
        %v1374 = vpop.permute.xlu0 %1373
        %1377 = vset.pattern.permute.xlu0 0
        %1378 = vperm.xlu0 %1377, %v636
        %v1379 = vpop.permute.xlu0 %1378
        %1382 = vset.pattern.permute.xlu0 0
        %1383 = vperm.xlu0 %1382, %v637
        %v1384 = vpop.permute.xlu0 %1383
        %1387 = vset.pattern.permute.xlu0 0
        %1388 = vperm.xlu0 %1387, %v638
        %v1389 = vpop.permute.xlu0 %1388
        %1392 = vset.pattern.permute.xlu0 0
        %1393 = vperm.xlu0 %1392, %v639
        %v1394 = vpop.permute.xlu0 %1393
        %1397 = vset.pattern.permute.xlu0 0
        %1398 = vperm.xlu0 %1397, %v640
        %v1399 = vpop.permute.xlu0 %1398
        %1402 = vset.pattern.permute.xlu0 0
        %1403 = vperm.xlu0 %1402, %v641
        %v1404 = vpop.permute.xlu0 %1403
        %1407 = vset.pattern.permute.xlu0 0
        %1408 = vperm.xlu0 %1407, %v642
        %v1409 = vpop.permute.xlu0 %1408
        %1412 = vset.pattern.permute.xlu0 0
        %1413 = vperm.xlu0 %1412, %v643
        %v1414 = vpop.permute.xlu0 %1413
        %1417 = vset.pattern.permute.xlu0 0
        %1418 = vperm.xlu0 %1417, %v644
        %v1419 = vpop.permute.xlu0 %1418
        %1422 = vset.pattern.permute.xlu0 0
        %1423 = vperm.xlu0 %1422, %v645
        %v1424 = vpop.permute.xlu0 %1423
        %1427 = vset.pattern.permute.xlu0 0
        %1428 = vperm.xlu0 %1427, %v646
        %v1429 = vpop.permute.xlu0 %1428
        %1432 = vset.pattern.permute.xlu0 0
        %1433 = vperm.xlu0 %1432, %v647
        %v1434 = vpop.permute.xlu0 %1433
        %1437 = vset.pattern.permute.xlu0 0
        %1438 = vperm.xlu0 %1437, %v648
        %v1439 = vpop.permute.xlu0 %1438
        %v1441 = vmul.f32 %v1020, %v1284
        %v1442 = vmul.f32 %v1021, %v1289
        %v1443 = vmul.f32 %v990, %v1294
        %v1444 = vmul.f32 %v991, %v1299
        %v1445 = vmul.f32 %v992, %v1304
        %v1446 = vmul.f32 %v993, %v1309
        %v1447 = vmul.f32 %v994, %v1314
        %v1448 = vmul.f32 %v995, %v1319
        %v1449 = vmul.f32 %v996, %v1324
        %v1450 = vmul.f32 %v997, %v1329
        %v1451 = vmul.f32 %v998, %v1334
        %v1452 = vmul.f32 %v999, %v1339
        %v1453 = vmul.f32 %v1000, %v1344
        %v1454 = vmul.f32 %v1001, %v1349
        %v1455 = vmul.f32 %v1002, %v1354
        %v1456 = vmul.f32 %v1003, %v1359
        %v1457 = vmul.f32 %v1004, %v1364
        %v1458 = vmul.f32 %v1005, %v1369
        %v1459 = vmul.f32 %v1006, %v1374
        %v1460 = vmul.f32 %v1007, %v1379
        %v1461 = vmul.f32 %v1008, %v1384
        %v1462 = vmul.f32 %v1009, %v1389
        %v1463 = vmul.f32 %v1010, %v1394
        %v1464 = vmul.f32 %v1011, %v1399
        %v1465 = vmul.f32 %v1012, %v1404
        %v1466 = vmul.f32 %v1013, %v1409
        %v1467 = vmul.f32 %v1014, %v1414
        %v1468 = vmul.f32 %v1015, %v1419
        %v1469 = vmul.f32 %v1016, %v1424
        %v1470 = vmul.f32 %v1017, %v1429
        %v1471 = vmul.f32 %v1018, %v1434
        %v1472 = vmul.f32 %v1019, %v1439
        %v1473 = vrot.slane %v990, 1
        %v1474 = vrot.slane %v991, 1
        %v1475 = vrot.slane %v992, 1
        %v1476 = vrot.slane %v993, 1
        %v1477 = vrot.slane %v994, 1
        %v1478 = vrot.slane %v995, 1
        %v1479 = vrot.slane %v996, 1
        %v1480 = vrot.slane %v997, 1
        %v1481 = vrot.slane %v998, 1
        %v1482 = vrot.slane %v999, 1
        %v1483 = vrot.slane %v1000, 1
        %v1484 = vrot.slane %v1001, 1
        %v1485 = vrot.slane %v1002, 1
        %v1486 = vrot.slane %v1003, 1
        %v1487 = vrot.slane %v1004, 1
        %v1488 = vrot.slane %v1005, 1
        %v1489 = vrot.slane %v1006, 1
        %v1490 = vrot.slane %v1007, 1
        %v1491 = vrot.slane %v1008, 1
        %v1492 = vrot.slane %v1009, 1
        %v1493 = vrot.slane %v1010, 1
        %v1494 = vrot.slane %v1011, 1
        %v1495 = vrot.slane %v1012, 1
        %v1496 = vrot.slane %v1013, 1
        %v1497 = vrot.slane %v1014, 1
        %v1498 = vrot.slane %v1015, 1
        %v1499 = vrot.slane %v1016, 1
        %v1500 = vrot.slane %v1017, 1
        %v1501 = vrot.slane %v1018, 1
        %v1502 = vrot.slane %v1019, 1
        %v1503 = vrot.slane %v1020, 1
        %v1504 = vrot.slane %v1021, 1
        %vm1505 = vcmp.lt.s32.totalorder %v1055, 7
        %v1506 = vsel %vm1505, %v1503, %v1504
        %v1507 = vsel %vm1505, %v1502, %v1503
        %v1508 = vsel %vm1505, %v1501, %v1502
        %v1509 = vsel %vm1505, %v1500, %v1501
        %v1510 = vsel %vm1505, %v1499, %v1500
        %v1511 = vsel %vm1505, %v1498, %v1499
        %v1512 = vsel %vm1505, %v1497, %v1498
        %v1513 = vsel %vm1505, %v1496, %v1497
        %v1514 = vsel %vm1505, %v1495, %v1496
        %v1515 = vsel %vm1505, %v1494, %v1495
        %v1516 = vsel %vm1505, %v1493, %v1494
        %v1517 = vsel %vm1505, %v1492, %v1493
        %v1518 = vsel %vm1505, %v1491, %v1492
        %v1519 = vsel %vm1505, %v1490, %v1491
        %v1520 = vsel %vm1505, %v1489, %v1490
        %v1521 = vsel %vm1505, %v1488, %v1489
        %v1522 = vsel %vm1505, %v1487, %v1488
        %v1523 = vsel %vm1505, %v1486, %v1487
        %v1524 = vsel %vm1505, %v1485, %v1486
        %v1525 = vsel %vm1505, %v1484, %v1485
        %v1526 = vsel %vm1505, %v1483, %v1484
        %v1527 = vsel %vm1505, %v1482, %v1483
        %v1528 = vsel %vm1505, %v1481, %v1482
        %v1529 = vsel %vm1505, %v1480, %v1481
        %v1530 = vsel %vm1505, %v1479, %v1480
        %v1531 = vsel %vm1505, %v1478, %v1479
        %v1532 = vsel %vm1505, %v1477, %v1478
        %v1533 = vsel %vm1505, %v1476, %v1477
        %v1534 = vsel %vm1505, %v1475, %v1476
        %v1535 = vsel %vm1505, %v1474, %v1475
        %v1536 = vsel %vm1505, %v1473, %v1474
        %v1537 = vsel %vm1505, %v1504, %v1473
        %1539 = vset.pattern.permute.xlu0 0
        %1540 = vperm.xlu0 %1539, %v650
        %v1541 = vpop.permute.xlu0 %1540
        %1544 = vset.pattern.permute.xlu0 0
        %1545 = vperm.xlu0 %1544, %v651
        %v1546 = vpop.permute.xlu0 %1545
        %1549 = vset.pattern.permute.xlu0 0
        %1550 = vperm.xlu0 %1549, %v652
        %v1551 = vpop.permute.xlu0 %1550
        %1554 = vset.pattern.permute.xlu0 0
        %1555 = vperm.xlu0 %1554, %v653
        %v1556 = vpop.permute.xlu0 %1555
        %1559 = vset.pattern.permute.xlu0 0
        %1560 = vperm.xlu0 %1559, %v654
        %v1561 = vpop.permute.xlu0 %1560
        %1564 = vset.pattern.permute.xlu0 0
        %1565 = vperm.xlu0 %1564, %v655
        %v1566 = vpop.permute.xlu0 %1565
        %1569 = vset.pattern.permute.xlu0 0
        %1570 = vperm.xlu0 %1569, %v656
        %v1571 = vpop.permute.xlu0 %1570
        %1574 = vset.pattern.permute.xlu0 0
        %1575 = vperm.xlu0 %1574, %v657
        %v1576 = vpop.permute.xlu0 %1575
        %1579 = vset.pattern.permute.xlu0 0
        %1580 = vperm.xlu0 %1579, %v658
        %v1581 = vpop.permute.xlu0 %1580
        %1584 = vset.pattern.permute.xlu0 0
        %1585 = vperm.xlu0 %1584, %v659
        %v1586 = vpop.permute.xlu0 %1585
        %1589 = vset.pattern.permute.xlu0 0
        %1590 = vperm.xlu0 %1589, %v660
        %v1591 = vpop.permute.xlu0 %1590
        %1594 = vset.pattern.permute.xlu0 0
        %1595 = vperm.xlu0 %1594, %v661
        %v1596 = vpop.permute.xlu0 %1595
        %1599 = vset.pattern.permute.xlu0 0
        %1600 = vperm.xlu0 %1599, %v662
        %v1601 = vpop.permute.xlu0 %1600
        %1604 = vset.pattern.permute.xlu0 0
        %1605 = vperm.xlu0 %1604, %v663
        %v1606 = vpop.permute.xlu0 %1605
        %1609 = vset.pattern.permute.xlu0 0
        %1610 = vperm.xlu0 %1609, %v664
        %v1611 = vpop.permute.xlu0 %1610
        %1614 = vset.pattern.permute.xlu0 0
        %1615 = vperm.xlu0 %1614, %v665
        %v1616 = vpop.permute.xlu0 %1615
        %1619 = vset.pattern.permute.xlu0 0
        %1620 = vperm.xlu0 %1619, %v666
        %v1621 = vpop.permute.xlu0 %1620
        %1624 = vset.pattern.permute.xlu0 0
        %1625 = vperm.xlu0 %1624, %v667
        %v1626 = vpop.permute.xlu0 %1625
        %1629 = vset.pattern.permute.xlu0 0
        %1630 = vperm.xlu0 %1629, %v668
        %v1631 = vpop.permute.xlu0 %1630
        %1634 = vset.pattern.permute.xlu0 0
        %1635 = vperm.xlu0 %1634, %v669
        %v1636 = vpop.permute.xlu0 %1635
        %1639 = vset.pattern.permute.xlu0 0
        %1640 = vperm.xlu0 %1639, %v670
        %v1641 = vpop.permute.xlu0 %1640
        %1644 = vset.pattern.permute.xlu0 0
        %1645 = vperm.xlu0 %1644, %v671
        %v1646 = vpop.permute.xlu0 %1645
        %1649 = vset.pattern.permute.xlu0 0
        %1650 = vperm.xlu0 %1649, %v672
        %v1651 = vpop.permute.xlu0 %1650
        %1654 = vset.pattern.permute.xlu0 0
        %1655 = vperm.xlu0 %1654, %v673
        %v1656 = vpop.permute.xlu0 %1655
        %1659 = vset.pattern.permute.xlu0 0
        %1660 = vperm.xlu0 %1659, %v674
        %v1661 = vpop.permute.xlu0 %1660
        %1664 = vset.pattern.permute.xlu0 0
        %1665 = vperm.xlu0 %1664, %v675
        %v1666 = vpop.permute.xlu0 %1665
        %1669 = vset.pattern.permute.xlu0 0
        %1670 = vperm.xlu0 %1669, %v676
        %v1671 = vpop.permute.xlu0 %1670
        %1674 = vset.pattern.permute.xlu0 0
        %1675 = vperm.xlu0 %1674, %v677
        %v1676 = vpop.permute.xlu0 %1675
        %1679 = vset.pattern.permute.xlu0 0
        %1680 = vperm.xlu0 %1679, %v678
        %v1681 = vpop.permute.xlu0 %1680
        %1684 = vset.pattern.permute.xlu0 0
        %1685 = vperm.xlu0 %1684, %v679
        %v1686 = vpop.permute.xlu0 %1685
        %1689 = vset.pattern.permute.xlu0 0
        %1690 = vperm.xlu0 %1689, %v680
        %v1691 = vpop.permute.xlu0 %1690
        %1694 = vset.pattern.permute.xlu0 0
        %1695 = vperm.xlu0 %1694, %v681
        %v1696 = vpop.permute.xlu0 %1695
        %v1698 = vmul.f32 %v1506, %v1541
        %v1699 = vmul.f32 %v1537, %v1546
        %v1700 = vmul.f32 %v1536, %v1551
        %v1701 = vmul.f32 %v1535, %v1556
        %v1702 = vmul.f32 %v1534, %v1561
        %v1703 = vmul.f32 %v1533, %v1566
        %v1704 = vmul.f32 %v1532, %v1571
        %v1705 = vmul.f32 %v1531, %v1576
        %v1706 = vmul.f32 %v1530, %v1581
        %v1707 = vmul.f32 %v1529, %v1586
        %v1708 = vmul.f32 %v1528, %v1591
        %v1709 = vmul.f32 %v1527, %v1596
        %v1710 = vmul.f32 %v1526, %v1601
        %v1711 = vmul.f32 %v1525, %v1606
        %v1712 = vmul.f32 %v1524, %v1611
        %v1713 = vmul.f32 %v1523, %v1616
        %v1714 = vmul.f32 %v1522, %v1621
        %v1715 = vmul.f32 %v1521, %v1626
        %v1716 = vmul.f32 %v1520, %v1631
        %v1717 = vmul.f32 %v1519, %v1636
        %v1718 = vmul.f32 %v1518, %v1641
        %v1719 = vmul.f32 %v1517, %v1646
        %v1720 = vmul.f32 %v1516, %v1651
        %v1721 = vmul.f32 %v1515, %v1656
        %v1722 = vmul.f32 %v1514, %v1661
        %v1723 = vmul.f32 %v1513, %v1666
        %v1724 = vmul.f32 %v1512, %v1671
        %v1725 = vmul.f32 %v1511, %v1676
        %v1726 = vmul.f32 %v1510, %v1681
        %v1727 = vmul.f32 %v1509, %v1686
        %v1728 = vmul.f32 %v1508, %v1691
        %v1729 = vmul.f32 %v1507, %v1696
        %1731 = vset.pattern.permute.xlu0 0
        %1732 = vperm.xlu0 %1731, %v683
        %v1733 = vpop.permute.xlu0 %1732
        %1736 = vset.pattern.permute.xlu0 0
        %1737 = vperm.xlu0 %1736, %v684
        %v1738 = vpop.permute.xlu0 %1737
        %1741 = vset.pattern.permute.xlu0 0
        %1742 = vperm.xlu0 %1741, %v685
        %v1743 = vpop.permute.xlu0 %1742
        %1746 = vset.pattern.permute.xlu0 0
        %1747 = vperm.xlu0 %1746, %v686
        %v1748 = vpop.permute.xlu0 %1747
        %1751 = vset.pattern.permute.xlu0 0
        %1752 = vperm.xlu0 %1751, %v687
        %v1753 = vpop.permute.xlu0 %1752
        %1756 = vset.pattern.permute.xlu0 0
        %1757 = vperm.xlu0 %1756, %v688
        %v1758 = vpop.permute.xlu0 %1757
        %1761 = vset.pattern.permute.xlu0 0
        %1762 = vperm.xlu0 %1761, %v689
        %v1763 = vpop.permute.xlu0 %1762
        %1766 = vset.pattern.permute.xlu0 0
        %1767 = vperm.xlu0 %1766, %v690
        %v1768 = vpop.permute.xlu0 %1767
        %1771 = vset.pattern.permute.xlu0 0
        %1772 = vperm.xlu0 %1771, %v691
        %v1773 = vpop.permute.xlu0 %1772
        %1776 = vset.pattern.permute.xlu0 0
        %1777 = vperm.xlu0 %1776, %v692
        %v1778 = vpop.permute.xlu0 %1777
        %1781 = vset.pattern.permute.xlu0 0
        %1782 = vperm.xlu0 %1781, %v693
        %v1783 = vpop.permute.xlu0 %1782
        %1786 = vset.pattern.permute.xlu0 0
        %1787 = vperm.xlu0 %1786, %v694
        %v1788 = vpop.permute.xlu0 %1787
        %1791 = vset.pattern.permute.xlu0 0
        %1792 = vperm.xlu0 %1791, %v695
        %v1793 = vpop.permute.xlu0 %1792
        %1796 = vset.pattern.permute.xlu0 0
        %1797 = vperm.xlu0 %1796, %v696
        %v1798 = vpop.permute.xlu0 %1797
        %1801 = vset.pattern.permute.xlu0 0
        %1802 = vperm.xlu0 %1801, %v697
        %v1803 = vpop.permute.xlu0 %1802
        %1806 = vset.pattern.permute.xlu0 0
        %1807 = vperm.xlu0 %1806, %v698
        %v1808 = vpop.permute.xlu0 %1807
        %1811 = vset.pattern.permute.xlu0 0
        %1812 = vperm.xlu0 %1811, %v699
        %v1813 = vpop.permute.xlu0 %1812
        %1816 = vset.pattern.permute.xlu0 0
        %1817 = vperm.xlu0 %1816, %v700
        %v1818 = vpop.permute.xlu0 %1817
        %1821 = vset.pattern.permute.xlu0 0
        %1822 = vperm.xlu0 %1821, %v701
        %v1823 = vpop.permute.xlu0 %1822
        %1826 = vset.pattern.permute.xlu0 0
        %1827 = vperm.xlu0 %1826, %v702
        %v1828 = vpop.permute.xlu0 %1827
        %1831 = vset.pattern.permute.xlu0 0
        %1832 = vperm.xlu0 %1831, %v703
        %v1833 = vpop.permute.xlu0 %1832
        %1836 = vset.pattern.permute.xlu0 0
        %1837 = vperm.xlu0 %1836, %v704
        %v1838 = vpop.permute.xlu0 %1837
        %1841 = vset.pattern.permute.xlu0 0
        %1842 = vperm.xlu0 %1841, %v705
        %v1843 = vpop.permute.xlu0 %1842
        %1846 = vset.pattern.permute.xlu0 0
        %1847 = vperm.xlu0 %1846, %v706
        %v1848 = vpop.permute.xlu0 %1847
        %1851 = vset.pattern.permute.xlu0 0
        %1852 = vperm.xlu0 %1851, %v707
        %v1853 = vpop.permute.xlu0 %1852
        %1856 = vset.pattern.permute.xlu0 0
        %1857 = vperm.xlu0 %1856, %v708
        %v1858 = vpop.permute.xlu0 %1857
        %1861 = vset.pattern.permute.xlu0 0
        %1862 = vperm.xlu0 %1861, %v709
        %v1863 = vpop.permute.xlu0 %1862
        %1866 = vset.pattern.permute.xlu0 0
        %1867 = vperm.xlu0 %1866, %v710
        %v1868 = vpop.permute.xlu0 %1867
        %1871 = vset.pattern.permute.xlu0 0
        %1872 = vperm.xlu0 %1871, %v711
        %v1873 = vpop.permute.xlu0 %1872
        %1876 = vset.pattern.permute.xlu0 0
        %1877 = vperm.xlu0 %1876, %v712
        %v1878 = vpop.permute.xlu0 %1877
        %1881 = vset.pattern.permute.xlu0 0
        %1882 = vperm.xlu0 %1881, %v713
        %v1883 = vpop.permute.xlu0 %1882
        %1886 = vset.pattern.permute.xlu0 0
        %1887 = vperm.xlu0 %1886, %v714
        %v1888 = vpop.permute.xlu0 %1887
        %v1890 = vmul.f32 %v1088, %v1733
        %v1891 = vmul.f32 %v1087, %v1738
        %v1892 = vmul.f32 %v1086, %v1743
        %v1893 = vmul.f32 %v1085, %v1748
        %v1894 = vmul.f32 %v1084, %v1753
        %v1895 = vmul.f32 %v1083, %v1758
        %v1896 = vmul.f32 %v1082, %v1763
        %v1897 = vmul.f32 %v1081, %v1768
        %v1898 = vmul.f32 %v1080, %v1773
        %v1899 = vmul.f32 %v1079, %v1778
        %v1900 = vmul.f32 %v1078, %v1783
        %v1901 = vmul.f32 %v1077, %v1788
        %v1902 = vmul.f32 %v1076, %v1793
        %v1903 = vmul.f32 %v1075, %v1798
        %v1904 = vmul.f32 %v1074, %v1803
        %v1905 = vmul.f32 %v1073, %v1808
        %v1906 = vmul.f32 %v1072, %v1813
        %v1907 = vmul.f32 %v1071, %v1818
        %v1908 = vmul.f32 %v1070, %v1823
        %v1909 = vmul.f32 %v1069, %v1828
        %v1910 = vmul.f32 %v1068, %v1833
        %v1911 = vmul.f32 %v1067, %v1838
        %v1912 = vmul.f32 %v1066, %v1843
        %v1913 = vmul.f32 %v1065, %v1848
        %v1914 = vmul.f32 %v1064, %v1853
        %v1915 = vmul.f32 %v1063, %v1858
        %v1916 = vmul.f32 %v1062, %v1863
        %v1917 = vmul.f32 %v1061, %v1868
        %v1918 = vmul.f32 %v1060, %v1873
        %v1919 = vmul.f32 %v1059, %v1878
        %v1920 = vmul.f32 %v1058, %v1883
        %v1921 = vmul.f32 %v1057, %v1888
        %1923 = vset.pattern.permute.xlu0 0
        %1924 = vperm.xlu0 %1923, %v716
        %v1925 = vpop.permute.xlu0 %1924
        %1928 = vset.pattern.permute.xlu0 0
        %1929 = vperm.xlu0 %1928, %v717
        %v1930 = vpop.permute.xlu0 %1929
        %1933 = vset.pattern.permute.xlu0 0
        %1934 = vperm.xlu0 %1933, %v718
        %v1935 = vpop.permute.xlu0 %1934
        %1938 = vset.pattern.permute.xlu0 0
        %1939 = vperm.xlu0 %1938, %v719
        %v1940 = vpop.permute.xlu0 %1939
        %1943 = vset.pattern.permute.xlu0 0
        %1944 = vperm.xlu0 %1943, %v720
        %v1945 = vpop.permute.xlu0 %1944
        %1948 = vset.pattern.permute.xlu0 0
        %1949 = vperm.xlu0 %1948, %v721
        %v1950 = vpop.permute.xlu0 %1949
        %1953 = vset.pattern.permute.xlu0 0
        %1954 = vperm.xlu0 %1953, %v722
        %v1955 = vpop.permute.xlu0 %1954
        %1958 = vset.pattern.permute.xlu0 0
        %1959 = vperm.xlu0 %1958, %v723
        %v1960 = vpop.permute.xlu0 %1959
        %1963 = vset.pattern.permute.xlu0 0
        %1964 = vperm.xlu0 %1963, %v724
        %v1965 = vpop.permute.xlu0 %1964
        %1968 = vset.pattern.permute.xlu0 0
        %1969 = vperm.xlu0 %1968, %v725
        %v1970 = vpop.permute.xlu0 %1969
        %1973 = vset.pattern.permute.xlu0 0
        %1974 = vperm.xlu0 %1973, %v726
        %v1975 = vpop.permute.xlu0 %1974
        %1978 = vset.pattern.permute.xlu0 0
        %1979 = vperm.xlu0 %1978, %v727
        %v1980 = vpop.permute.xlu0 %1979
        %1983 = vset.pattern.permute.xlu0 0
        %1984 = vperm.xlu0 %1983, %v728
        %v1985 = vpop.permute.xlu0 %1984
        %1988 = vset.pattern.permute.xlu0 0
        %1989 = vperm.xlu0 %1988, %v729
        %v1990 = vpop.permute.xlu0 %1989
        %1993 = vset.pattern.permute.xlu0 0
        %1994 = vperm.xlu0 %1993, %v730
        %v1995 = vpop.permute.xlu0 %1994
        %1998 = vset.pattern.permute.xlu0 0
        %1999 = vperm.xlu0 %1998, %v731
        %v2000 = vpop.permute.xlu0 %1999
        %2003 = vset.pattern.permute.xlu0 0
        %2004 = vperm.xlu0 %2003, %v732
        %v2005 = vpop.permute.xlu0 %2004
        %2008 = vset.pattern.permute.xlu0 0
        %2009 = vperm.xlu0 %2008, %v733
        %v2010 = vpop.permute.xlu0 %2009
        %2013 = vset.pattern.permute.xlu0 0
        %2014 = vperm.xlu0 %2013, %v734
        %v2015 = vpop.permute.xlu0 %2014
        %2018 = vset.pattern.permute.xlu0 0
        %2019 = vperm.xlu0 %2018, %v735
        %v2020 = vpop.permute.xlu0 %2019
        %2023 = vset.pattern.permute.xlu0 0
        %2024 = vperm.xlu0 %2023, %v736
        %v2025 = vpop.permute.xlu0 %2024
        %2028 = vset.pattern.permute.xlu0 0
        %2029 = vperm.xlu0 %2028, %v737
        %v2030 = vpop.permute.xlu0 %2029
        %2033 = vset.pattern.permute.xlu0 0
        %2034 = vperm.xlu0 %2033, %v738
        %v2035 = vpop.permute.xlu0 %2034
        %2038 = vset.pattern.permute.xlu0 0
        %2039 = vperm.xlu0 %2038, %v739
        %v2040 = vpop.permute.xlu0 %2039
        %2043 = vset.pattern.permute.xlu0 0
        %2044 = vperm.xlu0 %2043, %v740
        %v2045 = vpop.permute.xlu0 %2044
        %2048 = vset.pattern.permute.xlu0 0
        %2049 = vperm.xlu0 %2048, %v741
        %v2050 = vpop.permute.xlu0 %2049
        %2053 = vset.pattern.permute.xlu0 0
        %2054 = vperm.xlu0 %2053, %v742
        %v2055 = vpop.permute.xlu0 %2054
        %2058 = vset.pattern.permute.xlu0 0
        %2059 = vperm.xlu0 %2058, %v743
        %v2060 = vpop.permute.xlu0 %2059
        %2063 = vset.pattern.permute.xlu0 0
        %2064 = vperm.xlu0 %2063, %v744
        %v2065 = vpop.permute.xlu0 %2064
        %2068 = vset.pattern.permute.xlu0 0
        %2069 = vperm.xlu0 %2068, %v745
        %v2070 = vpop.permute.xlu0 %2069
        %2073 = vset.pattern.permute.xlu0 0
        %2074 = vperm.xlu0 %2073, %v746
        %v2075 = vpop.permute.xlu0 %2074
        %2078 = vset.pattern.permute.xlu0 0
        %2079 = vperm.xlu0 %2078, %v747
        %v2080 = vpop.permute.xlu0 %2079
        %v2082 = vmul.f32 %v990, %v1925
        %v2083 = vmul.f32 %v991, %v1930
        %v2084 = vmul.f32 %v992, %v1935
        %v2085 = vmul.f32 %v993, %v1940
        %v2086 = vmul.f32 %v994, %v1945
        %v2087 = vmul.f32 %v995, %v1950
        %v2088 = vmul.f32 %v996, %v1955
        %v2089 = vmul.f32 %v997, %v1960
        %v2090 = vmul.f32 %v998, %v1965
        %v2091 = vmul.f32 %v999, %v1970
        %v2092 = vmul.f32 %v1000, %v1975
        %v2093 = vmul.f32 %v1001, %v1980
        %v2094 = vmul.f32 %v1002, %v1985
        %v2095 = vmul.f32 %v1003, %v1990
        %v2096 = vmul.f32 %v1004, %v1995
        %v2097 = vmul.f32 %v1005, %v2000
        %v2098 = vmul.f32 %v1006, %v2005
        %v2099 = vmul.f32 %v1007, %v2010
        %v2100 = vmul.f32 %v1008, %v2015
        %v2101 = vmul.f32 %v1009, %v2020
        %v2102 = vmul.f32 %v1010, %v2025
        %v2103 = vmul.f32 %v1011, %v2030
        %v2104 = vmul.f32 %v1012, %v2035
        %v2105 = vmul.f32 %v1013, %v2040
        %v2106 = vmul.f32 %v1014, %v2045
        %v2107 = vmul.f32 %v1015, %v2050
        %v2108 = vmul.f32 %v1016, %v2055
        %v2109 = vmul.f32 %v1017, %v2060
        %v2110 = vmul.f32 %v1018, %v2065
        %v2111 = vmul.f32 %v1019, %v2070
        %v2112 = vmul.f32 %v1020, %v2075
        %v2113 = vmul.f32 %v1021, %v2080
        %2115 = vset.pattern.permute.xlu0 0
        %2116 = vperm.xlu0 %2115, %v749
        %v2117 = vpop.permute.xlu0 %2116
        %2120 = vset.pattern.permute.xlu0 0
        %2121 = vperm.xlu0 %2120, %v750
        %v2122 = vpop.permute.xlu0 %2121
        %2125 = vset.pattern.permute.xlu0 0
        %2126 = vperm.xlu0 %2125, %v751
        %v2127 = vpop.permute.xlu0 %2126
        %2130 = vset.pattern.permute.xlu0 0
        %2131 = vperm.xlu0 %2130, %v752
        %v2132 = vpop.permute.xlu0 %2131
        %2135 = vset.pattern.permute.xlu0 0
        %2136 = vperm.xlu0 %2135, %v753
        %v2137 = vpop.permute.xlu0 %2136
        %2140 = vset.pattern.permute.xlu0 0
        %2141 = vperm.xlu0 %2140, %v754
        %v2142 = vpop.permute.xlu0 %2141
        %2145 = vset.pattern.permute.xlu0 0
        %2146 = vperm.xlu0 %2145, %v755
        %v2147 = vpop.permute.xlu0 %2146
        %2150 = vset.pattern.permute.xlu0 0
        %2151 = vperm.xlu0 %2150, %v756
        %v2152 = vpop.permute.xlu0 %2151
        %2155 = vset.pattern.permute.xlu0 0
        %2156 = vperm.xlu0 %2155, %v757
        %v2157 = vpop.permute.xlu0 %2156
        %2160 = vset.pattern.permute.xlu0 0
        %2161 = vperm.xlu0 %2160, %v758
        %v2162 = vpop.permute.xlu0 %2161
        %2165 = vset.pattern.permute.xlu0 0
        %2166 = vperm.xlu0 %2165, %v759
        %v2167 = vpop.permute.xlu0 %2166
        %2170 = vset.pattern.permute.xlu0 0
        %2171 = vperm.xlu0 %2170, %v760
        %v2172 = vpop.permute.xlu0 %2171
        %2175 = vset.pattern.permute.xlu0 0
        %2176 = vperm.xlu0 %2175, %v761
        %v2177 = vpop.permute.xlu0 %2176
        %2180 = vset.pattern.permute.xlu0 0
        %2181 = vperm.xlu0 %2180, %v762
        %v2182 = vpop.permute.xlu0 %2181
        %2185 = vset.pattern.permute.xlu0 0
        %2186 = vperm.xlu0 %2185, %v763
        %v2187 = vpop.permute.xlu0 %2186
        %2190 = vset.pattern.permute.xlu0 0
        %2191 = vperm.xlu0 %2190, %v764
        %v2192 = vpop.permute.xlu0 %2191
        %2195 = vset.pattern.permute.xlu0 0
        %2196 = vperm.xlu0 %2195, %v765
        %v2197 = vpop.permute.xlu0 %2196
        %2200 = vset.pattern.permute.xlu0 0
        %2201 = vperm.xlu0 %2200, %v766
        %v2202 = vpop.permute.xlu0 %2201
        %2205 = vset.pattern.permute.xlu0 0
        %2206 = vperm.xlu0 %2205, %v767
        %v2207 = vpop.permute.xlu0 %2206
        %2210 = vset.pattern.permute.xlu0 0
        %2211 = vperm.xlu0 %2210, %v768
        %v2212 = vpop.permute.xlu0 %2211
        %2215 = vset.pattern.permute.xlu0 0
        %2216 = vperm.xlu0 %2215, %v769
        %v2217 = vpop.permute.xlu0 %2216
        %2220 = vset.pattern.permute.xlu0 0
        %2221 = vperm.xlu0 %2220, %v770
        %v2222 = vpop.permute.xlu0 %2221
        %2225 = vset.pattern.permute.xlu0 0
        %2226 = vperm.xlu0 %2225, %v771
        %v2227 = vpop.permute.xlu0 %2226
        %2230 = vset.pattern.permute.xlu0 0
        %2231 = vperm.xlu0 %2230, %v772
        %v2232 = vpop.permute.xlu0 %2231
        %2235 = vset.pattern.permute.xlu0 0
        %2236 = vperm.xlu0 %2235, %v773
        %v2237 = vpop.permute.xlu0 %2236
        %2240 = vset.pattern.permute.xlu0 0
        %2241 = vperm.xlu0 %2240, %v774
        %v2242 = vpop.permute.xlu0 %2241
        %2245 = vset.pattern.permute.xlu0 0
        %2246 = vperm.xlu0 %2245, %v775
        %v2247 = vpop.permute.xlu0 %2246
        %2250 = vset.pattern.permute.xlu0 0
        %2251 = vperm.xlu0 %2250, %v776
        %v2252 = vpop.permute.xlu0 %2251
        %2255 = vset.pattern.permute.xlu0 0
        %2256 = vperm.xlu0 %2255, %v777
        %v2257 = vpop.permute.xlu0 %2256
        %2260 = vset.pattern.permute.xlu0 0
        %2261 = vperm.xlu0 %2260, %v778
        %v2262 = vpop.permute.xlu0 %2261
        %2265 = vset.pattern.permute.xlu0 0
        %2266 = vperm.xlu0 %2265, %v779
        %v2267 = vpop.permute.xlu0 %2266
        %2270 = vset.pattern.permute.xlu0 0
        %2271 = vperm.xlu0 %2270, %v780
        %v2272 = vpop.permute.xlu0 %2271
        %v2274 = vmul.f32 %v1536, %v2117
        %v2275 = vmul.f32 %v1535, %v2122
        %v2276 = vmul.f32 %v1534, %v2127
        %v2277 = vmul.f32 %v1533, %v2132
        %v2278 = vmul.f32 %v1532, %v2137
        %v2279 = vmul.f32 %v1531, %v2142
        %v2280 = vmul.f32 %v1530, %v2147
        %v2281 = vmul.f32 %v1529, %v2152
        %v2282 = vmul.f32 %v1528, %v2157
        %v2283 = vmul.f32 %v1527, %v2162
        %v2284 = vmul.f32 %v1526, %v2167
        %v2285 = vmul.f32 %v1525, %v2172
        %v2286 = vmul.f32 %v1524, %v2177
        %v2287 = vmul.f32 %v1523, %v2182
        %v2288 = vmul.f32 %v1522, %v2187
        %v2289 = vmul.f32 %v1521, %v2192
        %v2290 = vmul.f32 %v1520, %v2197
        %v2291 = vmul.f32 %v1519, %v2202
        %v2292 = vmul.f32 %v1518, %v2207
        %v2293 = vmul.f32 %v1517, %v2212
        %v2294 = vmul.f32 %v1516, %v2217
        %v2295 = vmul.f32 %v1515, %v2222
        %v2296 = vmul.f32 %v1514, %v2227
        %v2297 = vmul.f32 %v1513, %v2232
        %v2298 = vmul.f32 %v1512, %v2237
        %v2299 = vmul.f32 %v1511, %v2242
        %v2300 = vmul.f32 %v1510, %v2247
        %v2301 = vmul.f32 %v1509, %v2252
        %v2302 = vmul.f32 %v1508, %v2257
        %v2303 = vmul.f32 %v1507, %v2262
        %v2304 = vmul.f32 %v1506, %v2267
        %v2305 = vmul.f32 %v1537, %v2272
        %2307 = vset.pattern.permute.xlu0 0
        %2308 = vperm.xlu0 %2307, %v782
        %v2309 = vpop.permute.xlu0 %2308
        %2312 = vset.pattern.permute.xlu0 0
        %2313 = vperm.xlu0 %2312, %v783
        %v2314 = vpop.permute.xlu0 %2313
        %2317 = vset.pattern.permute.xlu0 0
        %2318 = vperm.xlu0 %2317, %v784
        %v2319 = vpop.permute.xlu0 %2318
        %2322 = vset.pattern.permute.xlu0 0
        %2323 = vperm.xlu0 %2322, %v785
        %v2324 = vpop.permute.xlu0 %2323
        %2327 = vset.pattern.permute.xlu0 0
        %2328 = vperm.xlu0 %2327, %v786
        %v2329 = vpop.permute.xlu0 %2328
        %2332 = vset.pattern.permute.xlu0 0
        %2333 = vperm.xlu0 %2332, %v787
        %v2334 = vpop.permute.xlu0 %2333
        %2337 = vset.pattern.permute.xlu0 0
        %2338 = vperm.xlu0 %2337, %v788
        %v2339 = vpop.permute.xlu0 %2338
        %2342 = vset.pattern.permute.xlu0 0
        %2343 = vperm.xlu0 %2342, %v789
        %v2344 = vpop.permute.xlu0 %2343
        %2347 = vset.pattern.permute.xlu0 0
        %2348 = vperm.xlu0 %2347, %v790
        %v2349 = vpop.permute.xlu0 %2348
        %2352 = vset.pattern.permute.xlu0 0
        %2353 = vperm.xlu0 %2352, %v791
        %v2354 = vpop.permute.xlu0 %2353
        %2357 = vset.pattern.permute.xlu0 0
        %2358 = vperm.xlu0 %2357, %v792
        %v2359 = vpop.permute.xlu0 %2358
        %2362 = vset.pattern.permute.xlu0 0
        %2363 = vperm.xlu0 %2362, %v793
        %v2364 = vpop.permute.xlu0 %2363
        %2367 = vset.pattern.permute.xlu0 0
        %2368 = vperm.xlu0 %2367, %v794
        %v2369 = vpop.permute.xlu0 %2368
        %2372 = vset.pattern.permute.xlu0 0
        %2373 = vperm.xlu0 %2372, %v795
        %v2374 = vpop.permute.xlu0 %2373
        %2377 = vset.pattern.permute.xlu0 0
        %2378 = vperm.xlu0 %2377, %v796
        %v2379 = vpop.permute.xlu0 %2378
        %2382 = vset.pattern.permute.xlu0 0
        %2383 = vperm.xlu0 %2382, %v797
        %v2384 = vpop.permute.xlu0 %2383
        %2387 = vset.pattern.permute.xlu0 0
        %2388 = vperm.xlu0 %2387, %v798
        %v2389 = vpop.permute.xlu0 %2388
        %2392 = vset.pattern.permute.xlu0 0
        %2393 = vperm.xlu0 %2392, %v799
        %v2394 = vpop.permute.xlu0 %2393
        %2397 = vset.pattern.permute.xlu0 0
        %2398 = vperm.xlu0 %2397, %v800
        %v2399 = vpop.permute.xlu0 %2398
        %2402 = vset.pattern.permute.xlu0 0
        %2403 = vperm.xlu0 %2402, %v801
        %v2404 = vpop.permute.xlu0 %2403
        %2407 = vset.pattern.permute.xlu0 0
        %2408 = vperm.xlu0 %2407, %v802
        %v2409 = vpop.permute.xlu0 %2408
        %2412 = vset.pattern.permute.xlu0 0
        %2413 = vperm.xlu0 %2412, %v803
        %v2414 = vpop.permute.xlu0 %2413
        %2417 = vset.pattern.permute.xlu0 0
        %2418 = vperm.xlu0 %2417, %v804
        %v2419 = vpop.permute.xlu0 %2418
        %2422 = vset.pattern.permute.xlu0 0
        %2423 = vperm.xlu0 %2422, %v805
        %v2424 = vpop.permute.xlu0 %2423
        %2427 = vset.pattern.permute.xlu0 0
        %2428 = vperm.xlu0 %2427, %v806
        %v2429 = vpop.permute.xlu0 %2428
        %2432 = vset.pattern.permute.xlu0 0
        %2433 = vperm.xlu0 %2432, %v807
        %v2434 = vpop.permute.xlu0 %2433
        %2437 = vset.pattern.permute.xlu0 0
        %2438 = vperm.xlu0 %2437, %v808
        %v2439 = vpop.permute.xlu0 %2438
        %2442 = vset.pattern.permute.xlu0 0
        %2443 = vperm.xlu0 %2442, %v809
        %v2444 = vpop.permute.xlu0 %2443
        %2447 = vset.pattern.permute.xlu0 0
        %2448 = vperm.xlu0 %2447, %v810
        %v2449 = vpop.permute.xlu0 %2448
        %2452 = vset.pattern.permute.xlu0 0
        %2453 = vperm.xlu0 %2452, %v811
        %v2454 = vpop.permute.xlu0 %2453
        %2457 = vset.pattern.permute.xlu0 0
        %2458 = vperm.xlu0 %2457, %v812
        %v2459 = vpop.permute.xlu0 %2458
        %2462 = vset.pattern.permute.xlu0 0
        %2463 = vperm.xlu0 %2462, %v813
        %v2464 = vpop.permute.xlu0 %2463
        %v2466 = vmul.f32 %v1086, %v2309
        %v2467 = vmul.f32 %v1085, %v2314
        %v2468 = vmul.f32 %v1084, %v2319
        %v2469 = vmul.f32 %v1083, %v2324
        %v2470 = vmul.f32 %v1082, %v2329
        %v2471 = vmul.f32 %v1081, %v2334
        %v2472 = vmul.f32 %v1080, %v2339
        %v2473 = vmul.f32 %v1079, %v2344
        %v2474 = vmul.f32 %v1078, %v2349
        %v2475 = vmul.f32 %v1077, %v2354
        %v2476 = vmul.f32 %v1076, %v2359
        %v2477 = vmul.f32 %v1075, %v2364
        %v2478 = vmul.f32 %v1074, %v2369
        %v2479 = vmul.f32 %v1073, %v2374
        %v2480 = vmul.f32 %v1072, %v2379
        %v2481 = vmul.f32 %v1071, %v2384
        %v2482 = vmul.f32 %v1070, %v2389
        %v2483 = vmul.f32 %v1069, %v2394
        %v2484 = vmul.f32 %v1068, %v2399
        %v2485 = vmul.f32 %v1067, %v2404
        %v2486 = vmul.f32 %v1066, %v2409
        %v2487 = vmul.f32 %v1065, %v2414
        %v2488 = vmul.f32 %v1064, %v2419
        %v2489 = vmul.f32 %v1063, %v2424
        %v2490 = vmul.f32 %v1062, %v2429
        %v2491 = vmul.f32 %v1061, %v2434
        %v2492 = vmul.f32 %v1060, %v2439
        %v2493 = vmul.f32 %v1059, %v2444
        %v2494 = vmul.f32 %v1058, %v2449
        %v2495 = vmul.f32 %v1057, %v2454
        %v2496 = vmul.f32 %v1088, %v2459
        %v2497 = vmul.f32 %v1087, %v2464
        %2499 = vset.pattern.permute.xlu0 0
        %2500 = vperm.xlu0 %2499, %v815
        %v2501 = vpop.permute.xlu0 %2500
        %2504 = vset.pattern.permute.xlu0 0
        %2505 = vperm.xlu0 %2504, %v816
        %v2506 = vpop.permute.xlu0 %2505
        %2509 = vset.pattern.permute.xlu0 0
        %2510 = vperm.xlu0 %2509, %v817
        %v2511 = vpop.permute.xlu0 %2510
        %2514 = vset.pattern.permute.xlu0 0
        %2515 = vperm.xlu0 %2514, %v818
        %v2516 = vpop.permute.xlu0 %2515
        %2519 = vset.pattern.permute.xlu0 0
        %2520 = vperm.xlu0 %2519, %v819
        %v2521 = vpop.permute.xlu0 %2520
        %2524 = vset.pattern.permute.xlu0 0
        %2525 = vperm.xlu0 %2524, %v820
        %v2526 = vpop.permute.xlu0 %2525
        %2529 = vset.pattern.permute.xlu0 0
        %2530 = vperm.xlu0 %2529, %v821
        %v2531 = vpop.permute.xlu0 %2530
        %2534 = vset.pattern.permute.xlu0 0
        %2535 = vperm.xlu0 %2534, %v822
        %v2536 = vpop.permute.xlu0 %2535
        %2539 = vset.pattern.permute.xlu0 0
        %2540 = vperm.xlu0 %2539, %v823
        %v2541 = vpop.permute.xlu0 %2540
        %2544 = vset.pattern.permute.xlu0 0
        %2545 = vperm.xlu0 %2544, %v824
        %v2546 = vpop.permute.xlu0 %2545
        %2549 = vset.pattern.permute.xlu0 0
        %2550 = vperm.xlu0 %2549, %v825
        %v2551 = vpop.permute.xlu0 %2550
        %2554 = vset.pattern.permute.xlu0 0
        %2555 = vperm.xlu0 %2554, %v826
        %v2556 = vpop.permute.xlu0 %2555
        %2559 = vset.pattern.permute.xlu0 0
        %2560 = vperm.xlu0 %2559, %v827
        %v2561 = vpop.permute.xlu0 %2560
        %2564 = vset.pattern.permute.xlu0 0
        %2565 = vperm.xlu0 %2564, %v828
        %v2566 = vpop.permute.xlu0 %2565
        %2569 = vset.pattern.permute.xlu0 0
        %2570 = vperm.xlu0 %2569, %v829
        %v2571 = vpop.permute.xlu0 %2570
        %2574 = vset.pattern.permute.xlu0 0
        %2575 = vperm.xlu0 %2574, %v830
        %v2576 = vpop.permute.xlu0 %2575
        %2579 = vset.pattern.permute.xlu0 0
        %2580 = vperm.xlu0 %2579, %v831
        %v2581 = vpop.permute.xlu0 %2580
        %2584 = vset.pattern.permute.xlu0 0
        %2585 = vperm.xlu0 %2584, %v832
        %v2586 = vpop.permute.xlu0 %2585
        %2589 = vset.pattern.permute.xlu0 0
        %2590 = vperm.xlu0 %2589, %v833
        %v2591 = vpop.permute.xlu0 %2590
        %2594 = vset.pattern.permute.xlu0 0
        %2595 = vperm.xlu0 %2594, %v834
        %v2596 = vpop.permute.xlu0 %2595
        %2599 = vset.pattern.permute.xlu0 0
        %2600 = vperm.xlu0 %2599, %v835
        %v2601 = vpop.permute.xlu0 %2600
        %2604 = vset.pattern.permute.xlu0 0
        %2605 = vperm.xlu0 %2604, %v836
        %v2606 = vpop.permute.xlu0 %2605
        %2609 = vset.pattern.permute.xlu0 0
        %2610 = vperm.xlu0 %2609, %v837
        %v2611 = vpop.permute.xlu0 %2610
        %2614 = vset.pattern.permute.xlu0 0
        %2615 = vperm.xlu0 %2614, %v838
        %v2616 = vpop.permute.xlu0 %2615
        %2619 = vset.pattern.permute.xlu0 0
        %2620 = vperm.xlu0 %2619, %v839
        %v2621 = vpop.permute.xlu0 %2620
        %2624 = vset.pattern.permute.xlu0 0
        %2625 = vperm.xlu0 %2624, %v840
        %v2626 = vpop.permute.xlu0 %2625
        %2629 = vset.pattern.permute.xlu0 0
        %2630 = vperm.xlu0 %2629, %v841
        %v2631 = vpop.permute.xlu0 %2630
        %2634 = vset.pattern.permute.xlu0 0
        %2635 = vperm.xlu0 %2634, %v842
        %v2636 = vpop.permute.xlu0 %2635
        %2639 = vset.pattern.permute.xlu0 0
        %2640 = vperm.xlu0 %2639, %v843
        %v2641 = vpop.permute.xlu0 %2640
        %2644 = vset.pattern.permute.xlu0 0
        %2645 = vperm.xlu0 %2644, %v844
        %v2646 = vpop.permute.xlu0 %2645
        %2649 = vset.pattern.permute.xlu0 0
        %2650 = vperm.xlu0 %2649, %v845
        %v2651 = vpop.permute.xlu0 %2650
        %2654 = vset.pattern.permute.xlu0 0
        %2655 = vperm.xlu0 %2654, %v846
        %v2656 = vpop.permute.xlu0 %2655
        %v2658 = vmul.f32 %v992, %v2501
        %v2659 = vmul.f32 %v993, %v2506
        %v2660 = vmul.f32 %v994, %v2511
        %v2661 = vmul.f32 %v995, %v2516
        %v2662 = vmul.f32 %v996, %v2521
        %v2663 = vmul.f32 %v997, %v2526
        %v2664 = vmul.f32 %v998, %v2531
        %v2665 = vmul.f32 %v999, %v2536
        %v2666 = vmul.f32 %v1000, %v2541
        %v2667 = vmul.f32 %v1001, %v2546
        %v2668 = vmul.f32 %v1002, %v2551
        %v2669 = vmul.f32 %v1003, %v2556
        %v2670 = vmul.f32 %v1004, %v2561
        %v2671 = vmul.f32 %v1005, %v2566
        %v2672 = vmul.f32 %v1006, %v2571
        %v2673 = vmul.f32 %v1007, %v2576
        %v2674 = vmul.f32 %v1008, %v2581
        %v2675 = vmul.f32 %v1009, %v2586
        %v2676 = vmul.f32 %v1010, %v2591
        %v2677 = vmul.f32 %v1011, %v2596
        %v2678 = vmul.f32 %v1012, %v2601
        %v2679 = vmul.f32 %v1013, %v2606
        %v2680 = vmul.f32 %v1014, %v2611
        %v2681 = vmul.f32 %v1015, %v2616
        %v2682 = vmul.f32 %v1016, %v2621
        %v2683 = vmul.f32 %v1017, %v2626
        %v2684 = vmul.f32 %v1018, %v2631
        %v2685 = vmul.f32 %v1019, %v2636
        %v2686 = vmul.f32 %v1020, %v2641
        %v2687 = vmul.f32 %v1021, %v2646
        %v2688 = vmul.f32 %v990, %v2651
        %v2689 = vmul.f32 %v991, %v2656
        %2691 = vset.pattern.permute.xlu0 0
        %2692 = vperm.xlu0 %2691, %v848
        %v2693 = vpop.permute.xlu0 %2692
        %2696 = vset.pattern.permute.xlu0 0
        %2697 = vperm.xlu0 %2696, %v849
        %v2698 = vpop.permute.xlu0 %2697
        %2701 = vset.pattern.permute.xlu0 0
        %2702 = vperm.xlu0 %2701, %v850
        %v2703 = vpop.permute.xlu0 %2702
        %2706 = vset.pattern.permute.xlu0 0
        %2707 = vperm.xlu0 %2706, %v851
        %v2708 = vpop.permute.xlu0 %2707
        %2711 = vset.pattern.permute.xlu0 0
        %2712 = vperm.xlu0 %2711, %v852
        %v2713 = vpop.permute.xlu0 %2712
        %2716 = vset.pattern.permute.xlu0 0
        %2717 = vperm.xlu0 %2716, %v853
        %v2718 = vpop.permute.xlu0 %2717
        %2721 = vset.pattern.permute.xlu0 0
        %2722 = vperm.xlu0 %2721, %v854
        %v2723 = vpop.permute.xlu0 %2722
        %2726 = vset.pattern.permute.xlu0 0
        %2727 = vperm.xlu0 %2726, %v855
        %v2728 = vpop.permute.xlu0 %2727
        %2731 = vset.pattern.permute.xlu0 0
        %2732 = vperm.xlu0 %2731, %v856
        %v2733 = vpop.permute.xlu0 %2732
        %2736 = vset.pattern.permute.xlu0 0
        %2737 = vperm.xlu0 %2736, %v857
        %v2738 = vpop.permute.xlu0 %2737
        %2741 = vset.pattern.permute.xlu0 0
        %2742 = vperm.xlu0 %2741, %v858
        %v2743 = vpop.permute.xlu0 %2742
        %2746 = vset.pattern.permute.xlu0 0
        %2747 = vperm.xlu0 %2746, %v859
        %v2748 = vpop.permute.xlu0 %2747
        %2751 = vset.pattern.permute.xlu0 0
        %2752 = vperm.xlu0 %2751, %v860
        %v2753 = vpop.permute.xlu0 %2752
        %2756 = vset.pattern.permute.xlu0 0
        %2757 = vperm.xlu0 %2756, %v861
        %v2758 = vpop.permute.xlu0 %2757
        %2761 = vset.pattern.permute.xlu0 0
        %2762 = vperm.xlu0 %2761, %v862
        %v2763 = vpop.permute.xlu0 %2762
        %2766 = vset.pattern.permute.xlu0 0
        %2767 = vperm.xlu0 %2766, %v863
        %v2768 = vpop.permute.xlu0 %2767
        %2771 = vset.pattern.permute.xlu0 0
        %2772 = vperm.xlu0 %2771, %v864
        %v2773 = vpop.permute.xlu0 %2772
        %2776 = vset.pattern.permute.xlu0 0
        %2777 = vperm.xlu0 %2776, %v865
        %v2778 = vpop.permute.xlu0 %2777
        %2781 = vset.pattern.permute.xlu0 0
        %2782 = vperm.xlu0 %2781, %v866
        %v2783 = vpop.permute.xlu0 %2782
        %2786 = vset.pattern.permute.xlu0 0
        %2787 = vperm.xlu0 %2786, %v867
        %v2788 = vpop.permute.xlu0 %2787
        %2791 = vset.pattern.permute.xlu0 0
        %2792 = vperm.xlu0 %2791, %v868
        %v2793 = vpop.permute.xlu0 %2792
        %2796 = vset.pattern.permute.xlu0 0
        %2797 = vperm.xlu0 %2796, %v869
        %v2798 = vpop.permute.xlu0 %2797
        %2801 = vset.pattern.permute.xlu0 0
        %2802 = vperm.xlu0 %2801, %v870
        %v2803 = vpop.permute.xlu0 %2802
        %2806 = vset.pattern.permute.xlu0 0
        %2807 = vperm.xlu0 %2806, %v871
        %v2808 = vpop.permute.xlu0 %2807
        %2811 = vset.pattern.permute.xlu0 0
        %2812 = vperm.xlu0 %2811, %v872
        %v2813 = vpop.permute.xlu0 %2812
        %2816 = vset.pattern.permute.xlu0 0
        %2817 = vperm.xlu0 %2816, %v873
        %v2818 = vpop.permute.xlu0 %2817
        %2821 = vset.pattern.permute.xlu0 0
        %2822 = vperm.xlu0 %2821, %v874
        %v2823 = vpop.permute.xlu0 %2822
        %2826 = vset.pattern.permute.xlu0 0
        %2827 = vperm.xlu0 %2826, %v875
        %v2828 = vpop.permute.xlu0 %2827
        %2831 = vset.pattern.permute.xlu0 0
        %2832 = vperm.xlu0 %2831, %v876
        %v2833 = vpop.permute.xlu0 %2832
        %2836 = vset.pattern.permute.xlu0 0
        %2837 = vperm.xlu0 %2836, %v877
        %v2838 = vpop.permute.xlu0 %2837
        %2841 = vset.pattern.permute.xlu0 0
        %2842 = vperm.xlu0 %2841, %v878
        %v2843 = vpop.permute.xlu0 %2842
        %2846 = vset.pattern.permute.xlu0 0
        %2847 = vperm.xlu0 %2846, %v879
        %v2848 = vpop.permute.xlu0 %2847
        %v2850 = vmul.f32 %v1534, %v2693
        %v2851 = vmul.f32 %v1533, %v2698
        %v2852 = vmul.f32 %v1532, %v2703
        %v2853 = vmul.f32 %v1531, %v2708
        %v2854 = vmul.f32 %v1530, %v2713
        %v2855 = vmul.f32 %v1529, %v2718
        %v2856 = vmul.f32 %v1528, %v2723
        %v2857 = vmul.f32 %v1527, %v2728
        %v2858 = vmul.f32 %v1526, %v2733
        %v2859 = vmul.f32 %v1525, %v2738
        %v2860 = vmul.f32 %v1524, %v2743
        %v2861 = vmul.f32 %v1523, %v2748
        %v2862 = vmul.f32 %v1522, %v2753
        %v2863 = vmul.f32 %v1521, %v2758
        %v2864 = vmul.f32 %v1520, %v2763
        %v2865 = vmul.f32 %v1519, %v2768
        %v2866 = vmul.f32 %v1518, %v2773
        %v2867 = vmul.f32 %v1517, %v2778
        %v2868 = vmul.f32 %v1516, %v2783
        %v2869 = vmul.f32 %v1515, %v2788
        %v2870 = vmul.f32 %v1514, %v2793
        %v2871 = vmul.f32 %v1513, %v2798
        %v2872 = vmul.f32 %v1512, %v2803
        %v2873 = vmul.f32 %v1511, %v2808
        %v2874 = vmul.f32 %v1510, %v2813
        %v2875 = vmul.f32 %v1509, %v2818
        %v2876 = vmul.f32 %v1508, %v2823
        %v2877 = vmul.f32 %v1507, %v2828
        %v2878 = vmul.f32 %v1506, %v2833
        %v2879 = vmul.f32 %v1537, %v2838
        %v2880 = vmul.f32 %v1536, %v2843
        %v2881 = vmul.f32 %v1535, %v2848
        %2914 = vrot.lane.b32.xlu0 %v1441, 4
        %v2915 = vpop.permute.xlu0 %2914
        %2916 = vrot.lane.b32.xlu0 %v1442, 4
        %v2917 = vpop.permute.xlu0 %2916
        %2918 = vrot.lane.b32.xlu0 %v1443, 4
        %v2919 = vpop.permute.xlu0 %2918
        %2920 = vrot.lane.b32.xlu0 %v1444, 4
        %v2921 = vpop.permute.xlu0 %2920
        %2922 = vrot.lane.b32.xlu0 %v1445, 4
        %v2923 = vpop.permute.xlu0 %2922
        %2924 = vrot.lane.b32.xlu0 %v1446, 4
        %v2925 = vpop.permute.xlu0 %2924
        %2926 = vrot.lane.b32.xlu0 %v1447, 4
        %v2927 = vpop.permute.xlu0 %2926
        %2928 = vrot.lane.b32.xlu0 %v1448, 4
        %v2929 = vpop.permute.xlu0 %2928
        %2930 = vrot.lane.b32.xlu0 %v1449, 4
        %v2931 = vpop.permute.xlu0 %2930
        %2932 = vrot.lane.b32.xlu0 %v1450, 4
        %v2933 = vpop.permute.xlu0 %2932
        %2934 = vrot.lane.b32.xlu0 %v1451, 4
        %v2935 = vpop.permute.xlu0 %2934
        %2936 = vrot.lane.b32.xlu0 %v1452, 4
        %v2937 = vpop.permute.xlu0 %2936
        %2938 = vrot.lane.b32.xlu0 %v1453, 4
        %v2939 = vpop.permute.xlu0 %2938
        %2940 = vrot.lane.b32.xlu0 %v1454, 4
        %v2941 = vpop.permute.xlu0 %2940
        %2942 = vrot.lane.b32.xlu0 %v1455, 4
        %v2943 = vpop.permute.xlu0 %2942
        %2944 = vrot.lane.b32.xlu0 %v1456, 4
        %v2945 = vpop.permute.xlu0 %2944
        %2946 = vrot.lane.b32.xlu0 %v1457, 4
        %v2947 = vpop.permute.xlu0 %2946
        %2948 = vrot.lane.b32.xlu0 %v1458, 4
        %v2949 = vpop.permute.xlu0 %2948
        %2950 = vrot.lane.b32.xlu0 %v1459, 4
        %v2951 = vpop.permute.xlu0 %2950
        %2952 = vrot.lane.b32.xlu0 %v1460, 4
        %v2953 = vpop.permute.xlu0 %2952
        %2954 = vrot.lane.b32.xlu0 %v1461, 4
        %v2955 = vpop.permute.xlu0 %2954
        %2956 = vrot.lane.b32.xlu0 %v1462, 4
        %v2957 = vpop.permute.xlu0 %2956
        %2958 = vrot.lane.b32.xlu0 %v1463, 4
        %v2959 = vpop.permute.xlu0 %2958
        %2960 = vrot.lane.b32.xlu0 %v1464, 4
        %v2961 = vpop.permute.xlu0 %2960
        %2962 = vrot.lane.b32.xlu0 %v1465, 4
        %v2963 = vpop.permute.xlu0 %2962
        %2964 = vrot.lane.b32.xlu0 %v1466, 4
        %v2965 = vpop.permute.xlu0 %2964
        %2966 = vrot.lane.b32.xlu0 %v1467, 4
        %v2967 = vpop.permute.xlu0 %2966
        %2968 = vrot.lane.b32.xlu0 %v1468, 4
        %v2969 = vpop.permute.xlu0 %2968
        %2970 = vrot.lane.b32.xlu0 %v1469, 4
        %v2971 = vpop.permute.xlu0 %2970
        %2972 = vrot.lane.b32.xlu0 %v1470, 4
        %v2973 = vpop.permute.xlu0 %2972
        %2974 = vrot.lane.b32.xlu0 %v1471, 4
        %v2975 = vpop.permute.xlu0 %2974
        %2976 = vrot.lane.b32.xlu0 %v1472, 4
        %v2977 = vpop.permute.xlu0 %2976
        %3042 = vrot.lane.b32.xlu0 %v1698, 8
        %v3043 = vpop.permute.xlu0 %3042
        %3044 = vrot.lane.b32.xlu0 %v1699, 8
        %v3045 = vpop.permute.xlu0 %3044
        %3046 = vrot.lane.b32.xlu0 %v1700, 8
        %v3047 = vpop.permute.xlu0 %3046
        %3048 = vrot.lane.b32.xlu0 %v1701, 8
        %v3049 = vpop.permute.xlu0 %3048
        %3050 = vrot.lane.b32.xlu0 %v1702, 8
        %v3051 = vpop.permute.xlu0 %3050
        %3052 = vrot.lane.b32.xlu0 %v1703, 8
        %v3053 = vpop.permute.xlu0 %3052
        %3054 = vrot.lane.b32.xlu0 %v1704, 8
        %v3055 = vpop.permute.xlu0 %3054
        %3056 = vrot.lane.b32.xlu0 %v1705, 8
        %v3057 = vpop.permute.xlu0 %3056
        %3058 = vrot.lane.b32.xlu0 %v1706, 8
        %v3059 = vpop.permute.xlu0 %3058
        %3060 = vrot.lane.b32.xlu0 %v1707, 8
        %v3061 = vpop.permute.xlu0 %3060
        %3062 = vrot.lane.b32.xlu0 %v1708, 8
        %v3063 = vpop.permute.xlu0 %3062
        %3064 = vrot.lane.b32.xlu0 %v1709, 8
        %v3065 = vpop.permute.xlu0 %3064
        %3066 = vrot.lane.b32.xlu0 %v1710, 8
        %v3067 = vpop.permute.xlu0 %3066
        %3068 = vrot.lane.b32.xlu0 %v1711, 8
        %v3069 = vpop.permute.xlu0 %3068
        %3070 = vrot.lane.b32.xlu0 %v1712, 8
        %v3071 = vpop.permute.xlu0 %3070
        %3072 = vrot.lane.b32.xlu0 %v1713, 8
        %v3073 = vpop.permute.xlu0 %3072
        %3074 = vrot.lane.b32.xlu0 %v1714, 8
        %v3075 = vpop.permute.xlu0 %3074
        %3076 = vrot.lane.b32.xlu0 %v1715, 8
        %v3077 = vpop.permute.xlu0 %3076
        %3078 = vrot.lane.b32.xlu0 %v1716, 8
        %v3079 = vpop.permute.xlu0 %3078
        %3080 = vrot.lane.b32.xlu0 %v1717, 8
        %v3081 = vpop.permute.xlu0 %3080
        %3082 = vrot.lane.b32.xlu0 %v1718, 8
        %v3083 = vpop.permute.xlu0 %3082
        %3084 = vrot.lane.b32.xlu0 %v1719, 8
        %v3085 = vpop.permute.xlu0 %3084
        %3086 = vrot.lane.b32.xlu0 %v1720, 8
        %v3087 = vpop.permute.xlu0 %3086
        %3088 = vrot.lane.b32.xlu0 %v1721, 8
        %v3089 = vpop.permute.xlu0 %3088
        %3090 = vrot.lane.b32.xlu0 %v1722, 8
        %v3091 = vpop.permute.xlu0 %3090
        %3092 = vrot.lane.b32.xlu0 %v1723, 8
        %v3093 = vpop.permute.xlu0 %3092
        %3094 = vrot.lane.b32.xlu0 %v1724, 8
        %v3095 = vpop.permute.xlu0 %3094
        %3096 = vrot.lane.b32.xlu0 %v1725, 8
        %v3097 = vpop.permute.xlu0 %3096
        %3098 = vrot.lane.b32.xlu0 %v1726, 8
        %v3099 = vpop.permute.xlu0 %3098
        %3100 = vrot.lane.b32.xlu0 %v1727, 8
        %v3101 = vpop.permute.xlu0 %3100
        %3102 = vrot.lane.b32.xlu0 %v1728, 8
        %v3103 = vpop.permute.xlu0 %3102
        %3104 = vrot.lane.b32.xlu0 %v1729, 8
        %v3105 = vpop.permute.xlu0 %3104
        %3170 = vrot.lane.b32.xlu0 %v1890, 12
        %v3171 = vpop.permute.xlu0 %3170
        %3172 = vrot.lane.b32.xlu0 %v1891, 12
        %v3173 = vpop.permute.xlu0 %3172
        %3174 = vrot.lane.b32.xlu0 %v1892, 12
        %v3175 = vpop.permute.xlu0 %3174
        %3176 = vrot.lane.b32.xlu0 %v1893, 12
        %v3177 = vpop.permute.xlu0 %3176
        %3178 = vrot.lane.b32.xlu0 %v1894, 12
        %v3179 = vpop.permute.xlu0 %3178
        %3180 = vrot.lane.b32.xlu0 %v1895, 12
        %v3181 = vpop.permute.xlu0 %3180
        %3182 = vrot.lane.b32.xlu0 %v1896, 12
        %v3183 = vpop.permute.xlu0 %3182
        %3184 = vrot.lane.b32.xlu0 %v1897, 12
        %v3185 = vpop.permute.xlu0 %3184
        %3186 = vrot.lane.b32.xlu0 %v1898, 12
        %v3187 = vpop.permute.xlu0 %3186
        %3188 = vrot.lane.b32.xlu0 %v1899, 12
        %v3189 = vpop.permute.xlu0 %3188
        %3190 = vrot.lane.b32.xlu0 %v1900, 12
        %v3191 = vpop.permute.xlu0 %3190
        %3192 = vrot.lane.b32.xlu0 %v1901, 12
        %v3193 = vpop.permute.xlu0 %3192
        %3194 = vrot.lane.b32.xlu0 %v1902, 12
        %v3195 = vpop.permute.xlu0 %3194
        %3196 = vrot.lane.b32.xlu0 %v1903, 12
        %v3197 = vpop.permute.xlu0 %3196
        %3198 = vrot.lane.b32.xlu0 %v1904, 12
        %v3199 = vpop.permute.xlu0 %3198
        %3200 = vrot.lane.b32.xlu0 %v1905, 12
        %v3201 = vpop.permute.xlu0 %3200
        %3202 = vrot.lane.b32.xlu0 %v1906, 12
        %v3203 = vpop.permute.xlu0 %3202
        %3204 = vrot.lane.b32.xlu0 %v1907, 12
        %v3205 = vpop.permute.xlu0 %3204
        %3206 = vrot.lane.b32.xlu0 %v1908, 12
        %v3207 = vpop.permute.xlu0 %3206
        %3208 = vrot.lane.b32.xlu0 %v1909, 12
        %v3209 = vpop.permute.xlu0 %3208
        %3210 = vrot.lane.b32.xlu0 %v1910, 12
        %v3211 = vpop.permute.xlu0 %3210
        %3212 = vrot.lane.b32.xlu0 %v1911, 12
        %v3213 = vpop.permute.xlu0 %3212
        %3214 = vrot.lane.b32.xlu0 %v1912, 12
        %v3215 = vpop.permute.xlu0 %3214
        %3216 = vrot.lane.b32.xlu0 %v1913, 12
        %v3217 = vpop.permute.xlu0 %3216
        %3218 = vrot.lane.b32.xlu0 %v1914, 12
        %v3219 = vpop.permute.xlu0 %3218
        %3220 = vrot.lane.b32.xlu0 %v1915, 12
        %v3221 = vpop.permute.xlu0 %3220
        %3222 = vrot.lane.b32.xlu0 %v1916, 12
        %v3223 = vpop.permute.xlu0 %3222
        %3224 = vrot.lane.b32.xlu0 %v1917, 12
        %v3225 = vpop.permute.xlu0 %3224
        %3226 = vrot.lane.b32.xlu0 %v1918, 12
        %v3227 = vpop.permute.xlu0 %3226
        %3228 = vrot.lane.b32.xlu0 %v1919, 12
        %v3229 = vpop.permute.xlu0 %3228
        %3230 = vrot.lane.b32.xlu0 %v1920, 12
        %v3231 = vpop.permute.xlu0 %3230
        %3232 = vrot.lane.b32.xlu0 %v1921, 12
        %v3233 = vpop.permute.xlu0 %3232
        %3298 = vrot.lane.b32.xlu0 %v2082, 16
        %v3299 = vpop.permute.xlu0 %3298
        %3300 = vrot.lane.b32.xlu0 %v2083, 16
        %v3301 = vpop.permute.xlu0 %3300
        %3302 = vrot.lane.b32.xlu0 %v2084, 16
        %v3303 = vpop.permute.xlu0 %3302
        %3304 = vrot.lane.b32.xlu0 %v2085, 16
        %v3305 = vpop.permute.xlu0 %3304
        %3306 = vrot.lane.b32.xlu0 %v2086, 16
        %v3307 = vpop.permute.xlu0 %3306
        %3308 = vrot.lane.b32.xlu0 %v2087, 16
        %v3309 = vpop.permute.xlu0 %3308
        %3310 = vrot.lane.b32.xlu0 %v2088, 16
        %v3311 = vpop.permute.xlu0 %3310
        %3312 = vrot.lane.b32.xlu0 %v2089, 16
        %v3313 = vpop.permute.xlu0 %3312
        %3314 = vrot.lane.b32.xlu0 %v2090, 16
        %v3315 = vpop.permute.xlu0 %3314
        %3316 = vrot.lane.b32.xlu0 %v2091, 16
        %v3317 = vpop.permute.xlu0 %3316
        %3318 = vrot.lane.b32.xlu0 %v2092, 16
        %v3319 = vpop.permute.xlu0 %3318
        %3320 = vrot.lane.b32.xlu0 %v2093, 16
        %v3321 = vpop.permute.xlu0 %3320
        %3322 = vrot.lane.b32.xlu0 %v2094, 16
        %v3323 = vpop.permute.xlu0 %3322
        %3324 = vrot.lane.b32.xlu0 %v2095, 16
        %v3325 = vpop.permute.xlu0 %3324
        %3326 = vrot.lane.b32.xlu0 %v2096, 16
        %v3327 = vpop.permute.xlu0 %3326
        %3328 = vrot.lane.b32.xlu0 %v2097, 16
        %v3329 = vpop.permute.xlu0 %3328
        %3330 = vrot.lane.b32.xlu0 %v2098, 16
        %v3331 = vpop.permute.xlu0 %3330
        %3332 = vrot.lane.b32.xlu0 %v2099, 16
        %v3333 = vpop.permute.xlu0 %3332
        %3334 = vrot.lane.b32.xlu0 %v2100, 16
        %v3335 = vpop.permute.xlu0 %3334
        %3336 = vrot.lane.b32.xlu0 %v2101, 16
        %v3337 = vpop.permute.xlu0 %3336
        %3338 = vrot.lane.b32.xlu0 %v2102, 16
        %v3339 = vpop.permute.xlu0 %3338
        %3340 = vrot.lane.b32.xlu0 %v2103, 16
        %v3341 = vpop.permute.xlu0 %3340
        %3342 = vrot.lane.b32.xlu0 %v2104, 16
        %v3343 = vpop.permute.xlu0 %3342
        %3344 = vrot.lane.b32.xlu0 %v2105, 16
        %v3345 = vpop.permute.xlu0 %3344
        %3346 = vrot.lane.b32.xlu0 %v2106, 16
        %v3347 = vpop.permute.xlu0 %3346
        %3348 = vrot.lane.b32.xlu0 %v2107, 16
        %v3349 = vpop.permute.xlu0 %3348
        %3350 = vrot.lane.b32.xlu0 %v2108, 16
        %v3351 = vpop.permute.xlu0 %3350
        %3352 = vrot.lane.b32.xlu0 %v2109, 16
        %v3353 = vpop.permute.xlu0 %3352
        %3354 = vrot.lane.b32.xlu0 %v2110, 16
        %v3355 = vpop.permute.xlu0 %3354
        %3356 = vrot.lane.b32.xlu0 %v2111, 16
        %v3357 = vpop.permute.xlu0 %3356
        %3358 = vrot.lane.b32.xlu0 %v2112, 16
        %v3359 = vpop.permute.xlu0 %3358
        %3360 = vrot.lane.b32.xlu0 %v2113, 16
        %v3361 = vpop.permute.xlu0 %3360
        %3426 = vrot.lane.b32.xlu0 %v2274, 20
        %v3427 = vpop.permute.xlu0 %3426
        %3428 = vrot.lane.b32.xlu0 %v2275, 20
        %v3429 = vpop.permute.xlu0 %3428
        %3430 = vrot.lane.b32.xlu0 %v2276, 20
        %v3431 = vpop.permute.xlu0 %3430
        %3432 = vrot.lane.b32.xlu0 %v2277, 20
        %v3433 = vpop.permute.xlu0 %3432
        %3434 = vrot.lane.b32.xlu0 %v2278, 20
        %v3435 = vpop.permute.xlu0 %3434
        %3436 = vrot.lane.b32.xlu0 %v2279, 20
        %v3437 = vpop.permute.xlu0 %3436
        %3438 = vrot.lane.b32.xlu0 %v2280, 20
        %v3439 = vpop.permute.xlu0 %3438
        %3440 = vrot.lane.b32.xlu0 %v2281, 20
        %v3441 = vpop.permute.xlu0 %3440
        %3442 = vrot.lane.b32.xlu0 %v2282, 20
        %v3443 = vpop.permute.xlu0 %3442
        %3444 = vrot.lane.b32.xlu0 %v2283, 20
        %v3445 = vpop.permute.xlu0 %3444
        %3446 = vrot.lane.b32.xlu0 %v2284, 20
        %v3447 = vpop.permute.xlu0 %3446
        %3448 = vrot.lane.b32.xlu0 %v2285, 20
        %v3449 = vpop.permute.xlu0 %3448
        %3450 = vrot.lane.b32.xlu0 %v2286, 20
        %v3451 = vpop.permute.xlu0 %3450
        %3452 = vrot.lane.b32.xlu0 %v2287, 20
        %v3453 = vpop.permute.xlu0 %3452
        %3454 = vrot.lane.b32.xlu0 %v2288, 20
        %v3455 = vpop.permute.xlu0 %3454
        %3456 = vrot.lane.b32.xlu0 %v2289, 20
        %v3457 = vpop.permute.xlu0 %3456
        %3458 = vrot.lane.b32.xlu0 %v2290, 20
        %v3459 = vpop.permute.xlu0 %3458
        %3460 = vrot.lane.b32.xlu0 %v2291, 20
        %v3461 = vpop.permute.xlu0 %3460
        %3462 = vrot.lane.b32.xlu0 %v2292, 20
        %v3463 = vpop.permute.xlu0 %3462
        %3464 = vrot.lane.b32.xlu0 %v2293, 20
        %v3465 = vpop.permute.xlu0 %3464
        %3466 = vrot.lane.b32.xlu0 %v2294, 20
        %v3467 = vpop.permute.xlu0 %3466
        %3468 = vrot.lane.b32.xlu0 %v2295, 20
        %v3469 = vpop.permute.xlu0 %3468
        %3470 = vrot.lane.b32.xlu0 %v2296, 20
        %v3471 = vpop.permute.xlu0 %3470
        %3472 = vrot.lane.b32.xlu0 %v2297, 20
        %v3473 = vpop.permute.xlu0 %3472
        %3474 = vrot.lane.b32.xlu0 %v2298, 20
        %v3475 = vpop.permute.xlu0 %3474
        %3476 = vrot.lane.b32.xlu0 %v2299, 20
        %v3477 = vpop.permute.xlu0 %3476
        %3478 = vrot.lane.b32.xlu0 %v2300, 20
        %v3479 = vpop.permute.xlu0 %3478
        %3480 = vrot.lane.b32.xlu0 %v2301, 20
        %v3481 = vpop.permute.xlu0 %3480
        %3482 = vrot.lane.b32.xlu0 %v2302, 20
        %v3483 = vpop.permute.xlu0 %3482
        %3484 = vrot.lane.b32.xlu0 %v2303, 20
        %v3485 = vpop.permute.xlu0 %3484
        %3486 = vrot.lane.b32.xlu0 %v2304, 20
        %v3487 = vpop.permute.xlu0 %3486
        %3488 = vrot.lane.b32.xlu0 %v2305, 20
        %v3489 = vpop.permute.xlu0 %3488
        %3554 = vrot.lane.b32.xlu0 %v2466, 24
        %v3555 = vpop.permute.xlu0 %3554
        %3556 = vrot.lane.b32.xlu0 %v2467, 24
        %v3557 = vpop.permute.xlu0 %3556
        %3558 = vrot.lane.b32.xlu0 %v2468, 24
        %v3559 = vpop.permute.xlu0 %3558
        %3560 = vrot.lane.b32.xlu0 %v2469, 24
        %v3561 = vpop.permute.xlu0 %3560
        %3562 = vrot.lane.b32.xlu0 %v2470, 24
        %v3563 = vpop.permute.xlu0 %3562
        %3564 = vrot.lane.b32.xlu0 %v2471, 24
        %v3565 = vpop.permute.xlu0 %3564
        %3566 = vrot.lane.b32.xlu0 %v2472, 24
        %v3567 = vpop.permute.xlu0 %3566
        %3568 = vrot.lane.b32.xlu0 %v2473, 24
        %v3569 = vpop.permute.xlu0 %3568
        %3570 = vrot.lane.b32.xlu0 %v2474, 24
        %v3571 = vpop.permute.xlu0 %3570
        %3572 = vrot.lane.b32.xlu0 %v2475, 24
        %v3573 = vpop.permute.xlu0 %3572
        %3574 = vrot.lane.b32.xlu0 %v2476, 24
        %v3575 = vpop.permute.xlu0 %3574
        %3576 = vrot.lane.b32.xlu0 %v2477, 24
        %v3577 = vpop.permute.xlu0 %3576
        %3578 = vrot.lane.b32.xlu0 %v2478, 24
        %v3579 = vpop.permute.xlu0 %3578
        %3580 = vrot.lane.b32.xlu0 %v2479, 24
        %v3581 = vpop.permute.xlu0 %3580
        %3582 = vrot.lane.b32.xlu0 %v2480, 24
        %v3583 = vpop.permute.xlu0 %3582
        %3584 = vrot.lane.b32.xlu0 %v2481, 24
        %v3585 = vpop.permute.xlu0 %3584
        %3586 = vrot.lane.b32.xlu0 %v2482, 24
        %v3587 = vpop.permute.xlu0 %3586
        %3588 = vrot.lane.b32.xlu0 %v2483, 24
        %v3589 = vpop.permute.xlu0 %3588
        %3590 = vrot.lane.b32.xlu0 %v2484, 24
        %v3591 = vpop.permute.xlu0 %3590
        %3592 = vrot.lane.b32.xlu0 %v2485, 24
        %v3593 = vpop.permute.xlu0 %3592
        %3594 = vrot.lane.b32.xlu0 %v2486, 24
        %v3595 = vpop.permute.xlu0 %3594
        %3596 = vrot.lane.b32.xlu0 %v2487, 24
        %v3597 = vpop.permute.xlu0 %3596
        %3598 = vrot.lane.b32.xlu0 %v2488, 24
        %v3599 = vpop.permute.xlu0 %3598
        %3600 = vrot.lane.b32.xlu0 %v2489, 24
        %v3601 = vpop.permute.xlu0 %3600
        %3602 = vrot.lane.b32.xlu0 %v2490, 24
        %v3603 = vpop.permute.xlu0 %3602
        %3604 = vrot.lane.b32.xlu0 %v2491, 24
        %v3605 = vpop.permute.xlu0 %3604
        %3606 = vrot.lane.b32.xlu0 %v2492, 24
        %v3607 = vpop.permute.xlu0 %3606
        %3608 = vrot.lane.b32.xlu0 %v2493, 24
        %v3609 = vpop.permute.xlu0 %3608
        %3610 = vrot.lane.b32.xlu0 %v2494, 24
        %v3611 = vpop.permute.xlu0 %3610
        %3612 = vrot.lane.b32.xlu0 %v2495, 24
        %v3613 = vpop.permute.xlu0 %3612
        %3614 = vrot.lane.b32.xlu0 %v2496, 24
        %v3615 = vpop.permute.xlu0 %3614
        %3616 = vrot.lane.b32.xlu0 %v2497, 24
        %v3617 = vpop.permute.xlu0 %3616
        %3682 = vrot.lane.b32.xlu0 %v2658, 28
        %v3683 = vpop.permute.xlu0 %3682
        %3684 = vrot.lane.b32.xlu0 %v2659, 28
        %v3685 = vpop.permute.xlu0 %3684
        %3686 = vrot.lane.b32.xlu0 %v2660, 28
        %v3687 = vpop.permute.xlu0 %3686
        %3688 = vrot.lane.b32.xlu0 %v2661, 28
        %v3689 = vpop.permute.xlu0 %3688
        %3690 = vrot.lane.b32.xlu0 %v2662, 28
        %v3691 = vpop.permute.xlu0 %3690
        %3692 = vrot.lane.b32.xlu0 %v2663, 28
        %v3693 = vpop.permute.xlu0 %3692
        %3694 = vrot.lane.b32.xlu0 %v2664, 28
        %v3695 = vpop.permute.xlu0 %3694
        %3696 = vrot.lane.b32.xlu0 %v2665, 28
        %v3697 = vpop.permute.xlu0 %3696
        %3698 = vrot.lane.b32.xlu0 %v2666, 28
        %v3699 = vpop.permute.xlu0 %3698
        %3700 = vrot.lane.b32.xlu0 %v2667, 28
        %v3701 = vpop.permute.xlu0 %3700
        %3702 = vrot.lane.b32.xlu0 %v2668, 28
        %v3703 = vpop.permute.xlu0 %3702
        %3704 = vrot.lane.b32.xlu0 %v2669, 28
        %v3705 = vpop.permute.xlu0 %3704
        %3706 = vrot.lane.b32.xlu0 %v2670, 28
        %v3707 = vpop.permute.xlu0 %3706
        %3708 = vrot.lane.b32.xlu0 %v2671, 28
        %v3709 = vpop.permute.xlu0 %3708
        %3710 = vrot.lane.b32.xlu0 %v2672, 28
        %v3711 = vpop.permute.xlu0 %3710
        %3712 = vrot.lane.b32.xlu0 %v2673, 28
        %v3713 = vpop.permute.xlu0 %3712
        %3714 = vrot.lane.b32.xlu0 %v2674, 28
        %v3715 = vpop.permute.xlu0 %3714
        %3716 = vrot.lane.b32.xlu0 %v2675, 28
        %v3717 = vpop.permute.xlu0 %3716
        %3718 = vrot.lane.b32.xlu0 %v2676, 28
        %v3719 = vpop.permute.xlu0 %3718
        %3720 = vrot.lane.b32.xlu0 %v2677, 28
        %v3721 = vpop.permute.xlu0 %3720
        %3722 = vrot.lane.b32.xlu0 %v2678, 28
        %v3723 = vpop.permute.xlu0 %3722
        %3724 = vrot.lane.b32.xlu0 %v2679, 28
        %v3725 = vpop.permute.xlu0 %3724
        %3726 = vrot.lane.b32.xlu0 %v2680, 28
        %v3727 = vpop.permute.xlu0 %3726
        %3728 = vrot.lane.b32.xlu0 %v2681, 28
        %v3729 = vpop.permute.xlu0 %3728
        %3730 = vrot.lane.b32.xlu0 %v2682, 28
        %v3731 = vpop.permute.xlu0 %3730
        %3732 = vrot.lane.b32.xlu0 %v2683, 28
        %v3733 = vpop.permute.xlu0 %3732
        %3734 = vrot.lane.b32.xlu0 %v2684, 28
        %v3735 = vpop.permute.xlu0 %3734
        %3736 = vrot.lane.b32.xlu0 %v2685, 28
        %v3737 = vpop.permute.xlu0 %3736
        %3738 = vrot.lane.b32.xlu0 %v2686, 28
        %v3739 = vpop.permute.xlu0 %3738
        %3740 = vrot.lane.b32.xlu0 %v2687, 28
        %v3741 = vpop.permute.xlu0 %3740
        %3742 = vrot.lane.b32.xlu0 %v2688, 28
        %v3743 = vpop.permute.xlu0 %3742
        %3744 = vrot.lane.b32.xlu0 %v2689, 28
        %v3745 = vpop.permute.xlu0 %3744
        %3810 = vrot.lane.b32.xlu0 %v2850, 32
        %v3811 = vpop.permute.xlu0 %3810
        %3812 = vrot.lane.b32.xlu0 %v2851, 32
        %v3813 = vpop.permute.xlu0 %3812
        %3814 = vrot.lane.b32.xlu0 %v2852, 32
        %v3815 = vpop.permute.xlu0 %3814
        %3816 = vrot.lane.b32.xlu0 %v2853, 32
        %v3817 = vpop.permute.xlu0 %3816
        %3818 = vrot.lane.b32.xlu0 %v2854, 32
        %v3819 = vpop.permute.xlu0 %3818
        %3820 = vrot.lane.b32.xlu0 %v2855, 32
        %v3821 = vpop.permute.xlu0 %3820
        %3822 = vrot.lane.b32.xlu0 %v2856, 32
        %v3823 = vpop.permute.xlu0 %3822
        %3824 = vrot.lane.b32.xlu0 %v2857, 32
        %v3825 = vpop.permute.xlu0 %3824
        %3826 = vrot.lane.b32.xlu0 %v2858, 32
        %v3827 = vpop.permute.xlu0 %3826
        %3828 = vrot.lane.b32.xlu0 %v2859, 32
        %v3829 = vpop.permute.xlu0 %3828
        %3830 = vrot.lane.b32.xlu0 %v2860, 32
        %v3831 = vpop.permute.xlu0 %3830
        %3832 = vrot.lane.b32.xlu0 %v2861, 32
        %v3833 = vpop.permute.xlu0 %3832
        %3834 = vrot.lane.b32.xlu0 %v2862, 32
        %v3835 = vpop.permute.xlu0 %3834
        %3836 = vrot.lane.b32.xlu0 %v2863, 32
        %v3837 = vpop.permute.xlu0 %3836
        %3838 = vrot.lane.b32.xlu0 %v2864, 32
        %v3839 = vpop.permute.xlu0 %3838
        %3840 = vrot.lane.b32.xlu0 %v2865, 32
        %v3841 = vpop.permute.xlu0 %3840
        %3842 = vrot.lane.b32.xlu0 %v2866, 32
        %v3843 = vpop.permute.xlu0 %3842
        %3844 = vrot.lane.b32.xlu0 %v2867, 32
        %v3845 = vpop.permute.xlu0 %3844
        %3846 = vrot.lane.b32.xlu0 %v2868, 32
        %v3847 = vpop.permute.xlu0 %3846
        %3848 = vrot.lane.b32.xlu0 %v2869, 32
        %v3849 = vpop.permute.xlu0 %3848
        %3850 = vrot.lane.b32.xlu0 %v2870, 32
        %v3851 = vpop.permute.xlu0 %3850
        %3852 = vrot.lane.b32.xlu0 %v2871, 32
        %v3853 = vpop.permute.xlu0 %3852
        %3854 = vrot.lane.b32.xlu0 %v2872, 32
        %v3855 = vpop.permute.xlu0 %3854
        %3856 = vrot.lane.b32.xlu0 %v2873, 32
        %v3857 = vpop.permute.xlu0 %3856
        %3858 = vrot.lane.b32.xlu0 %v2874, 32
        %v3859 = vpop.permute.xlu0 %3858
        %3860 = vrot.lane.b32.xlu0 %v2875, 32
        %v3861 = vpop.permute.xlu0 %3860
        %3862 = vrot.lane.b32.xlu0 %v2876, 32
        %v3863 = vpop.permute.xlu0 %3862
        %3864 = vrot.lane.b32.xlu0 %v2877, 32
        %v3865 = vpop.permute.xlu0 %3864
        %3866 = vrot.lane.b32.xlu0 %v2878, 32
        %v3867 = vpop.permute.xlu0 %3866
        %3868 = vrot.lane.b32.xlu0 %v2879, 32
        %v3869 = vpop.permute.xlu0 %3868
        %3870 = vrot.lane.b32.xlu0 %v2880, 32
        %v3871 = vpop.permute.xlu0 %3870
        %3872 = vrot.lane.b32.xlu0 %v2881, 32
        %v3873 = vpop.permute.xlu0 %3872
        %vm3906 = vcmask 31744
        %v3907 = vsel %vm3906, %v1249, %v2915
        %v3908 = vsel %vm3906, %v1250, %v2917
        %v3909 = vsel %vm3906, %v1251, %v2919
        %v3910 = vsel %vm3906, %v1252, %v2921
        %v3911 = vsel %vm3906, %v1253, %v2923
        %v3912 = vsel %vm3906, %v1254, %v2925
        %v3913 = vsel %vm3906, %v1255, %v2927
        %v3914 = vsel %vm3906, %v1256, %v2929
        %v3915 = vsel %vm3906, %v1257, %v2931
        %v3916 = vsel %vm3906, %v1258, %v2933
        %v3917 = vsel %vm3906, %v1259, %v2935
        %v3918 = vsel %vm3906, %v1260, %v2937
        %v3919 = vsel %vm3906, %v1261, %v2939
        %v3920 = vsel %vm3906, %v1262, %v2941
        %v3921 = vsel %vm3906, %v1263, %v2943
        %v3922 = vsel %vm3906, %v1264, %v2945
        %v3923 = vsel %vm3906, %v1265, %v2947
        %v3924 = vsel %vm3906, %v1266, %v2949
        %v3925 = vsel %vm3906, %v1267, %v2951
        %v3926 = vsel %vm3906, %v1268, %v2953
        %v3927 = vsel %vm3906, %v1269, %v2955
        %v3928 = vsel %vm3906, %v1270, %v2957
        %v3929 = vsel %vm3906, %v1271, %v2959
        %v3930 = vsel %vm3906, %v1272, %v2961
        %v3931 = vsel %vm3906, %v1273, %v2963
        %v3932 = vsel %vm3906, %v1274, %v2965
        %v3933 = vsel %vm3906, %v1275, %v2967
        %v3934 = vsel %vm3906, %v1276, %v2969
        %v3935 = vsel %vm3906, %v1277, %v2971
        %v3936 = vsel %vm3906, %v1278, %v2973
        %v3937 = vsel %vm3906, %v1279, %v2975
        %v3938 = vsel %vm3906, %v1280, %v2977
        %vm3939 = vcmask 64512
        %v3940 = vsel %vm3939, %v3907, %v3043
        %v3941 = vsel %vm3939, %v3908, %v3045
        %v3942 = vsel %vm3939, %v3909, %v3047
        %v3943 = vsel %vm3939, %v3910, %v3049
        %v3944 = vsel %vm3939, %v3911, %v3051
        %v3945 = vsel %vm3939, %v3912, %v3053
        %v3946 = vsel %vm3939, %v3913, %v3055
        %v3947 = vsel %vm3939, %v3914, %v3057
        %v3948 = vsel %vm3939, %v3915, %v3059
        %v3949 = vsel %vm3939, %v3916, %v3061
        %v3950 = vsel %vm3939, %v3917, %v3063
        %v3951 = vsel %vm3939, %v3918, %v3065
        %v3952 = vsel %vm3939, %v3919, %v3067
        %v3953 = vsel %vm3939, %v3920, %v3069
        %v3954 = vsel %vm3939, %v3921, %v3071
        %v3955 = vsel %vm3939, %v3922, %v3073
        %v3956 = vsel %vm3939, %v3923, %v3075
        %v3957 = vsel %vm3939, %v3924, %v3077
        %v3958 = vsel %vm3939, %v3925, %v3079
        %v3959 = vsel %vm3939, %v3926, %v3081
        %v3960 = vsel %vm3939, %v3927, %v3083
        %v3961 = vsel %vm3939, %v3928, %v3085
        %v3962 = vsel %vm3939, %v3929, %v3087
        %v3963 = vsel %vm3939, %v3930, %v3089
        %v3964 = vsel %vm3939, %v3931, %v3091
        %v3965 = vsel %vm3939, %v3932, %v3093
        %v3966 = vsel %vm3939, %v3933, %v3095
        %v3967 = vsel %vm3939, %v3934, %v3097
        %v3968 = vsel %vm3939, %v3935, %v3099
        %v3969 = vsel %vm3939, %v3936, %v3101
        %v3970 = vsel %vm3939, %v3937, %v3103
        %v3971 = vsel %vm3939, %v3938, %v3105
        %vm3972 = vcmask 97280
        %v3973 = vsel %vm3972, %v3940, %v3171
        %v3974 = vsel %vm3972, %v3941, %v3173
        %v3975 = vsel %vm3972, %v3942, %v3175
        %v3976 = vsel %vm3972, %v3943, %v3177
        %v3977 = vsel %vm3972, %v3944, %v3179
        %v3978 = vsel %vm3972, %v3945, %v3181
        %v3979 = vsel %vm3972, %v3946, %v3183
        %v3980 = vsel %vm3972, %v3947, %v3185
        %v3981 = vsel %vm3972, %v3948, %v3187
        %v3982 = vsel %vm3972, %v3949, %v3189
        %v3983 = vsel %vm3972, %v3950, %v3191
        %v3984 = vsel %vm3972, %v3951, %v3193
        %v3985 = vsel %vm3972, %v3952, %v3195
        %v3986 = vsel %vm3972, %v3953, %v3197
        %v3987 = vsel %vm3972, %v3954, %v3199
        %v3988 = vsel %vm3972, %v3955, %v3201
        %v3989 = vsel %vm3972, %v3956, %v3203
        %v3990 = vsel %vm3972, %v3957, %v3205
        %v3991 = vsel %vm3972, %v3958, %v3207
        %v3992 = vsel %vm3972, %v3959, %v3209
        %v3993 = vsel %vm3972, %v3960, %v3211
        %v3994 = vsel %vm3972, %v3961, %v3213
        %v3995 = vsel %vm3972, %v3962, %v3215
        %v3996 = vsel %vm3972, %v3963, %v3217
        %v3997 = vsel %vm3972, %v3964, %v3219
        %v3998 = vsel %vm3972, %v3965, %v3221
        %v3999 = vsel %vm3972, %v3966, %v3223
        %v4000 = vsel %vm3972, %v3967, %v3225
        %v4001 = vsel %vm3972, %v3968, %v3227
        %v4002 = vsel %vm3972, %v3969, %v3229
        %v4003 = vsel %vm3972, %v3970, %v3231
        %v4004 = vsel %vm3972, %v3971, %v3233
        %vm4005 = vcmask 130048
        %v4006 = vsel %vm4005, %v3973, %v3299
        %v4007 = vsel %vm4005, %v3974, %v3301
        %v4008 = vsel %vm4005, %v3975, %v3303
        %v4009 = vsel %vm4005, %v3976, %v3305
        %v4010 = vsel %vm4005, %v3977, %v3307
        %v4011 = vsel %vm4005, %v3978, %v3309
        %v4012 = vsel %vm4005, %v3979, %v3311
        %v4013 = vsel %vm4005, %v3980, %v3313
        %v4014 = vsel %vm4005, %v3981, %v3315
        %v4015 = vsel %vm4005, %v3982, %v3317
        %v4016 = vsel %vm4005, %v3983, %v3319
        %v4017 = vsel %vm4005, %v3984, %v3321
        %v4018 = vsel %vm4005, %v3985, %v3323
        %v4019 = vsel %vm4005, %v3986, %v3325
        %v4020 = vsel %vm4005, %v3987, %v3327
        %v4021 = vsel %vm4005, %v3988, %v3329
        %v4022 = vsel %vm4005, %v3989, %v3331
        %v4023 = vsel %vm4005, %v3990, %v3333
        %v4024 = vsel %vm4005, %v3991, %v3335
        %v4025 = vsel %vm4005, %v3992, %v3337
        %v4026 = vsel %vm4005, %v3993, %v3339
        %v4027 = vsel %vm4005, %v3994, %v3341
        %v4028 = vsel %vm4005, %v3995, %v3343
        %v4029 = vsel %vm4005, %v3996, %v3345
        %v4030 = vsel %vm4005, %v3997, %v3347
        %v4031 = vsel %vm4005, %v3998, %v3349
        %v4032 = vsel %vm4005, %v3999, %v3351
        %v4033 = vsel %vm4005, %v4000, %v3353
        %v4034 = vsel %vm4005, %v4001, %v3355
        %v4035 = vsel %vm4005, %v4002, %v3357
        %v4036 = vsel %vm4005, %v4003, %v3359
        %v4037 = vsel %vm4005, %v4004, %v3361
        %vm4038 = vcmask 162816
        %v4039 = vsel %vm4038, %v4006, %v3427
        %v4040 = vsel %vm4038, %v4007, %v3429
        %v4041 = vsel %vm4038, %v4008, %v3431
        %v4042 = vsel %vm4038, %v4009, %v3433
        %v4043 = vsel %vm4038, %v4010, %v3435
        %v4044 = vsel %vm4038, %v4011, %v3437
        %v4045 = vsel %vm4038, %v4012, %v3439
        %v4046 = vsel %vm4038, %v4013, %v3441
        %v4047 = vsel %vm4038, %v4014, %v3443
        %v4048 = vsel %vm4038, %v4015, %v3445
        %v4049 = vsel %vm4038, %v4016, %v3447
        %v4050 = vsel %vm4038, %v4017, %v3449
        %v4051 = vsel %vm4038, %v4018, %v3451
        %v4052 = vsel %vm4038, %v4019, %v3453
        %v4053 = vsel %vm4038, %v4020, %v3455
        %v4054 = vsel %vm4038, %v4021, %v3457
        %v4055 = vsel %vm4038, %v4022, %v3459
        %v4056 = vsel %vm4038, %v4023, %v3461
        %v4057 = vsel %vm4038, %v4024, %v3463
        %v4058 = vsel %vm4038, %v4025, %v3465
        %v4059 = vsel %vm4038, %v4026, %v3467
        %v4060 = vsel %vm4038, %v4027, %v3469
        %v4061 = vsel %vm4038, %v4028, %v3471
        %v4062 = vsel %vm4038, %v4029, %v3473
        %v4063 = vsel %vm4038, %v4030, %v3475
        %v4064 = vsel %vm4038, %v4031, %v3477
        %v4065 = vsel %vm4038, %v4032, %v3479
        %v4066 = vsel %vm4038, %v4033, %v3481
        %v4067 = vsel %vm4038, %v4034, %v3483
        %v4068 = vsel %vm4038, %v4035, %v3485
        %v4069 = vsel %vm4038, %v4036, %v3487
        %v4070 = vsel %vm4038, %v4037, %v3489
        %vm4071 = vcmask 195584
        %v4072 = vsel %vm4071, %v4039, %v3555
        %v4073 = vsel %vm4071, %v4040, %v3557
        %v4074 = vsel %vm4071, %v4041, %v3559
        %v4075 = vsel %vm4071, %v4042, %v3561
        %v4076 = vsel %vm4071, %v4043, %v3563
        %v4077 = vsel %vm4071, %v4044, %v3565
        %v4078 = vsel %vm4071, %v4045, %v3567
        %v4079 = vsel %vm4071, %v4046, %v3569
        %v4080 = vsel %vm4071, %v4047, %v3571
        %v4081 = vsel %vm4071, %v4048, %v3573
        %v4082 = vsel %vm4071, %v4049, %v3575
        %v4083 = vsel %vm4071, %v4050, %v3577
        %v4084 = vsel %vm4071, %v4051, %v3579
        %v4085 = vsel %vm4071, %v4052, %v3581
        %v4086 = vsel %vm4071, %v4053, %v3583
        %v4087 = vsel %vm4071, %v4054, %v3585
        %v4088 = vsel %vm4071, %v4055, %v3587
        %v4089 = vsel %vm4071, %v4056, %v3589
        %v4090 = vsel %vm4071, %v4057, %v3591
        %v4091 = vsel %vm4071, %v4058, %v3593
        %v4092 = vsel %vm4071, %v4059, %v3595
        %v4093 = vsel %vm4071, %v4060, %v3597
        %v4094 = vsel %vm4071, %v4061, %v3599
        %v4095 = vsel %vm4071, %v4062, %v3601
        %v4096 = vsel %vm4071, %v4063, %v3603
        %v4097 = vsel %vm4071, %v4064, %v3605
        %v4098 = vsel %vm4071, %v4065, %v3607
        %v4099 = vsel %vm4071, %v4066, %v3609
        %v4100 = vsel %vm4071, %v4067, %v3611
        %v4101 = vsel %vm4071, %v4068, %v3613
        %v4102 = vsel %vm4071, %v4069, %v3615
        %v4103 = vsel %vm4071, %v4070, %v3617
        %vm4104 = vcmask 228352
        %v4105 = vsel %vm4104, %v4072, %v3683
        %v4106 = vsel %vm4104, %v4073, %v3685
        %v4107 = vsel %vm4104, %v4074, %v3687
        %v4108 = vsel %vm4104, %v4075, %v3689
        %v4109 = vsel %vm4104, %v4076, %v3691
        %v4110 = vsel %vm4104, %v4077, %v3693
        %v4111 = vsel %vm4104, %v4078, %v3695
        %v4112 = vsel %vm4104, %v4079, %v3697
        %v4113 = vsel %vm4104, %v4080, %v3699
        %v4114 = vsel %vm4104, %v4081, %v3701
        %v4115 = vsel %vm4104, %v4082, %v3703
        %v4116 = vsel %vm4104, %v4083, %v3705
        %v4117 = vsel %vm4104, %v4084, %v3707
        %v4118 = vsel %vm4104, %v4085, %v3709
        %v4119 = vsel %vm4104, %v4086, %v3711
        %v4120 = vsel %vm4104, %v4087, %v3713
        %v4121 = vsel %vm4104, %v4088, %v3715
        %v4122 = vsel %vm4104, %v4089, %v3717
        %v4123 = vsel %vm4104, %v4090, %v3719
        %v4124 = vsel %vm4104, %v4091, %v3721
        %v4125 = vsel %vm4104, %v4092, %v3723
        %v4126 = vsel %vm4104, %v4093, %v3725
        %v4127 = vsel %vm4104, %v4094, %v3727
        %v4128 = vsel %vm4104, %v4095, %v3729
        %v4129 = vsel %vm4104, %v4096, %v3731
        %v4130 = vsel %vm4104, %v4097, %v3733
        %v4131 = vsel %vm4104, %v4098, %v3735
        %v4132 = vsel %vm4104, %v4099, %v3737
        %v4133 = vsel %vm4104, %v4100, %v3739
        %v4134 = vsel %vm4104, %v4101, %v3741
        %v4135 = vsel %vm4104, %v4102, %v3743
        %v4136 = vsel %vm4104, %v4103, %v3745
        %vm4137 = vcmask 261120
        %v4138 = vsel %vm4137, %v4105, %v3811
        %v4139 = vsel %vm4137, %v4106, %v3813
        %v4140 = vsel %vm4137, %v4107, %v3815
        %v4141 = vsel %vm4137, %v4108, %v3817
        %v4142 = vsel %vm4137, %v4109, %v3819
        %v4143 = vsel %vm4137, %v4110, %v3821
        %v4144 = vsel %vm4137, %v4111, %v3823
        %v4145 = vsel %vm4137, %v4112, %v3825
        %v4146 = vsel %vm4137, %v4113, %v3827
        %v4147 = vsel %vm4137, %v4114, %v3829
        %v4148 = vsel %vm4137, %v4115, %v3831
        %v4149 = vsel %vm4137, %v4116, %v3833
        %v4150 = vsel %vm4137, %v4117, %v3835
        %v4151 = vsel %vm4137, %v4118, %v3837
        %v4152 = vsel %vm4137, %v4119, %v3839
        %v4153 = vsel %vm4137, %v4120, %v3841
        %v4154 = vsel %vm4137, %v4121, %v3843
        %v4155 = vsel %vm4137, %v4122, %v3845
        %v4156 = vsel %vm4137, %v4123, %v3847
        %v4157 = vsel %vm4137, %v4124, %v3849
        %v4158 = vsel %vm4137, %v4125, %v3851
        %v4159 = vsel %vm4137, %v4126, %v3853
        %v4160 = vsel %vm4137, %v4127, %v3855
        %v4161 = vsel %vm4137, %v4128, %v3857
        %v4162 = vsel %vm4137, %v4129, %v3859
        %v4163 = vsel %vm4137, %v4130, %v3861
        %v4164 = vsel %vm4137, %v4131, %v3863
        %v4165 = vsel %vm4137, %v4132, %v3865
        %v4166 = vsel %vm4137, %v4133, %v3867
        %v4167 = vsel %vm4137, %v4134, %v3869
        %v4168 = vsel %vm4137, %v4135, %v3871
        %v4169 = vsel %vm4137, %v4136, %v3873
        %v4170 = vpack.c.bf16 %v4139, %v4138
        %v4171 = vpack.c.bf16 %v4141, %v4140
        %v4172 = vpack.c.bf16 %v4143, %v4142
        %v4173 = vpack.c.bf16 %v4145, %v4144
        %v4174 = vpack.c.bf16 %v4147, %v4146
        %v4175 = vpack.c.bf16 %v4149, %v4148
        %v4176 = vpack.c.bf16 %v4151, %v4150
        %v4177 = vpack.c.bf16 %v4153, %v4152
        %v4178 = vpack.c.bf16 %v4155, %v4154
        %v4179 = vpack.c.bf16 %v4157, %v4156
        %v4180 = vpack.c.bf16 %v4159, %v4158
        %v4181 = vpack.c.bf16 %v4161, %v4160
        %v4182 = vpack.c.bf16 %v4163, %v4162
        %v4183 = vpack.c.bf16 %v4165, %v4164
        %v4184 = vpack.c.bf16 %v4167, %v4166
        %v4185 = vpack.c.bf16 %v4169, %v4168
        %v4186 = vld [vmem:[%s4] sm:$0xf]
        %v4187 = vld [vmem:[%s4 + $0x4] sm:$0xf]
        %v4188 = vld [vmem:[%s4 + $0x8] sm:$0xf]
        %v4189 = vld [vmem:[%s4 + $0xc] sm:$0xf]
        %v4190 = vld [vmem:[%s4 + $0x10] sm:$0x3]
        %v4196 = vunpack.c.l.b16 %v4186
        %v4197 = vunpack.c.l.b16 %v4187
        %v4198 = vunpack.c.l.b16 %v4188
        %v4199 = vunpack.c.l.b16 %v4189
        %v4200 = vunpack.c.l.b16 %v4190
        %v4201 = vpack.c.b16 %v4197, %v4196
        %v4202 = vpack.c.b16 %v4199, %v4198
        %v4203 = vpack.c.b16 %v4200, %v4200
        %vm4206 = vcmask 293888
        %v4208 = vsel %vm4206, %v4170, 0
        %v4211 = vsel %vm4206, %v4171, 0
        %v4214 = vsel %vm4206, %v4172, 0
        %v4217 = vsel %vm4206, %v4173, 0
        %v4220 = vsel %vm4206, %v4174, 0
        %v4223 = vsel %vm4206, %v4175, 0
        %v4226 = vsel %vm4206, %v4176, 0
        %v4229 = vsel %vm4206, %v4177, 0
        %v4232 = vsel %vm4206, %v4178, 0
        %v4235 = vsel %vm4206, %v4179, 0
        %v4238 = vsel %vm4206, %v4180, 0
        %v4241 = vsel %vm4206, %v4181, 0
        %v4244 = vsel %vm4206, %v4182, 0
        %v4247 = vsel %vm4206, %v4183, 0
        %v4250 = vsel %vm4206, %v4184, 0
        %v4253 = vsel %vm4206, %v4185, 0
        %vm4255 = vcmask 1041408
        %v4257 = vsel %vm4255, %v4203, 0
        %4259 = vmatprep.subr.bf16.mxu0 0
        %4260 = vmatpush1.bf16.msra.mxu0 %v4201
        %4261 = vmatprep.subr.bf16.mxu0 0
        %4262 = vmatpush1.bf16.msra.mxu0 %v4202
        %4263 = vmatprep.subr.bf16.mxu0 0
        %4264 = vmatpush1.bf16.msra.mxu0 %v4257
        %4265 = vmatprep.subr.bf16.mxu0 0
        %4266 = vmatpush1.bf16.msra.mxu0 0
        %4267 = vmatprep.subr.bf16.mxu0 0
        %4268 = vmatpush1.bf16.msra.mxu0 0
        %4269 = vmatprep.subr.bf16.mxu0 0
        %4270 = vmatpush1.bf16.msra.mxu0 0
        %4271 = vmatprep.subr.bf16.mxu0 0
        %4272 = vmatpush1.bf16.msra.mxu0 0
        %4273 = vmatprep.subr.bf16.mxu0 0
        %4274 = vmatpush1.bf16.msra.mxu0 0
        %4275 = vmatprep.subr.bf16.mxu0 0
        %4276 = vmatpush1.bf16.msra.mxu0 0
        %4277 = vmatprep.subr.bf16.mxu0 0
        %4278 = vmatpush1.bf16.msra.mxu0 0
        %4279 = vmatprep.subr.bf16.mxu0 0
        %4280 = vmatpush1.bf16.msra.mxu0 0
        %4281 = vmatprep.subr.bf16.mxu0 0
        %4282 = vmatpush1.bf16.msra.mxu0 0
        %4283 = vmatprep.subr.bf16.mxu0 0
        %4284 = vmatpush1.bf16.msra.mxu0 0
        %4285 = vmatprep.subr.bf16.mxu0 0
        %4286 = vmatpush1.bf16.msra.mxu0 0
        %4287 = vmatprep.subr.bf16.mxu0 0
        %4288 = vmatpush1.bf16.msra.mxu0 0
        %4289 = vmatprep.subr.bf16.mxu0 0
        %4290 = vmatpush1.bf16.msra.mxu0 0
        %4291 = vmatprep.mubr.bf16.mxu0 0
        %4292 = vmatmul.mubr.bf16.gmra.mrb[0].mxu0 %v4208
        %v4293 = vpop.f32.mrb[0].mxu0
        %v4294 = vadd.f32 0.0, %v4293
        %v4295 = vpop.f32.mrb[0].mxu0
        %v4296 = vpop.f32.mrb[0].mxu0
        %v4297 = vadd.f32 0.0, %v4296
        %v4298 = vpop.f32.mrb[0].mxu0
        %4299 = vmatprep.mubr.bf16.mxu0 0
        %4300 = vmatmul.mubr.bf16.gmra.mrb[0].mxu0 %v4211
        %v4301 = vpop.f32.mrb[0].mxu0
        %v4302 = vadd.f32 0.0, %v4301
        %v4303 = vpop.f32.mrb[0].mxu0
        %v4304 = vpop.f32.mrb[0].mxu0
        %v4305 = vadd.f32 0.0, %v4304
        %v4306 = vpop.f32.mrb[0].mxu0
        %4307 = vmatprep.mubr.bf16.mxu0 0
        %4308 = vmatmul.mubr.bf16.gmra.mrb[0].mxu0 %v4214
        %v4309 = vpop.f32.mrb[0].mxu0
        %v4310 = vadd.f32 0.0, %v4309
        %v4311 = vpop.f32.mrb[0].mxu0
        %v4312 = vpop.f32.mrb[0].mxu0
        %v4313 = vadd.f32 0.0, %v4312
        %v4314 = vpop.f32.mrb[0].mxu0
        %4315 = vmatprep.mubr.bf16.mxu0 0
        %4316 = vmatmul.mubr.bf16.gmra.mrb[0].mxu0 %v4217
        %v4317 = vpop.f32.mrb[0].mxu0
        %v4318 = vadd.f32 0.0, %v4317
        %v4319 = vpop.f32.mrb[0].mxu0
        %v4320 = vpop.f32.mrb[0].mxu0
        %v4321 = vadd.f32 0.0, %v4320
        %v4322 = vpop.f32.mrb[0].mxu0
        %4323 = vmatprep.mubr.bf16.mxu0 0
        %4324 = vmatmul.mubr.bf16.gmra.mrb[0].mxu0 %v4220
        %v4325 = vpop.f32.mrb[0].mxu0
        %v4326 = vadd.f32 0.0, %v4325
        %v4327 = vpop.f32.mrb[0].mxu0
        %v4328 = vpop.f32.mrb[0].mxu0
        %v4329 = vadd.f32 0.0, %v4328
        %v4330 = vpop.f32.mrb[0].mxu0
        %4331 = vmatprep.mubr.bf16.mxu0 0
        %4332 = vmatmul.mubr.bf16.gmra.mrb[0].mxu0 %v4223
        %v4333 = vpop.f32.mrb[0].mxu0
        %v4334 = vadd.f32 0.0, %v4333
        %v4335 = vpop.f32.mrb[0].mxu0
        %v4336 = vpop.f32.mrb[0].mxu0
        %v4337 = vadd.f32 0.0, %v4336
        %v4338 = vpop.f32.mrb[0].mxu0
        %4339 = vmatprep.mubr.bf16.mxu0 0
        %4340 = vmatmul.mubr.bf16.gmra.mrb[0].mxu0 %v4226
        %v4341 = vpop.f32.mrb[0].mxu0
        %v4342 = vadd.f32 0.0, %v4341
        %v4343 = vpop.f32.mrb[0].mxu0
        %v4344 = vpop.f32.mrb[0].mxu0
        %v4345 = vadd.f32 0.0, %v4344
        %v4346 = vpop.f32.mrb[0].mxu0
        %4347 = vmatprep.mubr.bf16.mxu0 0
        %4348 = vmatmul.mubr.bf16.gmra.mrb[0].mxu0 %v4229
        %v4349 = vpop.f32.mrb[0].mxu0
        %v4350 = vadd.f32 0.0, %v4349
        %v4351 = vpop.f32.mrb[0].mxu0
        %v4352 = vpop.f32.mrb[0].mxu0
        %v4353 = vadd.f32 0.0, %v4352
        %v4354 = vpop.f32.mrb[0].mxu0
        %4355 = vmatprep.mubr.bf16.mxu0 0
        %4356 = vmatmul.mubr.bf16.gmra.mrb[0].mxu0 %v4232
        %v4357 = vpop.f32.mrb[0].mxu0
        %v4358 = vadd.f32 0.0, %v4357
        %v4359 = vpop.f32.mrb[0].mxu0
        %v4360 = vpop.f32.mrb[0].mxu0
        %v4361 = vadd.f32 0.0, %v4360
        %v4362 = vpop.f32.mrb[0].mxu0
        %4363 = vmatprep.mubr.bf16.mxu0 0
        %4364 = vmatmul.mubr.bf16.gmra.mrb[0].mxu0 %v4235
        %v4365 = vpop.f32.mrb[0].mxu0
        %v4366 = vadd.f32 0.0, %v4365
        %v4367 = vpop.f32.mrb[0].mxu0
        %v4368 = vpop.f32.mrb[0].mxu0
        %v4369 = vadd.f32 0.0, %v4368
        %v4370 = vpop.f32.mrb[0].mxu0
        %4371 = vmatprep.mubr.bf16.mxu0 0
        %4372 = vmatmul.mubr.bf16.gmra.mrb[0].mxu0 %v4238
        %v4373 = vpop.f32.mrb[0].mxu0
        %v4374 = vadd.f32 0.0, %v4373
        %v4375 = vpop.f32.mrb[0].mxu0
        %v4376 = vpop.f32.mrb[0].mxu0
        %v4377 = vadd.f32 0.0, %v4376
        %v4378 = vpop.f32.mrb[0].mxu0
        %4379 = vmatprep.mubr.bf16.mxu0 0
        %4380 = vmatmul.mubr.bf16.gmra.mrb[0].mxu0 %v4241
        %v4381 = vpop.f32.mrb[0].mxu0
        %v4382 = vadd.f32 0.0, %v4381
        %v4383 = vpop.f32.mrb[0].mxu0
        %v4384 = vpop.f32.mrb[0].mxu0
        %v4385 = vadd.f32 0.0, %v4384
        %v4386 = vpop.f32.mrb[0].mxu0
        %4387 = vmatprep.mubr.bf16.mxu0 0
        %4388 = vmatmul.mubr.bf16.gmra.mrb[0].mxu0 %v4244
        %v4389 = vpop.f32.mrb[0].mxu0
        %v4390 = vadd.f32 0.0, %v4389
        %v4391 = vpop.f32.mrb[0].mxu0
        %v4392 = vpop.f32.mrb[0].mxu0
        %v4393 = vadd.f32 0.0, %v4392
        %v4394 = vpop.f32.mrb[0].mxu0
        %4395 = vmatprep.mubr.bf16.mxu0 0
        %4396 = vmatmul.mubr.bf16.gmra.mrb[0].mxu0 %v4247
        %v4397 = vpop.f32.mrb[0].mxu0
        %v4398 = vadd.f32 0.0, %v4397
        %v4399 = vpop.f32.mrb[0].mxu0
        %v4400 = vpop.f32.mrb[0].mxu0
        %v4401 = vadd.f32 0.0, %v4400
        %v4402 = vpop.f32.mrb[0].mxu0
        %4403 = vmatprep.mubr.bf16.mxu0 0
        %4404 = vmatmul.mubr.bf16.gmra.mrb[0].mxu0 %v4250
        %v4405 = vpop.f32.mrb[0].mxu0
        %v4406 = vadd.f32 0.0, %v4405
        %v4407 = vpop.f32.mrb[0].mxu0
        %v4408 = vpop.f32.mrb[0].mxu0
        %v4409 = vadd.f32 0.0, %v4408
        %v4410 = vpop.f32.mrb[0].mxu0
        %4411 = vmatprep.mubr.bf16.mxu0 0
        %4412 = vmatmul.mubr.bf16.gmra.mrb[0].mxu0 %v4253
        %v4413 = vpop.f32.mrb[0].mxu0
        %v4414 = vadd.f32 0.0, %v4413
        %v4415 = vpop.f32.mrb[0].mxu0
        %v4416 = vpop.f32.mrb[0].mxu0
        %v4417 = vadd.f32 0.0, %v4416
        %v4418 = vpop.f32.mrb[0].mxu0
        %4419 = vdwg.mxu0
        %v4420 = vld [vmem:[#allocation7] sm:$0x1]
        %v4422 = vlaneseq
        %v4423 = vshrl.u32 %v4422, 7
        %v4424 = vsub.s32 0, %v4423
        %v4425 = vrot.slane %v4420, %v4424
        %v4427 = vmul.f32 %v4294, %v4425
        %v4428 = vmul.f32 %v4297, %v4425
        %v4429 = vmul.f32 %v4302, %v4425
        %v4430 = vmul.f32 %v4305, %v4425
        %v4431 = vmul.f32 %v4310, %v4425
        %v4432 = vmul.f32 %v4313, %v4425
        %v4433 = vmul.f32 %v4318, %v4425
        %v4434 = vmul.f32 %v4321, %v4425
        %v4435 = vmul.f32 %v4326, %v4425
        %v4436 = vmul.f32 %v4329, %v4425
        %v4437 = vmul.f32 %v4334, %v4425
        %v4438 = vmul.f32 %v4337, %v4425
        %v4439 = vmul.f32 %v4342, %v4425
        %v4440 = vmul.f32 %v4345, %v4425
        %v4441 = vmul.f32 %v4350, %v4425
        %v4442 = vmul.f32 %v4353, %v4425
        %v4443 = vmul.f32 %v4358, %v4425
        %v4444 = vmul.f32 %v4361, %v4425
        %v4445 = vmul.f32 %v4366, %v4425
        %v4446 = vmul.f32 %v4369, %v4425
        %v4447 = vmul.f32 %v4374, %v4425
        %v4448 = vmul.f32 %v4377, %v4425
        %v4449 = vmul.f32 %v4382, %v4425
        %v4450 = vmul.f32 %v4385, %v4425
        %v4451 = vmul.f32 %v4390, %v4425
        %v4452 = vmul.f32 %v4393, %v4425
        %v4453 = vmul.f32 %v4398, %v4425
        %v4454 = vmul.f32 %v4401, %v4425
        %v4455 = vmul.f32 %v4406, %v4425
        %v4456 = vmul.f32 %v4409, %v4425
        %v4457 = vmul.f32 %v4414, %v4425
        %v4458 = vmul.f32 %v4417, %v4425
        %v4459 = vld [vmem:[#allocation9] sm:$0x1]
        %v4461 = vlaneseq
        %v4462 = vshrl.u32 %v4461, 7
        %v4463 = vsub.s32 0, %v4462
        %v4464 = vrot.slane %v4459, %v4463
        %v4466 = vadd.f32 %v4427, %v4464
        %v4467 = vadd.f32 %v4428, %v4464
        %v4468 = vadd.f32 %v4429, %v4464
        %v4469 = vadd.f32 %v4430, %v4464
        %v4470 = vadd.f32 %v4431, %v4464
        %v4471 = vadd.f32 %v4432, %v4464
        %v4472 = vadd.f32 %v4433, %v4464
        %v4473 = vadd.f32 %v4434, %v4464
        %v4474 = vadd.f32 %v4435, %v4464
        %v4475 = vadd.f32 %v4436, %v4464
        %v4476 = vadd.f32 %v4437, %v4464
        %v4477 = vadd.f32 %v4438, %v4464
        %v4478 = vadd.f32 %v4439, %v4464
        %v4479 = vadd.f32 %v4440, %v4464
        %v4480 = vadd.f32 %v4441, %v4464
        %v4481 = vadd.f32 %v4442, %v4464
        %v4482 = vadd.f32 %v4443, %v4464
        %v4483 = vadd.f32 %v4444, %v4464
        %v4484 = vadd.f32 %v4445, %v4464
        %v4485 = vadd.f32 %v4446, %v4464
        %v4486 = vadd.f32 %v4447, %v4464
        %v4487 = vadd.f32 %v4448, %v4464
        %v4488 = vadd.f32 %v4449, %v4464
        %v4489 = vadd.f32 %v4450, %v4464
        %v4490 = vadd.f32 %v4451, %v4464
        %v4491 = vadd.f32 %v4452, %v4464
        %v4492 = vadd.f32 %v4453, %v4464
        %v4493 = vadd.f32 %v4454, %v4464
        %v4494 = vadd.f32 %v4455, %v4464
        %v4495 = vadd.f32 %v4456, %v4464
        %v4496 = vadd.f32 %v4457, %v4464
        %v4497 = vadd.f32 %v4458, %v4464
        %v4498 = vmax.f32 %v4466, 0.0
        %v4499 = vmax.f32 %v4467, 0.0
        %v4500 = vmax.f32 %v4468, 0.0
        %v4501 = vmax.f32 %v4469, 0.0
        %v4502 = vmax.f32 %v4470, 0.0
        %v4503 = vmax.f32 %v4471, 0.0
        %v4504 = vmax.f32 %v4472, 0.0
        %v4505 = vmax.f32 %v4473, 0.0
        %v4506 = vmax.f32 %v4474, 0.0
        %v4507 = vmax.f32 %v4475, 0.0
        %v4508 = vmax.f32 %v4476, 0.0
        %v4509 = vmax.f32 %v4477, 0.0
        %v4510 = vmax.f32 %v4478, 0.0
        %v4511 = vmax.f32 %v4479, 0.0
        %v4512 = vmax.f32 %v4480, 0.0
        %v4513 = vmax.f32 %v4481, 0.0
        %v4514 = vmax.f32 %v4482, 0.0
        %v4515 = vmax.f32 %v4483, 0.0
        %v4516 = vmax.f32 %v4484, 0.0
        %v4517 = vmax.f32 %v4485, 0.0
        %v4518 = vmax.f32 %v4486, 0.0
        %v4519 = vmax.f32 %v4487, 0.0
        %v4520 = vmax.f32 %v4488, 0.0
        %v4521 = vmax.f32 %v4489, 0.0
        %v4522 = vmax.f32 %v4490, 0.0
        %v4523 = vmax.f32 %v4491, 0.0
        %v4524 = vmax.f32 %v4492, 0.0
        %v4525 = vmax.f32 %v4493, 0.0
        %v4526 = vmax.f32 %v4494, 0.0
        %v4527 = vmax.f32 %v4495, 0.0
        %v4528 = vmax.f32 %v4496, 0.0
        %v4529 = vmax.f32 %v4497, 0.0
        %v4530 = vrot.slane %v4498, 7
        %v4531 = vrot.slane %v4499, 7
        %v4532 = vrot.slane %v4500, 7
        %v4533 = vrot.slane %v4501, 7
        %v4534 = vrot.slane %v4502, 7
        %v4535 = vrot.slane %v4503, 7
        %v4536 = vrot.slane %v4504, 7
        %v4537 = vrot.slane %v4505, 7
        %v4538 = vrot.slane %v4506, 7
        %v4539 = vrot.slane %v4507, 7
        %v4540 = vrot.slane %v4508, 7
        %v4541 = vrot.slane %v4509, 7
        %v4542 = vrot.slane %v4510, 7
        %v4543 = vrot.slane %v4511, 7
        %v4544 = vrot.slane %v4512, 7
        %v4545 = vrot.slane %v4513, 7
        %v4546 = vrot.slane %v4514, 7
        %v4547 = vrot.slane %v4515, 7
        %v4548 = vrot.slane %v4516, 7
        %v4549 = vrot.slane %v4517, 7
        %v4550 = vrot.slane %v4518, 7
        %v4551 = vrot.slane %v4519, 7
        %v4552 = vrot.slane %v4520, 7
        %v4553 = vrot.slane %v4521, 7
        %v4554 = vrot.slane %v4522, 7
        %v4555 = vrot.slane %v4523, 7
        %v4556 = vrot.slane %v4524, 7
        %v4557 = vrot.slane %v4525, 7
        %v4558 = vrot.slane %v4526, 7
        %v4559 = vrot.slane %v4527, 7
        %v4560 = vrot.slane %v4528, 7
        %v4561 = vrot.slane %v4529, 7
        %v4562 = vsel %vm1056, %v4560, %v4561
        %v4563 = vsel %vm1056, %v4559, %v4560
        %v4564 = vsel %vm1056, %v4558, %v4559
        %v4565 = vsel %vm1056, %v4557, %v4558
        %v4566 = vsel %vm1056, %v4556, %v4557
        %v4567 = vsel %vm1056, %v4555, %v4556
        %v4568 = vsel %vm1056, %v4554, %v4555
        %v4569 = vsel %vm1056, %v4553, %v4554
        %v4570 = vsel %vm1056, %v4552, %v4553
        %v4571 = vsel %vm1056, %v4551, %v4552
        %v4572 = vsel %vm1056, %v4550, %v4551
        %v4573 = vsel %vm1056, %v4549, %v4550
        %v4574 = vsel %vm1056, %v4548, %v4549
        %v4575 = vsel %vm1056, %v4547, %v4548
        %v4576 = vsel %vm1056, %v4546, %v4547
        %v4577 = vsel %vm1056, %v4545, %v4546
        %v4578 = vsel %vm1056, %v4544, %v4545
        %v4579 = vsel %vm1056, %v4543, %v4544
        %v4580 = vsel %vm1056, %v4542, %v4543
        %v4581 = vsel %vm1056, %v4541, %v4542
        %v4582 = vsel %vm1056, %v4540, %v4541
        %v4583 = vsel %vm1056, %v4539, %v4540
        %v4584 = vsel %vm1056, %v4538, %v4539
        %v4585 = vsel %vm1056, %v4537, %v4538
        %v4586 = vsel %vm1056, %v4536, %v4537
        %v4587 = vsel %vm1056, %v4535, %v4536
        %v4588 = vsel %vm1056, %v4534, %v4535
        %v4589 = vsel %vm1056, %v4533, %v4534
        %v4590 = vsel %vm1056, %v4532, %v4533
        %v4591 = vsel %vm1056, %v4531, %v4532
        %v4592 = vsel %vm1056, %v4530, %v4531
        %v4593 = vsel %vm1056, %v4561, %v4530
        %v4594 = vmul.f32 %v4563, %v1092
        %v4595 = vmul.f32 %v4562, %v1097
        %v4596 = vmul.f32 %v4593, %v1102
        %v4597 = vmul.f32 %v4592, %v1107
        %v4598 = vmul.f32 %v4591, %v1112
        %v4599 = vmul.f32 %v4590, %v1117
        %v4600 = vmul.f32 %v4589, %v1122
        %v4601 = vmul.f32 %v4588, %v1127
        %v4602 = vmul.f32 %v4587, %v1132
        %v4603 = vmul.f32 %v4586, %v1137
        %v4604 = vmul.f32 %v4585, %v1142
        %v4605 = vmul.f32 %v4584, %v1147
        %v4606 = vmul.f32 %v4583, %v1152
        %v4607 = vmul.f32 %v4582, %v1157
        %v4608 = vmul.f32 %v4581, %v1162
        %v4609 = vmul.f32 %v4580, %v1167
        %v4610 = vmul.f32 %v4579, %v1172
        %v4611 = vmul.f32 %v4578, %v1177
        %v4612 = vmul.f32 %v4577, %v1182
        %v4613 = vmul.f32 %v4576, %v1187
        %v4614 = vmul.f32 %v4575, %v1192
        %v4615 = vmul.f32 %v4574, %v1197
        %v4616 = vmul.f32 %v4573, %v1202
        %v4617 = vmul.f32 %v4572, %v1207
        %v4618 = vmul.f32 %v4571, %v1212
        %v4619 = vmul.f32 %v4570, %v1217
        %v4620 = vmul.f32 %v4569, %v1222
        %v4621 = vmul.f32 %v4568, %v1227
        %v4622 = vmul.f32 %v4567, %v1232
        %v4623 = vmul.f32 %v4566, %v1237
        %v4624 = vmul.f32 %v4565, %v1242
        %v4625 = vmul.f32 %v4564, %v1247
        %v4626 = vmul.f32 %v4528, %v1284
        %v4627 = vmul.f32 %v4529, %v1289
        %v4628 = vmul.f32 %v4498, %v1294
        %v4629 = vmul.f32 %v4499, %v1299
        %v4630 = vmul.f32 %v4500, %v1304
        %v4631 = vmul.f32 %v4501, %v1309
        %v4632 = vmul.f32 %v4502, %v1314
        %v4633 = vmul.f32 %v4503, %v1319
        %v4634 = vmul.f32 %v4504, %v1324
        %v4635 = vmul.f32 %v4505, %v1329
        %v4636 = vmul.f32 %v4506, %v1334
        %v4637 = vmul.f32 %v4507, %v1339
        %v4638 = vmul.f32 %v4508, %v1344
        %v4639 = vmul.f32 %v4509, %v1349
        %v4640 = vmul.f32 %v4510, %v1354
        %v4641 = vmul.f32 %v4511, %v1359
        %v4642 = vmul.f32 %v4512, %v1364
        %v4643 = vmul.f32 %v4513, %v1369
        %v4644 = vmul.f32 %v4514, %v1374
        %v4645 = vmul.f32 %v4515, %v1379
        %v4646 = vmul.f32 %v4516, %v1384
        %v4647 = vmul.f32 %v4517, %v1389
        %v4648 = vmul.f32 %v4518, %v1394
        %v4649 = vmul.f32 %v4519, %v1399
        %v4650 = vmul.f32 %v4520, %v1404
        %v4651 = vmul.f32 %v4521, %v1409
        %v4652 = vmul.f32 %v4522, %v1414
        %v4653 = vmul.f32 %v4523, %v1419
        %v4654 = vmul.f32 %v4524, %v1424
        %v4655 = vmul.f32 %v4525, %v1429
        %v4656 = vmul.f32 %v4526, %v1434
        %v4657 = vmul.f32 %v4527, %v1439
        %v4658 = vrot.slane %v4498, 1
        %v4659 = vrot.slane %v4499, 1
        %v4660 = vrot.slane %v4500, 1
        %v4661 = vrot.slane %v4501, 1
        %v4662 = vrot.slane %v4502, 1
        %v4663 = vrot.slane %v4503, 1
        %v4664 = vrot.slane %v4504, 1
        %v4665 = vrot.slane %v4505, 1
        %v4666 = vrot.slane %v4506, 1
        %v4667 = vrot.slane %v4507, 1
        %v4668 = vrot.slane %v4508, 1
        %v4669 = vrot.slane %v4509, 1
        %v4670 = vrot.slane %v4510, 1
        %v4671 = vrot.slane %v4511, 1
        %v4672 = vrot.slane %v4512, 1
        %v4673 = vrot.slane %v4513, 1
        %v4674 = vrot.slane %v4514, 1
        %v4675 = vrot.slane %v4515, 1
        %v4676 = vrot.slane %v4516, 1
        %v4677 = vrot.slane %v4517, 1
        %v4678 = vrot.slane %v4518, 1
        %v4679 = vrot.slane %v4519, 1
        %v4680 = vrot.slane %v4520, 1
        %v4681 = vrot.slane %v4521, 1
        %v4682 = vrot.slane %v4522, 1
        %v4683 = vrot.slane %v4523, 1
        %v4684 = vrot.slane %v4524, 1
        %v4685 = vrot.slane %v4525, 1
        %v4686 = vrot.slane %v4526, 1
        %v4687 = vrot.slane %v4527, 1
        %v4688 = vrot.slane %v4528, 1
        %v4689 = vrot.slane %v4529, 1
        %v4690 = vsel %vm1505, %v4688, %v4689
        %v4691 = vsel %vm1505, %v4687, %v4688
        %v4692 = vsel %vm1505, %v4686, %v4687
        %v4693 = vsel %vm1505, %v4685, %v4686
        %v4694 = vsel %vm1505, %v4684, %v4685
        %v4695 = vsel %vm1505, %v4683, %v4684
        %v4696 = vsel %vm1505, %v4682, %v4683
        %v4697 = vsel %vm1505, %v4681, %v4682
        %v4698 = vsel %vm1505, %v4680, %v4681
        %v4699 = vsel %vm1505, %v4679, %v4680
        %v4700 = vsel %vm1505, %v4678, %v4679
        %v4701 = vsel %vm1505, %v4677, %v4678
        %v4702 = vsel %vm1505, %v4676, %v4677
        %v4703 = vsel %vm1505, %v4675, %v4676
        %v4704 = vsel %vm1505, %v4674, %v4675
        %v4705 = vsel %vm1505, %v4673, %v4674
        %v4706 = vsel %vm1505, %v4672, %v4673
        %v4707 = vsel %vm1505, %v4671, %v4672
        %v4708 = vsel %vm1505, %v4670, %v4671
        %v4709 = vsel %vm1505, %v4669, %v4670
        %v4710 = vsel %vm1505, %v4668, %v4669
        %v4711 = vsel %vm1505, %v4667, %v4668
        %v4712 = vsel %vm1505, %v4666, %v4667
        %v4713 = vsel %vm1505, %v4665, %v4666
        %v4714 = vsel %vm1505, %v4664, %v4665
        %v4715 = vsel %vm1505, %v4663, %v4664
        %v4716 = vsel %vm1505, %v4662, %v4663
        %v4717 = vsel %vm1505, %v4661, %v4662
        %v4718 = vsel %vm1505, %v4660, %v4661
        %v4719 = vsel %vm1505, %v4659, %v4660
        %v4720 = vsel %vm1505, %v4658, %v4659
        %v4721 = vsel %vm1505, %v4689, %v4658
        %v4722 = vmul.f32 %v4690, %v1541
        %v4723 = vmul.f32 %v4721, %v1546
        %v4724 = vmul.f32 %v4720, %v1551
        %v4725 = vmul.f32 %v4719, %v1556
        %v4726 = vmul.f32 %v4718, %v1561
        %v4727 = vmul.f32 %v4717, %v1566
        %v4728 = vmul.f32 %v4716, %v1571
        %v4729 = vmul.f32 %v4715, %v1576
        %v4730 = vmul.f32 %v4714, %v1581
        %v4731 = vmul.f32 %v4713, %v1586
        %v4732 = vmul.f32 %v4712, %v1591
        %v4733 = vmul.f32 %v4711, %v1596
        %v4734 = vmul.f32 %v4710, %v1601
        %v4735 = vmul.f32 %v4709, %v1606
        %v4736 = vmul.f32 %v4708, %v1611
        %v4737 = vmul.f32 %v4707, %v1616
        %v4738 = vmul.f32 %v4706, %v1621
        %v4739 = vmul.f32 %v4705, %v1626
        %v4740 = vmul.f32 %v4704, %v1631
        %v4741 = vmul.f32 %v4703, %v1636
        %v4742 = vmul.f32 %v4702, %v1641
        %v4743 = vmul.f32 %v4701, %v1646
        %v4744 = vmul.f32 %v4700, %v1651
        %v4745 = vmul.f32 %v4699, %v1656
        %v4746 = vmul.f32 %v4698, %v1661
        %v4747 = vmul.f32 %v4697, %v1666
        %v4748 = vmul.f32 %v4696, %v1671
        %v4749 = vmul.f32 %v4695, %v1676
        %v4750 = vmul.f32 %v4694, %v1681
        %v4751 = vmul.f32 %v4693, %v1686
        %v4752 = vmul.f32 %v4692, %v1691
        %v4753 = vmul.f32 %v4691, %v1696
        %v4754 = vmul.f32 %v4593, %v1733
        %v4755 = vmul.f32 %v4592, %v1738
        %v4756 = vmul.f32 %v4591, %v1743
        %v4757 = vmul.f32 %v4590, %v1748
        %v4758 = vmul.f32 %v4589, %v1753
        %v4759 = vmul.f32 %v4588, %v1758
        %v4760 = vmul.f32 %v4587, %v1763
        %v4761 = vmul.f32 %v4586, %v1768
        %v4762 = vmul.f32 %v4585, %v1773
        %v4763 = vmul.f32 %v4584, %v1778
        %v4764 = vmul.f32 %v4583, %v1783
        %v4765 = vmul.f32 %v4582, %v1788
        %v4766 = vmul.f32 %v4581, %v1793
        %v4767 = vmul.f32 %v4580, %v1798
        %v4768 = vmul.f32 %v4579, %v1803
        %v4769 = vmul.f32 %v4578, %v1808
        %v4770 = vmul.f32 %v4577, %v1813
        %v4771 = vmul.f32 %v4576, %v1818
        %v4772 = vmul.f32 %v4575, %v1823
        %v4773 = vmul.f32 %v4574, %v1828
        %v4774 = vmul.f32 %v4573, %v1833
        %v4775 = vmul.f32 %v4572, %v1838
        %v4776 = vmul.f32 %v4571, %v1843
        %v4777 = vmul.f32 %v4570, %v1848
        %v4778 = vmul.f32 %v4569, %v1853
        %v4779 = vmul.f32 %v4568, %v1858
        %v4780 = vmul.f32 %v4567, %v1863
        %v4781 = vmul.f32 %v4566, %v1868
        %v4782 = vmul.f32 %v4565, %v1873
        %v4783 = vmul.f32 %v4564, %v1878
        %v4784 = vmul.f32 %v4563, %v1883
        %v4785 = vmul.f32 %v4562, %v1888
        %v4786 = vmul.f32 %v4498, %v1925
        %v4787 = vmul.f32 %v4499, %v1930
        %v4788 = vmul.f32 %v4500, %v1935
        %v4789 = vmul.f32 %v4501, %v1940
        %v4790 = vmul.f32 %v4502, %v1945
        %v4791 = vmul.f32 %v4503, %v1950
        %v4792 = vmul.f32 %v4504, %v1955
        %v4793 = vmul.f32 %v4505, %v1960
        %v4794 = vmul.f32 %v4506, %v1965
        %v4795 = vmul.f32 %v4507, %v1970
        %v4796 = vmul.f32 %v4508, %v1975
        %v4797 = vmul.f32 %v4509, %v1980
        %v4798 = vmul.f32 %v4510, %v1985
        %v4799 = vmul.f32 %v4511, %v1990
        %v4800 = vmul.f32 %v4512, %v1995
        %v4801 = vmul.f32 %v4513, %v2000
        %v4802 = vmul.f32 %v4514, %v2005
        %v4803 = vmul.f32 %v4515, %v2010
        %v4804 = vmul.f32 %v4516, %v2015
        %v4805 = vmul.f32 %v4517, %v2020
        %v4806 = vmul.f32 %v4518, %v2025
        %v4807 = vmul.f32 %v4519, %v2030
        %v4808 = vmul.f32 %v4520, %v2035
        %v4809 = vmul.f32 %v4521, %v2040
        %v4810 = vmul.f32 %v4522, %v2045
        %v4811 = vmul.f32 %v4523, %v2050
        %v4812 = vmul.f32 %v4524, %v2055
        %v4813 = vmul.f32 %v4525, %v2060
        %v4814 = vmul.f32 %v4526, %v2065
        %v4815 = vmul.f32 %v4527, %v2070
        %v4816 = vmul.f32 %v4528, %v2075
        %v4817 = vmul.f32 %v4529, %v2080
        %v4818 = vmul.f32 %v4720, %v2117
        %v4819 = vmul.f32 %v4719, %v2122
        %v4820 = vmul.f32 %v4718, %v2127
        %v4821 = vmul.f32 %v4717, %v2132
        %v4822 = vmul.f32 %v4716, %v2137
        %v4823 = vmul.f32 %v4715, %v2142
        %v4824 = vmul.f32 %v4714, %v2147
        %v4825 = vmul.f32 %v4713, %v2152
        %v4826 = vmul.f32 %v4712, %v2157
        %v4827 = vmul.f32 %v4711, %v2162
        %v4828 = vmul.f32 %v4710, %v2167
        %v4829 = vmul.f32 %v4709, %v2172
        %v4830 = vmul.f32 %v4708, %v2177
        %v4831 = vmul.f32 %v4707, %v2182
        %v4832 = vmul.f32 %v4706, %v2187
        %v4833 = vmul.f32 %v4705, %v2192
        %v4834 = vmul.f32 %v4704, %v2197
        %v4835 = vmul.f32 %v4703, %v2202
        %v4836 = vmul.f32 %v4702, %v2207
        %v4837 = vmul.f32 %v4701, %v2212
        %v4838 = vmul.f32 %v4700, %v2217
        %v4839 = vmul.f32 %v4699, %v2222
        %v4840 = vmul.f32 %v4698, %v2227
        %v4841 = vmul.f32 %v4697, %v2232
        %v4842 = vmul.f32 %v4696, %v2237
        %v4843 = vmul.f32 %v4695, %v2242
        %v4844 = vmul.f32 %v4694, %v2247
        %v4845 = vmul.f32 %v4693, %v2252
        %v4846 = vmul.f32 %v4692, %v2257
        %v4847 = vmul.f32 %v4691, %v2262
        %v4848 = vmul.f32 %v4690, %v2267
        %v4849 = vmul.f32 %v4721, %v2272
        %v4850 = vmul.f32 %v4591, %v2309
        %v4851 = vmul.f32 %v4590, %v2314
        %v4852 = vmul.f32 %v4589, %v2319
        %v4853 = vmul.f32 %v4588, %v2324
        %v4854 = vmul.f32 %v4587, %v2329
        %v4855 = vmul.f32 %v4586, %v2334
        %v4856 = vmul.f32 %v4585, %v2339
        %v4857 = vmul.f32 %v4584, %v2344
        %v4858 = vmul.f32 %v4583, %v2349
        %v4859 = vmul.f32 %v4582, %v2354
        %v4860 = vmul.f32 %v4581, %v2359
        %v4861 = vmul.f32 %v4580, %v2364
        %v4862 = vmul.f32 %v4579, %v2369
        %v4863 = vmul.f32 %v4578, %v2374
        %v4864 = vmul.f32 %v4577, %v2379
        %v4865 = vmul.f32 %v4576, %v2384
        %v4866 = vmul.f32 %v4575, %v2389
        %v4867 = vmul.f32 %v4574, %v2394
        %v4868 = vmul.f32 %v4573, %v2399
        %v4869 = vmul.f32 %v4572, %v2404
        %v4870 = vmul.f32 %v4571, %v2409
        %v4871 = vmul.f32 %v4570, %v2414
        %v4872 = vmul.f32 %v4569, %v2419
        %v4873 = vmul.f32 %v4568, %v2424
        %v4874 = vmul.f32 %v4567, %v2429
        %v4875 = vmul.f32 %v4566, %v2434
        %v4876 = vmul.f32 %v4565, %v2439
        %v4877 = vmul.f32 %v4564, %v2444
        %v4878 = vmul.f32 %v4563, %v2449
        %v4879 = vmul.f32 %v4562, %v2454
        %v4880 = vmul.f32 %v4593, %v2459
        %v4881 = vmul.f32 %v4592, %v2464
        %v4882 = vmul.f32 %v4500, %v2501
        %v4883 = vmul.f32 %v4501, %v2506
        %v4884 = vmul.f32 %v4502, %v2511
        %v4885 = vmul.f32 %v4503, %v2516
        %v4886 = vmul.f32 %v4504, %v2521
        %v4887 = vmul.f32 %v4505, %v2526
        %v4888 = vmul.f32 %v4506, %v2531
        %v4889 = vmul.f32 %v4507, %v2536
        %v4890 = vmul.f32 %v4508, %v2541
        %v4891 = vmul.f32 %v4509, %v2546
        %v4892 = vmul.f32 %v4510, %v2551
        %v4893 = vmul.f32 %v4511, %v2556
        %v4894 = vmul.f32 %v4512, %v2561
        %v4895 = vmul.f32 %v4513, %v2566
        %v4896 = vmul.f32 %v4514, %v2571
        %v4897 = vmul.f32 %v4515, %v2576
        %v4898 = vmul.f32 %v4516, %v2581
        %v4899 = vmul.f32 %v4517, %v2586
        %v4900 = vmul.f32 %v4518, %v2591
        %v4901 = vmul.f32 %v4519, %v2596
        %v4902 = vmul.f32 %v4520, %v2601
        %v4903 = vmul.f32 %v4521, %v2606
        %v4904 = vmul.f32 %v4522, %v2611
        %v4905 = vmul.f32 %v4523, %v2616
        %v4906 = vmul.f32 %v4524, %v2621
        %v4907 = vmul.f32 %v4525, %v2626
        %v4908 = vmul.f32 %v4526, %v2631
        %v4909 = vmul.f32 %v4527, %v2636
        %v4910 = vmul.f32 %v4528, %v2641
        %v4911 = vmul.f32 %v4529, %v2646
        %v4912 = vmul.f32 %v4498, %v2651
        %v4913 = vmul.f32 %v4499, %v2656
        %v4914 = vmul.f32 %v4718, %v2693
        %v4915 = vmul.f32 %v4717, %v2698
        %v4916 = vmul.f32 %v4716, %v2703
        %v4917 = vmul.f32 %v4715, %v2708
        %v4918 = vmul.f32 %v4714, %v2713
        %v4919 = vmul.f32 %v4713, %v2718
        %v4920 = vmul.f32 %v4712, %v2723
        %v4921 = vmul.f32 %v4711, %v2728
        %v4922 = vmul.f32 %v4710, %v2733
        %v4923 = vmul.f32 %v4709, %v2738
        %v4924 = vmul.f32 %v4708, %v2743
        %v4925 = vmul.f32 %v4707, %v2748
        %v4926 = vmul.f32 %v4706, %v2753
        %v4927 = vmul.f32 %v4705, %v2758
        %v4928 = vmul.f32 %v4704, %v2763
        %v4929 = vmul.f32 %v4703, %v2768
        %v4930 = vmul.f32 %v4702, %v2773
        %v4931 = vmul.f32 %v4701, %v2778
        %v4932 = vmul.f32 %v4700, %v2783
        %v4933 = vmul.f32 %v4699, %v2788
        %v4934 = vmul.f32 %v4698, %v2793
        %v4935 = vmul.f32 %v4697, %v2798
        %v4936 = vmul.f32 %v4696, %v2803
        %v4937 = vmul.f32 %v4695, %v2808
        %v4938 = vmul.f32 %v4694, %v2813
        %v4939 = vmul.f32 %v4693, %v2818
        %v4940 = vmul.f32 %v4692, %v2823
        %v4941 = vmul.f32 %v4691, %v2828
        %v4942 = vmul.f32 %v4690, %v2833
        %v4943 = vmul.f32 %v4721, %v2838
        %v4944 = vmul.f32 %v4720, %v2843
        %v4945 = vmul.f32 %v4719, %v2848
        %4978 = vrot.lane.b32.xlu0 %v4626, 4
        %v4979 = vpop.permute.xlu0 %4978
        %4980 = vrot.lane.b32.xlu0 %v4627, 4
        %v4981 = vpop.permute.xlu0 %4980
        %4982 = vrot.lane.b32.xlu0 %v4628, 4
        %v4983 = vpop.permute.xlu0 %4982
        %4984 = vrot.lane.b32.xlu0 %v4629, 4
        %v4985 = vpop.permute.xlu0 %4984
        %4986 = vrot.lane.b32.xlu0 %v4630, 4
        %v4987 = vpop.permute.xlu0 %4986
        %4988 = vrot.lane.b32.xlu0 %v4631, 4
        %v4989 = vpop.permute.xlu0 %4988
        %4990 = vrot.lane.b32.xlu0 %v4632, 4
        %v4991 = vpop.permute.xlu0 %4990
        %4992 = vrot.lane.b32.xlu0 %v4633, 4
        %v4993 = vpop.permute.xlu0 %4992
        %4994 = vrot.lane.b32.xlu0 %v4634, 4
        %v4995 = vpop.permute.xlu0 %4994
        %4996 = vrot.lane.b32.xlu0 %v4635, 4
        %v4997 = vpop.permute.xlu0 %4996
        %4998 = vrot.lane.b32.xlu0 %v4636, 4
        %v4999 = vpop.permute.xlu0 %4998
        %5000 = vrot.lane.b32.xlu0 %v4637, 4
        %v5001 = vpop.permute.xlu0 %5000
        %5002 = vrot.lane.b32.xlu0 %v4638, 4
        %v5003 = vpop.permute.xlu0 %5002
        %5004 = vrot.lane.b32.xlu0 %v4639, 4
        %v5005 = vpop.permute.xlu0 %5004
        %5006 = vrot.lane.b32.xlu0 %v4640, 4
        %v5007 = vpop.permute.xlu0 %5006
        %5008 = vrot.lane.b32.xlu0 %v4641, 4
        %v5009 = vpop.permute.xlu0 %5008
        %5010 = vrot.lane.b32.xlu0 %v4642, 4
        %v5011 = vpop.permute.xlu0 %5010
        %5012 = vrot.lane.b32.xlu0 %v4643, 4
        %v5013 = vpop.permute.xlu0 %5012
        %5014 = vrot.lane.b32.xlu0 %v4644, 4
        %v5015 = vpop.permute.xlu0 %5014
        %5016 = vrot.lane.b32.xlu0 %v4645, 4
        %v5017 = vpop.permute.xlu0 %5016
        %5018 = vrot.lane.b32.xlu0 %v4646, 4
        %v5019 = vpop.permute.xlu0 %5018
        %5020 = vrot.lane.b32.xlu0 %v4647, 4
        %v5021 = vpop.permute.xlu0 %5020
        %5022 = vrot.lane.b32.xlu0 %v4648, 4
        %v5023 = vpop.permute.xlu0 %5022
        %5024 = vrot.lane.b32.xlu0 %v4649, 4
        %v5025 = vpop.permute.xlu0 %5024
        %5026 = vrot.lane.b32.xlu0 %v4650, 4
        %v5027 = vpop.permute.xlu0 %5026
        %5028 = vrot.lane.b32.xlu0 %v4651, 4
        %v5029 = vpop.permute.xlu0 %5028
        %5030 = vrot.lane.b32.xlu0 %v4652, 4
        %v5031 = vpop.permute.xlu0 %5030
        %5032 = vrot.lane.b32.xlu0 %v4653, 4
        %v5033 = vpop.permute.xlu0 %5032
        %5034 = vrot.lane.b32.xlu0 %v4654, 4
        %v5035 = vpop.permute.xlu0 %5034
        %5036 = vrot.lane.b32.xlu0 %v4655, 4
        %v5037 = vpop.permute.xlu0 %5036
        %5038 = vrot.lane.b32.xlu0 %v4656, 4
        %v5039 = vpop.permute.xlu0 %5038
        %5040 = vrot.lane.b32.xlu0 %v4657, 4
        %v5041 = vpop.permute.xlu0 %5040
        %5106 = vrot.lane.b32.xlu0 %v4722, 8
        %v5107 = vpop.permute.xlu0 %5106
        %5108 = vrot.lane.b32.xlu0 %v4723, 8
        %v5109 = vpop.permute.xlu0 %5108
        %5110 = vrot.lane.b32.xlu0 %v4724, 8
        %v5111 = vpop.permute.xlu0 %5110
        %5112 = vrot.lane.b32.xlu0 %v4725, 8
        %v5113 = vpop.permute.xlu0 %5112
        %5114 = vrot.lane.b32.xlu0 %v4726, 8
        %v5115 = vpop.permute.xlu0 %5114
        %5116 = vrot.lane.b32.xlu0 %v4727, 8
        %v5117 = vpop.permute.xlu0 %5116
        %5118 = vrot.lane.b32.xlu0 %v4728, 8
        %v5119 = vpop.permute.xlu0 %5118
        %5120 = vrot.lane.b32.xlu0 %v4729, 8
        %v5121 = vpop.permute.xlu0 %5120
        %5122 = vrot.lane.b32.xlu0 %v4730, 8
        %v5123 = vpop.permute.xlu0 %5122
        %5124 = vrot.lane.b32.xlu0 %v4731, 8
        %v5125 = vpop.permute.xlu0 %5124
        %5126 = vrot.lane.b32.xlu0 %v4732, 8
        %v5127 = vpop.permute.xlu0 %5126
        %5128 = vrot.lane.b32.xlu0 %v4733, 8
        %v5129 = vpop.permute.xlu0 %5128
        %5130 = vrot.lane.b32.xlu0 %v4734, 8
        %v5131 = vpop.permute.xlu0 %5130
        %5132 = vrot.lane.b32.xlu0 %v4735, 8
        %v5133 = vpop.permute.xlu0 %5132
        %5134 = vrot.lane.b32.xlu0 %v4736, 8
        %v5135 = vpop.permute.xlu0 %5134
        %5136 = vrot.lane.b32.xlu0 %v4737, 8
        %v5137 = vpop.permute.xlu0 %5136
        %5138 = vrot.lane.b32.xlu0 %v4738, 8
        %v5139 = vpop.permute.xlu0 %5138
        %5140 = vrot.lane.b32.xlu0 %v4739, 8
        %v5141 = vpop.permute.xlu0 %5140
        %5142 = vrot.lane.b32.xlu0 %v4740, 8
        %v5143 = vpop.permute.xlu0 %5142
        %5144 = vrot.lane.b32.xlu0 %v4741, 8
        %v5145 = vpop.permute.xlu0 %5144
        %5146 = vrot.lane.b32.xlu0 %v4742, 8
        %v5147 = vpop.permute.xlu0 %5146
        %5148 = vrot.lane.b32.xlu0 %v4743, 8
        %v5149 = vpop.permute.xlu0 %5148
        %5150 = vrot.lane.b32.xlu0 %v4744, 8
        %v5151 = vpop.permute.xlu0 %5150
        %5152 = vrot.lane.b32.xlu0 %v4745, 8
        %v5153 = vpop.permute.xlu0 %5152
        %5154 = vrot.lane.b32.xlu0 %v4746, 8
        %v5155 = vpop.permute.xlu0 %5154
        %5156 = vrot.lane.b32.xlu0 %v4747, 8
        %v5157 = vpop.permute.xlu0 %5156
        %5158 = vrot.lane.b32.xlu0 %v4748, 8
        %v5159 = vpop.permute.xlu0 %5158
        %5160 = vrot.lane.b32.xlu0 %v4749, 8
        %v5161 = vpop.permute.xlu0 %5160
        %5162 = vrot.lane.b32.xlu0 %v4750, 8
        %v5163 = vpop.permute.xlu0 %5162
        %5164 = vrot.lane.b32.xlu0 %v4751, 8
        %v5165 = vpop.permute.xlu0 %5164
        %5166 = vrot.lane.b32.xlu0 %v4752, 8
        %v5167 = vpop.permute.xlu0 %5166
        %5168 = vrot.lane.b32.xlu0 %v4753, 8
        %v5169 = vpop.permute.xlu0 %5168
        %5234 = vrot.lane.b32.xlu0 %v4754, 12
        %v5235 = vpop.permute.xlu0 %5234
        %5236 = vrot.lane.b32.xlu0 %v4755, 12
        %v5237 = vpop.permute.xlu0 %5236
        %5238 = vrot.lane.b32.xlu0 %v4756, 12
        %v5239 = vpop.permute.xlu0 %5238
        %5240 = vrot.lane.b32.xlu0 %v4757, 12
        %v5241 = vpop.permute.xlu0 %5240
        %5242 = vrot.lane.b32.xlu0 %v4758, 12
        %v5243 = vpop.permute.xlu0 %5242
        %5244 = vrot.lane.b32.xlu0 %v4759, 12
        %v5245 = vpop.permute.xlu0 %5244
        %5246 = vrot.lane.b32.xlu0 %v4760, 12
        %v5247 = vpop.permute.xlu0 %5246
        %5248 = vrot.lane.b32.xlu0 %v4761, 12
        %v5249 = vpop.permute.xlu0 %5248
        %5250 = vrot.lane.b32.xlu0 %v4762, 12
        %v5251 = vpop.permute.xlu0 %5250
        %5252 = vrot.lane.b32.xlu0 %v4763, 12
        %v5253 = vpop.permute.xlu0 %5252
        %5254 = vrot.lane.b32.xlu0 %v4764, 12
        %v5255 = vpop.permute.xlu0 %5254
        %5256 = vrot.lane.b32.xlu0 %v4765, 12
        %v5257 = vpop.permute.xlu0 %5256
        %5258 = vrot.lane.b32.xlu0 %v4766, 12
        %v5259 = vpop.permute.xlu0 %5258
        %5260 = vrot.lane.b32.xlu0 %v4767, 12
        %v5261 = vpop.permute.xlu0 %5260
        %5262 = vrot.lane.b32.xlu0 %v4768, 12
        %v5263 = vpop.permute.xlu0 %5262
        %5264 = vrot.lane.b32.xlu0 %v4769, 12
        %v5265 = vpop.permute.xlu0 %5264
        %5266 = vrot.lane.b32.xlu0 %v4770, 12
        %v5267 = vpop.permute.xlu0 %5266
        %5268 = vrot.lane.b32.xlu0 %v4771, 12
        %v5269 = vpop.permute.xlu0 %5268
        %5270 = vrot.lane.b32.xlu0 %v4772, 12
        %v5271 = vpop.permute.xlu0 %5270
        %5272 = vrot.lane.b32.xlu0 %v4773, 12
        %v5273 = vpop.permute.xlu0 %5272
        %5274 = vrot.lane.b32.xlu0 %v4774, 12
        %v5275 = vpop.permute.xlu0 %5274
        %5276 = vrot.lane.b32.xlu0 %v4775, 12
        %v5277 = vpop.permute.xlu0 %5276
        %5278 = vrot.lane.b32.xlu0 %v4776, 12
        %v5279 = vpop.permute.xlu0 %5278
        %5280 = vrot.lane.b32.xlu0 %v4777, 12
        %v5281 = vpop.permute.xlu0 %5280
        %5282 = vrot.lane.b32.xlu0 %v4778, 12
        %v5283 = vpop.permute.xlu0 %5282
        %5284 = vrot.lane.b32.xlu0 %v4779, 12
        %v5285 = vpop.permute.xlu0 %5284
        %5286 = vrot.lane.b32.xlu0 %v4780, 12
        %v5287 = vpop.permute.xlu0 %5286
        %5288 = vrot.lane.b32.xlu0 %v4781, 12
        %v5289 = vpop.permute.xlu0 %5288
        %5290 = vrot.lane.b32.xlu0 %v4782, 12
        %v5291 = vpop.permute.xlu0 %5290
        %5292 = vrot.lane.b32.xlu0 %v4783, 12
        %v5293 = vpop.permute.xlu0 %5292
        %5294 = vrot.lane.b32.xlu0 %v4784, 12
        %v5295 = vpop.permute.xlu0 %5294
        %5296 = vrot.lane.b32.xlu0 %v4785, 12
        %v5297 = vpop.permute.xlu0 %5296
        %5362 = vrot.lane.b32.xlu0 %v4786, 16
        %v5363 = vpop.permute.xlu0 %5362
        %5364 = vrot.lane.b32.xlu0 %v4787, 16
        %v5365 = vpop.permute.xlu0 %5364
        %5366 = vrot.lane.b32.xlu0 %v4788, 16
        %v5367 = vpop.permute.xlu0 %5366
        %5368 = vrot.lane.b32.xlu0 %v4789, 16
        %v5369 = vpop.permute.xlu0 %5368
        %5370 = vrot.lane.b32.xlu0 %v4790, 16
        %v5371 = vpop.permute.xlu0 %5370
        %5372 = vrot.lane.b32.xlu0 %v4791, 16
        %v5373 = vpop.permute.xlu0 %5372
        %5374 = vrot.lane.b32.xlu0 %v4792, 16
        %v5375 = vpop.permute.xlu0 %5374
        %5376 = vrot.lane.b32.xlu0 %v4793, 16
        %v5377 = vpop.permute.xlu0 %5376
        %5378 = vrot.lane.b32.xlu0 %v4794, 16
        %v5379 = vpop.permute.xlu0 %5378
        %5380 = vrot.lane.b32.xlu0 %v4795, 16
        %v5381 = vpop.permute.xlu0 %5380
        %5382 = vrot.lane.b32.xlu0 %v4796, 16
        %v5383 = vpop.permute.xlu0 %5382
        %5384 = vrot.lane.b32.xlu0 %v4797, 16
        %v5385 = vpop.permute.xlu0 %5384
        %5386 = vrot.lane.b32.xlu0 %v4798, 16
        %v5387 = vpop.permute.xlu0 %5386
        %5388 = vrot.lane.b32.xlu0 %v4799, 16
        %v5389 = vpop.permute.xlu0 %5388
        %5390 = vrot.lane.b32.xlu0 %v4800, 16
        %v5391 = vpop.permute.xlu0 %5390
        %5392 = vrot.lane.b32.xlu0 %v4801, 16
        %v5393 = vpop.permute.xlu0 %5392
        %5394 = vrot.lane.b32.xlu0 %v4802, 16
        %v5395 = vpop.permute.xlu0 %5394
        %5396 = vrot.lane.b32.xlu0 %v4803, 16
        %v5397 = vpop.permute.xlu0 %5396
        %5398 = vrot.lane.b32.xlu0 %v4804, 16
        %v5399 = vpop.permute.xlu0 %5398
        %5400 = vrot.lane.b32.xlu0 %v4805, 16
        %v5401 = vpop.permute.xlu0 %5400
        %5402 = vrot.lane.b32.xlu0 %v4806, 16
        %v5403 = vpop.permute.xlu0 %5402
        %5404 = vrot.lane.b32.xlu0 %v4807, 16
        %v5405 = vpop.permute.xlu0 %5404
        %5406 = vrot.lane.b32.xlu0 %v4808, 16
        %v5407 = vpop.permute.xlu0 %5406
        %5408 = vrot.lane.b32.xlu0 %v4809, 16
        %v5409 = vpop.permute.xlu0 %5408
        %5410 = vrot.lane.b32.xlu0 %v4810, 16
        %v5411 = vpop.permute.xlu0 %5410
        %5412 = vrot.lane.b32.xlu0 %v4811, 16
        %v5413 = vpop.permute.xlu0 %5412
        %5414 = vrot.lane.b32.xlu0 %v4812, 16
        %v5415 = vpop.permute.xlu0 %5414
        %5416 = vrot.lane.b32.xlu0 %v4813, 16
        %v5417 = vpop.permute.xlu0 %5416
        %5418 = vrot.lane.b32.xlu0 %v4814, 16
        %v5419 = vpop.permute.xlu0 %5418
        %5420 = vrot.lane.b32.xlu0 %v4815, 16
        %v5421 = vpop.permute.xlu0 %5420
        %5422 = vrot.lane.b32.xlu0 %v4816, 16
        %v5423 = vpop.permute.xlu0 %5422
        %5424 = vrot.lane.b32.xlu0 %v4817, 16
        %v5425 = vpop.permute.xlu0 %5424
        %5490 = vrot.lane.b32.xlu0 %v4818, 20
        %v5491 = vpop.permute.xlu0 %5490
        %5492 = vrot.lane.b32.xlu0 %v4819, 20
        %v5493 = vpop.permute.xlu0 %5492
        %5494 = vrot.lane.b32.xlu0 %v4820, 20
        %v5495 = vpop.permute.xlu0 %5494
        %5496 = vrot.lane.b32.xlu0 %v4821, 20
        %v5497 = vpop.permute.xlu0 %5496
        %5498 = vrot.lane.b32.xlu0 %v4822, 20
        %v5499 = vpop.permute.xlu0 %5498
        %5500 = vrot.lane.b32.xlu0 %v4823, 20
        %v5501 = vpop.permute.xlu0 %5500
        %5502 = vrot.lane.b32.xlu0 %v4824, 20
        %v5503 = vpop.permute.xlu0 %5502
        %5504 = vrot.lane.b32.xlu0 %v4825, 20
        %v5505 = vpop.permute.xlu0 %5504
        %5506 = vrot.lane.b32.xlu0 %v4826, 20
        %v5507 = vpop.permute.xlu0 %5506
        %5508 = vrot.lane.b32.xlu0 %v4827, 20
        %v5509 = vpop.permute.xlu0 %5508
        %5510 = vrot.lane.b32.xlu0 %v4828, 20
        %v5511 = vpop.permute.xlu0 %5510
        %5512 = vrot.lane.b32.xlu0 %v4829, 20
        %v5513 = vpop.permute.xlu0 %5512
        %5514 = vrot.lane.b32.xlu0 %v4830, 20
        %v5515 = vpop.permute.xlu0 %5514
        %5516 = vrot.lane.b32.xlu0 %v4831, 20
        %v5517 = vpop.permute.xlu0 %5516
        %5518 = vrot.lane.b32.xlu0 %v4832, 20
        %v5519 = vpop.permute.xlu0 %5518
        %5520 = vrot.lane.b32.xlu0 %v4833, 20
        %v5521 = vpop.permute.xlu0 %5520
        %5522 = vrot.lane.b32.xlu0 %v4834, 20
        %v5523 = vpop.permute.xlu0 %5522
        %5524 = vrot.lane.b32.xlu0 %v4835, 20
        %v5525 = vpop.permute.xlu0 %5524
        %5526 = vrot.lane.b32.xlu0 %v4836, 20
        %v5527 = vpop.permute.xlu0 %5526
        %5528 = vrot.lane.b32.xlu0 %v4837, 20
        %v5529 = vpop.permute.xlu0 %5528
        %5530 = vrot.lane.b32.xlu0 %v4838, 20
        %v5531 = vpop.permute.xlu0 %5530
        %5532 = vrot.lane.b32.xlu0 %v4839, 20
        %v5533 = vpop.permute.xlu0 %5532
        %5534 = vrot.lane.b32.xlu0 %v4840, 20
        %v5535 = vpop.permute.xlu0 %5534
        %5536 = vrot.lane.b32.xlu0 %v4841, 20
        %v5537 = vpop.permute.xlu0 %5536
        %5538 = vrot.lane.b32.xlu0 %v4842, 20
        %v5539 = vpop.permute.xlu0 %5538
        %5540 = vrot.lane.b32.xlu0 %v4843, 20
        %v5541 = vpop.permute.xlu0 %5540
        %5542 = vrot.lane.b32.xlu0 %v4844, 20
        %v5543 = vpop.permute.xlu0 %5542
        %5544 = vrot.lane.b32.xlu0 %v4845, 20
        %v5545 = vpop.permute.xlu0 %5544
        %5546 = vrot.lane.b32.xlu0 %v4846, 20
        %v5547 = vpop.permute.xlu0 %5546
        %5548 = vrot.lane.b32.xlu0 %v4847, 20
        %v5549 = vpop.permute.xlu0 %5548
        %5550 = vrot.lane.b32.xlu0 %v4848, 20
        %v5551 = vpop.permute.xlu0 %5550
        %5552 = vrot.lane.b32.xlu0 %v4849, 20
        %v5553 = vpop.permute.xlu0 %5552
        %5618 = vrot.lane.b32.xlu0 %v4850, 24
        %v5619 = vpop.permute.xlu0 %5618
        %5620 = vrot.lane.b32.xlu0 %v4851, 24
        %v5621 = vpop.permute.xlu0 %5620
        %5622 = vrot.lane.b32.xlu0 %v4852, 24
        %v5623 = vpop.permute.xlu0 %5622
        %5624 = vrot.lane.b32.xlu0 %v4853, 24
        %v5625 = vpop.permute.xlu0 %5624
        %5626 = vrot.lane.b32.xlu0 %v4854, 24
        %v5627 = vpop.permute.xlu0 %5626
        %5628 = vrot.lane.b32.xlu0 %v4855, 24
        %v5629 = vpop.permute.xlu0 %5628
        %5630 = vrot.lane.b32.xlu0 %v4856, 24
        %v5631 = vpop.permute.xlu0 %5630
        %5632 = vrot.lane.b32.xlu0 %v4857, 24
        %v5633 = vpop.permute.xlu0 %5632
        %5634 = vrot.lane.b32.xlu0 %v4858, 24
        %v5635 = vpop.permute.xlu0 %5634
        %5636 = vrot.lane.b32.xlu0 %v4859, 24
        %v5637 = vpop.permute.xlu0 %5636
        %5638 = vrot.lane.b32.xlu0 %v4860, 24
        %v5639 = vpop.permute.xlu0 %5638
        %5640 = vrot.lane.b32.xlu0 %v4861, 24
        %v5641 = vpop.permute.xlu0 %5640
        %5642 = vrot.lane.b32.xlu0 %v4862, 24
        %v5643 = vpop.permute.xlu0 %5642
        %5644 = vrot.lane.b32.xlu0 %v4863, 24
        %v5645 = vpop.permute.xlu0 %5644
        %5646 = vrot.lane.b32.xlu0 %v4864, 24
        %v5647 = vpop.permute.xlu0 %5646
        %5648 = vrot.lane.b32.xlu0 %v4865, 24
        %v5649 = vpop.permute.xlu0 %5648
        %5650 = vrot.lane.b32.xlu0 %v4866, 24
        %v5651 = vpop.permute.xlu0 %5650
        %5652 = vrot.lane.b32.xlu0 %v4867, 24
        %v5653 = vpop.permute.xlu0 %5652
        %5654 = vrot.lane.b32.xlu0 %v4868, 24
        %v5655 = vpop.permute.xlu0 %5654
        %5656 = vrot.lane.b32.xlu0 %v4869, 24
        %v5657 = vpop.permute.xlu0 %5656
        %5658 = vrot.lane.b32.xlu0 %v4870, 24
        %v5659 = vpop.permute.xlu0 %5658
        %5660 = vrot.lane.b32.xlu0 %v4871, 24
        %v5661 = vpop.permute.xlu0 %5660
        %5662 = vrot.lane.b32.xlu0 %v4872, 24
        %v5663 = vpop.permute.xlu0 %5662
        %5664 = vrot.lane.b32.xlu0 %v4873, 24
        %v5665 = vpop.permute.xlu0 %5664
        %5666 = vrot.lane.b32.xlu0 %v4874, 24
        %v5667 = vpop.permute.xlu0 %5666
        %5668 = vrot.lane.b32.xlu0 %v4875, 24
        %v5669 = vpop.permute.xlu0 %5668
        %5670 = vrot.lane.b32.xlu0 %v4876, 24
        %v5671 = vpop.permute.xlu0 %5670
        %5672 = vrot.lane.b32.xlu0 %v4877, 24
        %v5673 = vpop.permute.xlu0 %5672
        %5674 = vrot.lane.b32.xlu0 %v4878, 24
        %v5675 = vpop.permute.xlu0 %5674
        %5676 = vrot.lane.b32.xlu0 %v4879, 24
        %v5677 = vpop.permute.xlu0 %5676
        %5678 = vrot.lane.b32.xlu0 %v4880, 24
        %v5679 = vpop.permute.xlu0 %5678
        %5680 = vrot.lane.b32.xlu0 %v4881, 24
        %v5681 = vpop.permute.xlu0 %5680
        %5746 = vrot.lane.b32.xlu0 %v4882, 28
        %v5747 = vpop.permute.xlu0 %5746
        %5748 = vrot.lane.b32.xlu0 %v4883, 28
        %v5749 = vpop.permute.xlu0 %5748
        %5750 = vrot.lane.b32.xlu0 %v4884, 28
        %v5751 = vpop.permute.xlu0 %5750
        %5752 = vrot.lane.b32.xlu0 %v4885, 28
        %v5753 = vpop.permute.xlu0 %5752
        %5754 = vrot.lane.b32.xlu0 %v4886, 28
        %v5755 = vpop.permute.xlu0 %5754
        %5756 = vrot.lane.b32.xlu0 %v4887, 28
        %v5757 = vpop.permute.xlu0 %5756
        %5758 = vrot.lane.b32.xlu0 %v4888, 28
        %v5759 = vpop.permute.xlu0 %5758
        %5760 = vrot.lane.b32.xlu0 %v4889, 28
        %v5761 = vpop.permute.xlu0 %5760
        %5762 = vrot.lane.b32.xlu0 %v4890, 28
        %v5763 = vpop.permute.xlu0 %5762
        %5764 = vrot.lane.b32.xlu0 %v4891, 28
        %v5765 = vpop.permute.xlu0 %5764
        %5766 = vrot.lane.b32.xlu0 %v4892, 28
        %v5767 = vpop.permute.xlu0 %5766
        %5768 = vrot.lane.b32.xlu0 %v4893, 28
        %v5769 = vpop.permute.xlu0 %5768
        %5770 = vrot.lane.b32.xlu0 %v4894, 28
        %v5771 = vpop.permute.xlu0 %5770
        %5772 = vrot.lane.b32.xlu0 %v4895, 28
        %v5773 = vpop.permute.xlu0 %5772
        %5774 = vrot.lane.b32.xlu0 %v4896, 28
        %v5775 = vpop.permute.xlu0 %5774
        %5776 = vrot.lane.b32.xlu0 %v4897, 28
        %v5777 = vpop.permute.xlu0 %5776
        %5778 = vrot.lane.b32.xlu0 %v4898, 28
        %v5779 = vpop.permute.xlu0 %5778
        %5780 = vrot.lane.b32.xlu0 %v4899, 28
        %v5781 = vpop.permute.xlu0 %5780
        %5782 = vrot.lane.b32.xlu0 %v4900, 28
        %v5783 = vpop.permute.xlu0 %5782
        %5784 = vrot.lane.b32.xlu0 %v4901, 28
        %v5785 = vpop.permute.xlu0 %5784
        %5786 = vrot.lane.b32.xlu0 %v4902, 28
        %v5787 = vpop.permute.xlu0 %5786
        %5788 = vrot.lane.b32.xlu0 %v4903, 28
        %v5789 = vpop.permute.xlu0 %5788
        %5790 = vrot.lane.b32.xlu0 %v4904, 28
        %v5791 = vpop.permute.xlu0 %5790
        %5792 = vrot.lane.b32.xlu0 %v4905, 28
        %v5793 = vpop.permute.xlu0 %5792
        %5794 = vrot.lane.b32.xlu0 %v4906, 28
        %v5795 = vpop.permute.xlu0 %5794
        %5796 = vrot.lane.b32.xlu0 %v4907, 28
        %v5797 = vpop.permute.xlu0 %5796
        %5798 = vrot.lane.b32.xlu0 %v4908, 28
        %v5799 = vpop.permute.xlu0 %5798
        %5800 = vrot.lane.b32.xlu0 %v4909, 28
        %v5801 = vpop.permute.xlu0 %5800
        %5802 = vrot.lane.b32.xlu0 %v4910, 28
        %v5803 = vpop.permute.xlu0 %5802
        %5804 = vrot.lane.b32.xlu0 %v4911, 28
        %v5805 = vpop.permute.xlu0 %5804
        %5806 = vrot.lane.b32.xlu0 %v4912, 28
        %v5807 = vpop.permute.xlu0 %5806
        %5808 = vrot.lane.b32.xlu0 %v4913, 28
        %v5809 = vpop.permute.xlu0 %5808
        %5874 = vrot.lane.b32.xlu0 %v4914, 32
        %v5875 = vpop.permute.xlu0 %5874
        %5876 = vrot.lane.b32.xlu0 %v4915, 32
        %v5877 = vpop.permute.xlu0 %5876
        %5878 = vrot.lane.b32.xlu0 %v4916, 32
        %v5879 = vpop.permute.xlu0 %5878
        %5880 = vrot.lane.b32.xlu0 %v4917, 32
        %v5881 = vpop.permute.xlu0 %5880
        %5882 = vrot.lane.b32.xlu0 %v4918, 32
        %v5883 = vpop.permute.xlu0 %5882
        %5884 = vrot.lane.b32.xlu0 %v4919, 32
        %v5885 = vpop.permute.xlu0 %5884
        %5886 = vrot.lane.b32.xlu0 %v4920, 32
        %v5887 = vpop.permute.xlu0 %5886
        %5888 = vrot.lane.b32.xlu0 %v4921, 32
        %v5889 = vpop.permute.xlu0 %5888
        %5890 = vrot.lane.b32.xlu0 %v4922, 32
        %v5891 = vpop.permute.xlu0 %5890
        %5892 = vrot.lane.b32.xlu0 %v4923, 32
        %v5893 = vpop.permute.xlu0 %5892
        %5894 = vrot.lane.b32.xlu0 %v4924, 32
        %v5895 = vpop.permute.xlu0 %5894
        %5896 = vrot.lane.b32.xlu0 %v4925, 32
        %v5897 = vpop.permute.xlu0 %5896
        %5898 = vrot.lane.b32.xlu0 %v4926, 32
        %v5899 = vpop.permute.xlu0 %5898
        %5900 = vrot.lane.b32.xlu0 %v4927, 32
        %v5901 = vpop.permute.xlu0 %5900
        %5902 = vrot.lane.b32.xlu0 %v4928, 32
        %v5903 = vpop.permute.xlu0 %5902
        %5904 = vrot.lane.b32.xlu0 %v4929, 32
        %v5905 = vpop.permute.xlu0 %5904
        %5906 = vrot.lane.b32.xlu0 %v4930, 32
        %v5907 = vpop.permute.xlu0 %5906
        %5908 = vrot.lane.b32.xlu0 %v4931, 32
        %v5909 = vpop.permute.xlu0 %5908
        %5910 = vrot.lane.b32.xlu0 %v4932, 32
        %v5911 = vpop.permute.xlu0 %5910
        %5912 = vrot.lane.b32.xlu0 %v4933, 32
        %v5913 = vpop.permute.xlu0 %5912
        %5914 = vrot.lane.b32.xlu0 %v4934, 32
        %v5915 = vpop.permute.xlu0 %5914
        %5916 = vrot.lane.b32.xlu0 %v4935, 32
        %v5917 = vpop.permute.xlu0 %5916
        %5918 = vrot.lane.b32.xlu0 %v4936, 32
        %v5919 = vpop.permute.xlu0 %5918
        %5920 = vrot.lane.b32.xlu0 %v4937, 32
        %v5921 = vpop.permute.xlu0 %5920
        %5922 = vrot.lane.b32.xlu0 %v4938, 32
        %v5923 = vpop.permute.xlu0 %5922
        %5924 = vrot.lane.b32.xlu0 %v4939, 32
        %v5925 = vpop.permute.xlu0 %5924
        %5926 = vrot.lane.b32.xlu0 %v4940, 32
        %v5927 = vpop.permute.xlu0 %5926
        %5928 = vrot.lane.b32.xlu0 %v4941, 32
        %v5929 = vpop.permute.xlu0 %5928
        %5930 = vrot.lane.b32.xlu0 %v4942, 32
        %v5931 = vpop.permute.xlu0 %5930
        %5932 = vrot.lane.b32.xlu0 %v4943, 32
        %v5933 = vpop.permute.xlu0 %5932
        %5934 = vrot.lane.b32.xlu0 %v4944, 32
        %v5935 = vpop.permute.xlu0 %5934
        %5936 = vrot.lane.b32.xlu0 %v4945, 32
        %v5937 = vpop.permute.xlu0 %5936
        %v5970 = vsel %vm3906, %v4594, %v4979
        %v5971 = vsel %vm3906, %v4595, %v4981
        %v5972 = vsel %vm3906, %v4596, %v4983
        %v5973 = vsel %vm3906, %v4597, %v4985
        %v5974 = vsel %vm3906, %v4598, %v4987
        %v5975 = vsel %vm3906, %v4599, %v4989
        %v5976 = vsel %vm3906, %v4600, %v4991
        %v5977 = vsel %vm3906, %v4601, %v4993
        %v5978 = vsel %vm3906, %v4602, %v4995
        %v5979 = vsel %vm3906, %v4603, %v4997
        %v5980 = vsel %vm3906, %v4604, %v4999
        %v5981 = vsel %vm3906, %v4605, %v5001
        %v5982 = vsel %vm3906, %v4606, %v5003
        %v5983 = vsel %vm3906, %v4607, %v5005
        %v5984 = vsel %vm3906, %v4608, %v5007
        %v5985 = vsel %vm3906, %v4609, %v5009
        %v5986 = vsel %vm3906, %v4610, %v5011
        %v5987 = vsel %vm3906, %v4611, %v5013
        %v5988 = vsel %vm3906, %v4612, %v5015
        %v5989 = vsel %vm3906, %v4613, %v5017
        %v5990 = vsel %vm3906, %v4614, %v5019
        %v5991 = vsel %vm3906, %v4615, %v5021
        %v5992 = vsel %vm3906, %v4616, %v5023
        %v5993 = vsel %vm3906, %v4617, %v5025
        %v5994 = vsel %vm3906, %v4618, %v5027
        %v5995 = vsel %vm3906, %v4619, %v5029
        %v5996 = vsel %vm3906, %v4620, %v5031
        %v5997 = vsel %vm3906, %v4621, %v5033
        %v5998 = vsel %vm3906, %v4622, %v5035
        %v5999 = vsel %vm3906, %v4623, %v5037
        %v6000 = vsel %vm3906, %v4624, %v5039
        %v6001 = vsel %vm3906, %v4625, %v5041
        %v6002 = vsel %vm3939, %v5970, %v5107
        %v6003 = vsel %vm3939, %v5971, %v5109
        %v6004 = vsel %vm3939, %v5972, %v5111
        %v6005 = vsel %vm3939, %v5973, %v5113
        %v6006 = vsel %vm3939, %v5974, %v5115
        %v6007 = vsel %vm3939, %v5975, %v5117
        %v6008 = vsel %vm3939, %v5976, %v5119
        %v6009 = vsel %vm3939, %v5977, %v5121
        %v6010 = vsel %vm3939, %v5978, %v5123
        %v6011 = vsel %vm3939, %v5979, %v5125
        %v6012 = vsel %vm3939, %v5980, %v5127
        %v6013 = vsel %vm3939, %v5981, %v5129
        %v6014 = vsel %vm3939, %v5982, %v5131
        %v6015 = vsel %vm3939, %v5983, %v5133
        %v6016 = vsel %vm3939, %v5984, %v5135
        %v6017 = vsel %vm3939, %v5985, %v5137
        %v6018 = vsel %vm3939, %v5986, %v5139
        %v6019 = vsel %vm3939, %v5987, %v5141
        %v6020 = vsel %vm3939, %v5988, %v5143
        %v6021 = vsel %vm3939, %v5989, %v5145
        %v6022 = vsel %vm3939, %v5990, %v5147
        %v6023 = vsel %vm3939, %v5991, %v5149
        %v6024 = vsel %vm3939, %v5992, %v5151
        %v6025 = vsel %vm3939, %v5993, %v5153
        %v6026 = vsel %vm3939, %v5994, %v5155
        %v6027 = vsel %vm3939, %v5995, %v5157
        %v6028 = vsel %vm3939, %v5996, %v5159
        %v6029 = vsel %vm3939, %v5997, %v5161
        %v6030 = vsel %vm3939, %v5998, %v5163
        %v6031 = vsel %vm3939, %v5999, %v5165
        %v6032 = vsel %vm3939, %v6000, %v5167
        %v6033 = vsel %vm3939, %v6001, %v5169
        %v6034 = vsel %vm3972, %v6002, %v5235
        %v6035 = vsel %vm3972, %v6003, %v5237
        %v6036 = vsel %vm3972, %v6004, %v5239
        %v6037 = vsel %vm3972, %v6005, %v5241
        %v6038 = vsel %vm3972, %v6006, %v5243
        %v6039 = vsel %vm3972, %v6007, %v5245
        %v6040 = vsel %vm3972, %v6008, %v5247
        %v6041 = vsel %vm3972, %v6009, %v5249
        %v6042 = vsel %vm3972, %v6010, %v5251
        %v6043 = vsel %vm3972, %v6011, %v5253
        %v6044 = vsel %vm3972, %v6012, %v5255
        %v6045 = vsel %vm3972, %v6013, %v5257
        %v6046 = vsel %vm3972, %v6014, %v5259
        %v6047 = vsel %vm3972, %v6015, %v5261
        %v6048 = vsel %vm3972, %v6016, %v5263
        %v6049 = vsel %vm3972, %v6017, %v5265
        %v6050 = vsel %vm3972, %v6018, %v5267
        %v6051 = vsel %vm3972, %v6019, %v5269
        %v6052 = vsel %vm3972, %v6020, %v5271
        %v6053 = vsel %vm3972, %v6021, %v5273
        %v6054 = vsel %vm3972, %v6022, %v5275
        %v6055 = vsel %vm3972, %v6023, %v5277
        %v6056 = vsel %vm3972, %v6024, %v5279
        %v6057 = vsel %vm3972, %v6025, %v5281
        %v6058 = vsel %vm3972, %v6026, %v5283
        %v6059 = vsel %vm3972, %v6027, %v5285
        %v6060 = vsel %vm3972, %v6028, %v5287
        %v6061 = vsel %vm3972, %v6029, %v5289
        %v6062 = vsel %vm3972, %v6030, %v5291
        %v6063 = vsel %vm3972, %v6031, %v5293
        %v6064 = vsel %vm3972, %v6032, %v5295
        %v6065 = vsel %vm3972, %v6033, %v5297
        %v6066 = vsel %vm4005, %v6034, %v5363
        %v6067 = vsel %vm4005, %v6035, %v5365
        %v6068 = vsel %vm4005, %v6036, %v5367
        %v6069 = vsel %vm4005, %v6037, %v5369
        %v6070 = vsel %vm4005, %v6038, %v5371
        %v6071 = vsel %vm4005, %v6039, %v5373
        %v6072 = vsel %vm4005, %v6040, %v5375
        %v6073 = vsel %vm4005, %v6041, %v5377
        %v6074 = vsel %vm4005, %v6042, %v5379
        %v6075 = vsel %vm4005, %v6043, %v5381
        %v6076 = vsel %vm4005, %v6044, %v5383
        %v6077 = vsel %vm4005, %v6045, %v5385
        %v6078 = vsel %vm4005, %v6046, %v5387
        %v6079 = vsel %vm4005, %v6047, %v5389
        %v6080 = vsel %vm4005, %v6048, %v5391
        %v6081 = vsel %vm4005, %v6049, %v5393
        %v6082 = vsel %vm4005, %v6050, %v5395
        %v6083 = vsel %vm4005, %v6051, %v5397
        %v6084 = vsel %vm4005, %v6052, %v5399
        %v6085 = vsel %vm4005, %v6053, %v5401
        %v6086 = vsel %vm4005, %v6054, %v5403
        %v6087 = vsel %vm4005, %v6055, %v5405
        %v6088 = vsel %vm4005, %v6056, %v5407
        %v6089 = vsel %vm4005, %v6057, %v5409
        %v6090 = vsel %vm4005, %v6058, %v5411
        %v6091 = vsel %vm4005, %v6059, %v5413
        %v6092 = vsel %vm4005, %v6060, %v5415
        %v6093 = vsel %vm4005, %v6061, %v5417
        %v6094 = vsel %vm4005, %v6062, %v5419
        %v6095 = vsel %vm4005, %v6063, %v5421
        %v6096 = vsel %vm4005, %v6064, %v5423
        %v6097 = vsel %vm4005, %v6065, %v5425
        %v6098 = vsel %vm4038, %v6066, %v5491
        %v6099 = vsel %vm4038, %v6067, %v5493
        %v6100 = vsel %vm4038, %v6068, %v5495
        %v6101 = vsel %vm4038, %v6069, %v5497
        %v6102 = vsel %vm4038, %v6070, %v5499
        %v6103 = vsel %vm4038, %v6071, %v5501
        %v6104 = vsel %vm4038, %v6072, %v5503
        %v6105 = vsel %vm4038, %v6073, %v5505
        %v6106 = vsel %vm4038, %v6074, %v5507
        %v6107 = vsel %vm4038, %v6075, %v5509
        %v6108 = vsel %vm4038, %v6076, %v5511
        %v6109 = vsel %vm4038, %v6077, %v5513
        %v6110 = vsel %vm4038, %v6078, %v5515
        %v6111 = vsel %vm4038, %v6079, %v5517
        %v6112 = vsel %vm4038, %v6080, %v5519
        %v6113 = vsel %vm4038, %v6081, %v5521
        %v6114 = vsel %vm4038, %v6082, %v5523
        %v6115 = vsel %vm4038, %v6083, %v5525
        %v6116 = vsel %vm4038, %v6084, %v5527
        %v6117 = vsel %vm4038, %v6085, %v5529
        %v6118 = vsel %vm4038, %v6086, %v5531
        %v6119 = vsel %vm4038, %v6087, %v5533
        %v6120 = vsel %vm4038, %v6088, %v5535
        %v6121 = vsel %vm4038, %v6089, %v5537
        %v6122 = vsel %vm4038, %v6090, %v5539
        %v6123 = vsel %vm4038, %v6091, %v5541
        %v6124 = vsel %vm4038, %v6092, %v5543
        %v6125 = vsel %vm4038, %v6093, %v5545
        %v6126 = vsel %vm4038, %v6094, %v5547
        %v6127 = vsel %vm4038, %v6095, %v5549
        %v6128 = vsel %vm4038, %v6096, %v5551
        %v6129 = vsel %vm4038, %v6097, %v5553
        %v6130 = vsel %vm4071, %v6098, %v5619
        %v6131 = vsel %vm4071, %v6099, %v5621
        %v6132 = vsel %vm4071, %v6100, %v5623
        %v6133 = vsel %vm4071, %v6101, %v5625
        %v6134 = vsel %vm4071, %v6102, %v5627
        %v6135 = vsel %vm4071, %v6103, %v5629
        %v6136 = vsel %vm4071, %v6104, %v5631
        %v6137 = vsel %vm4071, %v6105, %v5633
        %v6138 = vsel %vm4071, %v6106, %v5635
        %v6139 = vsel %vm4071, %v6107, %v5637
        %v6140 = vsel %vm4071, %v6108, %v5639
        %v6141 = vsel %vm4071, %v6109, %v5641
        %v6142 = vsel %vm4071, %v6110, %v5643
        %v6143 = vsel %vm4071, %v6111, %v5645
        %v6144 = vsel %vm4071, %v6112, %v5647
        %v6145 = vsel %vm4071, %v6113, %v5649
        %v6146 = vsel %vm4071, %v6114, %v5651
        %v6147 = vsel %vm4071, %v6115, %v5653
        %v6148 = vsel %vm4071, %v6116, %v5655
        %v6149 = vsel %vm4071, %v6117, %v5657
        %v6150 = vsel %vm4071, %v6118, %v5659
        %v6151 = vsel %vm4071, %v6119, %v5661
        %v6152 = vsel %vm4071, %v6120, %v5663
        %v6153 = vsel %vm4071, %v6121, %v5665
        %v6154 = vsel %vm4071, %v6122, %v5667
        %v6155 = vsel %vm4071, %v6123, %v5669
        %v6156 = vsel %vm4071, %v6124, %v5671
        %v6157 = vsel %vm4071, %v6125, %v5673
        %v6158 = vsel %vm4071, %v6126, %v5675
        %v6159 = vsel %vm4071, %v6127, %v5677
        %v6160 = vsel %vm4071, %v6128, %v5679
        %v6161 = vsel %vm4071, %v6129, %v5681
        %v6162 = vsel %vm4104, %v6130, %v5747
        %v6163 = vsel %vm4104, %v6131, %v5749
        %v6164 = vsel %vm4104, %v6132, %v5751
        %v6165 = vsel %vm4104, %v6133, %v5753
        %v6166 = vsel %vm4104, %v6134, %v5755
        %v6167 = vsel %vm4104, %v6135, %v5757
        %v6168 = vsel %vm4104, %v6136, %v5759
        %v6169 = vsel %vm4104, %v6137, %v5761
        %v6170 = vsel %vm4104, %v6138, %v5763
        %v6171 = vsel %vm4104, %v6139, %v5765
        %v6172 = vsel %vm4104, %v6140, %v5767
        %v6173 = vsel %vm4104, %v6141, %v5769
        %v6174 = vsel %vm4104, %v6142, %v5771
        %v6175 = vsel %vm4104, %v6143, %v5773
        %v6176 = vsel %vm4104, %v6144, %v5775
        %v6177 = vsel %vm4104, %v6145, %v5777
        %v6178 = vsel %vm4104, %v6146, %v5779
        %v6179 = vsel %vm4104, %v6147, %v5781
        %v6180 = vsel %vm4104, %v6148, %v5783
        %v6181 = vsel %vm4104, %v6149, %v5785
        %v6182 = vsel %vm4104, %v6150, %v5787
        %v6183 = vsel %vm4104, %v6151, %v5789
        %v6184 = vsel %vm4104, %v6152, %v5791
        %v6185 = vsel %vm4104, %v6153, %v5793
        %v6186 = vsel %vm4104, %v6154, %v5795
        %v6187 = vsel %vm4104, %v6155, %v5797
        %v6188 = vsel %vm4104, %v6156, %v5799
        %v6189 = vsel %vm4104, %v6157, %v5801
        %v6190 = vsel %vm4104, %v6158, %v5803
        %v6191 = vsel %vm4104, %v6159, %v5805
        %v6192 = vsel %vm4104, %v6160, %v5807
        %v6193 = vsel %vm4104, %v6161, %v5809
        %v6194 = vsel %vm4137, %v6162, %v5875
        %v6195 = vsel %vm4137, %v6163, %v5877
        %v6196 = vsel %vm4137, %v6164, %v5879
        %v6197 = vsel %vm4137, %v6165, %v5881
        %v6198 = vsel %vm4137, %v6166, %v5883
        %v6199 = vsel %vm4137, %v6167, %v5885
        %v6200 = vsel %vm4137, %v6168, %v5887
        %v6201 = vsel %vm4137, %v6169, %v5889
        %v6202 = vsel %vm4137, %v6170, %v5891
        %v6203 = vsel %vm4137, %v6171, %v5893
        %v6204 = vsel %vm4137, %v6172, %v5895
        %v6205 = vsel %vm4137, %v6173, %v5897
        %v6206 = vsel %vm4137, %v6174, %v5899
        %v6207 = vsel %vm4137, %v6175, %v5901
        %v6208 = vsel %vm4137, %v6176, %v5903
        %v6209 = vsel %vm4137, %v6177, %v5905
        %v6210 = vsel %vm4137, %v6178, %v5907
        %v6211 = vsel %vm4137, %v6179, %v5909
        %v6212 = vsel %vm4137, %v6180, %v5911
        %v6213 = vsel %vm4137, %v6181, %v5913
        %v6214 = vsel %vm4137, %v6182, %v5915
        %v6215 = vsel %vm4137, %v6183, %v5917
        %v6216 = vsel %vm4137, %v6184, %v5919
        %v6217 = vsel %vm4137, %v6185, %v5921
        %v6218 = vsel %vm4137, %v6186, %v5923
        %v6219 = vsel %vm4137, %v6187, %v5925
        %v6220 = vsel %vm4137, %v6188, %v5927
        %v6221 = vsel %vm4137, %v6189, %v5929
        %v6222 = vsel %vm4137, %v6190, %v5931
        %v6223 = vsel %vm4137, %v6191, %v5933
        %v6224 = vsel %vm4137, %v6192, %v5935
        %v6225 = vsel %vm4137, %v6193, %v5937
        %v6226 = vpack.c.bf16 %v6195, %v6194
        %v6227 = vpack.c.bf16 %v6197, %v6196
        %v6228 = vpack.c.bf16 %v6199, %v6198
        %v6229 = vpack.c.bf16 %v6201, %v6200
        %v6230 = vpack.c.bf16 %v6203, %v6202
        %v6231 = vpack.c.bf16 %v6205, %v6204
        %v6232 = vpack.c.bf16 %v6207, %v6206
        %v6233 = vpack.c.bf16 %v6209, %v6208
        %v6234 = vpack.c.bf16 %v6211, %v6210
        %v6235 = vpack.c.bf16 %v6213, %v6212
        %v6236 = vpack.c.bf16 %v6215, %v6214
        %v6237 = vpack.c.bf16 %v6217, %v6216
        %v6238 = vpack.c.bf16 %v6219, %v6218
        %v6239 = vpack.c.bf16 %v6221, %v6220
        %v6240 = vpack.c.bf16 %v6223, %v6222
        %v6241 = vpack.c.bf16 %v6225, %v6224
        %v6242 = vld [vmem:[%s7] sm:$0xf]
        %v6243 = vld [vmem:[%s7 + $0x4] sm:$0xf]
        %v6244 = vld [vmem:[%s7 + $0x8] sm:$0xf]
        %v6245 = vld [vmem:[%s7 + $0xc] sm:$0xf]
        %v6246 = vld [vmem:[%s7 + $0x10] sm:$0x3]
        %v6252 = vunpack.c.l.b16 %v6242
        %v6253 = vunpack.c.l.b16 %v6243
        %v6254 = vunpack.c.l.b16 %v6244
        %v6255 = vunpack.c.l.b16 %v6245
        %v6256 = vunpack.c.l.b16 %v6246
        %v6257 = vpack.c.b16 %v6253, %v6252
        %v6258 = vpack.c.b16 %v6255, %v6254
        %v6259 = vpack.c.b16 %v6256, %v6256
        %v6263 = vsel %vm4206, %v6226, 0
        %v6266 = vsel %vm4206, %v6227, 0
        %v6269 = vsel %vm4206, %v6228, 0
        %v6272 = vsel %vm4206, %v6229, 0
        %v6275 = vsel %vm4206, %v6230, 0
        %v6278 = vsel %vm4206, %v6231, 0
        %v6281 = vsel %vm4206, %v6232, 0
        %v6284 = vsel %vm4206, %v6233, 0
        %v6287 = vsel %vm4206, %v6234, 0
        %v6290 = vsel %vm4206, %v6235, 0
        %v6293 = vsel %vm4206, %v6236, 0
        %v6296 = vsel %vm4206, %v6237, 0
        %v6299 = vsel %vm4206, %v6238, 0
        %v6302 = vsel %vm4206, %v6239, 0
        %v6305 = vsel %vm4206, %v6240, 0
        %v6308 = vsel %vm4206, %v6241, 0
        %v6311 = vsel %vm4255, %v6259, 0
        %6313 = vmatprep.subr.bf16.mxu0 0
        %6314 = vmatpush1.bf16.msra.mxu0 %v6257
        %6315 = vmatprep.subr.bf16.mxu0 0
        %6316 = vmatpush1.bf16.msra.mxu0 %v6258
        %6317 = vmatprep.subr.bf16.mxu0 0
        %6318 = vmatpush1.bf16.msra.mxu0 %v6311
        %6319 = vmatprep.subr.bf16.mxu0 0
        %6320 = vmatpush1.bf16.msra.mxu0 0
        %6321 = vmatprep.subr.bf16.mxu0 0
        %6322 = vmatpush1.bf16.msra.mxu0 0
        %6323 = vmatprep.subr.bf16.mxu0 0
        %6324 = vmatpush1.bf16.msra.mxu0 0
        %6325 = vmatprep.subr.bf16.mxu0 0
        %6326 = vmatpush1.bf16.msra.mxu0 0
        %6327 = vmatprep.subr.bf16.mxu0 0
        %6328 = vmatpush1.bf16.msra.mxu0 0
        %6329 = vmatprep.subr.bf16.mxu0 0
        %6330 = vmatpush1.bf16.msra.mxu0 0
        %6331 = vmatprep.subr.bf16.mxu0 0
        %6332 = vmatpush1.bf16.msra.mxu0 0
        %6333 = vmatprep.subr.bf16.mxu0 0
        %6334 = vmatpush1.bf16.msra.mxu0 0
        %6335 = vmatprep.subr.bf16.mxu0 0
        %6336 = vmatpush1.bf16.msra.mxu0 0
        %6337 = vmatprep.subr.bf16.mxu0 0
        %6338 = vmatpush1.bf16.msra.mxu0 0
        %6339 = vmatprep.subr.bf16.mxu0 0
        %6340 = vmatpush1.bf16.msra.mxu0 0
        %6341 = vmatprep.subr.bf16.mxu0 0
        %6342 = vmatpush1.bf16.msra.mxu0 0
        %6343 = vmatprep.subr.bf16.mxu0 0
        %6344 = vmatpush1.bf16.msra.mxu0 0
        %6345 = vmatprep.mubr.bf16.mxu0 0
        %6346 = vmatmul.mubr.bf16.gmra.mrb[0].mxu0 %v6263
        %v6347 = vpop.f32.mrb[0].mxu0
        %v6348 = vadd.f32 0.0, %v6347
        %v6349 = vpop.f32.mrb[0].mxu0
        %v6350 = vpop.f32.mrb[0].mxu0
        %v6351 = vadd.f32 0.0, %v6350
        %v6352 = vpop.f32.mrb[0].mxu0
        %6353 = vmatprep.mubr.bf16.mxu0 0
        %6354 = vmatmul.mubr.bf16.gmra.mrb[0].mxu0 %v6266
        %v6355 = vpop.f32.mrb[0].mxu0
        %v6356 = vadd.f32 0.0, %v6355
        %v6357 = vpop.f32.mrb[0].mxu0
        %v6358 = vpop.f32.mrb[0].mxu0
        %v6359 = vadd.f32 0.0, %v6358
        %v6360 = vpop.f32.mrb[0].mxu0
        %6361 = vmatprep.mubr.bf16.mxu0 0
        %6362 = vmatmul.mubr.bf16.gmra.mrb[0].mxu0 %v6269
        %v6363 = vpop.f32.mrb[0].mxu0
        %v6364 = vadd.f32 0.0, %v6363
        %v6365 = vpop.f32.mrb[0].mxu0
        %v6366 = vpop.f32.mrb[0].mxu0
        %v6367 = vadd.f32 0.0, %v6366
        %v6368 = vpop.f32.mrb[0].mxu0
        %6369 = vmatprep.mubr.bf16.mxu0 0
        %6370 = vmatmul.mubr.bf16.gmra.mrb[0].mxu0 %v6272
        %v6371 = vpop.f32.mrb[0].mxu0
        %v6372 = vadd.f32 0.0, %v6371
        %v6373 = vpop.f32.mrb[0].mxu0
        %v6374 = vpop.f32.mrb[0].mxu0
        %v6375 = vadd.f32 0.0, %v6374
        %v6376 = vpop.f32.mrb[0].mxu0
        %6377 = vmatprep.mubr.bf16.mxu0 0
        %6378 = vmatmul.mubr.bf16.gmra.mrb[0].mxu0 %v6275
        %v6379 = vpop.f32.mrb[0].mxu0
        %v6380 = vadd.f32 0.0, %v6379
        %v6381 = vpop.f32.mrb[0].mxu0
        %v6382 = vpop.f32.mrb[0].mxu0
        %v6383 = vadd.f32 0.0, %v6382
        %v6384 = vpop.f32.mrb[0].mxu0
        %6385 = vmatprep.mubr.bf16.mxu0 0
        %6386 = vmatmul.mubr.bf16.gmra.mrb[0].mxu0 %v6278
        %v6387 = vpop.f32.mrb[0].mxu0
        %v6388 = vadd.f32 0.0, %v6387
        %v6389 = vpop.f32.mrb[0].mxu0
        %v6390 = vpop.f32.mrb[0].mxu0
        %v6391 = vadd.f32 0.0, %v6390
        %v6392 = vpop.f32.mrb[0].mxu0
        %6393 = vmatprep.mubr.bf16.mxu0 0
        %6394 = vmatmul.mubr.bf16.gmra.mrb[0].mxu0 %v6281
        %v6395 = vpop.f32.mrb[0].mxu0
        %v6396 = vadd.f32 0.0, %v6395
        %v6397 = vpop.f32.mrb[0].mxu0
        %v6398 = vpop.f32.mrb[0].mxu0
        %v6399 = vadd.f32 0.0, %v6398
        %v6400 = vpop.f32.mrb[0].mxu0
        %6401 = vmatprep.mubr.bf16.mxu0 0
        %6402 = vmatmul.mubr.bf16.gmra.mrb[0].mxu0 %v6284
        %v6403 = vpop.f32.mrb[0].mxu0
        %v6404 = vadd.f32 0.0, %v6403
        %v6405 = vpop.f32.mrb[0].mxu0
        %v6406 = vpop.f32.mrb[0].mxu0
        %v6407 = vadd.f32 0.0, %v6406
        %v6408 = vpop.f32.mrb[0].mxu0
        %6409 = vmatprep.mubr.bf16.mxu0 0
        %6410 = vmatmul.mubr.bf16.gmra.mrb[0].mxu0 %v6287
        %v6411 = vpop.f32.mrb[0].mxu0
        %v6412 = vadd.f32 0.0, %v6411
        %v6413 = vpop.f32.mrb[0].mxu0
        %v6414 = vpop.f32.mrb[0].mxu0
        %v6415 = vadd.f32 0.0, %v6414
        %v6416 = vpop.f32.mrb[0].mxu0
        %6417 = vmatprep.mubr.bf16.mxu0 0
        %6418 = vmatmul.mubr.bf16.gmra.mrb[0].mxu0 %v6290
        %v6419 = vpop.f32.mrb[0].mxu0
        %v6420 = vadd.f32 0.0, %v6419
        %v6421 = vpop.f32.mrb[0].mxu0
        %v6422 = vpop.f32.mrb[0].mxu0
        %v6423 = vadd.f32 0.0, %v6422
        %v6424 = vpop.f32.mrb[0].mxu0
        %6425 = vmatprep.mubr.bf16.mxu0 0
        %6426 = vmatmul.mubr.bf16.gmra.mrb[0].mxu0 %v6293
        %v6427 = vpop.f32.mrb[0].mxu0
        %v6428 = vadd.f32 0.0, %v6427
        %v6429 = vpop.f32.mrb[0].mxu0
        %v6430 = vpop.f32.mrb[0].mxu0
        %v6431 = vadd.f32 0.0, %v6430
        %v6432 = vpop.f32.mrb[0].mxu0
        %6433 = vmatprep.mubr.bf16.mxu0 0
        %6434 = vmatmul.mubr.bf16.gmra.mrb[0].mxu0 %v6296
        %v6435 = vpop.f32.mrb[0].mxu0
        %v6436 = vadd.f32 0.0, %v6435
        %v6437 = vpop.f32.mrb[0].mxu0
        %v6438 = vpop.f32.mrb[0].mxu0
        %v6439 = vadd.f32 0.0, %v6438
        %v6440 = vpop.f32.mrb[0].mxu0
        %6441 = vmatprep.mubr.bf16.mxu0 0
        %6442 = vmatmul.mubr.bf16.gmra.mrb[0].mxu0 %v6299
        %v6443 = vpop.f32.mrb[0].mxu0
        %v6444 = vadd.f32 0.0, %v6443
        %v6445 = vpop.f32.mrb[0].mxu0
        %v6446 = vpop.f32.mrb[0].mxu0
        %v6447 = vadd.f32 0.0, %v6446
        %v6448 = vpop.f32.mrb[0].mxu0
        %6449 = vmatprep.mubr.bf16.mxu0 0
        %6450 = vmatmul.mubr.bf16.gmra.mrb[0].mxu0 %v6302
        %v6451 = vpop.f32.mrb[0].mxu0
        %v6452 = vadd.f32 0.0, %v6451
        %v6453 = vpop.f32.mrb[0].mxu0
        %v6454 = vpop.f32.mrb[0].mxu0
        %v6455 = vadd.f32 0.0, %v6454
        %v6456 = vpop.f32.mrb[0].mxu0
        %6457 = vmatprep.mubr.bf16.mxu0 0
        %6458 = vmatmul.mubr.bf16.gmra.mrb[0].mxu0 %v6305
        %v6459 = vpop.f32.mrb[0].mxu0
        %v6460 = vadd.f32 0.0, %v6459
        %v6461 = vpop.f32.mrb[0].mxu0
        %v6462 = vpop.f32.mrb[0].mxu0
        %v6463 = vadd.f32 0.0, %v6462
        %v6464 = vpop.f32.mrb[0].mxu0
        %6465 = vmatprep.mubr.bf16.mxu0 0
        %6466 = vmatmul.mubr.bf16.gmra.mrb[0].mxu0 %v6308
        %v6467 = vpop.f32.mrb[0].mxu0
        %v6468 = vadd.f32 0.0, %v6467
        %v6469 = vpop.f32.mrb[0].mxu0
        %v6470 = vpop.f32.mrb[0].mxu0
        %v6471 = vadd.f32 0.0, %v6470
        %v6472 = vpop.f32.mrb[0].mxu0
        %6473 = vdwg.mxu0
        %v6474 = vld [vmem:[#allocation10] sm:$0x1]
        %v6476 = vlaneseq
        %v6477 = vshrl.u32 %v6476, 7
        %v6478 = vsub.s32 0, %v6477
        %v6479 = vrot.slane %v6474, %v6478
        %v6481 = vmul.f32 %v6348, %v6479
        %v6482 = vmul.f32 %v6351, %v6479
        %v6483 = vmul.f32 %v6356, %v6479
        %v6484 = vmul.f32 %v6359, %v6479
        %v6485 = vmul.f32 %v6364, %v6479
        %v6486 = vmul.f32 %v6367, %v6479
        %v6487 = vmul.f32 %v6372, %v6479
        %v6488 = vmul.f32 %v6375, %v6479
        %v6489 = vmul.f32 %v6380, %v6479
        %v6490 = vmul.f32 %v6383, %v6479
        %v6491 = vmul.f32 %v6388, %v6479
        %v6492 = vmul.f32 %v6391, %v6479
        %v6493 = vmul.f32 %v6396, %v6479
        %v6494 = vmul.f32 %v6399, %v6479
        %v6495 = vmul.f32 %v6404, %v6479
        %v6496 = vmul.f32 %v6407, %v6479
        %v6497 = vmul.f32 %v6412, %v6479
        %v6498 = vmul.f32 %v6415, %v6479
        %v6499 = vmul.f32 %v6420, %v6479
        %v6500 = vmul.f32 %v6423, %v6479
        %v6501 = vmul.f32 %v6428, %v6479
        %v6502 = vmul.f32 %v6431, %v6479
        %v6503 = vmul.f32 %v6436, %v6479
        %v6504 = vmul.f32 %v6439, %v6479
        %v6505 = vmul.f32 %v6444, %v6479
        %v6506 = vmul.f32 %v6447, %v6479
        %v6507 = vmul.f32 %v6452, %v6479
        %v6508 = vmul.f32 %v6455, %v6479
        %v6509 = vmul.f32 %v6460, %v6479
        %v6510 = vmul.f32 %v6463, %v6479
        %v6511 = vmul.f32 %v6468, %v6479
        %v6512 = vmul.f32 %v6471, %v6479
        %v6513 = vld [vmem:[#allocation12] sm:$0x1]
        %v6515 = vlaneseq
        %v6516 = vshrl.u32 %v6515, 7
        %v6517 = vsub.s32 0, %v6516
        %v6518 = vrot.slane %v6513, %v6517
        %v6520 = vadd.f32 %v6481, %v6518
        %v6521 = vadd.f32 %v6482, %v6518
        %v6522 = vadd.f32 %v6483, %v6518
        %v6523 = vadd.f32 %v6484, %v6518
        %v6524 = vadd.f32 %v6485, %v6518
        %v6525 = vadd.f32 %v6486, %v6518
        %v6526 = vadd.f32 %v6487, %v6518
        %v6527 = vadd.f32 %v6488, %v6518
        %v6528 = vadd.f32 %v6489, %v6518
        %v6529 = vadd.f32 %v6490, %v6518
        %v6530 = vadd.f32 %v6491, %v6518
        %v6531 = vadd.f32 %v6492, %v6518
        %v6532 = vadd.f32 %v6493, %v6518
        %v6533 = vadd.f32 %v6494, %v6518
        %v6534 = vadd.f32 %v6495, %v6518
        %v6535 = vadd.f32 %v6496, %v6518
        %v6536 = vadd.f32 %v6497, %v6518
        %v6537 = vadd.f32 %v6498, %v6518
        %v6538 = vadd.f32 %v6499, %v6518
        %v6539 = vadd.f32 %v6500, %v6518
        %v6540 = vadd.f32 %v6501, %v6518
        %v6541 = vadd.f32 %v6502, %v6518
        %v6542 = vadd.f32 %v6503, %v6518
        %v6543 = vadd.f32 %v6504, %v6518
        %v6544 = vadd.f32 %v6505, %v6518
        %v6545 = vadd.f32 %v6506, %v6518
        %v6546 = vadd.f32 %v6507, %v6518
        %v6547 = vadd.f32 %v6508, %v6518
        %v6548 = vadd.f32 %v6509, %v6518
        %v6549 = vadd.f32 %v6510, %v6518
        %v6550 = vadd.f32 %v6511, %v6518
        %v6551 = vadd.f32 %v6512, %v6518
        %v6552 = vmax.f32 %v6520, 0.0
        %v6553 = vmax.f32 %v6521, 0.0
        %v6554 = vmax.f32 %v6522, 0.0
        %v6555 = vmax.f32 %v6523, 0.0
        %v6556 = vmax.f32 %v6524, 0.0
        %v6557 = vmax.f32 %v6525, 0.0
        %v6558 = vmax.f32 %v6526, 0.0
        %v6559 = vmax.f32 %v6527, 0.0
        %v6560 = vmax.f32 %v6528, 0.0
        %v6561 = vmax.f32 %v6529, 0.0
        %v6562 = vmax.f32 %v6530, 0.0
        %v6563 = vmax.f32 %v6531, 0.0
        %v6564 = vmax.f32 %v6532, 0.0
        %v6565 = vmax.f32 %v6533, 0.0
        %v6566 = vmax.f32 %v6534, 0.0
        %v6567 = vmax.f32 %v6535, 0.0
        %v6568 = vmax.f32 %v6536, 0.0
        %v6569 = vmax.f32 %v6537, 0.0
        %v6570 = vmax.f32 %v6538, 0.0
        %v6571 = vmax.f32 %v6539, 0.0
        %v6572 = vmax.f32 %v6540, 0.0
        %v6573 = vmax.f32 %v6541, 0.0
        %v6574 = vmax.f32 %v6542, 0.0
        %v6575 = vmax.f32 %v6543, 0.0
        %v6576 = vmax.f32 %v6544, 0.0
        %v6577 = vmax.f32 %v6545, 0.0
        %v6578 = vmax.f32 %v6546, 0.0
        %v6579 = vmax.f32 %v6547, 0.0
        %v6580 = vmax.f32 %v6548, 0.0
        %v6581 = vmax.f32 %v6549, 0.0
        %v6582 = vmax.f32 %v6550, 0.0
        %v6583 = vmax.f32 %v6551, 0.0
        %v6584 = vrot.slane %v6552, 7
        %v6585 = vrot.slane %v6553, 7
        %v6586 = vrot.slane %v6554, 7
        %v6587 = vrot.slane %v6555, 7
        %v6588 = vrot.slane %v6556, 7
        %v6589 = vrot.slane %v6557, 7
        %v6590 = vrot.slane %v6558, 7
        %v6591 = vrot.slane %v6559, 7
        %v6592 = vrot.slane %v6560, 7
        %v6593 = vrot.slane %v6561, 7
        %v6594 = vrot.slane %v6562, 7
        %v6595 = vrot.slane %v6563, 7
        %v6596 = vrot.slane %v6564, 7
        %v6597 = vrot.slane %v6565, 7
        %v6598 = vrot.slane %v6566, 7
        %v6599 = vrot.slane %v6567, 7
        %v6600 = vrot.slane %v6568, 7
        %v6601 = vrot.slane %v6569, 7
        %v6602 = vrot.slane %v6570, 7
        %v6603 = vrot.slane %v6571, 7
        %v6604 = vrot.slane %v6572, 7
        %v6605 = vrot.slane %v6573, 7
        %v6606 = vrot.slane %v6574, 7
        %v6607 = vrot.slane %v6575, 7
        %v6608 = vrot.slane %v6576, 7
        %v6609 = vrot.slane %v6577, 7
        %v6610 = vrot.slane %v6578, 7
        %v6611 = vrot.slane %v6579, 7
        %v6612 = vrot.slane %v6580, 7
        %v6613 = vrot.slane %v6581, 7
        %v6614 = vrot.slane %v6582, 7
        %v6615 = vrot.slane %v6583, 7
        %v6616 = vsel %vm1056, %v6614, %v6615
        %v6617 = vsel %vm1056, %v6613, %v6614
        %v6618 = vsel %vm1056, %v6612, %v6613
        %v6619 = vsel %vm1056, %v6611, %v6612
        %v6620 = vsel %vm1056, %v6610, %v6611
        %v6621 = vsel %vm1056, %v6609, %v6610
        %v6622 = vsel %vm1056, %v6608, %v6609
        %v6623 = vsel %vm1056, %v6607, %v6608
        %v6624 = vsel %vm1056, %v6606, %v6607
        %v6625 = vsel %vm1056, %v6605, %v6606
        %v6626 = vsel %vm1056, %v6604, %v6605
        %v6627 = vsel %vm1056, %v6603, %v6604
        %v6628 = vsel %vm1056, %v6602, %v6603
        %v6629 = vsel %vm1056, %v6601, %v6602
        %v6630 = vsel %vm1056, %v6600, %v6601
        %v6631 = vsel %vm1056, %v6599, %v6600
        %v6632 = vsel %vm1056, %v6598, %v6599
        %v6633 = vsel %vm1056, %v6597, %v6598
        %v6634 = vsel %vm1056, %v6596, %v6597
        %v6635 = vsel %vm1056, %v6595, %v6596
        %v6636 = vsel %vm1056, %v6594, %v6595
        %v6637 = vsel %vm1056, %v6593, %v6594
        %v6638 = vsel %vm1056, %v6592, %v6593
        %v6639 = vsel %vm1056, %v6591, %v6592
        %v6640 = vsel %vm1056, %v6590, %v6591
        %v6641 = vsel %vm1056, %v6589, %v6590
        %v6642 = vsel %vm1056, %v6588, %v6589
        %v6643 = vsel %vm1056, %v6587, %v6588
        %v6644 = vsel %vm1056, %v6586, %v6587
        %v6645 = vsel %vm1056, %v6585, %v6586
        %v6646 = vsel %vm1056, %v6584, %v6585
        %v6647 = vsel %vm1056, %v6615, %v6584
        %v6648 = vmul.f32 %v6617, %v1092
        %v6649 = vmul.f32 %v6616, %v1097
        %v6650 = vmul.f32 %v6647, %v1102
        %v6651 = vmul.f32 %v6646, %v1107
        %v6652 = vmul.f32 %v6645, %v1112
        %v6653 = vmul.f32 %v6644, %v1117
        %v6654 = vmul.f32 %v6643, %v1122
        %v6655 = vmul.f32 %v6642, %v1127
        %v6656 = vmul.f32 %v6641, %v1132
        %v6657 = vmul.f32 %v6640, %v1137
        %v6658 = vmul.f32 %v6639, %v1142
        %v6659 = vmul.f32 %v6638, %v1147
        %v6660 = vmul.f32 %v6637, %v1152
        %v6661 = vmul.f32 %v6636, %v1157
        %v6662 = vmul.f32 %v6635, %v1162
        %v6663 = vmul.f32 %v6634, %v1167
        %v6664 = vmul.f32 %v6633, %v1172
        %v6665 = vmul.f32 %v6632, %v1177
        %v6666 = vmul.f32 %v6631, %v1182
        %v6667 = vmul.f32 %v6630, %v1187
        %v6668 = vmul.f32 %v6629, %v1192
        %v6669 = vmul.f32 %v6628, %v1197
        %v6670 = vmul.f32 %v6627, %v1202
        %v6671 = vmul.f32 %v6626, %v1207
        %v6672 = vmul.f32 %v6625, %v1212
        %v6673 = vmul.f32 %v6624, %v1217
        %v6674 = vmul.f32 %v6623, %v1222
        %v6675 = vmul.f32 %v6622, %v1227
        %v6676 = vmul.f32 %v6621, %v1232
        %v6677 = vmul.f32 %v6620, %v1237
        %v6678 = vmul.f32 %v6619, %v1242
        %v6679 = vmul.f32 %v6618, %v1247
        %v6680 = vmul.f32 %v6582, %v1284
        %v6681 = vmul.f32 %v6583, %v1289
        %v6682 = vmul.f32 %v6552, %v1294
        %v6683 = vmul.f32 %v6553, %v1299
        %v6684 = vmul.f32 %v6554, %v1304
        %v6685 = vmul.f32 %v6555, %v1309
        %v6686 = vmul.f32 %v6556, %v1314
        %v6687 = vmul.f32 %v6557, %v1319
        %v6688 = vmul.f32 %v6558, %v1324
        %v6689 = vmul.f32 %v6559, %v1329
        %v6690 = vmul.f32 %v6560, %v1334
        %v6691 = vmul.f32 %v6561, %v1339
        %v6692 = vmul.f32 %v6562, %v1344
        %v6693 = vmul.f32 %v6563, %v1349
        %v6694 = vmul.f32 %v6564, %v1354
        %v6695 = vmul.f32 %v6565, %v1359
        %v6696 = vmul.f32 %v6566, %v1364
        %v6697 = vmul.f32 %v6567, %v1369
        %v6698 = vmul.f32 %v6568, %v1374
        %v6699 = vmul.f32 %v6569, %v1379
        %v6700 = vmul.f32 %v6570, %v1384
        %v6701 = vmul.f32 %v6571, %v1389
        %v6702 = vmul.f32 %v6572, %v1394
        %v6703 = vmul.f32 %v6573, %v1399
        %v6704 = vmul.f32 %v6574, %v1404
        %v6705 = vmul.f32 %v6575, %v1409
        %v6706 = vmul.f32 %v6576, %v1414
        %v6707 = vmul.f32 %v6577, %v1419
        %v6708 = vmul.f32 %v6578, %v1424
        %v6709 = vmul.f32 %v6579, %v1429
        %v6710 = vmul.f32 %v6580, %v1434
        %v6711 = vmul.f32 %v6581, %v1439
        %v6712 = vrot.slane %v6552, 1
        %v6713 = vrot.slane %v6553, 1
        %v6714 = vrot.slane %v6554, 1
        %v6715 = vrot.slane %v6555, 1
        %v6716 = vrot.slane %v6556, 1
        %v6717 = vrot.slane %v6557, 1
        %v6718 = vrot.slane %v6558, 1
        %v6719 = vrot.slane %v6559, 1
        %v6720 = vrot.slane %v6560, 1
        %v6721 = vrot.slane %v6561, 1
        %v6722 = vrot.slane %v6562, 1
        %v6723 = vrot.slane %v6563, 1
        %v6724 = vrot.slane %v6564, 1
        %v6725 = vrot.slane %v6565, 1
        %v6726 = vrot.slane %v6566, 1
        %v6727 = vrot.slane %v6567, 1
        %v6728 = vrot.slane %v6568, 1
        %v6729 = vrot.slane %v6569, 1
        %v6730 = vrot.slane %v6570, 1
        %v6731 = vrot.slane %v6571, 1
        %v6732 = vrot.slane %v6572, 1
        %v6733 = vrot.slane %v6573, 1
        %v6734 = vrot.slane %v6574, 1
        %v6735 = vrot.slane %v6575, 1
        %v6736 = vrot.slane %v6576, 1
        %v6737 = vrot.slane %v6577, 1
        %v6738 = vrot.slane %v6578, 1
        %v6739 = vrot.slane %v6579, 1
        %v6740 = vrot.slane %v6580, 1
        %v6741 = vrot.slane %v6581, 1
        %v6742 = vrot.slane %v6582, 1
        %v6743 = vrot.slane %v6583, 1
        %v6744 = vsel %vm1505, %v6742, %v6743
        %v6745 = vsel %vm1505, %v6741, %v6742
        %v6746 = vsel %vm1505, %v6740, %v6741
        %v6747 = vsel %vm1505, %v6739, %v6740
        %v6748 = vsel %vm1505, %v6738, %v6739
        %v6749 = vsel %vm1505, %v6737, %v6738
        %v6750 = vsel %vm1505, %v6736, %v6737
        %v6751 = vsel %vm1505, %v6735, %v6736
        %v6752 = vsel %vm1505, %v6734, %v6735
        %v6753 = vsel %vm1505, %v6733, %v6734
        %v6754 = vsel %vm1505, %v6732, %v6733
        %v6755 = vsel %vm1505, %v6731, %v6732
        %v6756 = vsel %vm1505, %v6730, %v6731
        %v6757 = vsel %vm1505, %v6729, %v6730
        %v6758 = vsel %vm1505, %v6728, %v6729
        %v6759 = vsel %vm1505, %v6727, %v6728
        %v6760 = vsel %vm1505, %v6726, %v6727
        %v6761 = vsel %vm1505, %v6725, %v6726
        %v6762 = vsel %vm1505, %v6724, %v6725
        %v6763 = vsel %vm1505, %v6723, %v6724
        %v6764 = vsel %vm1505, %v6722, %v6723
        %v6765 = vsel %vm1505, %v6721, %v6722
        %v6766 = vsel %vm1505, %v6720, %v6721
        %v6767 = vsel %vm1505, %v6719, %v6720
        %v6768 = vsel %vm1505, %v6718, %v6719
        %v6769 = vsel %vm1505, %v6717, %v6718
        %v6770 = vsel %vm1505, %v6716, %v6717
        %v6771 = vsel %vm1505, %v6715, %v6716
        %v6772 = vsel %vm1505, %v6714, %v6715
        %v6773 = vsel %vm1505, %v6713, %v6714
        %v6774 = vsel %vm1505, %v6712, %v6713
        %v6775 = vsel %vm1505, %v6743, %v6712
        %v6776 = vmul.f32 %v6744, %v1541
        %v6777 = vmul.f32 %v6775, %v1546
        %v6778 = vmul.f32 %v6774, %v1551
        %v6779 = vmul.f32 %v6773, %v1556
        %v6780 = vmul.f32 %v6772, %v1561
        %v6781 = vmul.f32 %v6771, %v1566
        %v6782 = vmul.f32 %v6770, %v1571
        %v6783 = vmul.f32 %v6769, %v1576
        %v6784 = vmul.f32 %v6768, %v1581
        %v6785 = vmul.f32 %v6767, %v1586
        %v6786 = vmul.f32 %v6766, %v1591
        %v6787 = vmul.f32 %v6765, %v1596
        %v6788 = vmul.f32 %v6764, %v1601
        %v6789 = vmul.f32 %v6763, %v1606
        %v6790 = vmul.f32 %v6762, %v1611
        %v6791 = vmul.f32 %v6761, %v1616
        %v6792 = vmul.f32 %v6760, %v1621
        %v6793 = vmul.f32 %v6759, %v1626
        %v6794 = vmul.f32 %v6758, %v1631
        %v6795 = vmul.f32 %v6757, %v1636
        %v6796 = vmul.f32 %v6756, %v1641
        %v6797 = vmul.f32 %v6755, %v1646
        %v6798 = vmul.f32 %v6754, %v1651
        %v6799 = vmul.f32 %v6753, %v1656
        %v6800 = vmul.f32 %v6752, %v1661
        %v6801 = vmul.f32 %v6751, %v1666
        %v6802 = vmul.f32 %v6750, %v1671
        %v6803 = vmul.f32 %v6749, %v1676
        %v6804 = vmul.f32 %v6748, %v1681
        %v6805 = vmul.f32 %v6747, %v1686
        %v6806 = vmul.f32 %v6746, %v1691
        %v6807 = vmul.f32 %v6745, %v1696
        %v6808 = vmul.f32 %v6647, %v1733
        %v6809 = vmul.f32 %v6646, %v1738
        %v6810 = vmul.f32 %v6645, %v1743
        %v6811 = vmul.f32 %v6644, %v1748
        %v6812 = vmul.f32 %v6643, %v1753
        %v6813 = vmul.f32 %v6642, %v1758
        %v6814 = vmul.f32 %v6641, %v1763
        %v6815 = vmul.f32 %v6640, %v1768
        %v6816 = vmul.f32 %v6639, %v1773
        %v6817 = vmul.f32 %v6638, %v1778
        %v6818 = vmul.f32 %v6637, %v1783
        %v6819 = vmul.f32 %v6636, %v1788
        %v6820 = vmul.f32 %v6635, %v1793
        %v6821 = vmul.f32 %v6634, %v1798
        %v6822 = vmul.f32 %v6633, %v1803
        %v6823 = vmul.f32 %v6632, %v1808
        %v6824 = vmul.f32 %v6631, %v1813
        %v6825 = vmul.f32 %v6630, %v1818
        %v6826 = vmul.f32 %v6629, %v1823
        %v6827 = vmul.f32 %v6628, %v1828
        %v6828 = vmul.f32 %v6627, %v1833
        %v6829 = vmul.f32 %v6626, %v1838
        %v6830 = vmul.f32 %v6625, %v1843
        %v6831 = vmul.f32 %v6624, %v1848
        %v6832 = vmul.f32 %v6623, %v1853
        %v6833 = vmul.f32 %v6622, %v1858
        %v6834 = vmul.f32 %v6621, %v1863
        %v6835 = vmul.f32 %v6620, %v1868
        %v6836 = vmul.f32 %v6619, %v1873
        %v6837 = vmul.f32 %v6618, %v1878
        %v6838 = vmul.f32 %v6617, %v1883
        %v6839 = vmul.f32 %v6616, %v1888
        %v6840 = vmul.f32 %v6552, %v1925
        %v6841 = vmul.f32 %v6553, %v1930
        %v6842 = vmul.f32 %v6554, %v1935
        %v6843 = vmul.f32 %v6555, %v1940
        %v6844 = vmul.f32 %v6556, %v1945
        %v6845 = vmul.f32 %v6557, %v1950
        %v6846 = vmul.f32 %v6558, %v1955
        %v6847 = vmul.f32 %v6559, %v1960
        %v6848 = vmul.f32 %v6560, %v1965
        %v6849 = vmul.f32 %v6561, %v1970
        %v6850 = vmul.f32 %v6562, %v1975
        %v6851 = vmul.f32 %v6563, %v1980
        %v6852 = vmul.f32 %v6564, %v1985
        %v6853 = vmul.f32 %v6565, %v1990
        %v6854 = vmul.f32 %v6566, %v1995
        %v6855 = vmul.f32 %v6567, %v2000
        %v6856 = vmul.f32 %v6568, %v2005
        %v6857 = vmul.f32 %v6569, %v2010
        %v6858 = vmul.f32 %v6570, %v2015
        %v6859 = vmul.f32 %v6571, %v2020
        %v6860 = vmul.f32 %v6572, %v2025
        %v6861 = vmul.f32 %v6573, %v2030
        %v6862 = vmul.f32 %v6574, %v2035
        %v6863 = vmul.f32 %v6575, %v2040
        %v6864 = vmul.f32 %v6576, %v2045
        %v6865 = vmul.f32 %v6577, %v2050
        %v6866 = vmul.f32 %v6578, %v2055
        %v6867 = vmul.f32 %v6579, %v2060
        %v6868 = vmul.f32 %v6580, %v2065
        %v6869 = vmul.f32 %v6581, %v2070
        %v6870 = vmul.f32 %v6582, %v2075
        %v6871 = vmul.f32 %v6583, %v2080
        %v6872 = vmul.f32 %v6774, %v2117
        %v6873 = vmul.f32 %v6773, %v2122
        %v6874 = vmul.f32 %v6772, %v2127
        %v6875 = vmul.f32 %v6771, %v2132
        %v6876 = vmul.f32 %v6770, %v2137
        %v6877 = vmul.f32 %v6769, %v2142
        %v6878 = vmul.f32 %v6768, %v2147
        %v6879 = vmul.f32 %v6767, %v2152
        %v6880 = vmul.f32 %v6766, %v2157
        %v6881 = vmul.f32 %v6765, %v2162
        %v6882 = vmul.f32 %v6764, %v2167
        %v6883 = vmul.f32 %v6763, %v2172
        %v6884 = vmul.f32 %v6762, %v2177
        %v6885 = vmul.f32 %v6761, %v2182
        %v6886 = vmul.f32 %v6760, %v2187
        %v6887 = vmul.f32 %v6759, %v2192
        %v6888 = vmul.f32 %v6758, %v2197
        %v6889 = vmul.f32 %v6757, %v2202
        %v6890 = vmul.f32 %v6756, %v2207
        %v6891 = vmul.f32 %v6755, %v2212
        %v6892 = vmul.f32 %v6754, %v2217
        %v6893 = vmul.f32 %v6753, %v2222
        %v6894 = vmul.f32 %v6752, %v2227
        %v6895 = vmul.f32 %v6751, %v2232
        %v6896 = vmul.f32 %v6750, %v2237
        %v6897 = vmul.f32 %v6749, %v2242
        %v6898 = vmul.f32 %v6748, %v2247
        %v6899 = vmul.f32 %v6747, %v2252
        %v6900 = vmul.f32 %v6746, %v2257
        %v6901 = vmul.f32 %v6745, %v2262
        %v6902 = vmul.f32 %v6744, %v2267
        %v6903 = vmul.f32 %v6775, %v2272
        %v6904 = vmul.f32 %v6645, %v2309
        %v6905 = vmul.f32 %v6644, %v2314
        %v6906 = vmul.f32 %v6643, %v2319
        %v6907 = vmul.f32 %v6642, %v2324
        %v6908 = vmul.f32 %v6641, %v2329
        %v6909 = vmul.f32 %v6640, %v2334
        %v6910 = vmul.f32 %v6639, %v2339
        %v6911 = vmul.f32 %v6638, %v2344
        %v6912 = vmul.f32 %v6637, %v2349
        %v6913 = vmul.f32 %v6636, %v2354
        %v6914 = vmul.f32 %v6635, %v2359
        %v6915 = vmul.f32 %v6634, %v2364
        %v6916 = vmul.f32 %v6633, %v2369
        %v6917 = vmul.f32 %v6632, %v2374
        %v6918 = vmul.f32 %v6631, %v2379
        %v6919 = vmul.f32 %v6630, %v2384
        %v6920 = vmul.f32 %v6629, %v2389
        %v6921 = vmul.f32 %v6628, %v2394
        %v6922 = vmul.f32 %v6627, %v2399
        %v6923 = vmul.f32 %v6626, %v2404
        %v6924 = vmul.f32 %v6625, %v2409
        %v6925 = vmul.f32 %v6624, %v2414
        %v6926 = vmul.f32 %v6623, %v2419
        %v6927 = vmul.f32 %v6622, %v2424
        %v6928 = vmul.f32 %v6621, %v2429
        %v6929 = vmul.f32 %v6620, %v2434
        %v6930 = vmul.f32 %v6619, %v2439
        %v6931 = vmul.f32 %v6618, %v2444
        %v6932 = vmul.f32 %v6617, %v2449
        %v6933 = vmul.f32 %v6616, %v2454
        %v6934 = vmul.f32 %v6647, %v2459
        %v6935 = vmul.f32 %v6646, %v2464
        %v6936 = vmul.f32 %v6554, %v2501
        %v6937 = vmul.f32 %v6555, %v2506
        %v6938 = vmul.f32 %v6556, %v2511
        %v6939 = vmul.f32 %v6557, %v2516
        %v6940 = vmul.f32 %v6558, %v2521
        %v6941 = vmul.f32 %v6559, %v2526
        %v6942 = vmul.f32 %v6560, %v2531
        %v6943 = vmul.f32 %v6561, %v2536
        %v6944 = vmul.f32 %v6562, %v2541
        %v6945 = vmul.f32 %v6563, %v2546
        %v6946 = vmul.f32 %v6564, %v2551
        %v6947 = vmul.f32 %v6565, %v2556
        %v6948 = vmul.f32 %v6566, %v2561
        %v6949 = vmul.f32 %v6567, %v2566
        %v6950 = vmul.f32 %v6568, %v2571
        %v6951 = vmul.f32 %v6569, %v2576
        %v6952 = vmul.f32 %v6570, %v2581
        %v6953 = vmul.f32 %v6571, %v2586
        %v6954 = vmul.f32 %v6572, %v2591
        %v6955 = vmul.f32 %v6573, %v2596
        %v6956 = vmul.f32 %v6574, %v2601
        %v6957 = vmul.f32 %v6575, %v2606
        %v6958 = vmul.f32 %v6576, %v2611
        %v6959 = vmul.f32 %v6577, %v2616
        %v6960 = vmul.f32 %v6578, %v2621
        %v6961 = vmul.f32 %v6579, %v2626
        %v6962 = vmul.f32 %v6580, %v2631
        %v6963 = vmul.f32 %v6581, %v2636
        %v6964 = vmul.f32 %v6582, %v2641
        %v6965 = vmul.f32 %v6583, %v2646
        %v6966 = vmul.f32 %v6552, %v2651
        %v6967 = vmul.f32 %v6553, %v2656
        %v6968 = vmul.f32 %v6772, %v2693
        %v6969 = vmul.f32 %v6771, %v2698
        %v6970 = vmul.f32 %v6770, %v2703
        %v6971 = vmul.f32 %v6769, %v2708
        %v6972 = vmul.f32 %v6768, %v2713
        %v6973 = vmul.f32 %v6767, %v2718
        %v6974 = vmul.f32 %v6766, %v2723
        %v6975 = vmul.f32 %v6765, %v2728
        %v6976 = vmul.f32 %v6764, %v2733
        %v6977 = vmul.f32 %v6763, %v2738
        %v6978 = vmul.f32 %v6762, %v2743
        %v6979 = vmul.f32 %v6761, %v2748
        %v6980 = vmul.f32 %v6760, %v2753
        %v6981 = vmul.f32 %v6759, %v2758
        %v6982 = vmul.f32 %v6758, %v2763
        %v6983 = vmul.f32 %v6757, %v2768
        %v6984 = vmul.f32 %v6756, %v2773
        %v6985 = vmul.f32 %v6755, %v2778
        %v6986 = vmul.f32 %v6754, %v2783
        %v6987 = vmul.f32 %v6753, %v2788
        %v6988 = vmul.f32 %v6752, %v2793
        %v6989 = vmul.f32 %v6751, %v2798
        %v6990 = vmul.f32 %v6750, %v2803
        %v6991 = vmul.f32 %v6749, %v2808
        %v6992 = vmul.f32 %v6748, %v2813
        %v6993 = vmul.f32 %v6747, %v2818
        %v6994 = vmul.f32 %v6746, %v2823
        %v6995 = vmul.f32 %v6745, %v2828
        %v6996 = vmul.f32 %v6744, %v2833
        %v6997 = vmul.f32 %v6775, %v2838
        %v6998 = vmul.f32 %v6774, %v2843
        %v6999 = vmul.f32 %v6773, %v2848
        %7032 = vrot.lane.b32.xlu0 %v6680, 2
        %v7033 = vpop.permute.xlu0 %7032
        %7034 = vrot.lane.b32.xlu0 %v6681, 2
        %v7035 = vpop.permute.xlu0 %7034
        %7036 = vrot.lane.b32.xlu0 %v6682, 2
        %v7037 = vpop.permute.xlu0 %7036
        %7038 = vrot.lane.b32.xlu0 %v6683, 2
        %v7039 = vpop.permute.xlu0 %7038
        %7040 = vrot.lane.b32.xlu0 %v6684, 2
        %v7041 = vpop.permute.xlu0 %7040
        %7042 = vrot.lane.b32.xlu0 %v6685, 2
        %v7043 = vpop.permute.xlu0 %7042
        %7044 = vrot.lane.b32.xlu0 %v6686, 2
        %v7045 = vpop.permute.xlu0 %7044
        %7046 = vrot.lane.b32.xlu0 %v6687, 2
        %v7047 = vpop.permute.xlu0 %7046
        %7048 = vrot.lane.b32.xlu0 %v6688, 2
        %v7049 = vpop.permute.xlu0 %7048
        %7050 = vrot.lane.b32.xlu0 %v6689, 2
        %v7051 = vpop.permute.xlu0 %7050
        %7052 = vrot.lane.b32.xlu0 %v6690, 2
        %v7053 = vpop.permute.xlu0 %7052
        %7054 = vrot.lane.b32.xlu0 %v6691, 2
        %v7055 = vpop.permute.xlu0 %7054
        %7056 = vrot.lane.b32.xlu0 %v6692, 2
        %v7057 = vpop.permute.xlu0 %7056
        %7058 = vrot.lane.b32.xlu0 %v6693, 2
        %v7059 = vpop.permute.xlu0 %7058
        %7060 = vrot.lane.b32.xlu0 %v6694, 2
        %v7061 = vpop.permute.xlu0 %7060
        %7062 = vrot.lane.b32.xlu0 %v6695, 2
        %v7063 = vpop.permute.xlu0 %7062
        %7064 = vrot.lane.b32.xlu0 %v6696, 2
        %v7065 = vpop.permute.xlu0 %7064
        %7066 = vrot.lane.b32.xlu0 %v6697, 2
        %v7067 = vpop.permute.xlu0 %7066
        %7068 = vrot.lane.b32.xlu0 %v6698, 2
        %v7069 = vpop.permute.xlu0 %7068
        %7070 = vrot.lane.b32.xlu0 %v6699, 2
        %v7071 = vpop.permute.xlu0 %7070
        %7072 = vrot.lane.b32.xlu0 %v6700, 2
        %v7073 = vpop.permute.xlu0 %7072
        %7074 = vrot.lane.b32.xlu0 %v6701, 2
        %v7075 = vpop.permute.xlu0 %7074
        %7076 = vrot.lane.b32.xlu0 %v6702, 2
        %v7077 = vpop.permute.xlu0 %7076
        %7078 = vrot.lane.b32.xlu0 %v6703, 2
        %v7079 = vpop.permute.xlu0 %7078
        %7080 = vrot.lane.b32.xlu0 %v6704, 2
        %v7081 = vpop.permute.xlu0 %7080
        %7082 = vrot.lane.b32.xlu0 %v6705, 2
        %v7083 = vpop.permute.xlu0 %7082
        %7084 = vrot.lane.b32.xlu0 %v6706, 2
        %v7085 = vpop.permute.xlu0 %7084
        %7086 = vrot.lane.b32.xlu0 %v6707, 2
        %v7087 = vpop.permute.xlu0 %7086
        %7088 = vrot.lane.b32.xlu0 %v6708, 2
        %v7089 = vpop.permute.xlu0 %7088
        %7090 = vrot.lane.b32.xlu0 %v6709, 2
        %v7091 = vpop.permute.xlu0 %7090
        %7092 = vrot.lane.b32.xlu0 %v6710, 2
        %v7093 = vpop.permute.xlu0 %7092
        %7094 = vrot.lane.b32.xlu0 %v6711, 2
        %v7095 = vpop.permute.xlu0 %7094
        %7160 = vrot.lane.b32.xlu0 %v6776, 4
        %v7161 = vpop.permute.xlu0 %7160
        %7162 = vrot.lane.b32.xlu0 %v6777, 4
        %v7163 = vpop.permute.xlu0 %7162
        %7164 = vrot.lane.b32.xlu0 %v6778, 4
        %v7165 = vpop.permute.xlu0 %7164
        %7166 = vrot.lane.b32.xlu0 %v6779, 4
        %v7167 = vpop.permute.xlu0 %7166
        %7168 = vrot.lane.b32.xlu0 %v6780, 4
        %v7169 = vpop.permute.xlu0 %7168
        %7170 = vrot.lane.b32.xlu0 %v6781, 4
        %v7171 = vpop.permute.xlu0 %7170
        %7172 = vrot.lane.b32.xlu0 %v6782, 4
        %v7173 = vpop.permute.xlu0 %7172
        %7174 = vrot.lane.b32.xlu0 %v6783, 4
        %v7175 = vpop.permute.xlu0 %7174
        %7176 = vrot.lane.b32.xlu0 %v6784, 4
        %v7177 = vpop.permute.xlu0 %7176
        %7178 = vrot.lane.b32.xlu0 %v6785, 4
        %v7179 = vpop.permute.xlu0 %7178
        %7180 = vrot.lane.b32.xlu0 %v6786, 4
        %v7181 = vpop.permute.xlu0 %7180
        %7182 = vrot.lane.b32.xlu0 %v6787, 4
        %v7183 = vpop.permute.xlu0 %7182
        %7184 = vrot.lane.b32.xlu0 %v6788, 4
        %v7185 = vpop.permute.xlu0 %7184
        %7186 = vrot.lane.b32.xlu0 %v6789, 4
        %v7187 = vpop.permute.xlu0 %7186
        %7188 = vrot.lane.b32.xlu0 %v6790, 4
        %v7189 = vpop.permute.xlu0 %7188
        %7190 = vrot.lane.b32.xlu0 %v6791, 4
        %v7191 = vpop.permute.xlu0 %7190
        %7192 = vrot.lane.b32.xlu0 %v6792, 4
        %v7193 = vpop.permute.xlu0 %7192
        %7194 = vrot.lane.b32.xlu0 %v6793, 4
        %v7195 = vpop.permute.xlu0 %7194
        %7196 = vrot.lane.b32.xlu0 %v6794, 4
        %v7197 = vpop.permute.xlu0 %7196
        %7198 = vrot.lane.b32.xlu0 %v6795, 4
        %v7199 = vpop.permute.xlu0 %7198
        %7200 = vrot.lane.b32.xlu0 %v6796, 4
        %v7201 = vpop.permute.xlu0 %7200
        %7202 = vrot.lane.b32.xlu0 %v6797, 4
        %v7203 = vpop.permute.xlu0 %7202
        %7204 = vrot.lane.b32.xlu0 %v6798, 4
        %v7205 = vpop.permute.xlu0 %7204
        %7206 = vrot.lane.b32.xlu0 %v6799, 4
        %v7207 = vpop.permute.xlu0 %7206
        %7208 = vrot.lane.b32.xlu0 %v6800, 4
        %v7209 = vpop.permute.xlu0 %7208
        %7210 = vrot.lane.b32.xlu0 %v6801, 4
        %v7211 = vpop.permute.xlu0 %7210
        %7212 = vrot.lane.b32.xlu0 %v6802, 4
        %v7213 = vpop.permute.xlu0 %7212
        %7214 = vrot.lane.b32.xlu0 %v6803, 4
        %v7215 = vpop.permute.xlu0 %7214
        %7216 = vrot.lane.b32.xlu0 %v6804, 4
        %v7217 = vpop.permute.xlu0 %7216
        %7218 = vrot.lane.b32.xlu0 %v6805, 4
        %v7219 = vpop.permute.xlu0 %7218
        %7220 = vrot.lane.b32.xlu0 %v6806, 4
        %v7221 = vpop.permute.xlu0 %7220
        %7222 = vrot.lane.b32.xlu0 %v6807, 4
        %v7223 = vpop.permute.xlu0 %7222
        %7288 = vrot.lane.b32.xlu0 %v6808, 6
        %v7289 = vpop.permute.xlu0 %7288
        %7290 = vrot.lane.b32.xlu0 %v6809, 6
        %v7291 = vpop.permute.xlu0 %7290
        %7292 = vrot.lane.b32.xlu0 %v6810, 6
        %v7293 = vpop.permute.xlu0 %7292
        %7294 = vrot.lane.b32.xlu0 %v6811, 6
        %v7295 = vpop.permute.xlu0 %7294
        %7296 = vrot.lane.b32.xlu0 %v6812, 6
        %v7297 = vpop.permute.xlu0 %7296
        %7298 = vrot.lane.b32.xlu0 %v6813, 6
        %v7299 = vpop.permute.xlu0 %7298
        %7300 = vrot.lane.b32.xlu0 %v6814, 6
        %v7301 = vpop.permute.xlu0 %7300
        %7302 = vrot.lane.b32.xlu0 %v6815, 6
        %v7303 = vpop.permute.xlu0 %7302
        %7304 = vrot.lane.b32.xlu0 %v6816, 6
        %v7305 = vpop.permute.xlu0 %7304
        %7306 = vrot.lane.b32.xlu0 %v6817, 6
        %v7307 = vpop.permute.xlu0 %7306
        %7308 = vrot.lane.b32.xlu0 %v6818, 6
        %v7309 = vpop.permute.xlu0 %7308
        %7310 = vrot.lane.b32.xlu0 %v6819, 6
        %v7311 = vpop.permute.xlu0 %7310
        %7312 = vrot.lane.b32.xlu0 %v6820, 6
        %v7313 = vpop.permute.xlu0 %7312
        %7314 = vrot.lane.b32.xlu0 %v6821, 6
        %v7315 = vpop.permute.xlu0 %7314
        %7316 = vrot.lane.b32.xlu0 %v6822, 6
        %v7317 = vpop.permute.xlu0 %7316
        %7318 = vrot.lane.b32.xlu0 %v6823, 6
        %v7319 = vpop.permute.xlu0 %7318
        %7320 = vrot.lane.b32.xlu0 %v6824, 6
        %v7321 = vpop.permute.xlu0 %7320
        %7322 = vrot.lane.b32.xlu0 %v6825, 6
        %v7323 = vpop.permute.xlu0 %7322
        %7324 = vrot.lane.b32.xlu0 %v6826, 6
        %v7325 = vpop.permute.xlu0 %7324
        %7326 = vrot.lane.b32.xlu0 %v6827, 6
        %v7327 = vpop.permute.xlu0 %7326
        %7328 = vrot.lane.b32.xlu0 %v6828, 6
        %v7329 = vpop.permute.xlu0 %7328
        %7330 = vrot.lane.b32.xlu0 %v6829, 6
        %v7331 = vpop.permute.xlu0 %7330
        %7332 = vrot.lane.b32.xlu0 %v6830, 6
        %v7333 = vpop.permute.xlu0 %7332
        %7334 = vrot.lane.b32.xlu0 %v6831, 6
        %v7335 = vpop.permute.xlu0 %7334
        %7336 = vrot.lane.b32.xlu0 %v6832, 6
        %v7337 = vpop.permute.xlu0 %7336
        %7338 = vrot.lane.b32.xlu0 %v6833, 6
        %v7339 = vpop.permute.xlu0 %7338
        %7340 = vrot.lane.b32.xlu0 %v6834, 6
        %v7341 = vpop.permute.xlu0 %7340
        %7342 = vrot.lane.b32.xlu0 %v6835, 6
        %v7343 = vpop.permute.xlu0 %7342
        %7344 = vrot.lane.b32.xlu0 %v6836, 6
        %v7345 = vpop.permute.xlu0 %7344
        %7346 = vrot.lane.b32.xlu0 %v6837, 6
        %v7347 = vpop.permute.xlu0 %7346
        %7348 = vrot.lane.b32.xlu0 %v6838, 6
        %v7349 = vpop.permute.xlu0 %7348
        %7350 = vrot.lane.b32.xlu0 %v6839, 6
        %v7351 = vpop.permute.xlu0 %7350
        %7416 = vrot.lane.b32.xlu0 %v6840, 8
        %v7417 = vpop.permute.xlu0 %7416
        %7418 = vrot.lane.b32.xlu0 %v6841, 8
        %v7419 = vpop.permute.xlu0 %7418
        %7420 = vrot.lane.b32.xlu0 %v6842, 8
        %v7421 = vpop.permute.xlu0 %7420
        %7422 = vrot.lane.b32.xlu0 %v6843, 8
        %v7423 = vpop.permute.xlu0 %7422
        %7424 = vrot.lane.b32.xlu0 %v6844, 8
        %v7425 = vpop.permute.xlu0 %7424
        %7426 = vrot.lane.b32.xlu0 %v6845, 8
        %v7427 = vpop.permute.xlu0 %7426
        %7428 = vrot.lane.b32.xlu0 %v6846, 8
        %v7429 = vpop.permute.xlu0 %7428
        %7430 = vrot.lane.b32.xlu0 %v6847, 8
        %v7431 = vpop.permute.xlu0 %7430
        %7432 = vrot.lane.b32.xlu0 %v6848, 8
        %v7433 = vpop.permute.xlu0 %7432
        %7434 = vrot.lane.b32.xlu0 %v6849, 8
        %v7435 = vpop.permute.xlu0 %7434
        %7436 = vrot.lane.b32.xlu0 %v6850, 8
        %v7437 = vpop.permute.xlu0 %7436
        %7438 = vrot.lane.b32.xlu0 %v6851, 8
        %v7439 = vpop.permute.xlu0 %7438
        %7440 = vrot.lane.b32.xlu0 %v6852, 8
        %v7441 = vpop.permute.xlu0 %7440
        %7442 = vrot.lane.b32.xlu0 %v6853, 8
        %v7443 = vpop.permute.xlu0 %7442
        %7444 = vrot.lane.b32.xlu0 %v6854, 8
        %v7445 = vpop.permute.xlu0 %7444
        %7446 = vrot.lane.b32.xlu0 %v6855, 8
        %v7447 = vpop.permute.xlu0 %7446
        %7448 = vrot.lane.b32.xlu0 %v6856, 8
        %v7449 = vpop.permute.xlu0 %7448
        %7450 = vrot.lane.b32.xlu0 %v6857, 8
        %v7451 = vpop.permute.xlu0 %7450
        %7452 = vrot.lane.b32.xlu0 %v6858, 8
        %v7453 = vpop.permute.xlu0 %7452
        %7454 = vrot.lane.b32.xlu0 %v6859, 8
        %v7455 = vpop.permute.xlu0 %7454
        %7456 = vrot.lane.b32.xlu0 %v6860, 8
        %v7457 = vpop.permute.xlu0 %7456
        %7458 = vrot.lane.b32.xlu0 %v6861, 8
        %v7459 = vpop.permute.xlu0 %7458
        %7460 = vrot.lane.b32.xlu0 %v6862, 8
        %v7461 = vpop.permute.xlu0 %7460
        %7462 = vrot.lane.b32.xlu0 %v6863, 8
        %v7463 = vpop.permute.xlu0 %7462
        %7464 = vrot.lane.b32.xlu0 %v6864, 8
        %v7465 = vpop.permute.xlu0 %7464
        %7466 = vrot.lane.b32.xlu0 %v6865, 8
        %v7467 = vpop.permute.xlu0 %7466
        %7468 = vrot.lane.b32.xlu0 %v6866, 8
        %v7469 = vpop.permute.xlu0 %7468
        %7470 = vrot.lane.b32.xlu0 %v6867, 8
        %v7471 = vpop.permute.xlu0 %7470
        %7472 = vrot.lane.b32.xlu0 %v6868, 8
        %v7473 = vpop.permute.xlu0 %7472
        %7474 = vrot.lane.b32.xlu0 %v6869, 8
        %v7475 = vpop.permute.xlu0 %7474
        %7476 = vrot.lane.b32.xlu0 %v6870, 8
        %v7477 = vpop.permute.xlu0 %7476
        %7478 = vrot.lane.b32.xlu0 %v6871, 8
        %v7479 = vpop.permute.xlu0 %7478
        %7544 = vrot.lane.b32.xlu0 %v6872, 10
        %v7545 = vpop.permute.xlu0 %7544
        %7546 = vrot.lane.b32.xlu0 %v6873, 10
        %v7547 = vpop.permute.xlu0 %7546
        %7548 = vrot.lane.b32.xlu0 %v6874, 10
        %v7549 = vpop.permute.xlu0 %7548
        %7550 = vrot.lane.b32.xlu0 %v6875, 10
        %v7551 = vpop.permute.xlu0 %7550
        %7552 = vrot.lane.b32.xlu0 %v6876, 10
        %v7553 = vpop.permute.xlu0 %7552
        %7554 = vrot.lane.b32.xlu0 %v6877, 10
        %v7555 = vpop.permute.xlu0 %7554
        %7556 = vrot.lane.b32.xlu0 %v6878, 10
        %v7557 = vpop.permute.xlu0 %7556
        %7558 = vrot.lane.b32.xlu0 %v6879, 10
        %v7559 = vpop.permute.xlu0 %7558
        %7560 = vrot.lane.b32.xlu0 %v6880, 10
        %v7561 = vpop.permute.xlu0 %7560
        %7562 = vrot.lane.b32.xlu0 %v6881, 10
        %v7563 = vpop.permute.xlu0 %7562
        %7564 = vrot.lane.b32.xlu0 %v6882, 10
        %v7565 = vpop.permute.xlu0 %7564
        %7566 = vrot.lane.b32.xlu0 %v6883, 10
        %v7567 = vpop.permute.xlu0 %7566
        %7568 = vrot.lane.b32.xlu0 %v6884, 10
        %v7569 = vpop.permute.xlu0 %7568
        %7570 = vrot.lane.b32.xlu0 %v6885, 10
        %v7571 = vpop.permute.xlu0 %7570
        %7572 = vrot.lane.b32.xlu0 %v6886, 10
        %v7573 = vpop.permute.xlu0 %7572
        %7574 = vrot.lane.b32.xlu0 %v6887, 10
        %v7575 = vpop.permute.xlu0 %7574
        %7576 = vrot.lane.b32.xlu0 %v6888, 10
        %v7577 = vpop.permute.xlu0 %7576
        %7578 = vrot.lane.b32.xlu0 %v6889, 10
        %v7579 = vpop.permute.xlu0 %7578
        %7580 = vrot.lane.b32.xlu0 %v6890, 10
        %v7581 = vpop.permute.xlu0 %7580
        %7582 = vrot.lane.b32.xlu0 %v6891, 10
        %v7583 = vpop.permute.xlu0 %7582
        %7584 = vrot.lane.b32.xlu0 %v6892, 10
        %v7585 = vpop.permute.xlu0 %7584
        %7586 = vrot.lane.b32.xlu0 %v6893, 10
        %v7587 = vpop.permute.xlu0 %7586
        %7588 = vrot.lane.b32.xlu0 %v6894, 10
        %v7589 = vpop.permute.xlu0 %7588
        %7590 = vrot.lane.b32.xlu0 %v6895, 10
        %v7591 = vpop.permute.xlu0 %7590
        %7592 = vrot.lane.b32.xlu0 %v6896, 10
        %v7593 = vpop.permute.xlu0 %7592
        %7594 = vrot.lane.b32.xlu0 %v6897, 10
        %v7595 = vpop.permute.xlu0 %7594
        %7596 = vrot.lane.b32.xlu0 %v6898, 10
        %v7597 = vpop.permute.xlu0 %7596
        %7598 = vrot.lane.b32.xlu0 %v6899, 10
        %v7599 = vpop.permute.xlu0 %7598
        %7600 = vrot.lane.b32.xlu0 %v6900, 10
        %v7601 = vpop.permute.xlu0 %7600
        %7602 = vrot.lane.b32.xlu0 %v6901, 10
        %v7603 = vpop.permute.xlu0 %7602
        %7604 = vrot.lane.b32.xlu0 %v6902, 10
        %v7605 = vpop.permute.xlu0 %7604
        %7606 = vrot.lane.b32.xlu0 %v6903, 10
        %v7607 = vpop.permute.xlu0 %7606
        %7672 = vrot.lane.b32.xlu0 %v6904, 12
        %v7673 = vpop.permute.xlu0 %7672
        %7674 = vrot.lane.b32.xlu0 %v6905, 12
        %v7675 = vpop.permute.xlu0 %7674
        %7676 = vrot.lane.b32.xlu0 %v6906, 12
        %v7677 = vpop.permute.xlu0 %7676
        %7678 = vrot.lane.b32.xlu0 %v6907, 12
        %v7679 = vpop.permute.xlu0 %7678
        %7680 = vrot.lane.b32.xlu0 %v6908, 12
        %v7681 = vpop.permute.xlu0 %7680
        %7682 = vrot.lane.b32.xlu0 %v6909, 12
        %v7683 = vpop.permute.xlu0 %7682
        %7684 = vrot.lane.b32.xlu0 %v6910, 12
        %v7685 = vpop.permute.xlu0 %7684
        %7686 = vrot.lane.b32.xlu0 %v6911, 12
        %v7687 = vpop.permute.xlu0 %7686
        %7688 = vrot.lane.b32.xlu0 %v6912, 12
        %v7689 = vpop.permute.xlu0 %7688
        %7690 = vrot.lane.b32.xlu0 %v6913, 12
        %v7691 = vpop.permute.xlu0 %7690
        %7692 = vrot.lane.b32.xlu0 %v6914, 12
        %v7693 = vpop.permute.xlu0 %7692
        %7694 = vrot.lane.b32.xlu0 %v6915, 12
        %v7695 = vpop.permute.xlu0 %7694
        %7696 = vrot.lane.b32.xlu0 %v6916, 12
        %v7697 = vpop.permute.xlu0 %7696
        %7698 = vrot.lane.b32.xlu0 %v6917, 12
        %v7699 = vpop.permute.xlu0 %7698
        %7700 = vrot.lane.b32.xlu0 %v6918, 12
        %v7701 = vpop.permute.xlu0 %7700
        %7702 = vrot.lane.b32.xlu0 %v6919, 12
        %v7703 = vpop.permute.xlu0 %7702
        %7704 = vrot.lane.b32.xlu0 %v6920, 12
        %v7705 = vpop.permute.xlu0 %7704
        %7706 = vrot.lane.b32.xlu0 %v6921, 12
        %v7707 = vpop.permute.xlu0 %7706
        %7708 = vrot.lane.b32.xlu0 %v6922, 12
        %v7709 = vpop.permute.xlu0 %7708
        %7710 = vrot.lane.b32.xlu0 %v6923, 12
        %v7711 = vpop.permute.xlu0 %7710
        %7712 = vrot.lane.b32.xlu0 %v6924, 12
        %v7713 = vpop.permute.xlu0 %7712
        %7714 = vrot.lane.b32.xlu0 %v6925, 12
        %v7715 = vpop.permute.xlu0 %7714
        %7716 = vrot.lane.b32.xlu0 %v6926, 12
        %v7717 = vpop.permute.xlu0 %7716
        %7718 = vrot.lane.b32.xlu0 %v6927, 12
        %v7719 = vpop.permute.xlu0 %7718
        %7720 = vrot.lane.b32.xlu0 %v6928, 12
        %v7721 = vpop.permute.xlu0 %7720
        %7722 = vrot.lane.b32.xlu0 %v6929, 12
        %v7723 = vpop.permute.xlu0 %7722
        %7724 = vrot.lane.b32.xlu0 %v6930, 12
        %v7725 = vpop.permute.xlu0 %7724
        %7726 = vrot.lane.b32.xlu0 %v6931, 12
        %v7727 = vpop.permute.xlu0 %7726
        %7728 = vrot.lane.b32.xlu0 %v6932, 12
        %v7729 = vpop.permute.xlu0 %7728
        %7730 = vrot.lane.b32.xlu0 %v6933, 12
        %v7731 = vpop.permute.xlu0 %7730
        %7732 = vrot.lane.b32.xlu0 %v6934, 12
        %v7733 = vpop.permute.xlu0 %7732
        %7734 = vrot.lane.b32.xlu0 %v6935, 12
        %v7735 = vpop.permute.xlu0 %7734
        %7800 = vrot.lane.b32.xlu0 %v6936, 14
        %v7801 = vpop.permute.xlu0 %7800
        %7802 = vrot.lane.b32.xlu0 %v6937, 14
        %v7803 = vpop.permute.xlu0 %7802
        %7804 = vrot.lane.b32.xlu0 %v6938, 14
        %v7805 = vpop.permute.xlu0 %7804
        %7806 = vrot.lane.b32.xlu0 %v6939, 14
        %v7807 = vpop.permute.xlu0 %7806
        %7808 = vrot.lane.b32.xlu0 %v6940, 14
        %v7809 = vpop.permute.xlu0 %7808
        %7810 = vrot.lane.b32.xlu0 %v6941, 14
        %v7811 = vpop.permute.xlu0 %7810
        %7812 = vrot.lane.b32.xlu0 %v6942, 14
        %v7813 = vpop.permute.xlu0 %7812
        %7814 = vrot.lane.b32.xlu0 %v6943, 14
        %v7815 = vpop.permute.xlu0 %7814
        %7816 = vrot.lane.b32.xlu0 %v6944, 14
        %v7817 = vpop.permute.xlu0 %7816
        %7818 = vrot.lane.b32.xlu0 %v6945, 14
        %v7819 = vpop.permute.xlu0 %7818
        %7820 = vrot.lane.b32.xlu0 %v6946, 14
        %v7821 = vpop.permute.xlu0 %7820
        %7822 = vrot.lane.b32.xlu0 %v6947, 14
        %v7823 = vpop.permute.xlu0 %7822
        %7824 = vrot.lane.b32.xlu0 %v6948, 14
        %v7825 = vpop.permute.xlu0 %7824
        %7826 = vrot.lane.b32.xlu0 %v6949, 14
        %v7827 = vpop.permute.xlu0 %7826
        %7828 = vrot.lane.b32.xlu0 %v6950, 14
        %v7829 = vpop.permute.xlu0 %7828
        %7830 = vrot.lane.b32.xlu0 %v6951, 14
        %v7831 = vpop.permute.xlu0 %7830
        %7832 = vrot.lane.b32.xlu0 %v6952, 14
        %v7833 = vpop.permute.xlu0 %7832
        %7834 = vrot.lane.b32.xlu0 %v6953, 14
        %v7835 = vpop.permute.xlu0 %7834
        %7836 = vrot.lane.b32.xlu0 %v6954, 14
        %v7837 = vpop.permute.xlu0 %7836
        %7838 = vrot.lane.b32.xlu0 %v6955, 14
        %v7839 = vpop.permute.xlu0 %7838
        %7840 = vrot.lane.b32.xlu0 %v6956, 14
        %v7841 = vpop.permute.xlu0 %7840
        %7842 = vrot.lane.b32.xlu0 %v6957, 14
        %v7843 = vpop.permute.xlu0 %7842
        %7844 = vrot.lane.b32.xlu0 %v6958, 14
        %v7845 = vpop.permute.xlu0 %7844
        %7846 = vrot.lane.b32.xlu0 %v6959, 14
        %v7847 = vpop.permute.xlu0 %7846
        %7848 = vrot.lane.b32.xlu0 %v6960, 14
        %v7849 = vpop.permute.xlu0 %7848
        %7850 = vrot.lane.b32.xlu0 %v6961, 14
        %v7851 = vpop.permute.xlu0 %7850
        %7852 = vrot.lane.b32.xlu0 %v6962, 14
        %v7853 = vpop.permute.xlu0 %7852
        %7854 = vrot.lane.b32.xlu0 %v6963, 14
        %v7855 = vpop.permute.xlu0 %7854
        %7856 = vrot.lane.b32.xlu0 %v6964, 14
        %v7857 = vpop.permute.xlu0 %7856
        %7858 = vrot.lane.b32.xlu0 %v6965, 14
        %v7859 = vpop.permute.xlu0 %7858
        %7860 = vrot.lane.b32.xlu0 %v6966, 14
        %v7861 = vpop.permute.xlu0 %7860
        %7862 = vrot.lane.b32.xlu0 %v6967, 14
        %v7863 = vpop.permute.xlu0 %7862
        %7928 = vrot.lane.b32.xlu0 %v6968, 16
        %v7929 = vpop.permute.xlu0 %7928
        %7930 = vrot.lane.b32.xlu0 %v6969, 16
        %v7931 = vpop.permute.xlu0 %7930
        %7932 = vrot.lane.b32.xlu0 %v6970, 16
        %v7933 = vpop.permute.xlu0 %7932
        %7934 = vrot.lane.b32.xlu0 %v6971, 16
        %v7935 = vpop.permute.xlu0 %7934
        %7936 = vrot.lane.b32.xlu0 %v6972, 16
        %v7937 = vpop.permute.xlu0 %7936
        %7938 = vrot.lane.b32.xlu0 %v6973, 16
        %v7939 = vpop.permute.xlu0 %7938
        %7940 = vrot.lane.b32.xlu0 %v6974, 16
        %v7941 = vpop.permute.xlu0 %7940
        %7942 = vrot.lane.b32.xlu0 %v6975, 16
        %v7943 = vpop.permute.xlu0 %7942
        %7944 = vrot.lane.b32.xlu0 %v6976, 16
        %v7945 = vpop.permute.xlu0 %7944
        %7946 = vrot.lane.b32.xlu0 %v6977, 16
        %v7947 = vpop.permute.xlu0 %7946
        %7948 = vrot.lane.b32.xlu0 %v6978, 16
        %v7949 = vpop.permute.xlu0 %7948
        %7950 = vrot.lane.b32.xlu0 %v6979, 16
        %v7951 = vpop.permute.xlu0 %7950
        %7952 = vrot.lane.b32.xlu0 %v6980, 16
        %v7953 = vpop.permute.xlu0 %7952
        %7954 = vrot.lane.b32.xlu0 %v6981, 16
        %v7955 = vpop.permute.xlu0 %7954
        %7956 = vrot.lane.b32.xlu0 %v6982, 16
        %v7957 = vpop.permute.xlu0 %7956
        %7958 = vrot.lane.b32.xlu0 %v6983, 16
        %v7959 = vpop.permute.xlu0 %7958
        %7960 = vrot.lane.b32.xlu0 %v6984, 16
        %v7961 = vpop.permute.xlu0 %7960
        %7962 = vrot.lane.b32.xlu0 %v6985, 16
        %v7963 = vpop.permute.xlu0 %7962
        %7964 = vrot.lane.b32.xlu0 %v6986, 16
        %v7965 = vpop.permute.xlu0 %7964
        %7966 = vrot.lane.b32.xlu0 %v6987, 16
        %v7967 = vpop.permute.xlu0 %7966
        %7968 = vrot.lane.b32.xlu0 %v6988, 16
        %v7969 = vpop.permute.xlu0 %7968
        %7970 = vrot.lane.b32.xlu0 %v6989, 16
        %v7971 = vpop.permute.xlu0 %7970
        %7972 = vrot.lane.b32.xlu0 %v6990, 16
        %v7973 = vpop.permute.xlu0 %7972
        %7974 = vrot.lane.b32.xlu0 %v6991, 16
        %v7975 = vpop.permute.xlu0 %7974
        %7976 = vrot.lane.b32.xlu0 %v6992, 16
        %v7977 = vpop.permute.xlu0 %7976
        %7978 = vrot.lane.b32.xlu0 %v6993, 16
        %v7979 = vpop.permute.xlu0 %7978
        %7980 = vrot.lane.b32.xlu0 %v6994, 16
        %v7981 = vpop.permute.xlu0 %7980
        %7982 = vrot.lane.b32.xlu0 %v6995, 16
        %v7983 = vpop.permute.xlu0 %7982
        %7984 = vrot.lane.b32.xlu0 %v6996, 16
        %v7985 = vpop.permute.xlu0 %7984
        %7986 = vrot.lane.b32.xlu0 %v6997, 16
        %v7987 = vpop.permute.xlu0 %7986
        %7988 = vrot.lane.b32.xlu0 %v6998, 16
        %v7989 = vpop.permute.xlu0 %7988
        %7990 = vrot.lane.b32.xlu0 %v6999, 16
        %v7991 = vpop.permute.xlu0 %7990
        %vm8024 = vcmask 15360
        %v8025 = vsel %vm8024, %v6648, %v7033
        %v8026 = vsel %vm8024, %v6649, %v7035
        %v8027 = vsel %vm8024, %v6650, %v7037
        %v8028 = vsel %vm8024, %v6651, %v7039
        %v8029 = vsel %vm8024, %v6652, %v7041
        %v8030 = vsel %vm8024, %v6653, %v7043
        %v8031 = vsel %vm8024, %v6654, %v7045
        %v8032 = vsel %vm8024, %v6655, %v7047
        %v8033 = vsel %vm8024, %v6656, %v7049
        %v8034 = vsel %vm8024, %v6657, %v7051
        %v8035 = vsel %vm8024, %v6658, %v7053
        %v8036 = vsel %vm8024, %v6659, %v7055
        %v8037 = vsel %vm8024, %v6660, %v7057
        %v8038 = vsel %vm8024, %v6661, %v7059
        %v8039 = vsel %vm8024, %v6662, %v7061
        %v8040 = vsel %vm8024, %v6663, %v7063
        %v8041 = vsel %vm8024, %v6664, %v7065
        %v8042 = vsel %vm8024, %v6665, %v7067
        %v8043 = vsel %vm8024, %v6666, %v7069
        %v8044 = vsel %vm8024, %v6667, %v7071
        %v8045 = vsel %vm8024, %v6668, %v7073
        %v8046 = vsel %vm8024, %v6669, %v7075
        %v8047 = vsel %vm8024, %v6670, %v7077
        %v8048 = vsel %vm8024, %v6671, %v7079
        %v8049 = vsel %vm8024, %v6672, %v7081
        %v8050 = vsel %vm8024, %v6673, %v7083
        %v8051 = vsel %vm8024, %v6674, %v7085
        %v8052 = vsel %vm8024, %v6675, %v7087
        %v8053 = vsel %vm8024, %v6676, %v7089
        %v8054 = vsel %vm8024, %v6677, %v7091
        %v8055 = vsel %vm8024, %v6678, %v7093
        %v8056 = vsel %vm8024, %v6679, %v7095
        %v8057 = vsel %vm3906, %v8025, %v7161
        %v8058 = vsel %vm3906, %v8026, %v7163
        %v8059 = vsel %vm3906, %v8027, %v7165
        %v8060 = vsel %vm3906, %v8028, %v7167
        %v8061 = vsel %vm3906, %v8029, %v7169
        %v8062 = vsel %vm3906, %v8030, %v7171
        %v8063 = vsel %vm3906, %v8031, %v7173
        %v8064 = vsel %vm3906, %v8032, %v7175
        %v8065 = vsel %vm3906, %v8033, %v7177
        %v8066 = vsel %vm3906, %v8034, %v7179
        %v8067 = vsel %vm3906, %v8035, %v7181
        %v8068 = vsel %vm3906, %v8036, %v7183
        %v8069 = vsel %vm3906, %v8037, %v7185
        %v8070 = vsel %vm3906, %v8038, %v7187
        %v8071 = vsel %vm3906, %v8039, %v7189
        %v8072 = vsel %vm3906, %v8040, %v7191
        %v8073 = vsel %vm3906, %v8041, %v7193
        %v8074 = vsel %vm3906, %v8042, %v7195
        %v8075 = vsel %vm3906, %v8043, %v7197
        %v8076 = vsel %vm3906, %v8044, %v7199
        %v8077 = vsel %vm3906, %v8045, %v7201
        %v8078 = vsel %vm3906, %v8046, %v7203
        %v8079 = vsel %vm3906, %v8047, %v7205
        %v8080 = vsel %vm3906, %v8048, %v7207
        %v8081 = vsel %vm3906, %v8049, %v7209
        %v8082 = vsel %vm3906, %v8050, %v7211
        %v8083 = vsel %vm3906, %v8051, %v7213
        %v8084 = vsel %vm3906, %v8052, %v7215
        %v8085 = vsel %vm3906, %v8053, %v7217
        %v8086 = vsel %vm3906, %v8054, %v7219
        %v8087 = vsel %vm3906, %v8055, %v7221
        %v8088 = vsel %vm3906, %v8056, %v7223
        %vm8089 = vcmask 48128
        %v8090 = vsel %vm8089, %v8057, %v7289
        %v8091 = vsel %vm8089, %v8058, %v7291
        %v8092 = vsel %vm8089, %v8059, %v7293
        %v8093 = vsel %vm8089, %v8060, %v7295
        %v8094 = vsel %vm8089, %v8061, %v7297
        %v8095 = vsel %vm8089, %v8062, %v7299
        %v8096 = vsel %vm8089, %v8063, %v7301
        %v8097 = vsel %vm8089, %v8064, %v7303
        %v8098 = vsel %vm8089, %v8065, %v7305
        %v8099 = vsel %vm8089, %v8066, %v7307
        %v8100 = vsel %vm8089, %v8067, %v7309
        %v8101 = vsel %vm8089, %v8068, %v7311
        %v8102 = vsel %vm8089, %v8069, %v7313
        %v8103 = vsel %vm8089, %v8070, %v7315
        %v8104 = vsel %vm8089, %v8071, %v7317
        %v8105 = vsel %vm8089, %v8072, %v7319
        %v8106 = vsel %vm8089, %v8073, %v7321
        %v8107 = vsel %vm8089, %v8074, %v7323
        %v8108 = vsel %vm8089, %v8075, %v7325
        %v8109 = vsel %vm8089, %v8076, %v7327
        %v8110 = vsel %vm8089, %v8077, %v7329
        %v8111 = vsel %vm8089, %v8078, %v7331
        %v8112 = vsel %vm8089, %v8079, %v7333
        %v8113 = vsel %vm8089, %v8080, %v7335
        %v8114 = vsel %vm8089, %v8081, %v7337
        %v8115 = vsel %vm8089, %v8082, %v7339
        %v8116 = vsel %vm8089, %v8083, %v7341
        %v8117 = vsel %vm8089, %v8084, %v7343
        %v8118 = vsel %vm8089, %v8085, %v7345
        %v8119 = vsel %vm8089, %v8086, %v7347
        %v8120 = vsel %vm8089, %v8087, %v7349
        %v8121 = vsel %vm8089, %v8088, %v7351
        %v8122 = vsel %vm3939, %v8090, %v7417
        %v8123 = vsel %vm3939, %v8091, %v7419
        %v8124 = vsel %vm3939, %v8092, %v7421
        %v8125 = vsel %vm3939, %v8093, %v7423
        %v8126 = vsel %vm3939, %v8094, %v7425
        %v8127 = vsel %vm3939, %v8095, %v7427
        %v8128 = vsel %vm3939, %v8096, %v7429
        %v8129 = vsel %vm3939, %v8097, %v7431
        %v8130 = vsel %vm3939, %v8098, %v7433
        %v8131 = vsel %vm3939, %v8099, %v7435
        %v8132 = vsel %vm3939, %v8100, %v7437
        %v8133 = vsel %vm3939, %v8101, %v7439
        %v8134 = vsel %vm3939, %v8102, %v7441
        %v8135 = vsel %vm3939, %v8103, %v7443
        %v8136 = vsel %vm3939, %v8104, %v7445
        %v8137 = vsel %vm3939, %v8105, %v7447
        %v8138 = vsel %vm3939, %v8106, %v7449
        %v8139 = vsel %vm3939, %v8107, %v7451
        %v8140 = vsel %vm3939, %v8108, %v7453
        %v8141 = vsel %vm3939, %v8109, %v7455
        %v8142 = vsel %vm3939, %v8110, %v7457
        %v8143 = vsel %vm3939, %v8111, %v7459
        %v8144 = vsel %vm3939, %v8112, %v7461
        %v8145 = vsel %vm3939, %v8113, %v7463
        %v8146 = vsel %vm3939, %v8114, %v7465
        %v8147 = vsel %vm3939, %v8115, %v7467
        %v8148 = vsel %vm3939, %v8116, %v7469
        %v8149 = vsel %vm3939, %v8117, %v7471
        %v8150 = vsel %vm3939, %v8118, %v7473
        %v8151 = vsel %vm3939, %v8119, %v7475
        %v8152 = vsel %vm3939, %v8120, %v7477
        %v8153 = vsel %vm3939, %v8121, %v7479
        %vm8154 = vcmask 80896
        %v8155 = vsel %vm8154, %v8122, %v7545
        %v8156 = vsel %vm8154, %v8123, %v7547
        %v8157 = vsel %vm8154, %v8124, %v7549
        %v8158 = vsel %vm8154, %v8125, %v7551
        %v8159 = vsel %vm8154, %v8126, %v7553
        %v8160 = vsel %vm8154, %v8127, %v7555
        %v8161 = vsel %vm8154, %v8128, %v7557
        %v8162 = vsel %vm8154, %v8129, %v7559
        %v8163 = vsel %vm8154, %v8130, %v7561
        %v8164 = vsel %vm8154, %v8131, %v7563
        %v8165 = vsel %vm8154, %v8132, %v7565
        %v8166 = vsel %vm8154, %v8133, %v7567
        %v8167 = vsel %vm8154, %v8134, %v7569
        %v8168 = vsel %vm8154, %v8135, %v7571
        %v8169 = vsel %vm8154, %v8136, %v7573
        %v8170 = vsel %vm8154, %v8137, %v7575
        %v8171 = vsel %vm8154, %v8138, %v7577
        %v8172 = vsel %vm8154, %v8139, %v7579
        %v8173 = vsel %vm8154, %v8140, %v7581
        %v8174 = vsel %vm8154, %v8141, %v7583
        %v8175 = vsel %vm8154, %v8142, %v7585
        %v8176 = vsel %vm8154, %v8143, %v7587
        %v8177 = vsel %vm8154, %v8144, %v7589
        %v8178 = vsel %vm8154, %v8145, %v7591
        %v8179 = vsel %vm8154, %v8146, %v7593
        %v8180 = vsel %vm8154, %v8147, %v7595
        %v8181 = vsel %vm8154, %v8148, %v7597
        %v8182 = vsel %vm8154, %v8149, %v7599
        %v8183 = vsel %vm8154, %v8150, %v7601
        %v8184 = vsel %vm8154, %v8151, %v7603
        %v8185 = vsel %vm8154, %v8152, %v7605
        %v8186 = vsel %vm8154, %v8153, %v7607
        %v8187 = vsel %vm3972, %v8155, %v7673
        %v8188 = vsel %vm3972, %v8156, %v7675
        %v8189 = vsel %vm3972, %v8157, %v7677
        %v8190 = vsel %vm3972, %v8158, %v7679
        %v8191 = vsel %vm3972, %v8159, %v7681
        %v8192 = vsel %vm3972, %v8160, %v7683
        %v8193 = vsel %vm3972, %v8161, %v7685
        %v8194 = vsel %vm3972, %v8162, %v7687
        %v8195 = vsel %vm3972, %v8163, %v7689
        %v8196 = vsel %vm3972, %v8164, %v7691
        %v8197 = vsel %vm3972, %v8165, %v7693
        %v8198 = vsel %vm3972, %v8166, %v7695
        %v8199 = vsel %vm3972, %v8167, %v7697
        %v8200 = vsel %vm3972, %v8168, %v7699
        %v8201 = vsel %vm3972, %v8169, %v7701
        %v8202 = vsel %vm3972, %v8170, %v7703
        %v8203 = vsel %vm3972, %v8171, %v7705
        %v8204 = vsel %vm3972, %v8172, %v7707
        %v8205 = vsel %vm3972, %v8173, %v7709
        %v8206 = vsel %vm3972, %v8174, %v7711
        %v8207 = vsel %vm3972, %v8175, %v7713
        %v8208 = vsel %vm3972, %v8176, %v7715
        %v8209 = vsel %vm3972, %v8177, %v7717
        %v8210 = vsel %vm3972, %v8178, %v7719
        %v8211 = vsel %vm3972, %v8179, %v7721
        %v8212 = vsel %vm3972, %v8180, %v7723
        %v8213 = vsel %vm3972, %v8181, %v7725
        %v8214 = vsel %vm3972, %v8182, %v7727
        %v8215 = vsel %vm3972, %v8183, %v7729
        %v8216 = vsel %vm3972, %v8184, %v7731
        %v8217 = vsel %vm3972, %v8185, %v7733
        %v8218 = vsel %vm3972, %v8186, %v7735
        %vm8219 = vcmask 113664
        %v8220 = vsel %vm8219, %v8187, %v7801
        %v8221 = vsel %vm8219, %v8188, %v7803
        %v8222 = vsel %vm8219, %v8189, %v7805
        %v8223 = vsel %vm8219, %v8190, %v7807
        %v8224 = vsel %vm8219, %v8191, %v7809
        %v8225 = vsel %vm8219, %v8192, %v7811
        %v8226 = vsel %vm8219, %v8193, %v7813
        %v8227 = vsel %vm8219, %v8194, %v7815
        %v8228 = vsel %vm8219, %v8195, %v7817
        %v8229 = vsel %vm8219, %v8196, %v7819
        %v8230 = vsel %vm8219, %v8197, %v7821
        %v8231 = vsel %vm8219, %v8198, %v7823
        %v8232 = vsel %vm8219, %v8199, %v7825
        %v8233 = vsel %vm8219, %v8200, %v7827
        %v8234 = vsel %vm8219, %v8201, %v7829
        %v8235 = vsel %vm8219, %v8202, %v7831
        %v8236 = vsel %vm8219, %v8203, %v7833
        %v8237 = vsel %vm8219, %v8204, %v7835
        %v8238 = vsel %vm8219, %v8205, %v7837
        %v8239 = vsel %vm8219, %v8206, %v7839
        %v8240 = vsel %vm8219, %v8207, %v7841
        %v8241 = vsel %vm8219, %v8208, %v7843
        %v8242 = vsel %vm8219, %v8209, %v7845
        %v8243 = vsel %vm8219, %v8210, %v7847
        %v8244 = vsel %vm8219, %v8211, %v7849
        %v8245 = vsel %vm8219, %v8212, %v7851
        %v8246 = vsel %vm8219, %v8213, %v7853
        %v8247 = vsel %vm8219, %v8214, %v7855
        %v8248 = vsel %vm8219, %v8215, %v7857
        %v8249 = vsel %vm8219, %v8216, %v7859
        %v8250 = vsel %vm8219, %v8217, %v7861
        %v8251 = vsel %vm8219, %v8218, %v7863
        %v8252 = vsel %vm4005, %v8220, %v7929
        %v8253 = vsel %vm4005, %v8221, %v7931
        %v8254 = vsel %vm4005, %v8222, %v7933
        %v8255 = vsel %vm4005, %v8223, %v7935
        %v8256 = vsel %vm4005, %v8224, %v7937
        %v8257 = vsel %vm4005, %v8225, %v7939
        %v8258 = vsel %vm4005, %v8226, %v7941
        %v8259 = vsel %vm4005, %v8227, %v7943
        %v8260 = vsel %vm4005, %v8228, %v7945
        %v8261 = vsel %vm4005, %v8229, %v7947
        %v8262 = vsel %vm4005, %v8230, %v7949
        %v8263 = vsel %vm4005, %v8231, %v7951
        %v8264 = vsel %vm4005, %v8232, %v7953
        %v8265 = vsel %vm4005, %v8233, %v7955
        %v8266 = vsel %vm4005, %v8234, %v7957
        %v8267 = vsel %vm4005, %v8235, %v7959
        %v8268 = vsel %vm4005, %v8236, %v7961
        %v8269 = vsel %vm4005, %v8237, %v7963
        %v8270 = vsel %vm4005, %v8238, %v7965
        %v8271 = vsel %vm4005, %v8239, %v7967
        %v8272 = vsel %vm4005, %v8240, %v7969
        %v8273 = vsel %vm4005, %v8241, %v7971
        %v8274 = vsel %vm4005, %v8242, %v7973
        %v8275 = vsel %vm4005, %v8243, %v7975
        %v8276 = vsel %vm4005, %v8244, %v7977
        %v8277 = vsel %vm4005, %v8245, %v7979
        %v8278 = vsel %vm4005, %v8246, %v7981
        %v8279 = vsel %vm4005, %v8247, %v7983
        %v8280 = vsel %vm4005, %v8248, %v7985
        %v8281 = vsel %vm4005, %v8249, %v7987
        %v8282 = vsel %vm4005, %v8250, %v7989
        %v8283 = vsel %vm4005, %v8251, %v7991
        %v8284 = vpack.c.bf16 %v8253, %v8252
        %v8285 = vpack.c.bf16 %v8255, %v8254
        %v8286 = vpack.c.bf16 %v8257, %v8256
        %v8287 = vpack.c.bf16 %v8259, %v8258
        %v8288 = vpack.c.bf16 %v8261, %v8260
        %v8289 = vpack.c.bf16 %v8263, %v8262
        %v8290 = vpack.c.bf16 %v8265, %v8264
        %v8291 = vpack.c.bf16 %v8267, %v8266
        %v8292 = vpack.c.bf16 %v8269, %v8268
        %v8293 = vpack.c.bf16 %v8271, %v8270
        %v8294 = vpack.c.bf16 %v8273, %v8272
        %v8295 = vpack.c.bf16 %v8275, %v8274
        %v8296 = vpack.c.bf16 %v8277, %v8276
        %v8297 = vpack.c.bf16 %v8279, %v8278
        %v8298 = vpack.c.bf16 %v8281, %v8280
        %v8299 = vpack.c.bf16 %v8283, %v8282
        %v8300 = vld [vmem:[%s10] sm:$0xf]
        %v8301 = vld [vmem:[%s10 + $0x4] sm:$0xf]
        %v8302 = vld [vmem:[%s10 + $0x8] sm:$0x1]
        %v8306 = vunpack.c.l.b16 %v8300
        %v8307 = vunpack.c.l.b16 %v8301
        %v8308 = vunpack.c.l.b16 %v8302
        %v8309 = vpack.c.b16 %v8307, %v8306
        %v8310 = vpack.c.b16 %v8308, %v8308
        %vm8312 = vcmask 146432
        %v8314 = vsel %vm8312, %v8284, 0
        %v8317 = vsel %vm8312, %v8285, 0
        %v8320 = vsel %vm8312, %v8286, 0
        %v8323 = vsel %vm8312, %v8287, 0
        %v8326 = vsel %vm8312, %v8288, 0
        %v8329 = vsel %vm8312, %v8289, 0
        %v8332 = vsel %vm8312, %v8290, 0
        %v8335 = vsel %vm8312, %v8291, 0
        %v8338 = vsel %vm8312, %v8292, 0
        %v8341 = vsel %vm8312, %v8293, 0
        %v8344 = vsel %vm8312, %v8294, 0
        %v8347 = vsel %vm8312, %v8295, 0
        %v8350 = vsel %vm8312, %v8296, 0
        %v8353 = vsel %vm8312, %v8297, 0
        %v8356 = vsel %vm8312, %v8298, 0
        %v8359 = vsel %vm8312, %v8299, 0
        %vm8361 = vcmask 1040384
        %v8363 = vsel %vm8361, %v8310, 0
        %8365 = vmatprep.subr.bf16.mxu0 0
        %8366 = vmatpush1.bf16.msra.mxu0 %v8309
        %8367 = vmatprep.subr.bf16.mxu0 0
        %8368 = vmatpush1.bf16.msra.mxu0 %v8363
        %8369 = vmatprep.subr.bf16.mxu0 0
        %8370 = vmatpush1.bf16.msra.mxu0 0
        %8371 = vmatprep.subr.bf16.mxu0 0
        %8372 = vmatpush1.bf16.msra.mxu0 0
        %8373 = vmatprep.subr.bf16.mxu0 0
        %8374 = vmatpush1.bf16.msra.mxu0 0
        %8375 = vmatprep.subr.bf16.mxu0 0
        %8376 = vmatpush1.bf16.msra.mxu0 0
        %8377 = vmatprep.subr.bf16.mxu0 0
        %8378 = vmatpush1.bf16.msra.mxu0 0
        %8379 = vmatprep.subr.bf16.mxu0 0
        %8380 = vmatpush1.bf16.msra.mxu0 0
        %8381 = vmatprep.subr.bf16.mxu0 0
        %8382 = vmatpush1.bf16.msra.mxu0 0
        %8383 = vmatprep.subr.bf16.mxu0 0
        %8384 = vmatpush1.bf16.msra.mxu0 0
        %8385 = vmatprep.subr.bf16.mxu0 0
        %8386 = vmatpush1.bf16.msra.mxu0 0
        %8387 = vmatprep.subr.bf16.mxu0 0
        %8388 = vmatpush1.bf16.msra.mxu0 0
        %8389 = vmatprep.subr.bf16.mxu0 0
        %8390 = vmatpush1.bf16.msra.mxu0 0
        %8391 = vmatprep.subr.bf16.mxu0 0
        %8392 = vmatpush1.bf16.msra.mxu0 0
        %8393 = vmatprep.subr.bf16.mxu0 0
        %8394 = vmatpush1.bf16.msra.mxu0 0
        %8395 = vmatprep.subr.bf16.mxu0 0
        %8396 = vmatpush1.bf16.msra.mxu0 0
        %8397 = vmatprep.mubr.bf16.mxu0 0
        %8398 = vmatmul.mubr.bf16.gmra.mrb[0].mxu0 %v8314
        %v8399 = vpop.f32.mrb[0].mxu0
        %v8400 = vadd.f32 0.0, %v8399
        %v8401 = vpop.f32.mrb[0].mxu0
        %v8402 = vpop.f32.mrb[0].mxu0
        %v8403 = vadd.f32 0.0, %v8402
        %v8404 = vpop.f32.mrb[0].mxu0
        %8405 = vmatprep.mubr.bf16.mxu0 0
        %8406 = vmatmul.mubr.bf16.gmra.mrb[0].mxu0 %v8317
        %v8407 = vpop.f32.mrb[0].mxu0
        %v8408 = vadd.f32 0.0, %v8407
        %v8409 = vpop.f32.mrb[0].mxu0
        %v8410 = vpop.f32.mrb[0].mxu0
        %v8411 = vadd.f32 0.0, %v8410
        %v8412 = vpop.f32.mrb[0].mxu0
        %8413 = vmatprep.mubr.bf16.mxu0 0
        %8414 = vmatmul.mubr.bf16.gmra.mrb[0].mxu0 %v8320
        %v8415 = vpop.f32.mrb[0].mxu0
        %v8416 = vadd.f32 0.0, %v8415
        %v8417 = vpop.f32.mrb[0].mxu0
        %v8418 = vpop.f32.mrb[0].mxu0
        %v8419 = vadd.f32 0.0, %v8418
        %v8420 = vpop.f32.mrb[0].mxu0
        %8421 = vmatprep.mubr.bf16.mxu0 0
        %8422 = vmatmul.mubr.bf16.gmra.mrb[0].mxu0 %v8323
        %v8423 = vpop.f32.mrb[0].mxu0
        %v8424 = vadd.f32 0.0, %v8423
        %v8425 = vpop.f32.mrb[0].mxu0
        %v8426 = vpop.f32.mrb[0].mxu0
        %v8427 = vadd.f32 0.0, %v8426
        %v8428 = vpop.f32.mrb[0].mxu0
        %8429 = vmatprep.mubr.bf16.mxu0 0
        %8430 = vmatmul.mubr.bf16.gmra.mrb[0].mxu0 %v8326
        %v8431 = vpop.f32.mrb[0].mxu0
        %v8432 = vadd.f32 0.0, %v8431
        %v8433 = vpop.f32.mrb[0].mxu0
        %v8434 = vpop.f32.mrb[0].mxu0
        %v8435 = vadd.f32 0.0, %v8434
        %v8436 = vpop.f32.mrb[0].mxu0
        %8437 = vmatprep.mubr.bf16.mxu0 0
        %8438 = vmatmul.mubr.bf16.gmra.mrb[0].mxu0 %v8329
        %v8439 = vpop.f32.mrb[0].mxu0
        %v8440 = vadd.f32 0.0, %v8439
        %v8441 = vpop.f32.mrb[0].mxu0
        %v8442 = vpop.f32.mrb[0].mxu0
        %v8443 = vadd.f32 0.0, %v8442
        %v8444 = vpop.f32.mrb[0].mxu0
        %8445 = vmatprep.mubr.bf16.mxu0 0
        %8446 = vmatmul.mubr.bf16.gmra.mrb[0].mxu0 %v8332
        %v8447 = vpop.f32.mrb[0].mxu0
        %v8448 = vadd.f32 0.0, %v8447
        %v8449 = vpop.f32.mrb[0].mxu0
        %v8450 = vpop.f32.mrb[0].mxu0
        %v8451 = vadd.f32 0.0, %v8450
        %v8452 = vpop.f32.mrb[0].mxu0
        %8453 = vmatprep.mubr.bf16.mxu0 0
        %8454 = vmatmul.mubr.bf16.gmra.mrb[0].mxu0 %v8335
        %v8455 = vpop.f32.mrb[0].mxu0
        %v8456 = vadd.f32 0.0, %v8455
        %v8457 = vpop.f32.mrb[0].mxu0
        %v8458 = vpop.f32.mrb[0].mxu0
        %v8459 = vadd.f32 0.0, %v8458
        %v8460 = vpop.f32.mrb[0].mxu0
        %8461 = vmatprep.mubr.bf16.mxu0 0
        %8462 = vmatmul.mubr.bf16.gmra.mrb[0].mxu0 %v8338
        %v8463 = vpop.f32.mrb[0].mxu0
        %v8464 = vadd.f32 0.0, %v8463
        %v8465 = vpop.f32.mrb[0].mxu0
        %v8466 = vpop.f32.mrb[0].mxu0
        %v8467 = vadd.f32 0.0, %v8466
        %v8468 = vpop.f32.mrb[0].mxu0
        %8469 = vmatprep.mubr.bf16.mxu0 0
        %8470 = vmatmul.mubr.bf16.gmra.mrb[0].mxu0 %v8341
        %v8471 = vpop.f32.mrb[0].mxu0
        %v8472 = vadd.f32 0.0, %v8471
        %v8473 = vpop.f32.mrb[0].mxu0
        %v8474 = vpop.f32.mrb[0].mxu0
        %v8475 = vadd.f32 0.0, %v8474
        %v8476 = vpop.f32.mrb[0].mxu0
        %8477 = vmatprep.mubr.bf16.mxu0 0
        %8478 = vmatmul.mubr.bf16.gmra.mrb[0].mxu0 %v8344
        %v8479 = vpop.f32.mrb[0].mxu0
        %v8480 = vadd.f32 0.0, %v8479
        %v8481 = vpop.f32.mrb[0].mxu0
        %v8482 = vpop.f32.mrb[0].mxu0
        %v8483 = vadd.f32 0.0, %v8482
        %v8484 = vpop.f32.mrb[0].mxu0
        %8485 = vmatprep.mubr.bf16.mxu0 0
        %8486 = vmatmul.mubr.bf16.gmra.mrb[0].mxu0 %v8347
        %v8487 = vpop.f32.mrb[0].mxu0
        %v8488 = vadd.f32 0.0, %v8487
        %v8489 = vpop.f32.mrb[0].mxu0
        %v8490 = vpop.f32.mrb[0].mxu0
        %v8491 = vadd.f32 0.0, %v8490
        %v8492 = vpop.f32.mrb[0].mxu0
        %8493 = vmatprep.mubr.bf16.mxu0 0
        %8494 = vmatmul.mubr.bf16.gmra.mrb[0].mxu0 %v8350
        %v8495 = vpop.f32.mrb[0].mxu0
        %v8496 = vadd.f32 0.0, %v8495
        %v8497 = vpop.f32.mrb[0].mxu0
        %v8498 = vpop.f32.mrb[0].mxu0
        %v8499 = vadd.f32 0.0, %v8498
        %v8500 = vpop.f32.mrb[0].mxu0
        %8501 = vmatprep.mubr.bf16.mxu0 0
        %8502 = vmatmul.mubr.bf16.gmra.mrb[0].mxu0 %v8353
        %v8503 = vpop.f32.mrb[0].mxu0
        %v8504 = vadd.f32 0.0, %v8503
        %v8505 = vpop.f32.mrb[0].mxu0
        %v8506 = vpop.f32.mrb[0].mxu0
        %v8507 = vadd.f32 0.0, %v8506
        %v8508 = vpop.f32.mrb[0].mxu0
        %8509 = vmatprep.mubr.bf16.mxu0 0
        %8510 = vmatmul.mubr.bf16.gmra.mrb[0].mxu0 %v8356
        %v8511 = vpop.f32.mrb[0].mxu0
        %v8512 = vadd.f32 0.0, %v8511
        %v8513 = vpop.f32.mrb[0].mxu0
        %v8514 = vpop.f32.mrb[0].mxu0
        %v8515 = vadd.f32 0.0, %v8514
        %v8516 = vpop.f32.mrb[0].mxu0
        %8517 = vmatprep.mubr.bf16.mxu0 0
        %8518 = vmatmul.mubr.bf16.gmra.mrb[0].mxu0 %v8359
        %v8519 = vpop.f32.mrb[0].mxu0
        %v8520 = vadd.f32 0.0, %v8519
        %v8521 = vpop.f32.mrb[0].mxu0
        %v8522 = vpop.f32.mrb[0].mxu0
        %v8523 = vadd.f32 0.0, %v8522
        %v8524 = vpop.f32.mrb[0].mxu0
        %8525 = vdwg.mxu0
        %v8526 = vld [vmem:[#allocation13] sm:$0x1]
        %v8528 = vlaneseq
        %v8529 = vshrl.u32 %v8528, 7
        %v8530 = vsub.s32 0, %v8529
        %v8531 = vrot.slane %v8526, %v8530
        %v8533 = vmul.f32 %v880, %v8531
        %v8534 = vmul.f32 %v881, %v8531
        %v8535 = vmul.f32 %v882, %v8531
        %v8536 = vmul.f32 %v883, %v8531
        %v8537 = vmul.f32 %v884, %v8531
        %v8538 = vmul.f32 %v885, %v8531
        %v8539 = vmul.f32 %v886, %v8531
        %v8540 = vmul.f32 %v887, %v8531
        %v8541 = vmul.f32 %v888, %v8531
        %v8542 = vmul.f32 %v889, %v8531
        %v8543 = vmul.f32 %v890, %v8531
        %v8544 = vmul.f32 %v891, %v8531
        %v8545 = vmul.f32 %v892, %v8531
        %v8546 = vmul.f32 %v893, %v8531
        %v8547 = vmul.f32 %v894, %v8531
        %v8548 = vmul.f32 %v895, %v8531
        %v8549 = vmul.f32 %v896, %v8531
        %v8550 = vmul.f32 %v897, %v8531
        %v8551 = vmul.f32 %v898, %v8531
        %v8552 = vmul.f32 %v899, %v8531
        %v8553 = vmul.f32 %v900, %v8531
        %v8554 = vmul.f32 %v901, %v8531
        %v8555 = vmul.f32 %v902, %v8531
        %v8556 = vmul.f32 %v903, %v8531
        %v8557 = vmul.f32 %v904, %v8531
        %v8558 = vmul.f32 %v905, %v8531
        %v8559 = vmul.f32 %v906, %v8531
        %v8560 = vmul.f32 %v907, %v8531
        %v8561 = vmul.f32 %v908, %v8531
        %v8562 = vmul.f32 %v909, %v8531
        %v8563 = vmul.f32 %v910, %v8531
        %v8564 = vmul.f32 %v911, %v8531
        %v8565 = vld [vmem:[#allocation15] sm:$0x1]
        %v8567 = vlaneseq
        %v8568 = vshrl.u32 %v8567, 7
        %v8569 = vsub.s32 0, %v8568
        %v8570 = vrot.slane %v8565, %v8569
        %v8572 = vadd.f32 %v8533, %v8570
        %v8573 = vadd.f32 %v8534, %v8570
        %v8574 = vadd.f32 %v8535, %v8570
        %v8575 = vadd.f32 %v8536, %v8570
        %v8576 = vadd.f32 %v8537, %v8570
        %v8577 = vadd.f32 %v8538, %v8570
        %v8578 = vadd.f32 %v8539, %v8570
        %v8579 = vadd.f32 %v8540, %v8570
        %v8580 = vadd.f32 %v8541, %v8570
        %v8581 = vadd.f32 %v8542, %v8570
        %v8582 = vadd.f32 %v8543, %v8570
        %v8583 = vadd.f32 %v8544, %v8570
        %v8584 = vadd.f32 %v8545, %v8570
        %v8585 = vadd.f32 %v8546, %v8570
        %v8586 = vadd.f32 %v8547, %v8570
        %v8587 = vadd.f32 %v8548, %v8570
        %v8588 = vadd.f32 %v8549, %v8570
        %v8589 = vadd.f32 %v8550, %v8570
        %v8590 = vadd.f32 %v8551, %v8570
        %v8591 = vadd.f32 %v8552, %v8570
        %v8592 = vadd.f32 %v8553, %v8570
        %v8593 = vadd.f32 %v8554, %v8570
        %v8594 = vadd.f32 %v8555, %v8570
        %v8595 = vadd.f32 %v8556, %v8570
        %v8596 = vadd.f32 %v8557, %v8570
        %v8597 = vadd.f32 %v8558, %v8570
        %v8598 = vadd.f32 %v8559, %v8570
        %v8599 = vadd.f32 %v8560, %v8570
        %v8600 = vadd.f32 %v8561, %v8570
        %v8601 = vadd.f32 %v8562, %v8570
        %v8602 = vadd.f32 %v8563, %v8570
        %v8603 = vadd.f32 %v8564, %v8570
        %v8604 = vmax.f32 %v8572, 0.0
        %v8605 = vmax.f32 %v8573, 0.0
        %v8606 = vmax.f32 %v8574, 0.0
        %v8607 = vmax.f32 %v8575, 0.0
        %v8608 = vmax.f32 %v8576, 0.0
        %v8609 = vmax.f32 %v8577, 0.0
        %v8610 = vmax.f32 %v8578, 0.0
        %v8611 = vmax.f32 %v8579, 0.0
        %v8612 = vmax.f32 %v8580, 0.0
        %v8613 = vmax.f32 %v8581, 0.0
        %v8614 = vmax.f32 %v8582, 0.0
        %v8615 = vmax.f32 %v8583, 0.0
        %v8616 = vmax.f32 %v8584, 0.0
        %v8617 = vmax.f32 %v8585, 0.0
        %v8618 = vmax.f32 %v8586, 0.0
        %v8619 = vmax.f32 %v8587, 0.0
        %v8620 = vmax.f32 %v8588, 0.0
        %v8621 = vmax.f32 %v8589, 0.0
        %v8622 = vmax.f32 %v8590, 0.0
        %v8623 = vmax.f32 %v8591, 0.0
        %v8624 = vmax.f32 %v8592, 0.0
        %v8625 = vmax.f32 %v8593, 0.0
        %v8626 = vmax.f32 %v8594, 0.0
        %v8627 = vmax.f32 %v8595, 0.0
        %v8628 = vmax.f32 %v8596, 0.0
        %v8629 = vmax.f32 %v8597, 0.0
        %v8630 = vmax.f32 %v8598, 0.0
        %v8631 = vmax.f32 %v8599, 0.0
        %v8632 = vmax.f32 %v8600, 0.0
        %v8633 = vmax.f32 %v8601, 0.0
        %v8634 = vmax.f32 %v8602, 0.0
        %v8635 = vmax.f32 %v8603, 0.0
        %v8636 = vpack.c.bf16 %v8605, %v8604
        %v8637 = vpack.c.bf16 %v8607, %v8606
        %v8638 = vpack.c.bf16 %v8609, %v8608
        %v8639 = vpack.c.bf16 %v8611, %v8610
        %v8640 = vpack.c.bf16 %v8613, %v8612
        %v8641 = vpack.c.bf16 %v8615, %v8614
        %v8642 = vpack.c.bf16 %v8617, %v8616
        %v8643 = vpack.c.bf16 %v8619, %v8618
        %v8644 = vpack.c.bf16 %v8621, %v8620
        %v8645 = vpack.c.bf16 %v8623, %v8622
        %v8646 = vpack.c.bf16 %v8625, %v8624
        %v8647 = vpack.c.bf16 %v8627, %v8626
        %v8648 = vpack.c.bf16 %v8629, %v8628
        %v8649 = vpack.c.bf16 %v8631, %v8630
        %v8650 = vpack.c.bf16 %v8633, %v8632
        %v8651 = vpack.c.bf16 %v8635, %v8634
        %v8652 = vld [vmem:[%s13] sm:$0x3]
        %v8654 = vsel %vm3906, %v8636, 0
        %v8657 = vsel %vm3906, %v8637, 0
        %v8660 = vsel %vm3906, %v8638, 0
        %v8663 = vsel %vm3906, %v8639, 0
        %v8666 = vsel %vm3906, %v8640, 0
        %v8669 = vsel %vm3906, %v8641, 0
        %v8672 = vsel %vm3906, %v8642, 0
        %v8675 = vsel %vm3906, %v8643, 0
        %v8678 = vsel %vm3906, %v8644, 0
        %v8681 = vsel %vm3906, %v8645, 0
        %v8684 = vsel %vm3906, %v8646, 0
        %v8687 = vsel %vm3906, %v8647, 0
        %v8690 = vsel %vm3906, %v8648, 0
        %v8693 = vsel %vm3906, %v8649, 0
        %v8696 = vsel %vm3906, %v8650, 0
        %v8699 = vsel %vm3906, %v8651, 0
        %v8702 = vsel %vm4255, %v8652, 0
        %8704 = vmatprep.subr.bf16.mxu0 0
        %8705 = vmatpush1.bf16.msra.mxu0 %v8702
        %8706 = vmatprep.subr.bf16.mxu0 0
        %8707 = vmatpush1.bf16.msra.mxu0 0
        %8708 = vmatprep.subr.bf16.mxu0 0
        %8709 = vmatpush1.bf16.msra.mxu0 0
        %8710 = vmatprep.subr.bf16.mxu0 0
        %8711 = vmatpush1.bf16.msra.mxu0 0
        %8712 = vmatprep.subr.bf16.mxu0 0
        %8713 = vmatpush1.bf16.msra.mxu0 0
        %8714 = vmatprep.subr.bf16.mxu0 0
        %8715 = vmatpush1.bf16.msra.mxu0 0
        %8716 = vmatprep.subr.bf16.mxu0 0
        %8717 = vmatpush1.bf16.msra.mxu0 0
        %8718 = vmatprep.subr.bf16.mxu0 0
        %8719 = vmatpush1.bf16.msra.mxu0 0
        %8720 = vmatprep.subr.bf16.mxu0 0
        %8721 = vmatpush1.bf16.msra.mxu0 0
        %8722 = vmatprep.subr.bf16.mxu0 0
        %8723 = vmatpush1.bf16.msra.mxu0 0
        %8724 = vmatprep.subr.bf16.mxu0 0
        %8725 = vmatpush1.bf16.msra.mxu0 0
        %8726 = vmatprep.subr.bf16.mxu0 0
        %8727 = vmatpush1.bf16.msra.mxu0 0
        %8728 = vmatprep.subr.bf16.mxu0 0
        %8729 = vmatpush1.bf16.msra.mxu0 0
        %8730 = vmatprep.subr.bf16.mxu0 0
        %8731 = vmatpush1.bf16.msra.mxu0 0
        %8732 = vmatprep.subr.bf16.mxu0 0
        %8733 = vmatpush1.bf16.msra.mxu0 0
        %8734 = vmatprep.subr.bf16.mxu0 0
        %8735 = vmatpush1.bf16.msra.mxu0 0
        %8736 = vmatprep.mubr.bf16.mxu0 0
        %8737 = vmatmul.mubr.bf16.gmra.mrb[0].mxu0 %v8654
        %v8738 = vpop.f32.mrb[0].mxu0
        %v8739 = vadd.f32 0.0, %v8738
        %v8740 = vpop.f32.mrb[0].mxu0
        %v8741 = vpop.f32.mrb[0].mxu0
        %v8742 = vadd.f32 0.0, %v8741
        %v8743 = vpop.f32.mrb[0].mxu0
        %8744 = vmatprep.mubr.bf16.mxu0 0
        %8745 = vmatmul.mubr.bf16.gmra.mrb[0].mxu0 %v8657
        %v8746 = vpop.f32.mrb[0].mxu0
        %v8747 = vadd.f32 0.0, %v8746
        %v8748 = vpop.f32.mrb[0].mxu0
        %v8749 = vpop.f32.mrb[0].mxu0
        %v8750 = vadd.f32 0.0, %v8749
        %v8751 = vpop.f32.mrb[0].mxu0
        %8752 = vmatprep.mubr.bf16.mxu0 0
        %8753 = vmatmul.mubr.bf16.gmra.mrb[0].mxu0 %v8660
        %v8754 = vpop.f32.mrb[0].mxu0
        %v8755 = vadd.f32 0.0, %v8754
        %v8756 = vpop.f32.mrb[0].mxu0
        %v8757 = vpop.f32.mrb[0].mxu0
        %v8758 = vadd.f32 0.0, %v8757
        %v8759 = vpop.f32.mrb[0].mxu0
        %8760 = vmatprep.mubr.bf16.mxu0 0
        %8761 = vmatmul.mubr.bf16.gmra.mrb[0].mxu0 %v8663
        %v8762 = vpop.f32.mrb[0].mxu0
        %v8763 = vadd.f32 0.0, %v8762
        %v8764 = vpop.f32.mrb[0].mxu0
        %v8765 = vpop.f32.mrb[0].mxu0
        %v8766 = vadd.f32 0.0, %v8765
        %v8767 = vpop.f32.mrb[0].mxu0
        %8768 = vmatprep.mubr.bf16.mxu0 0
        %8769 = vmatmul.mubr.bf16.gmra.mrb[0].mxu0 %v8666
        %v8770 = vpop.f32.mrb[0].mxu0
        %v8771 = vadd.f32 0.0, %v8770
        %v8772 = vpop.f32.mrb[0].mxu0
        %v8773 = vpop.f32.mrb[0].mxu0
        %v8774 = vadd.f32 0.0, %v8773
        %v8775 = vpop.f32.mrb[0].mxu0
        %8776 = vmatprep.mubr.bf16.mxu0 0
        %8777 = vmatmul.mubr.bf16.gmra.mrb[0].mxu0 %v8669
        %v8778 = vpop.f32.mrb[0].mxu0
        %v8779 = vadd.f32 0.0, %v8778
        %v8780 = vpop.f32.mrb[0].mxu0
        %v8781 = vpop.f32.mrb[0].mxu0
        %v8782 = vadd.f32 0.0, %v8781
        %v8783 = vpop.f32.mrb[0].mxu0
        %8784 = vmatprep.mubr.bf16.mxu0 0
        %8785 = vmatmul.mubr.bf16.gmra.mrb[0].mxu0 %v8672
        %v8786 = vpop.f32.mrb[0].mxu0
        %v8787 = vadd.f32 0.0, %v8786
        %v8788 = vpop.f32.mrb[0].mxu0
        %v8789 = vpop.f32.mrb[0].mxu0
        %v8790 = vadd.f32 0.0, %v8789
        %v8791 = vpop.f32.mrb[0].mxu0
        %8792 = vmatprep.mubr.bf16.mxu0 0
        %8793 = vmatmul.mubr.bf16.gmra.mrb[0].mxu0 %v8675
        %v8794 = vpop.f32.mrb[0].mxu0
        %v8795 = vadd.f32 0.0, %v8794
        %v8796 = vpop.f32.mrb[0].mxu0
        %v8797 = vpop.f32.mrb[0].mxu0
        %v8798 = vadd.f32 0.0, %v8797
        %v8799 = vpop.f32.mrb[0].mxu0
        %8800 = vmatprep.mubr.bf16.mxu0 0
        %8801 = vmatmul.mubr.bf16.gmra.mrb[0].mxu0 %v8678
        %v8802 = vpop.f32.mrb[0].mxu0
        %v8803 = vadd.f32 0.0, %v8802
        %v8804 = vpop.f32.mrb[0].mxu0
        %v8805 = vpop.f32.mrb[0].mxu0
        %v8806 = vadd.f32 0.0, %v8805
        %v8807 = vpop.f32.mrb[0].mxu0
        %8808 = vmatprep.mubr.bf16.mxu0 0
        %8809 = vmatmul.mubr.bf16.gmra.mrb[0].mxu0 %v8681
        %v8810 = vpop.f32.mrb[0].mxu0
        %v8811 = vadd.f32 0.0, %v8810
        %v8812 = vpop.f32.mrb[0].mxu0
        %v8813 = vpop.f32.mrb[0].mxu0
        %v8814 = vadd.f32 0.0, %v8813
        %v8815 = vpop.f32.mrb[0].mxu0
        %8816 = vmatprep.mubr.bf16.mxu0 0
        %8817 = vmatmul.mubr.bf16.gmra.mrb[0].mxu0 %v8684
        %v8818 = vpop.f32.mrb[0].mxu0
        %v8819 = vadd.f32 0.0, %v8818
        %v8820 = vpop.f32.mrb[0].mxu0
        %v8821 = vpop.f32.mrb[0].mxu0
        %v8822 = vadd.f32 0.0, %v8821
        %v8823 = vpop.f32.mrb[0].mxu0
        %8824 = vmatprep.mubr.bf16.mxu0 0
        %8825 = vmatmul.mubr.bf16.gmra.mrb[0].mxu0 %v8687
        %v8826 = vpop.f32.mrb[0].mxu0
        %v8827 = vadd.f32 0.0, %v8826
        %v8828 = vpop.f32.mrb[0].mxu0
        %v8829 = vpop.f32.mrb[0].mxu0
        %v8830 = vadd.f32 0.0, %v8829
        %v8831 = vpop.f32.mrb[0].mxu0
        %8832 = vmatprep.mubr.bf16.mxu0 0
        %8833 = vmatmul.mubr.bf16.gmra.mrb[0].mxu0 %v8690
        %v8834 = vpop.f32.mrb[0].mxu0
        %v8835 = vadd.f32 0.0, %v8834
        %v8836 = vpop.f32.mrb[0].mxu0
        %v8837 = vpop.f32.mrb[0].mxu0
        %v8838 = vadd.f32 0.0, %v8837
        %v8839 = vpop.f32.mrb[0].mxu0
        %8840 = vmatprep.mubr.bf16.mxu0 0
        %8841 = vmatmul.mubr.bf16.gmra.mrb[0].mxu0 %v8693
        %v8842 = vpop.f32.mrb[0].mxu0
        %v8843 = vadd.f32 0.0, %v8842
        %v8844 = vpop.f32.mrb[0].mxu0
        %v8845 = vpop.f32.mrb[0].mxu0
        %v8846 = vadd.f32 0.0, %v8845
        %v8847 = vpop.f32.mrb[0].mxu0
        %8848 = vmatprep.mubr.bf16.mxu0 0
        %8849 = vmatmul.mubr.bf16.gmra.mrb[0].mxu0 %v8696
        %v8850 = vpop.f32.mrb[0].mxu0
        %v8851 = vadd.f32 0.0, %v8850
        %v8852 = vpop.f32.mrb[0].mxu0
        %v8853 = vpop.f32.mrb[0].mxu0
        %v8854 = vadd.f32 0.0, %v8853
        %v8855 = vpop.f32.mrb[0].mxu0
        %8856 = vmatprep.mubr.bf16.mxu0 0
        %8857 = vmatmul.mubr.bf16.gmra.mrb[0].mxu0 %v8699
        %v8858 = vpop.f32.mrb[0].mxu0
        %v8859 = vadd.f32 0.0, %v8858
        %v8860 = vpop.f32.mrb[0].mxu0
        %v8861 = vpop.f32.mrb[0].mxu0
        %v8862 = vadd.f32 0.0, %v8861
        %v8863 = vpop.f32.mrb[0].mxu0
        %8864 = vdwg.mxu0
        %8897 = vrot.lane.b32.xlu0 %v6348, 4
        %v8898 = vpop.permute.xlu0 %8897
        %8899 = vrot.lane.b32.xlu0 %v6351, 4
        %v8900 = vpop.permute.xlu0 %8899
        %8901 = vrot.lane.b32.xlu0 %v6356, 4
        %v8902 = vpop.permute.xlu0 %8901
        %8903 = vrot.lane.b32.xlu0 %v6359, 4
        %v8904 = vpop.permute.xlu0 %8903
        %8905 = vrot.lane.b32.xlu0 %v6364, 4
        %v8906 = vpop.permute.xlu0 %8905
        %8907 = vrot.lane.b32.xlu0 %v6367, 4
        %v8908 = vpop.permute.xlu0 %8907
        %8909 = vrot.lane.b32.xlu0 %v6372, 4
        %v8910 = vpop.permute.xlu0 %8909
        %8911 = vrot.lane.b32.xlu0 %v6375, 4
        %v8912 = vpop.permute.xlu0 %8911
        %8913 = vrot.lane.b32.xlu0 %v6380, 4
        %v8914 = vpop.permute.xlu0 %8913
        %8915 = vrot.lane.b32.xlu0 %v6383, 4
        %v8916 = vpop.permute.xlu0 %8915
        %8917 = vrot.lane.b32.xlu0 %v6388, 4
        %v8918 = vpop.permute.xlu0 %8917
        %8919 = vrot.lane.b32.xlu0 %v6391, 4
        %v8920 = vpop.permute.xlu0 %8919
        %8921 = vrot.lane.b32.xlu0 %v6396, 4
        %v8922 = vpop.permute.xlu0 %8921
        %8923 = vrot.lane.b32.xlu0 %v6399, 4
        %v8924 = vpop.permute.xlu0 %8923
        %8925 = vrot.lane.b32.xlu0 %v6404, 4
        %v8926 = vpop.permute.xlu0 %8925
        %8927 = vrot.lane.b32.xlu0 %v6407, 4
        %v8928 = vpop.permute.xlu0 %8927
        %8929 = vrot.lane.b32.xlu0 %v6412, 4
        %v8930 = vpop.permute.xlu0 %8929
        %8931 = vrot.lane.b32.xlu0 %v6415, 4
        %v8932 = vpop.permute.xlu0 %8931
        %8933 = vrot.lane.b32.xlu0 %v6420, 4
        %v8934 = vpop.permute.xlu0 %8933
        %8935 = vrot.lane.b32.xlu0 %v6423, 4
        %v8936 = vpop.permute.xlu0 %8935
        %8937 = vrot.lane.b32.xlu0 %v6428, 4
        %v8938 = vpop.permute.xlu0 %8937
        %8939 = vrot.lane.b32.xlu0 %v6431, 4
        %v8940 = vpop.permute.xlu0 %8939
        %8941 = vrot.lane.b32.xlu0 %v6436, 4
        %v8942 = vpop.permute.xlu0 %8941
        %8943 = vrot.lane.b32.xlu0 %v6439, 4
        %v8944 = vpop.permute.xlu0 %8943
        %8945 = vrot.lane.b32.xlu0 %v6444, 4
        %v8946 = vpop.permute.xlu0 %8945
        %8947 = vrot.lane.b32.xlu0 %v6447, 4
        %v8948 = vpop.permute.xlu0 %8947
        %8949 = vrot.lane.b32.xlu0 %v6452, 4
        %v8950 = vpop.permute.xlu0 %8949
        %8951 = vrot.lane.b32.xlu0 %v6455, 4
        %v8952 = vpop.permute.xlu0 %8951
        %8953 = vrot.lane.b32.xlu0 %v6460, 4
        %v8954 = vpop.permute.xlu0 %8953
        %8955 = vrot.lane.b32.xlu0 %v6463, 4
        %v8956 = vpop.permute.xlu0 %8955
        %8957 = vrot.lane.b32.xlu0 %v6468, 4
        %v8958 = vpop.permute.xlu0 %8957
        %8959 = vrot.lane.b32.xlu0 %v6471, 4
        %v8960 = vpop.permute.xlu0 %8959
        %9025 = vrot.lane.b32.xlu0 %v8400, 6
        %v9026 = vpop.permute.xlu0 %9025
        %9027 = vrot.lane.b32.xlu0 %v8403, 6
        %v9028 = vpop.permute.xlu0 %9027
        %9029 = vrot.lane.b32.xlu0 %v8408, 6
        %v9030 = vpop.permute.xlu0 %9029
        %9031 = vrot.lane.b32.xlu0 %v8411, 6
        %v9032 = vpop.permute.xlu0 %9031
        %9033 = vrot.lane.b32.xlu0 %v8416, 6
        %v9034 = vpop.permute.xlu0 %9033
        %9035 = vrot.lane.b32.xlu0 %v8419, 6
        %v9036 = vpop.permute.xlu0 %9035
        %9037 = vrot.lane.b32.xlu0 %v8424, 6
        %v9038 = vpop.permute.xlu0 %9037
        %9039 = vrot.lane.b32.xlu0 %v8427, 6
        %v9040 = vpop.permute.xlu0 %9039
        %9041 = vrot.lane.b32.xlu0 %v8432, 6
        %v9042 = vpop.permute.xlu0 %9041
        %9043 = vrot.lane.b32.xlu0 %v8435, 6
        %v9044 = vpop.permute.xlu0 %9043
        %9045 = vrot.lane.b32.xlu0 %v8440, 6
        %v9046 = vpop.permute.xlu0 %9045
        %9047 = vrot.lane.b32.xlu0 %v8443, 6
        %v9048 = vpop.permute.xlu0 %9047
        %9049 = vrot.lane.b32.xlu0 %v8448, 6
        %v9050 = vpop.permute.xlu0 %9049
        %9051 = vrot.lane.b32.xlu0 %v8451, 6
        %v9052 = vpop.permute.xlu0 %9051
        %9053 = vrot.lane.b32.xlu0 %v8456, 6
        %v9054 = vpop.permute.xlu0 %9053
        %9055 = vrot.lane.b32.xlu0 %v8459, 6
        %v9056 = vpop.permute.xlu0 %9055
        %9057 = vrot.lane.b32.xlu0 %v8464, 6
        %v9058 = vpop.permute.xlu0 %9057
        %9059 = vrot.lane.b32.xlu0 %v8467, 6
        %v9060 = vpop.permute.xlu0 %9059
        %9061 = vrot.lane.b32.xlu0 %v8472, 6
        %v9062 = vpop.permute.xlu0 %9061
        %9063 = vrot.lane.b32.xlu0 %v8475, 6
        %v9064 = vpop.permute.xlu0 %9063
        %9065 = vrot.lane.b32.xlu0 %v8480, 6
        %v9066 = vpop.permute.xlu0 %9065
        %9067 = vrot.lane.b32.xlu0 %v8483, 6
        %v9068 = vpop.permute.xlu0 %9067
        %9069 = vrot.lane.b32.xlu0 %v8488, 6
        %v9070 = vpop.permute.xlu0 %9069
        %9071 = vrot.lane.b32.xlu0 %v8491, 6
        %v9072 = vpop.permute.xlu0 %9071
        %9073 = vrot.lane.b32.xlu0 %v8496, 6
        %v9074 = vpop.permute.xlu0 %9073
        %9075 = vrot.lane.b32.xlu0 %v8499, 6
        %v9076 = vpop.permute.xlu0 %9075
        %9077 = vrot.lane.b32.xlu0 %v8504, 6
        %v9078 = vpop.permute.xlu0 %9077
        %9079 = vrot.lane.b32.xlu0 %v8507, 6
        %v9080 = vpop.permute.xlu0 %9079
        %9081 = vrot.lane.b32.xlu0 %v8512, 6
        %v9082 = vpop.permute.xlu0 %9081
        %9083 = vrot.lane.b32.xlu0 %v8515, 6
        %v9084 = vpop.permute.xlu0 %9083
        %9085 = vrot.lane.b32.xlu0 %v8520, 6
        %v9086 = vpop.permute.xlu0 %9085
        %9087 = vrot.lane.b32.xlu0 %v8523, 6
        %v9088 = vpop.permute.xlu0 %9087
        %v9121 = vsel %vm3906, %v4294, %v8898
        %v9122 = vsel %vm3906, %v4297, %v8900
        %v9123 = vsel %vm3906, %v4302, %v8902
        %v9124 = vsel %vm3906, %v4305, %v8904
        %v9125 = vsel %vm3906, %v4310, %v8906
        %v9126 = vsel %vm3906, %v4313, %v8908
        %v9127 = vsel %vm3906, %v4318, %v8910
        %v9128 = vsel %vm3906, %v4321, %v8912
        %v9129 = vsel %vm3906, %v4326, %v8914
        %v9130 = vsel %vm3906, %v4329, %v8916
        %v9131 = vsel %vm3906, %v4334, %v8918
        %v9132 = vsel %vm3906, %v4337, %v8920
        %v9133 = vsel %vm3906, %v4342, %v8922
        %v9134 = vsel %vm3906, %v4345, %v8924
        %v9135 = vsel %vm3906, %v4350, %v8926
        %v9136 = vsel %vm3906, %v4353, %v8928
        %v9137 = vsel %vm3906, %v4358, %v8930
        %v9138 = vsel %vm3906, %v4361, %v8932
        %v9139 = vsel %vm3906, %v4366, %v8934
        %v9140 = vsel %vm3906, %v4369, %v8936
        %v9141 = vsel %vm3906, %v4374, %v8938
        %v9142 = vsel %vm3906, %v4377, %v8940
        %v9143 = vsel %vm3906, %v4382, %v8942
        %v9144 = vsel %vm3906, %v4385, %v8944
        %v9145 = vsel %vm3906, %v4390, %v8946
        %v9146 = vsel %vm3906, %v4393, %v8948
        %v9147 = vsel %vm3906, %v4398, %v8950
        %v9148 = vsel %vm3906, %v4401, %v8952
        %v9149 = vsel %vm3906, %v4406, %v8954
        %v9150 = vsel %vm3906, %v4409, %v8956
        %v9151 = vsel %vm3906, %v4414, %v8958
        %v9152 = vsel %vm3906, %v4417, %v8960
        %v9153 = vsel %vm8089, %v9121, %v9026
        %v9154 = vsel %vm8089, %v9122, %v9028
        %v9155 = vsel %vm8089, %v9123, %v9030
        %v9156 = vsel %vm8089, %v9124, %v9032
        %v9157 = vsel %vm8089, %v9125, %v9034
        %v9158 = vsel %vm8089, %v9126, %v9036
        %v9159 = vsel %vm8089, %v9127, %v9038
        %v9160 = vsel %vm8089, %v9128, %v9040
        %v9161 = vsel %vm8089, %v9129, %v9042
        %v9162 = vsel %vm8089, %v9130, %v9044
        %v9163 = vsel %vm8089, %v9131, %v9046
        %v9164 = vsel %vm8089, %v9132, %v9048
        %v9165 = vsel %vm8089, %v9133, %v9050
        %v9166 = vsel %vm8089, %v9134, %v9052
        %v9167 = vsel %vm8089, %v9135, %v9054
        %v9168 = vsel %vm8089, %v9136, %v9056
        %v9169 = vsel %vm8089, %v9137, %v9058
        %v9170 = vsel %vm8089, %v9138, %v9060
        %v9171 = vsel %vm8089, %v9139, %v9062
        %v9172 = vsel %vm8089, %v9140, %v9064
        %v9173 = vsel %vm8089, %v9141, %v9066
        %v9174 = vsel %vm8089, %v9142, %v9068
        %v9175 = vsel %vm8089, %v9143, %v9070
        %v9176 = vsel %vm8089, %v9144, %v9072
        %v9177 = vsel %vm8089, %v9145, %v9074
        %v9178 = vsel %vm8089, %v9146, %v9076
        %v9179 = vsel %vm8089, %v9147, %v9078
        %v9180 = vsel %vm8089, %v9148, %v9080
        %v9181 = vsel %vm8089, %v9149, %v9082
        %v9182 = vsel %vm8089, %v9150, %v9084
        %v9183 = vsel %vm8089, %v9151, %v9086
        %v9184 = vsel %vm8089, %v9152, %v9088
        %v9185 = vadd.f32 %v9153, %v8739
        %v9186 = vadd.f32 %v9154, %v8742
        %v9187 = vadd.f32 %v9155, %v8747
        %v9188 = vadd.f32 %v9156, %v8750
        %v9189 = vadd.f32 %v9157, %v8755
        %v9190 = vadd.f32 %v9158, %v8758
        %v9191 = vadd.f32 %v9159, %v8763
        %v9192 = vadd.f32 %v9160, %v8766
        %v9193 = vadd.f32 %v9161, %v8771
        %v9194 = vadd.f32 %v9162, %v8774
        %v9195 = vadd.f32 %v9163, %v8779
        %v9196 = vadd.f32 %v9164, %v8782
        %v9197 = vadd.f32 %v9165, %v8787
        %v9198 = vadd.f32 %v9166, %v8790
        %v9199 = vadd.f32 %v9167, %v8795
        %v9200 = vadd.f32 %v9168, %v8798
        %v9201 = vadd.f32 %v9169, %v8803
        %v9202 = vadd.f32 %v9170, %v8806
        %v9203 = vadd.f32 %v9171, %v8811
        %v9204 = vadd.f32 %v9172, %v8814
        %v9205 = vadd.f32 %v9173, %v8819
        %v9206 = vadd.f32 %v9174, %v8822
        %v9207 = vadd.f32 %v9175, %v8827
        %v9208 = vadd.f32 %v9176, %v8830
        %v9209 = vadd.f32 %v9177, %v8835
        %v9210 = vadd.f32 %v9178, %v8838
        %v9211 = vadd.f32 %v9179, %v8843
        %v9212 = vadd.f32 %v9180, %v8846
        %v9213 = vadd.f32 %v9181, %v8851
        %v9214 = vadd.f32 %v9182, %v8854
        %v9215 = vadd.f32 %v9183, %v8859
        %v9216 = vadd.f32 %v9184, %v8862
        %9217 = vst.msk [vmem:[%s582] sm:$0xff] %vm3939, %v9185
        %9218 = vst.msk [vmem:[%s582 + $0x8] sm:$0xff] %vm3939, %v9186
        %9219 = vst.msk [vmem:[%s582 + $0x10] sm:$0xff] %vm3939, %v9187
        %9220 = vst.msk [vmem:[%s582 + $0x18] sm:$0xff] %vm3939, %v9188
        %9221 = vst.msk [vmem:[%s582 + $0x20] sm:$0xff] %vm3939, %v9189
        %9222 = vst.msk [vmem:[%s582 + $0x28] sm:$0xff] %vm3939, %v9190
        %9223 = vst.msk [vmem:[%s582 + $0x30] sm:$0xff] %vm3939, %v9191
        %9224 = vst.msk [vmem:[%s582 + $0x38] sm:$0xff] %vm3939, %v9192
        %9225 = vst.msk [vmem:[%s582 + $0x40] sm:$0xff] %vm3939, %v9193
        %9226 = vst.msk [vmem:[%s582 + $0x48] sm:$0xff] %vm3939, %v9194
        %9227 = vst.msk [vmem:[%s582 + $0x50] sm:$0xff] %vm3939, %v9195
        %9228 = vst.msk [vmem:[%s582 + $0x58] sm:$0xff] %vm3939, %v9196
        %9229 = vst.msk [vmem:[%s582 + $0x60] sm:$0xff] %vm3939, %v9197
        %9230 = vst.msk [vmem:[%s582 + $0x68] sm:$0xff] %vm3939, %v9198
        %9231 = vst.msk [vmem:[%s582 + $0x70] sm:$0xff] %vm3939, %v9199
        %9232 = vst.msk [vmem:[%s582 + $0x78] sm:$0xff] %vm3939, %v9200
        %9233 = vst.msk [vmem:[%s582 + $0x80] sm:$0xff] %vm3939, %v9201
        %9234 = vst.msk [vmem:[%s582 + $0x88] sm:$0xff] %vm3939, %v9202
        %9235 = vst.msk [vmem:[%s582 + $0x90] sm:$0xff] %vm3939, %v9203
        %9236 = vst.msk [vmem:[%s582 + $0x98] sm:$0xff] %vm3939, %v9204
        %9237 = vst.msk [vmem:[%s582 + $0xa0] sm:$0xff] %vm3939, %v9205
        %9238 = vst.msk [vmem:[%s582 + $0xa8] sm:$0xff] %vm3939, %v9206
        %9239 = vst.msk [vmem:[%s582 + $0xb0] sm:$0xff] %vm3939, %v9207
        %9240 = vst.msk [vmem:[%s582 + $0xb8] sm:$0xff] %vm3939, %v9208
        %9241 = vst.msk [vmem:[%s582 + $0xc0] sm:$0xff] %vm3939, %v9209
        %9242 = vst.msk [vmem:[%s582 + $0xc8] sm:$0xff] %vm3939, %v9210
        %9243 = vst.msk [vmem:[%s582 + $0xd0] sm:$0xff] %vm3939, %v9211
        %9244 = vst.msk [vmem:[%s582 + $0xd8] sm:$0xff] %vm3939, %v9212
        %9245 = vst.msk [vmem:[%s582 + $0xe0] sm:$0xff] %vm3939, %v9213
        %9246 = vst.msk [vmem:[%s582 + $0xe8] sm:$0xff] %vm3939, %v9214
        %9247 = vst.msk [vmem:[%s582 + $0xf0] sm:$0xff] %vm3939, %v9215
        %9248 = vst.msk [vmem:[%s582 + $0xf8] sm:$0xff] %vm3939, %v9216
        %p9249 = scmp.lt.s32.totalorder %s30, 1
        %s9250 = scalar_select %p9249, %s30, 1
        %s9251 = smul.addr %s9250, 32
        %s9252 = smul.addr %s9251, 8
        %s9253 = scalar_lea.vmem %s14, %s9252
        // Predicated region
        $region113: #{conv_block_forward.1} parent=75 // pred_check
          %p9254 = pneg %p347
        $region114: #{conv_block_forward.1} parent=75 // pred_check_branch
          %9256 = sbr.rel (%p9254) target = $region116
        $region115: #{conv_block_forward.1} parent=75 // pred_region
          _
        $region116: #{conv_block_forward.1} parent=75 // pred_fallthru
          _
      $region76: #{conv_block_forward.1} parent=5 // pred_fallthru
        _
      %p9257 = scmp.le.s32.totalorder 2, %s25
      // Predicated region
      $region117: #{conv_block_forward.1} parent=5 // pred_check
        %p9258 = pneg %p9257
      $region118: #{conv_block_forward.1} parent=5 // pred_check_branch
        %9260 = sbr.rel (%p9258) target = $region120
      $region119: #{conv_block_forward.1} parent=5 // pred_region
        %s9261 = ssub.s32 %s25, 2
        // Predicated region
        $region121: #{conv_block_forward.1} parent=119 // pred_check
          %p9262 = pneg %p353
        $region122: #{conv_block_forward.1} parent=119 // pred_check_branch
          %9264 = sbr.rel (%p9262) target = $region124
        $region123: #{conv_block_forward.1} parent=119 // pred_region
          %p9265 = scmp.lt.s32.totalorder %s31, 1
          %s9266 = scalar_select %p9265, %s31, 1
          %s9267 = smul.addr %s9266, 32
          %s9268 = smul.addr %s9267, 8
          %s9269 = scalar_lea.vmem %s14, %s9268
        $region124: #{conv_block_forward.1} parent=119 // pred_fallthru
          _
      $region120: #{conv_block_forward.1} parent=5 // pred_fallthru
        _
    $region6: #{conv_block_forward.1} parent=1 // loop_footer
      %s29 = sadd.s32 1, %s25
    $region7: #{conv_block_forward.1} parent=1 // loop_footer_branch
      %24 = sbr.rel target = $region3
    $region8: #{conv_block_forward.1} parent=1 // loop_exit
      _
    %9270 = vsyncpa [#allocation3], 1
    %s9271 = scalar_lea.sflag [#allocation3], 1
    %9272 = vsyncpa %s9271, 1
    %9273 = vsyncpa [#allocation5], 1
    %9274 = vsyncpa [#allocation8], 1
    %9275 = vsyncpa [#allocation11], 1
    %9276 = vsyncpa [#allocation14], 1

</llo_original>
